<compile_context>
chip_gen: v7x
topology: tpu7x:2x2x1
jax: 0.10.0
libtpu: 0.0.40
codegen_flags: <defaults>
</compile_context>

<pallas_src>
import functools

import jax
import jax.numpy as jnp
from jax import lax
from jax.experimental import pallas as pl
from jax.experimental.pallas import tpu as pltpu

# ----------------------------- tiny config ---------------------------------
NUM_MEL = 16      # num_mel_bins
T_IN    = 64      # input mel frames
T_ENC   = T_IN // 2          # encoder length after stride-2 conv2
D_MODEL = 64
N_HEADS = 2
HEAD_DIM = D_MODEL // N_HEADS
FFN     = 128
VOCAB   = 128
ENC_LAYERS = 1
DEC_LAYERS = 1
MAX_TGT = 16
TGT_LEN = 8
PAD_ID = 0
DECODER_START = 1
IGNORE_ID = -100
LN_EPS = 1e-5
NEG_INF = -1e9

# ----------------------- in-kernel building blocks --------------------------
# (plain value-level helpers traced inside the mega-kernels; no extra launches)


def _layer_norm(x, g, b):
    mu = jnp.mean(x, axis=-1, keepdims=True)
    xc = x - mu
    var = jnp.mean(xc * xc, axis=-1, keepdims=True)
    return xc * lax.rsqrt(var + LN_EPS) * g + b


def _mm(a, b):
    """bf16-operand MXU matmul with f32 accumulation."""
    return jnp.dot(a.astype(jnp.bfloat16), b.astype(jnp.bfloat16),
                   preferred_element_type=jnp.float32)


def _conv3_gelu(x, w_ref, b, stride, t_out):
    """Conv1d(kernel=3, padding=1, stride) + bias + GELU, fully in VMEM.

    The `t*stride - 1 + k` tap gather (im2col) is a 0/1 selection-matrix
    matmul built from iotas, so no strided slices / reshapes are needed and
    the zero padding at the boundaries falls out of the empty selection rows.
      x: (T, Cin) f32; w_ref: (3, Cin, Cout) bf16 ref; b: (1, Cout) f32.
    """
    T = x.shape[0]
    row = lax.broadcasted_iota(jnp.int32, (t_out, T), 0)
    col = lax.broadcasted_iota(jnp.int32, (t_out, T), 1)
    xb = x.astype(jnp.bfloat16)
    acc = None
    for k in range(3):
        sel = jnp.where(col == stride * row + (k - 1), 1.0, 0.0)
        xk = jnp.dot(sel.astype(jnp.bfloat16), xb,
                     preferred_element_type=jnp.float32)         # (t_out, Cin)
        term = _mm(xk, w_ref[k])                                  # (t_out, Cout)
        acc = term if acc is None else acc + term
    # TODO(synk): HF Whisper uses exact (erf) GELU; tanh-approx differs ~1e-3.
    return jax.nn.gelu(acc + b, approximate=True)


def _mha(x_q, x_kv, wq_ref, bq_ref, wk_ref, wv_ref, bv_ref, wo_ref, bo, mask):
    """Multi-head attention with per-head weights stacked on a leading axis
    (no lane slicing of activations); head merge folded into out_proj rows.
    Softmax scale is pre-folded into wq/bq at init.
      x_q: (Tq, D); x_kv: (Tk, D); returns (Tq, D) f32 (out_proj + bias)."""
    acc = None
    for h in range(N_HEADS):
        qh = _mm(x_q, wq_ref[h]) + bq_ref[h]          # (Tq, Dh)
        kh = _mm(x_kv, wk_ref[h])                     # (Tk, Dh)  (k_proj: no bias)
        vh = _mm(x_kv, wv_ref[h]) + bv_ref[h]         # (Tk, Dh)
        s = jnp.einsum('qd,kd->qk', qh.astype(jnp.bfloat16), kh.astype(jnp.bfloat16),
                       preferred_element_type=jnp.float32)
        if mask is not None:
            s = s + mask
        s = s - jnp.max(s, axis=-1, keepdims=True)
        p = jnp.exp(s)
        p = p * pl.reciprocal(jnp.sum(p, axis=-1, keepdims=True), approx=True)
        oh = _mm(p, vh)                               # (Tq, Dh)
        contrib = _mm(oh, wo_ref[h])                  # (Tq, D)
        acc = contrib if acc is None else acc + contrib
    return acc + bo


# ----------------------------- mega kernels ---------------------------------


def _encoder_kernel(*refs, n_layers):
    """One batch element per grid step: conv stem + all encoder layers +
    final encoder LayerNorm, entirely in VMEM."""
    it = iter(refs[:-1])
    o_ref = refs[-1]
    x_ref, c1w, c1b, c2w, c2b, pos = (next(it) for _ in range(6))

    x = x_ref[0].astype(jnp.float32)                              # (T_IN, NUM_MEL)
    h = _conv3_gelu(x, c1w, c1b[...], stride=1, t_out=T_IN)        # (T_IN, D)
    h = _conv3_gelu(h, c2w, c2b[...], stride=2, t_out=T_ENC)       # (T_ENC, D)
    h = h + pos[...]

    for _ in range(n_layers):
        ln1_g, ln1_b = next(it), next(it)
        wq, bq, wk, wv, bv, wo, bo = (next(it) for _ in range(7))
        ln2_g, ln2_b = next(it), next(it)
        fc1w, fc1b, fc2w, fc2b = (next(it) for _ in range(4))

        xa = _layer_norm(h, ln1_g[...], ln1_b[...])
        h = h + _mha(xa, xa, wq, bq, wk, wv, bv, wo, bo[...], None)
        xm = _layer_norm(h, ln2_g[...], ln2_b[...])
        f = jax.nn.gelu(_mm(xm, fc1w[...]) + fc1b[...], approximate=True)
        h = h + _mm(f, fc2w[...]) + fc2b[...]

    lnf_g, lnf_b = next(it), next(it)
    h = _layer_norm(h, lnf_g[...], lnf_b[...])
    o_ref[0] = h.astype(o_ref.dtype)


def _decoder_kernel(*refs, n_layers):
    """One batch element per grid step: all decoder layers (self + cross
    attention + FFN), final LayerNorm and the tied lm_head matmul."""
    it = iter(refs[:-1])
    o_ref = refs[-1]
    dec_ref, enc_ref = next(it), next(it)

    x = dec_ref[0].astype(jnp.float32)                            # (Td, D)
    enc = enc_ref[0]                                              # (T_ENC, D) bf16

    td = x.shape[0]
    r = lax.broadcasted_iota(jnp.int32, (td, td), 0)
    c = lax.broadcasted_iota(jnp.int32, (td, td), 1)
    causal = jnp.where(r >= c, 0.0, NEG_INF).astype(jnp.float32)

    for _ in range(n_layers):
        ln1_g, ln1_b = next(it), next(it)
        s_wq, s_bq, s_wk, s_wv, s_bv, s_wo, s_bo = (next(it) for _ in range(7))
        ln2_g, ln2_b = next(it), next(it)
        c_wq, c_bq, c_wk, c_wv, c_bv, c_wo, c_bo = (next(it) for _ in range(7))
        ln3_g, ln3_b = next(it), next(it)
        fc1w, fc1b, fc2w, fc2b = (next(it) for _ in range(4))

        xa = _layer_norm(x, ln1_g[...], ln1_b[...])
        x = x + _mha(xa, xa, s_wq, s_bq, s_wk, s_wv, s_bv, s_wo, s_bo[...], causal)
        xq = _layer_norm(x, ln2_g[...], ln2_b[...])
        x = x + _mha(xq, enc, c_wq, c_bq, c_wk, c_wv, c_bv, c_wo, c_bo[...], None)
        xm = _layer_norm(x, ln3_g[...], ln3_b[...])
        f = jax.nn.gelu(_mm(xm, fc1w[...]) + fc1b[...], approximate=True)
        x = x + _mm(f, fc2w[...]) + fc2b[...]

    lnf_g, lnf_b, embed = next(it), next(it), next(it)
    x = _layer_norm(x, lnf_g[...], lnf_b[...])
    # tied lm_head: logits[t, v] = sum_d x[t, d] * embed[v, d]
    logits = jnp.einsum('td,vd->tv', x.astype(jnp.bfloat16), embed[...],
                        preferred_element_type=jnp.float32)
    o_ref[0] = logits.astype(o_ref.dtype)


# ----------------------------- pallas_call wrappers -------------------------


def _full_spec(a):
    zeros = (0,) * a.ndim
    return pl.BlockSpec(a.shape, lambda b: zeros)


def _batch_spec(a):
    rest = (0,) * (a.ndim - 1)
    return pl.BlockSpec((1,) + a.shape[1:], lambda b: (b,) + rest)


def encoder_forward(params, feats_btc):
    """feats_btc: (B, T_IN, NUM_MEL) f32 -> (B, T_ENC, D_MODEL) bf16 (post final LN)."""
    B = feats_btc.shape[0]
    args = [feats_btc,
            params['conv1_w'], params['conv1_b'],
            params['conv2_w'], params['conv2_b'],
            params['enc_pos']]
    for lp in params['enc_layers']:
        sa = lp['self_attn']
        args += [lp['ln1_g'], lp['ln1_b'],
                 sa['wq'], sa['bq'], sa['wk'], sa['wv'], sa['bv'], sa['wo'], sa['bo'],
                 lp['ln2_g'], lp['ln2_b'],
                 lp['fc1_w'], lp['fc1_b'], lp['fc2_w'], lp['fc2_b']]
    args += [params['enc_ln_g'], params['enc_ln_b']]

    in_specs = [_batch_spec(feats_btc)] + [_full_spec(a) for a in args[1:]]
    kernel = functools.partial(_encoder_kernel, n_layers=len(params['enc_layers']))
    return pl.pallas_call(
        kernel,
        out_shape=jax.ShapeDtypeStruct((B, T_ENC, D_MODEL), jnp.bfloat16),
        grid_spec=pltpu.PrefetchScalarGridSpec(
            num_scalar_prefetch=0,
            grid=(B,),
            in_specs=in_specs,
            out_specs=pl.BlockSpec((1, T_ENC, D_MODEL), lambda b: (b, 0, 0))),
        compiler_params=pltpu.CompilerParams(dimension_semantics=("parallel",)),
    )(*args)


def decoder_forward(params, dec_in, enc_hidden):
    """dec_in: (B, Td, D) f32 (token + position embeds);
    enc_hidden: (B, T_ENC, D) bf16 -> logits (B, Td, VOCAB) f32."""
    B, Td, _ = dec_in.shape
    args = [dec_in, enc_hidden]
    for lp in params['dec_layers']:
        sa, ca = lp['self_attn'], lp['cross_attn']
        args += [lp['ln1_g'], lp['ln1_b'],
                 sa['wq'], sa['bq'], sa['wk'], sa['wv'], sa['bv'], sa['wo'], sa['bo'],
                 lp['ln2_g'], lp['ln2_b'],
                 ca['wq'], ca['bq'], ca['wk'], ca['wv'], ca['bv'], ca['wo'], ca['bo'],
                 lp['ln3_g'], lp['ln3_b'],
                 lp['fc1_w'], lp['fc1_b'], lp['fc2_w'], lp['fc2_b']]
    args += [params['dec_ln_g'], params['dec_ln_b'], params['embed_tokens']]

    in_specs = ([_batch_spec(dec_in), _batch_spec(enc_hidden)]
                + [_full_spec(a) for a in args[2:]])
    kernel = functools.partial(_decoder_kernel, n_layers=len(params['dec_layers']))
    return pl.pallas_call(
        kernel,
        out_shape=jax.ShapeDtypeStruct((B, Td, VOCAB), jnp.float32),
        grid_spec=pltpu.PrefetchScalarGridSpec(
            num_scalar_prefetch=0,
            grid=(B,),
            in_specs=in_specs,
            out_specs=pl.BlockSpec((1, Td, VOCAB), lambda b: (b, 0, 0))),
        compiler_params=pltpu.CompilerParams(dimension_semantics=("parallel",)),
    )(*args)


# ----------------------------- model glue (plain JAX) -----------------------


def shift_tokens_right(labels):
    shifted = jnp.concatenate(
        [jnp.full((labels.shape[0], 1), DECODER_START, labels.dtype),
         labels[:, :-1]], axis=1)
    return jnp.where(shifted == IGNORE_ID, PAD_ID, shifted)


def cross_entropy(logits, labels):
    logits = logits.astype(jnp.float32)
    valid = labels != IGNORE_ID
    safe_labels = jnp.where(valid, labels, 0)
    lse = jax.nn.logsumexp(logits, axis=-1)
    gold = jnp.take_along_axis(logits, safe_labels[..., None], axis=-1)[..., 0]
    nll = jnp.where(valid, lse - gold, 0.0)
    return nll.sum() / jnp.maximum(valid.sum(), 1).astype(jnp.float32)


def whisper_forward(params, input_features, labels):
    """Mirrors WhisperForConditionalGeneration(input_features, labels) ->
    (loss, logits)."""
    feats = jnp.transpose(input_features, (0, 2, 1))       # (B, T_IN, NUM_MEL)
    enc_hidden = encoder_forward(params, feats)             # (B, T_ENC, D) bf16

    dec_ids = shift_tokens_right(labels)
    Td = dec_ids.shape[1]
    dec_in = (params['embed_tokens'][dec_ids].astype(jnp.float32)
              + params['dec_pos'][None, :Td, :])             # (B, Td, D) f32
    logits = decoder_forward(params, dec_in, enc_hidden)
    loss = cross_entropy(logits, labels)
    return loss, logits

# TODO(synk): gradient_checkpointing_enable is a training-graph utility with
# no forward-pass Pallas equivalent; it is intentionally not modeled.

# ----------------------------- params ---------------------------------------


def init_params(key):
    keys = iter(jax.random.split(key, 512))

    def nrm(shape, scale=0.02):
        return scale * jax.random.normal(next(keys), shape, jnp.float32)

    def bf(x):
        return x.astype(jnp.bfloat16)

    def zeros(shape):
        return jnp.zeros(shape, jnp.float32)

    def ones(shape):
        return jnp.ones(shape, jnp.float32)

    q_scale = HEAD_DIM ** -0.5   # softmax scale folded into q weight AND q bias

    def attn_p():
        return {
            'wq': bf(nrm((N_HEADS, D_MODEL, HEAD_DIM)) * q_scale),
            'bq': zeros((N_HEADS, 1, HEAD_DIM)) * q_scale,
            'wk': bf(nrm((N_HEADS, D_MODEL, HEAD_DIM))),   # Whisper k_proj: no bias
            'wv': bf(nrm((N_HEADS, D_MODEL, HEAD_DIM))),
            'bv': zeros((N_HEADS, 1, HEAD_DIM)),
            'wo': bf(nrm((N_HEADS, HEAD_DIM, D_MODEL))),
            'bo': zeros((1, D_MODEL)),
        }

    def enc_layer():
        return {'self_attn': attn_p(),
                'ln1_g': ones((1, D_MODEL)), 'ln1_b': zeros((1, D_MODEL)),
                'ln2_g': ones((1, D_MODEL)), 'ln2_b': zeros((1, D_MODEL)),
                'fc1_w': bf(nrm((D_MODEL, FFN))), 'fc1_b': zeros((1, FFN)),
                'fc2_w': bf(nrm((FFN, D_MODEL))), 'fc2_b': zeros((1, D_MODEL))}

    def dec_layer():
        return {'self_attn': attn_p(), 'cross_attn': attn_p(),
                'ln1_g': ones((1, D_MODEL)), 'ln1_b': zeros((1, D_MODEL)),
                'ln2_g': ones((1, D_MODEL)), 'ln2_b': zeros((1, D_MODEL)),
                'ln3_g': ones((1, D_MODEL)), 'ln3_b': zeros((1, D_MODEL)),
                'fc1_w': bf(nrm((D_MODEL, FFN))), 'fc1_b': zeros((1, FFN)),
                'fc2_w': bf(nrm((FFN, D_MODEL))), 'fc2_b': zeros((1, D_MODEL))}

    return {
        # conv weights stored as bf16 tap-major (K, Cin, Cout)
        'conv1_w': bf(nrm((3, NUM_MEL, D_MODEL))), 'conv1_b': zeros((1, D_MODEL)),
        'conv2_w': bf(nrm((3, D_MODEL, D_MODEL))), 'conv2_b': zeros((1, D_MODEL)),
        'enc_pos': nrm((T_ENC, D_MODEL)),
        'enc_layers': [enc_layer() for _ in range(ENC_LAYERS)],
        'enc_ln_g': ones((1, D_MODEL)), 'enc_ln_b': zeros((1, D_MODEL)),
        'embed_tokens': bf(nrm((VOCAB, D_MODEL))),   # tied lm_head uses the same table
        'dec_pos': nrm((MAX_TGT, D_MODEL)),
        'dec_layers': [dec_layer() for _ in range(DEC_LAYERS)],
        'dec_ln_g': ones((1, D_MODEL)), 'dec_ln_b': zeros((1, D_MODEL)),
    }


# ----------------------------- main -----------------------------------------

if __name__ == "__main__":
    key = jax.random.PRNGKey(0)
    pkey, fkey, lkey = jax.random.split(key, 3)
    params = init_params(pkey)

    B = 2
    input_features = jax.random.normal(fkey, (B, NUM_MEL, T_IN), jnp.float32)
    labels = jax.random.randint(lkey, (B, TGT_LEN), 2, VOCAB, dtype=jnp.int32)
    labels = labels.at[:, -2:].set(IGNORE_ID)   # emulate -100 padded labels

    loss, logits = jax.jit(whisper_forward)(params, input_features, labels)
    jax.block_until_ready((loss, logits))
    assert logits.shape == (B, TGT_LEN, VOCAB)
    assert bool(jnp.isfinite(loss))
    print("KERNEL_OK")
</pallas_src>

<mosaic_0001>
module attributes {stable_mosaic.version = 11 : i64} {
  func.func @_decoder_kernel(%arg0: i32, %arg1: memref<1x8x64xf32, #tpu.memory_space<vmem>>, %arg2: memref<1x32x64xbf16, #tpu.memory_space<vmem>>, %arg3: memref<1x64xf32, #tpu.memory_space<vmem>>, %arg4: memref<1x64xf32, #tpu.memory_space<vmem>>, %arg5: memref<2x64x32xbf16, #tpu.memory_space<vmem>>, %arg6: memref<2x1x32xf32, #tpu.memory_space<vmem>>, %arg7: memref<2x64x32xbf16, #tpu.memory_space<vmem>>, %arg8: memref<2x64x32xbf16, #tpu.memory_space<vmem>>, %arg9: memref<2x1x32xf32, #tpu.memory_space<vmem>>, %arg10: memref<2x32x64xbf16, #tpu.memory_space<vmem>>, %arg11: memref<1x64xf32, #tpu.memory_space<vmem>>, %arg12: memref<1x64xf32, #tpu.memory_space<vmem>>, %arg13: memref<1x64xf32, #tpu.memory_space<vmem>>, %arg14: memref<2x64x32xbf16, #tpu.memory_space<vmem>>, %arg15: memref<2x1x32xf32, #tpu.memory_space<vmem>>, %arg16: memref<2x64x32xbf16, #tpu.memory_space<vmem>>, %arg17: memref<2x64x32xbf16, #tpu.memory_space<vmem>>, %arg18: memref<2x1x32xf32, #tpu.memory_space<vmem>>, %arg19: memref<2x32x64xbf16, #tpu.memory_space<vmem>>, %arg20: memref<1x64xf32, #tpu.memory_space<vmem>>, %arg21: memref<1x64xf32, #tpu.memory_space<vmem>>, %arg22: memref<1x64xf32, #tpu.memory_space<vmem>>, %arg23: memref<64x128xbf16, #tpu.memory_space<vmem>>, %arg24: memref<1x128xf32, #tpu.memory_space<vmem>>, %arg25: memref<128x64xbf16, #tpu.memory_space<vmem>>, %arg26: memref<1x64xf32, #tpu.memory_space<vmem>>, %arg27: memref<1x64xf32, #tpu.memory_space<vmem>>, %arg28: memref<1x64xf32, #tpu.memory_space<vmem>>, %arg29: memref<128x64xbf16, #tpu.memory_space<vmem>>, %arg30: memref<1x8x128xf32, #tpu.memory_space<vmem>>) attributes {dimension_semantics = [#tpu.dimension_semantics<parallel>], iteration_bounds = array<i64: 2>, scalar_prefetch = 0 : i64, scratch_operands = 0 : i64, tpu.core_type = #tpu.core_type<tc>, window_params = [{transform_indices = @transform_0, window_bounds = array<i64: 1, 8, 64>}, {transform_indices = @transform_1, window_bounds = array<i64: 1, 32, 64>}, {pipeline_mode = #tpu.pipeline_mode<synchronous>, transform_indices = @transform_2, window_bounds = array<i64: 1, 64>}, {pipeline_mode = #tpu.pipeline_mode<synchronous>, transform_indices = @transform_3, window_bounds = array<i64: 1, 64>}, {pipeline_mode = #tpu.pipeline_mode<synchronous>, transform_indices = @transform_4, window_bounds = array<i64: 2, 64, 32>}, {pipeline_mode = #tpu.pipeline_mode<synchronous>, transform_indices = @transform_5, window_bounds = array<i64: 2, 1, 32>}, {pipeline_mode = #tpu.pipeline_mode<synchronous>, transform_indices = @transform_6, window_bounds = array<i64: 2, 64, 32>}, {pipeline_mode = #tpu.pipeline_mode<synchronous>, transform_indices = @transform_7, window_bounds = array<i64: 2, 64, 32>}, {pipeline_mode = #tpu.pipeline_mode<synchronous>, transform_indices = @transform_8, window_bounds = array<i64: 2, 1, 32>}, {pipeline_mode = #tpu.pipeline_mode<synchronous>, transform_indices = @transform_9, window_bounds = array<i64: 2, 32, 64>}, {pipeline_mode = #tpu.pipeline_mode<synchronous>, transform_indices = @transform_10, window_bounds = array<i64: 1, 64>}, {pipeline_mode = #tpu.pipeline_mode<synchronous>, transform_indices = @transform_11, window_bounds = array<i64: 1, 64>}, {pipeline_mode = #tpu.pipeline_mode<synchronous>, transform_indices = @transform_12, window_bounds = array<i64: 1, 64>}, {pipeline_mode = #tpu.pipeline_mode<synchronous>, transform_indices = @transform_13, window_bounds = array<i64: 2, 64, 32>}, {pipeline_mode = #tpu.pipeline_mode<synchronous>, transform_indices = @transform_14, window_bounds = array<i64: 2, 1, 32>}, {pipeline_mode = #tpu.pipeline_mode<synchronous>, transform_indices = @transform_15, window_bounds = array<i64: 2, 64, 32>}, {pipeline_mode = #tpu.pipeline_mode<synchronous>, transform_indices = @transform_16, window_bounds = array<i64: 2, 64, 32>}, {pipeline_mode = #tpu.pipeline_mode<synchronous>, transform_indices = @transform_17, window_bounds = array<i64: 2, 1, 32>}, {pipeline_mode = #tpu.pipeline_mode<synchronous>, transform_indices = @transform_18, window_bounds = array<i64: 2, 32, 64>}, {pipeline_mode = #tpu.pipeline_mode<synchronous>, transform_indices = @transform_19, window_bounds = array<i64: 1, 64>}, {pipeline_mode = #tpu.pipeline_mode<synchronous>, transform_indices = @transform_20, window_bounds = array<i64: 1, 64>}, {pipeline_mode = #tpu.pipeline_mode<synchronous>, transform_indices = @transform_21, window_bounds = array<i64: 1, 64>}, {pipeline_mode = #tpu.pipeline_mode<synchronous>, transform_indices = @transform_22, window_bounds = array<i64: 64, 128>}, {pipeline_mode = #tpu.pipeline_mode<synchronous>, transform_indices = @transform_23, window_bounds = array<i64: 1, 128>}, {pipeline_mode = #tpu.pipeline_mode<synchronous>, transform_indices = @transform_24, window_bounds = array<i64: 128, 64>}, {pipeline_mode = #tpu.pipeline_mode<synchronous>, transform_indices = @transform_25, window_bounds = array<i64: 1, 64>}, {pipeline_mode = #tpu.pipeline_mode<synchronous>, transform_indices = @transform_26, window_bounds = array<i64: 1, 64>}, {pipeline_mode = #tpu.pipeline_mode<synchronous>, transform_indices = @transform_27, window_bounds = array<i64: 1, 64>}, {pipeline_mode = #tpu.pipeline_mode<synchronous>, transform_indices = @transform_28, window_bounds = array<i64: 128, 64>}, {transform_indices = @transform_29, window_bounds = array<i64: 1, 8, 128>}]} {
    %c0 = arith.constant 0 : index
    %c0_0 = arith.constant 0 : index
    %c0_1 = arith.constant 0 : index
    %0 = vector.load %arg1[%c0, %c0_0, %c0_1] : memref<1x8x64xf32, #tpu.memory_space<vmem>>, vector<1x8x64xf32>
    %1 = vector.shape_cast %0 : vector<1x8x64xf32> to vector<8x64xf32>
    %c0_2 = arith.constant 0 : index
    %c0_3 = arith.constant 0 : index
    %c0_4 = arith.constant 0 : index
    %2 = vector.load %arg2[%c0_2, %c0_3, %c0_4] : memref<1x32x64xbf16, #tpu.memory_space<vmem>>, vector<1x32x64xbf16>
    %3 = vector.shape_cast %2 : vector<1x32x64xbf16> to vector<32x64xbf16>
    %4 = tpu.iota {dimensions = array<i32: 0>} : vector<8x8xi32>
    %5 = tpu.iota {dimensions = array<i32: 1>} : vector<8x8xi32>
    %6 = arith.cmpi sge, %4, %5 : vector<8x8xi32>
    %cst = arith.constant 0.000000e+00 : f32
    %cst_5 = arith.constant -1.000000e+09 : f32
    %7 = vector.broadcast %cst : f32 to vector<8x8xf32>
    %8 = vector.broadcast %cst_5 : f32 to vector<8x8xf32>
    %9 = arith.select %6, %7, %8 : vector<8x8xi1>, vector<8x8xf32>
    %c0_6 = arith.constant 0 : index
    %c0_7 = arith.constant 0 : index
    %10 = vector.load %arg3[%c0_6, %c0_7] : memref<1x64xf32, #tpu.memory_space<vmem>>, vector<1x64xf32>
    %c0_8 = arith.constant 0 : index
    %c0_9 = arith.constant 0 : index
    %11 = vector.load %arg4[%c0_8, %c0_9] : memref<1x64xf32, #tpu.memory_space<vmem>>, vector<1x64xf32>
    %cst_10 = arith.constant dense<0.000000e+00> : vector<8xf32>
    %12 = vector.multi_reduction <add>, %1, %cst_10 [1] : vector<8x64xf32> to vector<8xf32>
    %13 = vector.shape_cast %12 : vector<8xf32> to vector<8x1xf32>
    %cst_11 = arith.constant 6.400000e+01 : f32
    %14 = vector.broadcast %cst_11 : f32 to vector<8x1xf32>
    %15 = arith.divf %13, %14 : vector<8x1xf32>
    %16 = vector.broadcast %15 : vector<8x1xf32> to vector<8x64xf32>
    %17 = arith.subf %1, %16 : vector<8x64xf32>
    %18 = arith.mulf %17, %17 : vector<8x64xf32>
    %cst_12 = arith.constant dense<0.000000e+00> : vector<8xf32>
    %19 = vector.multi_reduction <add>, %18, %cst_12 [1] : vector<8x64xf32> to vector<8xf32>
    %20 = vector.shape_cast %19 : vector<8xf32> to vector<8x1xf32>
    %cst_13 = arith.constant 6.400000e+01 : f32
    %21 = vector.broadcast %cst_13 : f32 to vector<8x1xf32>
    %22 = arith.divf %20, %21 : vector<8x1xf32>
    %cst_14 = arith.constant 9.99999974E-6 : f32
    %23 = vector.broadcast %cst_14 : f32 to vector<8x1xf32>
    %24 = arith.addf %22, %23 : vector<8x1xf32>
    %25 = math.rsqrt %24 : vector<8x1xf32>
    %26 = vector.broadcast %25 : vector<8x1xf32> to vector<8x64xf32>
    %27 = arith.mulf %17, %26 : vector<8x64xf32>
    %28 = vector.broadcast %10 : vector<1x64xf32> to vector<8x64xf32>
    %29 = arith.mulf %27, %28 : vector<8x64xf32>
    %30 = vector.broadcast %11 : vector<1x64xf32> to vector<8x64xf32>
    %31 = arith.addf %29, %30 : vector<8x64xf32>
    %c0_15 = arith.constant 0 : index
    %c0_16 = arith.constant 0 : index
    %32 = vector.load %arg11[%c0_15, %c0_16] : memref<1x64xf32, #tpu.memory_space<vmem>>, vector<1x64xf32>
    %c0_17 = arith.constant 0 : index
    %c0_18 = arith.constant 0 : index
    %c0_19 = arith.constant 0 : index
    %33 = vector.load %arg5[%c0_17, %c0_18, %c0_19] : memref<2x64x32xbf16, #tpu.memory_space<vmem>>, vector<1x64x32xbf16>
    %34 = vector.shape_cast %33 : vector<1x64x32xbf16> to vector<64x32xbf16>
    %35 = arith.truncf %31 : vector<8x64xf32> to vector<8x64xbf16>
    %cst_20 = arith.constant dense<0.000000e+00> : vector<8x32xf32>
    %36 = tpu.matmul %35, %34, %cst_20 {dimension_numbers = #tpu.dot_dimension_numbers<[1], [0], [0], [1], [0, 0, 1, 1], [], []>} : vector<8x64xbf16>, vector<64x32xbf16>, vector<8x32xf32> -> vector<8x32xf32>
    %c0_21 = arith.constant 0 : index
    %c0_22 = arith.constant 0 : index
    %c0_23 = arith.constant 0 : index
    %37 = vector.load %arg6[%c0_21, %c0_22, %c0_23] : memref<2x1x32xf32, #tpu.memory_space<vmem>>, vector<1x1x32xf32>
    %38 = vector.shape_cast %37 : vector<1x1x32xf32> to vector<1x32xf32>
    %39 = vector.broadcast %38 : vector<1x32xf32> to vector<8x32xf32>
    %40 = arith.addf %36, %39 : vector<8x32xf32>
    %c0_24 = arith.constant 0 : index
    %c0_25 = arith.constant 0 : index
    %c0_26 = arith.constant 0 : index
    %41 = vector.load %arg7[%c0_24, %c0_25, %c0_26] : memref<2x64x32xbf16, #tpu.memory_space<vmem>>, vector<1x64x32xbf16>
    %42 = vector.shape_cast %41 : vector<1x64x32xbf16> to vector<64x32xbf16>
    %43 = arith.truncf %31 : vector<8x64xf32> to vector<8x64xbf16>
    %cst_27 = arith.constant dense<0.000000e+00> : vector<8x32xf32>
    %44 = tpu.matmul %43, %42, %cst_27 {dimension_numbers = #tpu.dot_dimension_numbers<[1], [0], [0], [1], [0, 0, 1, 1], [], []>} : vector<8x64xbf16>, vector<64x32xbf16>, vector<8x32xf32> -> vector<8x32xf32>
    %c0_28 = arith.constant 0 : index
    %c0_29 = arith.constant 0 : index
    %c0_30 = arith.constant 0 : index
    %45 = vector.load %arg8[%c0_28, %c0_29, %c0_30] : memref<2x64x32xbf16, #tpu.memory_space<vmem>>, vector<1x64x32xbf16>
    %46 = vector.shape_cast %45 : vector<1x64x32xbf16> to vector<64x32xbf16>
    %47 = arith.truncf %31 : vector<8x64xf32> to vector<8x64xbf16>
    %cst_31 = arith.constant dense<0.000000e+00> : vector<8x32xf32>
    %48 = tpu.matmul %47, %46, %cst_31 {dimension_numbers = #tpu.dot_dimension_numbers<[1], [0], [0], [1], [0, 0, 1, 1], [], []>} : vector<8x64xbf16>, vector<64x32xbf16>, vector<8x32xf32> -> vector<8x32xf32>
    %c0_32 = arith.constant 0 : index
    %c0_33 = arith.constant 0 : index
    %c0_34 = arith.constant 0 : index
    %49 = vector.load %arg9[%c0_32, %c0_33, %c0_34] : memref<2x1x32xf32, #tpu.memory_space<vmem>>, vector<1x1x32xf32>
    %50 = vector.shape_cast %49 : vector<1x1x32xf32> to vector<1x32xf32>
    %51 = vector.broadcast %50 : vector<1x32xf32> to vector<8x32xf32>
    %52 = arith.addf %48, %51 : vector<8x32xf32>
    %53 = arith.truncf %40 : vector<8x32xf32> to vector<8x32xbf16>
    %54 = arith.truncf %44 : vector<8x32xf32> to vector<8x32xbf16>
    "tpu.trace_start"() <{level = 10 : i32, message = "qd,kd->qk"}> : () -> ()
    %cst_35 = arith.constant dense<0.000000e+00> : vector<8x8xf32>
    %55 = tpu.matmul %53, %54, %cst_35 {dimension_numbers = #tpu.dot_dimension_numbers<[1], [1], [0], [0], [0, 0, 1, 0], [], []>} : vector<8x32xbf16>, vector<8x32xbf16>, vector<8x8xf32> -> vector<8x8xf32>
    "tpu.trace_stop"() : () -> ()
    %56 = arith.addf %55, %9 : vector<8x8xf32>
    %cst_36 = arith.constant dense<0xFF800000> : vector<8xf32>
    %57 = vector.multi_reduction <maximumf>, %56, %cst_36 [1] : vector<8x8xf32> to vector<8xf32>
    %58 = vector.shape_cast %57 : vector<8xf32> to vector<8x1xf32>
    %59 = vector.broadcast %58 : vector<8x1xf32> to vector<8x8xf32>
    %60 = arith.subf %56, %59 : vector<8x8xf32>
    %61 = math.exp %60 : vector<8x8xf32>
    %cst_37 = arith.constant dense<0.000000e+00> : vector<8xf32>
    %62 = vector.multi_reduction <add>, %61, %cst_37 [1] : vector<8x8xf32> to vector<8xf32>
    %63 = vector.shape_cast %62 : vector<8xf32> to vector<8x1xf32>
    %64 = tpu.reciprocal %63 {approx = true} : vector<8x1xf32> -> vector<8x1xf32>
    %65 = vector.broadcast %64 : vector<8x1xf32> to vector<8x8xf32>
    %66 = arith.mulf %61, %65 : vector<8x8xf32>
    %67 = arith.truncf %66 : vector<8x8xf32> to vector<8x8xbf16>
    %68 = arith.truncf %52 : vector<8x32xf32> to vector<8x32xbf16>
    %cst_38 = arith.constant dense<0.000000e+00> : vector<8x32xf32>
    %69 = tpu.matmul %67, %68, %cst_38 {dimension_numbers = #tpu.dot_dimension_numbers<[1], [0], [0], [1], [0, 0, 1, 1], [], []>} : vector<8x8xbf16>, vector<8x32xbf16>, vector<8x32xf32> -> vector<8x32xf32>
    %c0_39 = arith.constant 0 : index
    %c0_40 = arith.constant 0 : index
    %c0_41 = arith.constant 0 : index
    %70 = vector.load %arg10[%c0_39, %c0_40, %c0_41] : memref<2x32x64xbf16, #tpu.memory_space<vmem>>, vector<1x32x64xbf16>
    %71 = vector.shape_cast %70 : vector<1x32x64xbf16> to vector<32x64xbf16>
    %72 = arith.truncf %69 : vector<8x32xf32> to vector<8x32xbf16>
    %cst_42 = arith.constant dense<0.000000e+00> : vector<8x64xf32>
    %73 = tpu.matmul %72, %71, %cst_42 {dimension_numbers = #tpu.dot_dimension_numbers<[1], [0], [0], [1], [0, 0, 1, 1], [], []>} : vector<8x32xbf16>, vector<32x64xbf16>, vector<8x64xf32> -> vector<8x64xf32>
    %c1 = arith.constant 1 : index
    %c0_43 = arith.constant 0 : index
    %c0_44 = arith.constant 0 : index
    %74 = vector.load %arg5[%c1, %c0_43, %c0_44] : memref<2x64x32xbf16, #tpu.memory_space<vmem>>, vector<1x64x32xbf16>
    %75 = vector.shape_cast %74 : vector<1x64x32xbf16> to vector<64x32xbf16>
    %76 = arith.truncf %31 : vector<8x64xf32> to vector<8x64xbf16>
    %cst_45 = arith.constant dense<0.000000e+00> : vector<8x32xf32>
    %77 = tpu.matmul %76, %75, %cst_45 {dimension_numbers = #tpu.dot_dimension_numbers<[1], [0], [0], [1], [0, 0, 1, 1], [], []>} : vector<8x64xbf16>, vector<64x32xbf16>, vector<8x32xf32> -> vector<8x32xf32>
    %c1_46 = arith.constant 1 : index
    %c0_47 = arith.constant 0 : index
    %c0_48 = arith.constant 0 : index
    %78 = vector.load %arg6[%c1_46, %c0_47, %c0_48] : memref<2x1x32xf32, #tpu.memory_space<vmem>>, vector<1x1x32xf32>
    %79 = vector.shape_cast %78 : vector<1x1x32xf32> to vector<1x32xf32>
    %80 = vector.broadcast %79 : vector<1x32xf32> to vector<8x32xf32>
    %81 = arith.addf %77, %80 : vector<8x32xf32>
    %c1_49 = arith.constant 1 : index
    %c0_50 = arith.constant 0 : index
    %c0_51 = arith.constant 0 : index
    %82 = vector.load %arg7[%c1_49, %c0_50, %c0_51] : memref<2x64x32xbf16, #tpu.memory_space<vmem>>, vector<1x64x32xbf16>
    %83 = vector.shape_cast %82 : vector<1x64x32xbf16> to vector<64x32xbf16>
    %84 = arith.truncf %31 : vector<8x64xf32> to vector<8x64xbf16>
    %cst_52 = arith.constant dense<0.000000e+00> : vector<8x32xf32>
    %85 = tpu.matmul %84, %83, %cst_52 {dimension_numbers = #tpu.dot_dimension_numbers<[1], [0], [0], [1], [0, 0, 1, 1], [], []>} : vector<8x64xbf16>, vector<64x32xbf16>, vector<8x32xf32> -> vector<8x32xf32>
    %c1_53 = arith.constant 1 : index
    %c0_54 = arith.constant 0 : index
    %c0_55 = arith.constant 0 : index
    %86 = vector.load %arg8[%c1_53, %c0_54, %c0_55] : memref<2x64x32xbf16, #tpu.memory_space<vmem>>, vector<1x64x32xbf16>
    %87 = vector.shape_cast %86 : vector<1x64x32xbf16> to vector<64x32xbf16>
    %88 = arith.truncf %31 : vector<8x64xf32> to vector<8x64xbf16>
    %cst_56 = arith.constant dense<0.000000e+00> : vector<8x32xf32>
    %89 = tpu.matmul %88, %87, %cst_56 {dimension_numbers = #tpu.dot_dimension_numbers<[1], [0], [0], [1], [0, 0, 1, 1], [], []>} : vector<8x64xbf16>, vector<64x32xbf16>, vector<8x32xf32> -> vector<8x32xf32>
    %c1_57 = arith.constant 1 : index
    %c0_58 = arith.constant 0 : index
    %c0_59 = arith.constant 0 : index
    %90 = vector.load %arg9[%c1_57, %c0_58, %c0_59] : memref<2x1x32xf32, #tpu.memory_space<vmem>>, vector<1x1x32xf32>
    %91 = vector.shape_cast %90 : vector<1x1x32xf32> to vector<1x32xf32>
    %92 = vector.broadcast %91 : vector<1x32xf32> to vector<8x32xf32>
    %93 = arith.addf %89, %92 : vector<8x32xf32>
    %94 = arith.truncf %81 : vector<8x32xf32> to vector<8x32xbf16>
    %95 = arith.truncf %85 : vector<8x32xf32> to vector<8x32xbf16>
    "tpu.trace_start"() <{level = 10 : i32, message = "qd,kd->qk"}> : () -> ()
    %cst_60 = arith.constant dense<0.000000e+00> : vector<8x8xf32>
    %96 = tpu.matmul %94, %95, %cst_60 {dimension_numbers = #tpu.dot_dimension_numbers<[1], [1], [0], [0], [0, 0, 1, 0], [], []>} : vector<8x32xbf16>, vector<8x32xbf16>, vector<8x8xf32> -> vector<8x8xf32>
    "tpu.trace_stop"() : () -> ()
    %97 = arith.addf %96, %9 : vector<8x8xf32>
    %cst_61 = arith.constant dense<0xFF800000> : vector<8xf32>
    %98 = vector.multi_reduction <maximumf>, %97, %cst_61 [1] : vector<8x8xf32> to vector<8xf32>
    %99 = vector.shape_cast %98 : vector<8xf32> to vector<8x1xf32>
    %100 = vector.broadcast %99 : vector<8x1xf32> to vector<8x8xf32>
    %101 = arith.subf %97, %100 : vector<8x8xf32>
    %102 = math.exp %101 : vector<8x8xf32>
    %cst_62 = arith.constant dense<0.000000e+00> : vector<8xf32>
    %103 = vector.multi_reduction <add>, %102, %cst_62 [1] : vector<8x8xf32> to vector<8xf32>
    %104 = vector.shape_cast %103 : vector<8xf32> to vector<8x1xf32>
    %105 = tpu.reciprocal %104 {approx = true} : vector<8x1xf32> -> vector<8x1xf32>
    %106 = vector.broadcast %105 : vector<8x1xf32> to vector<8x8xf32>
    %107 = arith.mulf %102, %106 : vector<8x8xf32>
    %108 = arith.truncf %107 : vector<8x8xf32> to vector<8x8xbf16>
    %109 = arith.truncf %93 : vector<8x32xf32> to vector<8x32xbf16>
    %cst_63 = arith.constant dense<0.000000e+00> : vector<8x32xf32>
    %110 = tpu.matmul %108, %109, %cst_63 {dimension_numbers = #tpu.dot_dimension_numbers<[1], [0], [0], [1], [0, 0, 1, 1], [], []>} : vector<8x8xbf16>, vector<8x32xbf16>, vector<8x32xf32> -> vector<8x32xf32>
    %c1_64 = arith.constant 1 : index
    %c0_65 = arith.constant 0 : index
    %c0_66 = arith.constant 0 : index
    %111 = vector.load %arg10[%c1_64, %c0_65, %c0_66] : memref<2x32x64xbf16, #tpu.memory_space<vmem>>, vector<1x32x64xbf16>
    %112 = vector.shape_cast %111 : vector<1x32x64xbf16> to vector<32x64xbf16>
    %113 = arith.truncf %110 : vector<8x32xf32> to vector<8x32xbf16>
    %cst_67 = arith.constant dense<0.000000e+00> : vector<8x64xf32>
    %114 = tpu.matmul %113, %112, %cst_67 {dimension_numbers = #tpu.dot_dimension_numbers<[1], [0], [0], [1], [0, 0, 1, 1], [], []>} : vector<8x32xbf16>, vector<32x64xbf16>, vector<8x64xf32> -> vector<8x64xf32>
    %115 = arith.addf %73, %114 : vector<8x64xf32>
    %116 = vector.broadcast %32 : vector<1x64xf32> to vector<8x64xf32>
    %117 = arith.addf %115, %116 : vector<8x64xf32>
    %118 = arith.addf %1, %117 : vector<8x64xf32>
    %c0_68 = arith.constant 0 : index
    %c0_69 = arith.constant 0 : index
    %119 = vector.load %arg12[%c0_68, %c0_69] : memref<1x64xf32, #tpu.memory_space<vmem>>, vector<1x64xf32>
    %c0_70 = arith.constant 0 : index
    %c0_71 = arith.constant 0 : index
    %120 = vector.load %arg13[%c0_70, %c0_71] : memref<1x64xf32, #tpu.memory_space<vmem>>, vector<1x64xf32>
    %cst_72 = arith.constant dense<0.000000e+00> : vector<8xf32>
    %121 = vector.multi_reduction <add>, %118, %cst_72 [1] : vector<8x64xf32> to vector<8xf32>
    %122 = vector.shape_cast %121 : vector<8xf32> to vector<8x1xf32>
    %cst_73 = arith.constant 6.400000e+01 : f32
    %123 = vector.broadcast %cst_73 : f32 to vector<8x1xf32>
    %124 = arith.divf %122, %123 : vector<8x1xf32>
    %125 = vector.broadcast %124 : vector<8x1xf32> to vector<8x64xf32>
    %126 = arith.subf %118, %125 : vector<8x64xf32>
    %127 = arith.mulf %126, %126 : vector<8x64xf32>
    %cst_74 = arith.constant dense<0.000000e+00> : vector<8xf32>
    %128 = vector.multi_reduction <add>, %127, %cst_74 [1] : vector<8x64xf32> to vector<8xf32>
    %129 = vector.shape_cast %128 : vector<8xf32> to vector<8x1xf32>
    %cst_75 = arith.constant 6.400000e+01 : f32
    %130 = vector.broadcast %cst_75 : f32 to vector<8x1xf32>
    %131 = arith.divf %129, %130 : vector<8x1xf32>
    %cst_76 = arith.constant 9.99999974E-6 : f32
    %132 = vector.broadcast %cst_76 : f32 to vector<8x1xf32>
    %133 = arith.addf %131, %132 : vector<8x1xf32>
    %134 = math.rsqrt %133 : vector<8x1xf32>
    %135 = vector.broadcast %134 : vector<8x1xf32> to vector<8x64xf32>
    %136 = arith.mulf %126, %135 : vector<8x64xf32>
    %137 = vector.broadcast %119 : vector<1x64xf32> to vector<8x64xf32>
    %138 = arith.mulf %136, %137 : vector<8x64xf32>
    %139 = vector.broadcast %120 : vector<1x64xf32> to vector<8x64xf32>
    %140 = arith.addf %138, %139 : vector<8x64xf32>
    %c0_77 = arith.constant 0 : index
    %c0_78 = arith.constant 0 : index
    %141 = vector.load %arg20[%c0_77, %c0_78] : memref<1x64xf32, #tpu.memory_space<vmem>>, vector<1x64xf32>
    %c0_79 = arith.constant 0 : index
    %c0_80 = arith.constant 0 : index
    %c0_81 = arith.constant 0 : index
    %142 = vector.load %arg14[%c0_79, %c0_80, %c0_81] : memref<2x64x32xbf16, #tpu.memory_space<vmem>>, vector<1x64x32xbf16>
    %143 = vector.shape_cast %142 : vector<1x64x32xbf16> to vector<64x32xbf16>
    %144 = arith.truncf %140 : vector<8x64xf32> to vector<8x64xbf16>
    %cst_82 = arith.constant dense<0.000000e+00> : vector<8x32xf32>
    %145 = tpu.matmul %144, %143, %cst_82 {dimension_numbers = #tpu.dot_dimension_numbers<[1], [0], [0], [1], [0, 0, 1, 1], [], []>} : vector<8x64xbf16>, vector<64x32xbf16>, vector<8x32xf32> -> vector<8x32xf32>
    %c0_83 = arith.constant 0 : index
    %c0_84 = arith.constant 0 : index
    %c0_85 = arith.constant 0 : index
    %146 = vector.load %arg15[%c0_83, %c0_84, %c0_85] : memref<2x1x32xf32, #tpu.memory_space<vmem>>, vector<1x1x32xf32>
    %147 = vector.shape_cast %146 : vector<1x1x32xf32> to vector<1x32xf32>
    %148 = vector.broadcast %147 : vector<1x32xf32> to vector<8x32xf32>
    %149 = arith.addf %145, %148 : vector<8x32xf32>
    %c0_86 = arith.constant 0 : index
    %c0_87 = arith.constant 0 : index
    %c0_88 = arith.constant 0 : index
    %150 = vector.load %arg16[%c0_86, %c0_87, %c0_88] : memref<2x64x32xbf16, #tpu.memory_space<vmem>>, vector<1x64x32xbf16>
    %151 = vector.shape_cast %150 : vector<1x64x32xbf16> to vector<64x32xbf16>
    %cst_89 = arith.constant dense<0.000000e+00> : vector<32x32xf32>
    %152 = tpu.matmul %3, %151, %cst_89 {dimension_numbers = #tpu.dot_dimension_numbers<[1], [0], [0], [1], [0, 0, 1, 1], [], []>} : vector<32x64xbf16>, vector<64x32xbf16>, vector<32x32xf32> -> vector<32x32xf32>
    %c0_90 = arith.constant 0 : index
    %c0_91 = arith.constant 0 : index
    %c0_92 = arith.constant 0 : index
    %153 = vector.load %arg17[%c0_90, %c0_91, %c0_92] : memref<2x64x32xbf16, #tpu.memory_space<vmem>>, vector<1x64x32xbf16>
    %154 = vector.shape_cast %153 : vector<1x64x32xbf16> to vector<64x32xbf16>
    %cst_93 = arith.constant dense<0.000000e+00> : vector<32x32xf32>
    %155 = tpu.matmul %3, %154, %cst_93 {dimension_numbers = #tpu.dot_dimension_numbers<[1], [0], [0], [1], [0, 0, 1, 1], [], []>} : vector<32x64xbf16>, vector<64x32xbf16>, vector<32x32xf32> -> vector<32x32xf32>
    %c0_94 = arith.constant 0 : index
    %c0_95 = arith.constant 0 : index
    %c0_96 = arith.constant 0 : index
    %156 = vector.load %arg18[%c0_94, %c0_95, %c0_96] : memref<2x1x32xf32, #tpu.memory_space<vmem>>, vector<1x1x32xf32>
    %157 = vector.shape_cast %156 : vector<1x1x32xf32> to vector<1x32xf32>
    %158 = vector.broadcast %157 : vector<1x32xf32> to vector<32x32xf32>
    %159 = arith.addf %155, %158 : vector<32x32xf32>
    %160 = arith.truncf %149 : vector<8x32xf32> to vector<8x32xbf16>
    %161 = arith.truncf %152 : vector<32x32xf32> to vector<32x32xbf16>
    "tpu.trace_start"() <{level = 10 : i32, message = "qd,kd->qk"}> : () -> ()
    %cst_97 = arith.constant dense<0.000000e+00> : vector<8x32xf32>
    %162 = tpu.matmul %160, %161, %cst_97 {dimension_numbers = #tpu.dot_dimension_numbers<[1], [1], [0], [0], [0, 0, 1, 0], [], []>} : vector<8x32xbf16>, vector<32x32xbf16>, vector<8x32xf32> -> vector<8x32xf32>
    "tpu.trace_stop"() : () -> ()
    %cst_98 = arith.constant dense<0xFF800000> : vector<8xf32>
    %163 = vector.multi_reduction <maximumf>, %162, %cst_98 [1] : vector<8x32xf32> to vector<8xf32>
    %164 = vector.shape_cast %163 : vector<8xf32> to vector<8x1xf32>
    %165 = vector.broadcast %164 : vector<8x1xf32> to vector<8x32xf32>
    %166 = arith.subf %162, %165 : vector<8x32xf32>
    %167 = math.exp %166 : vector<8x32xf32>
    %cst_99 = arith.constant dense<0.000000e+00> : vector<8xf32>
    %168 = vector.multi_reduction <add>, %167, %cst_99 [1] : vector<8x32xf32> to vector<8xf32>
    %169 = vector.shape_cast %168 : vector<8xf32> to vector<8x1xf32>
    %170 = tpu.reciprocal %169 {approx = true} : vector<8x1xf32> -> vector<8x1xf32>
    %171 = vector.broadcast %170 : vector<8x1xf32> to vector<8x32xf32>
    %172 = arith.mulf %167, %171 : vector<8x32xf32>
    %173 = arith.truncf %172 : vector<8x32xf32> to vector<8x32xbf16>
    %174 = arith.truncf %159 : vector<32x32xf32> to vector<32x32xbf16>
    %cst_100 = arith.constant dense<0.000000e+00> : vector<8x32xf32>
    %175 = tpu.matmul %173, %174, %cst_100 {dimension_numbers = #tpu.dot_dimension_numbers<[1], [0], [0], [1], [0, 0, 1, 1], [], []>} : vector<8x32xbf16>, vector<32x32xbf16>, vector<8x32xf32> -> vector<8x32xf32>
    %c0_101 = arith.constant 0 : index
    %c0_102 = arith.constant 0 : index
    %c0_103 = arith.constant 0 : index
    %176 = vector.load %arg19[%c0_101, %c0_102, %c0_103] : memref<2x32x64xbf16, #tpu.memory_space<vmem>>, vector<1x32x64xbf16>
    %177 = vector.shape_cast %176 : vector<1x32x64xbf16> to vector<32x64xbf16>
    %178 = arith.truncf %175 : vector<8x32xf32> to vector<8x32xbf16>
    %cst_104 = arith.constant dense<0.000000e+00> : vector<8x64xf32>
    %179 = tpu.matmul %178, %177, %cst_104 {dimension_numbers = #tpu.dot_dimension_numbers<[1], [0], [0], [1], [0, 0, 1, 1], [], []>} : vector<8x32xbf16>, vector<32x64xbf16>, vector<8x64xf32> -> vector<8x64xf32>
    %c1_105 = arith.constant 1 : index
    %c0_106 = arith.constant 0 : index
    %c0_107 = arith.constant 0 : index
    %180 = vector.load %arg14[%c1_105, %c0_106, %c0_107] : memref<2x64x32xbf16, #tpu.memory_space<vmem>>, vector<1x64x32xbf16>
    %181 = vector.shape_cast %180 : vector<1x64x32xbf16> to vector<64x32xbf16>
    %182 = arith.truncf %140 : vector<8x64xf32> to vector<8x64xbf16>
    %cst_108 = arith.constant dense<0.000000e+00> : vector<8x32xf32>
    %183 = tpu.matmul %182, %181, %cst_108 {dimension_numbers = #tpu.dot_dimension_numbers<[1], [0], [0], [1], [0, 0, 1, 1], [], []>} : vector<8x64xbf16>, vector<64x32xbf16>, vector<8x32xf32> -> vector<8x32xf32>
    %c1_109 = arith.constant 1 : index
    %c0_110 = arith.constant 0 : index
    %c0_111 = arith.constant 0 : index
    %184 = vector.load %arg15[%c1_109, %c0_110, %c0_111] : memref<2x1x32xf32, #tpu.memory_space<vmem>>, vector<1x1x32xf32>
    %185 = vector.shape_cast %184 : vector<1x1x32xf32> to vector<1x32xf32>
    %186 = vector.broadcast %185 : vector<1x32xf32> to vector<8x32xf32>
    %187 = arith.addf %183, %186 : vector<8x32xf32>
    %c1_112 = arith.constant 1 : index
    %c0_113 = arith.constant 0 : index
    %c0_114 = arith.constant 0 : index
    %188 = vector.load %arg16[%c1_112, %c0_113, %c0_114] : memref<2x64x32xbf16, #tpu.memory_space<vmem>>, vector<1x64x32xbf16>
    %189 = vector.shape_cast %188 : vector<1x64x32xbf16> to vector<64x32xbf16>
    %cst_115 = arith.constant dense<0.000000e+00> : vector<32x32xf32>
    %190 = tpu.matmul %3, %189, %cst_115 {dimension_numbers = #tpu.dot_dimension_numbers<[1], [0], [0], [1], [0, 0, 1, 1], [], []>} : vector<32x64xbf16>, vector<64x32xbf16>, vector<32x32xf32> -> vector<32x32xf32>
    %c1_116 = arith.constant 1 : index
    %c0_117 = arith.constant 0 : index
    %c0_118 = arith.constant 0 : index
    %191 = vector.load %arg17[%c1_116, %c0_117, %c0_118] : memref<2x64x32xbf16, #tpu.memory_space<vmem>>, vector<1x64x32xbf16>
    %192 = vector.shape_cast %191 : vector<1x64x32xbf16> to vector<64x32xbf16>
    %cst_119 = arith.constant dense<0.000000e+00> : vector<32x32xf32>
    %193 = tpu.matmul %3, %192, %cst_119 {dimension_numbers = #tpu.dot_dimension_numbers<[1], [0], [0], [1], [0, 0, 1, 1], [], []>} : vector<32x64xbf16>, vector<64x32xbf16>, vector<32x32xf32> -> vector<32x32xf32>
    %c1_120 = arith.constant 1 : index
    %c0_121 = arith.constant 0 : index
    %c0_122 = arith.constant 0 : index
    %194 = vector.load %arg18[%c1_120, %c0_121, %c0_122] : memref<2x1x32xf32, #tpu.memory_space<vmem>>, vector<1x1x32xf32>
    %195 = vector.shape_cast %194 : vector<1x1x32xf32> to vector<1x32xf32>
    %196 = vector.broadcast %195 : vector<1x32xf32> to vector<32x32xf32>
    %197 = arith.addf %193, %196 : vector<32x32xf32>
    %198 = arith.truncf %187 : vector<8x32xf32> to vector<8x32xbf16>
    %199 = arith.truncf %190 : vector<32x32xf32> to vector<32x32xbf16>
    "tpu.trace_start"() <{level = 10 : i32, message = "qd,kd->qk"}> : () -> ()
    %cst_123 = arith.constant dense<0.000000e+00> : vector<8x32xf32>
    %200 = tpu.matmul %198, %199, %cst_123 {dimension_numbers = #tpu.dot_dimension_numbers<[1], [1], [0], [0], [0, 0, 1, 0], [], []>} : vector<8x32xbf16>, vector<32x32xbf16>, vector<8x32xf32> -> vector<8x32xf32>
    "tpu.trace_stop"() : () -> ()
    %cst_124 = arith.constant dense<0xFF800000> : vector<8xf32>
    %201 = vector.multi_reduction <maximumf>, %200, %cst_124 [1] : vector<8x32xf32> to vector<8xf32>
    %202 = vector.shape_cast %201 : vector<8xf32> to vector<8x1xf32>
    %203 = vector.broadcast %202 : vector<8x1xf32> to vector<8x32xf32>
    %204 = arith.subf %200, %203 : vector<8x32xf32>
    %205 = math.exp %204 : vector<8x32xf32>
    %cst_125 = arith.constant dense<0.000000e+00> : vector<8xf32>
    %206 = vector.multi_reduction <add>, %205, %cst_125 [1] : vector<8x32xf32> to vector<8xf32>
    %207 = vector.shape_cast %206 : vector<8xf32> to vector<8x1xf32>
    %208 = tpu.reciprocal %207 {approx = true} : vector<8x1xf32> -> vector<8x1xf32>
    %209 = vector.broadcast %208 : vector<8x1xf32> to vector<8x32xf32>
    %210 = arith.mulf %205, %209 : vector<8x32xf32>
    %211 = arith.truncf %210 : vector<8x32xf32> to vector<8x32xbf16>
    %212 = arith.truncf %197 : vector<32x32xf32> to vector<32x32xbf16>
    %cst_126 = arith.constant dense<0.000000e+00> : vector<8x32xf32>
    %213 = tpu.matmul %211, %212, %cst_126 {dimension_numbers = #tpu.dot_dimension_numbers<[1], [0], [0], [1], [0, 0, 1, 1], [], []>} : vector<8x32xbf16>, vector<32x32xbf16>, vector<8x32xf32> -> vector<8x32xf32>
    %c1_127 = arith.constant 1 : index
    %c0_128 = arith.constant 0 : index
    %c0_129 = arith.constant 0 : index
    %214 = vector.load %arg19[%c1_127, %c0_128, %c0_129] : memref<2x32x64xbf16, #tpu.memory_space<vmem>>, vector<1x32x64xbf16>
    %215 = vector.shape_cast %214 : vector<1x32x64xbf16> to vector<32x64xbf16>
    %216 = arith.truncf %213 : vector<8x32xf32> to vector<8x32xbf16>
    %cst_130 = arith.constant dense<0.000000e+00> : vector<8x64xf32>
    %217 = tpu.matmul %216, %215, %cst_130 {dimension_numbers = #tpu.dot_dimension_numbers<[1], [0], [0], [1], [0, 0, 1, 1], [], []>} : vector<8x32xbf16>, vector<32x64xbf16>, vector<8x64xf32> -> vector<8x64xf32>
    %218 = arith.addf %179, %217 : vector<8x64xf32>
    %219 = vector.broadcast %141 : vector<1x64xf32> to vector<8x64xf32>
    %220 = arith.addf %218, %219 : vector<8x64xf32>
    %221 = arith.addf %118, %220 : vector<8x64xf32>
    %c0_131 = arith.constant 0 : index
    %c0_132 = arith.constant 0 : index
    %222 = vector.load %arg21[%c0_131, %c0_132] : memref<1x64xf32, #tpu.memory_space<vmem>>, vector<1x64xf32>
    %c0_133 = arith.constant 0 : index
    %c0_134 = arith.constant 0 : index
    %223 = vector.load %arg22[%c0_133, %c0_134] : memref<1x64xf32, #tpu.memory_space<vmem>>, vector<1x64xf32>
    %cst_135 = arith.constant dense<0.000000e+00> : vector<8xf32>
    %224 = vector.multi_reduction <add>, %221, %cst_135 [1] : vector<8x64xf32> to vector<8xf32>
    %225 = vector.shape_cast %224 : vector<8xf32> to vector<8x1xf32>
    %cst_136 = arith.constant 6.400000e+01 : f32
    %226 = vector.broadcast %cst_136 : f32 to vector<8x1xf32>
    %227 = arith.divf %225, %226 : vector<8x1xf32>
    %228 = vector.broadcast %227 : vector<8x1xf32> to vector<8x64xf32>
    %229 = arith.subf %221, %228 : vector<8x64xf32>
    %230 = arith.mulf %229, %229 : vector<8x64xf32>
    %cst_137 = arith.constant dense<0.000000e+00> : vector<8xf32>
    %231 = vector.multi_reduction <add>, %230, %cst_137 [1] : vector<8x64xf32> to vector<8xf32>
    %232 = vector.shape_cast %231 : vector<8xf32> to vector<8x1xf32>
    %cst_138 = arith.constant 6.400000e+01 : f32
    %233 = vector.broadcast %cst_138 : f32 to vector<8x1xf32>
    %234 = arith.divf %232, %233 : vector<8x1xf32>
    %cst_139 = arith.constant 9.99999974E-6 : f32
    %235 = vector.broadcast %cst_139 : f32 to vector<8x1xf32>
    %236 = arith.addf %234, %235 : vector<8x1xf32>
    %237 = math.rsqrt %236 : vector<8x1xf32>
    %238 = vector.broadcast %237 : vector<8x1xf32> to vector<8x64xf32>
    %239 = arith.mulf %229, %238 : vector<8x64xf32>
    %240 = vector.broadcast %222 : vector<1x64xf32> to vector<8x64xf32>
    %241 = arith.mulf %239, %240 : vector<8x64xf32>
    %242 = vector.broadcast %223 : vector<1x64xf32> to vector<8x64xf32>
    %243 = arith.addf %241, %242 : vector<8x64xf32>
    %c0_140 = arith.constant 0 : index
    %c0_141 = arith.constant 0 : index
    %244 = vector.load %arg23[%c0_140, %c0_141] : memref<64x128xbf16, #tpu.memory_space<vmem>>, vector<64x128xbf16>
    %245 = arith.truncf %243 : vector<8x64xf32> to vector<8x64xbf16>
    %cst_142 = arith.constant dense<0.000000e+00> : vector<8x128xf32>
    %246 = tpu.matmul %245, %244, %cst_142 {dimension_numbers = #tpu.dot_dimension_numbers<[1], [0], [0], [1], [0, 0, 1, 1], [], []>} : vector<8x64xbf16>, vector<64x128xbf16>, vector<8x128xf32> -> vector<8x128xf32>
    %c0_143 = arith.constant 0 : index
    %c0_144 = arith.constant 0 : index
    %247 = vector.load %arg24[%c0_143, %c0_144] : memref<1x128xf32, #tpu.memory_space<vmem>>, vector<1x128xf32>
    %248 = vector.broadcast %247 : vector<1x128xf32> to vector<8x128xf32>
    %249 = arith.addf %246, %248 : vector<8x128xf32>
    %250 = arith.mulf %249, %249 : vector<8x128xf32>
    %251 = arith.mulf %249, %250 : vector<8x128xf32>
    %cst_145 = arith.constant 4.471500e-02 : f32
    %252 = vector.broadcast %cst_145 : f32 to vector<8x128xf32>
    %253 = arith.mulf %252, %251 : vector<8x128xf32>
    %254 = arith.addf %249, %253 : vector<8x128xf32>
    %cst_146 = arith.constant 0.797884583 : f32
    %255 = vector.broadcast %cst_146 : f32 to vector<8x128xf32>
    %256 = arith.mulf %255, %254 : vector<8x128xf32>
    %257 = math.tanh %256 : vector<8x128xf32>
    %cst_147 = arith.constant 1.000000e+00 : f32
    %258 = vector.broadcast %cst_147 : f32 to vector<8x128xf32>
    %259 = arith.addf %258, %257 : vector<8x128xf32>
    %cst_148 = arith.constant 5.000000e-01 : f32
    %260 = vector.broadcast %cst_148 : f32 to vector<8x128xf32>
    %261 = arith.mulf %260, %259 : vector<8x128xf32>
    %262 = arith.mulf %249, %261 : vector<8x128xf32>
    %c0_149 = arith.constant 0 : index
    %c0_150 = arith.constant 0 : index
    %263 = vector.load %arg25[%c0_149, %c0_150] : memref<128x64xbf16, #tpu.memory_space<vmem>>, vector<128x64xbf16>
    %264 = arith.truncf %262 : vector<8x128xf32> to vector<8x128xbf16>
    %cst_151 = arith.constant dense<0.000000e+00> : vector<8x64xf32>
    %265 = tpu.matmul %264, %263, %cst_151 {dimension_numbers = #tpu.dot_dimension_numbers<[1], [0], [0], [1], [0, 0, 1, 1], [], []>} : vector<8x128xbf16>, vector<128x64xbf16>, vector<8x64xf32> -> vector<8x64xf32>
    %266 = arith.addf %221, %265 : vector<8x64xf32>
    %c0_152 = arith.constant 0 : index
    %c0_153 = arith.constant 0 : index
    %267 = vector.load %arg26[%c0_152, %c0_153] : memref<1x64xf32, #tpu.memory_space<vmem>>, vector<1x64xf32>
    %268 = vector.broadcast %267 : vector<1x64xf32> to vector<8x64xf32>
    %269 = arith.addf %266, %268 : vector<8x64xf32>
    %c0_154 = arith.constant 0 : index
    %c0_155 = arith.constant 0 : index
    %270 = vector.load %arg27[%c0_154, %c0_155] : memref<1x64xf32, #tpu.memory_space<vmem>>, vector<1x64xf32>
    %c0_156 = arith.constant 0 : index
    %c0_157 = arith.constant 0 : index
    %271 = vector.load %arg28[%c0_156, %c0_157] : memref<1x64xf32, #tpu.memory_space<vmem>>, vector<1x64xf32>
    %cst_158 = arith.constant dense<0.000000e+00> : vector<8xf32>
    %272 = vector.multi_reduction <add>, %269, %cst_158 [1] : vector<8x64xf32> to vector<8xf32>
    %273 = vector.shape_cast %272 : vector<8xf32> to vector<8x1xf32>
    %cst_159 = arith.constant 6.400000e+01 : f32
    %274 = vector.broadcast %cst_159 : f32 to vector<8x1xf32>
    %275 = arith.divf %273, %274 : vector<8x1xf32>
    %276 = vector.broadcast %275 : vector<8x1xf32> to vector<8x64xf32>
    %277 = arith.subf %269, %276 : vector<8x64xf32>
    %278 = arith.mulf %277, %277 : vector<8x64xf32>
    %cst_160 = arith.constant dense<0.000000e+00> : vector<8xf32>
    %279 = vector.multi_reduction <add>, %278, %cst_160 [1] : vector<8x64xf32> to vector<8xf32>
    %280 = vector.shape_cast %279 : vector<8xf32> to vector<8x1xf32>
    %cst_161 = arith.constant 6.400000e+01 : f32
    %281 = vector.broadcast %cst_161 : f32 to vector<8x1xf32>
    %282 = arith.divf %280, %281 : vector<8x1xf32>
    %cst_162 = arith.constant 9.99999974E-6 : f32
    %283 = vector.broadcast %cst_162 : f32 to vector<8x1xf32>
    %284 = arith.addf %282, %283 : vector<8x1xf32>
    %285 = math.rsqrt %284 : vector<8x1xf32>
    %286 = vector.broadcast %285 : vector<8x1xf32> to vector<8x64xf32>
    %287 = arith.mulf %277, %286 : vector<8x64xf32>
    %288 = vector.broadcast %270 : vector<1x64xf32> to vector<8x64xf32>
    %289 = arith.mulf %287, %288 : vector<8x64xf32>
    %290 = vector.broadcast %271 : vector<1x64xf32> to vector<8x64xf32>
    %291 = arith.addf %289, %290 : vector<8x64xf32>
    %292 = arith.truncf %291 : vector<8x64xf32> to vector<8x64xbf16>
    %c0_163 = arith.constant 0 : index
    %c0_164 = arith.constant 0 : index
    %293 = vector.load %arg29[%c0_163, %c0_164] : memref<128x64xbf16, #tpu.memory_space<vmem>>, vector<128x64xbf16>
    "tpu.trace_start"() <{level = 10 : i32, message = "td,vd->tv"}> : () -> ()
    %cst_165 = arith.constant dense<0.000000e+00> : vector<8x128xf32>
    %294 = tpu.matmul %292, %293, %cst_165 {dimension_numbers = #tpu.dot_dimension_numbers<[1], [1], [0], [0], [0, 0, 1, 0], [], []>} : vector<8x64xbf16>, vector<128x64xbf16>, vector<8x128xf32> -> vector<8x128xf32>
    "tpu.trace_stop"() : () -> ()
    %c0_166 = arith.constant 0 : index
    %c0_167 = arith.constant 0 : index
    %c0_168 = arith.constant 0 : index
    %295 = vector.load %arg30[%c0_166, %c0_167, %c0_168] : memref<1x8x128xf32, #tpu.memory_space<vmem>>, vector<1x8x128xf32>
    %296 = vector.shape_cast %295 : vector<1x8x128xf32> to vector<8x128xf32>
    %297 = vector.shape_cast %294 : vector<8x128xf32> to vector<1x8x128xf32>
    tpu.vector_store %arg30[%c0_166, %c0_167, %c0_168], %297 {strides = array<i32>} : memref<1x8x128xf32, #tpu.memory_space<vmem>>, vector<1x8x128xf32>,
    return
  }
  func.func @transform_0(%arg0: i32) -> (i32, i32, i32) {
    %c0_i32 = arith.constant 0 : i32
    %c0_i32_0 = arith.constant 0 : i32
    %c0_i32_1 = arith.constant 0 : i32
    return %arg0, %c0_i32, %c0_i32_0 : i32, i32, i32
  }
  func.func @transform_1(%arg0: i32) -> (i32, i32, i32) {
    %c0_i32 = arith.constant 0 : i32
    %c0_i32_0 = arith.constant 0 : i32
    %c0_i32_1 = arith.constant 0 : i32
    return %arg0, %c0_i32, %c0_i32_0 : i32, i32, i32
  }
  func.func @transform_2(%arg0: i32) -> (i32, i32) {
    %c0_i32 = arith.constant 0 : i32
    %c0_i32_0 = arith.constant 0 : i32
    %c0_i32_1 = arith.constant 0 : i32
    return %c0_i32, %c0_i32_0 : i32, i32
  }
  func.func @transform_3(%arg0: i32) -> (i32, i32) {
    %c0_i32 = arith.constant 0 : i32
    %c0_i32_0 = arith.constant 0 : i32
    %c0_i32_1 = arith.constant 0 : i32
    return %c0_i32, %c0_i32_0 : i32, i32
  }
  func.func @transform_4(%arg0: i32) -> (i32, i32, i32) {
    %c0_i32 = arith.constant 0 : i32
    %c0_i32_0 = arith.constant 0 : i32
    %c0_i32_1 = arith.constant 0 : i32
    %c0_i32_2 = arith.constant 0 : i32
    return %c0_i32, %c0_i32_0, %c0_i32_1 : i32, i32, i32
  }
  func.func @transform_5(%arg0: i32) -> (i32, i32, i32) {
    %c0_i32 = arith.constant 0 : i32
    %c0_i32_0 = arith.constant 0 : i32
    %c0_i32_1 = arith.constant 0 : i32
    %c0_i32_2 = arith.constant 0 : i32
    return %c0_i32, %c0_i32_0, %c0_i32_1 : i32, i32, i32
  }
  func.func @transform_6(%arg0: i32) -> (i32, i32, i32) {
    %c0_i32 = arith.constant 0 : i32
    %c0_i32_0 = arith.constant 0 : i32
    %c0_i32_1 = arith.constant 0 : i32
    %c0_i32_2 = arith.constant 0 : i32
    return %c0_i32, %c0_i32_0, %c0_i32_1 : i32, i32, i32
  }
  func.func @transform_7(%arg0: i32) -> (i32, i32, i32) {
    %c0_i32 = arith.constant 0 : i32
    %c0_i32_0 = arith.constant 0 : i32
    %c0_i32_1 = arith.constant 0 : i32
    %c0_i32_2 = arith.constant 0 : i32
    return %c0_i32, %c0_i32_0, %c0_i32_1 : i32, i32, i32
  }
  func.func @transform_8(%arg0: i32) -> (i32, i32, i32) {
    %c0_i32 = arith.constant 0 : i32
    %c0_i32_0 = arith.constant 0 : i32
    %c0_i32_1 = arith.constant 0 : i32
    %c0_i32_2 = arith.constant 0 : i32
    return %c0_i32, %c0_i32_0, %c0_i32_1 : i32, i32, i32
  }
  func.func @transform_9(%arg0: i32) -> (i32, i32, i32) {
    %c0_i32 = arith.constant 0 : i32
    %c0_i32_0 = arith.constant 0 : i32
    %c0_i32_1 = arith.constant 0 : i32
    %c0_i32_2 = arith.constant 0 : i32
    return %c0_i32, %c0_i32_0, %c0_i32_1 : i32, i32, i32
  }
  func.func @transform_10(%arg0: i32) -> (i32, i32) {
    %c0_i32 = arith.constant 0 : i32
    %c0_i32_0 = arith.constant 0 : i32
    %c0_i32_1 = arith.constant 0 : i32
    return %c0_i32, %c0_i32_0 : i32, i32
  }
  func.func @transform_11(%arg0: i32) -> (i32, i32) {
    %c0_i32 = arith.constant 0 : i32
    %c0_i32_0 = arith.constant 0 : i32
    %c0_i32_1 = arith.constant 0 : i32
    return %c0_i32, %c0_i32_0 : i32, i32
  }
  func.func @transform_12(%arg0: i32) -> (i32, i32) {
    %c0_i32 = arith.constant 0 : i32
    %c0_i32_0 = arith.constant 0 : i32
    %c0_i32_1 = arith.constant 0 : i32
    return %c0_i32, %c0_i32_0 : i32, i32
  }
  func.func @transform_13(%arg0: i32) -> (i32, i32, i32) {
    %c0_i32 = arith.constant 0 : i32
    %c0_i32_0 = arith.constant 0 : i32
    %c0_i32_1 = arith.constant 0 : i32
    %c0_i32_2 = arith.constant 0 : i32
    return %c0_i32, %c0_i32_0, %c0_i32_1 : i32, i32, i32
  }
  func.func @transform_14(%arg0: i32) -> (i32, i32, i32) {
    %c0_i32 = arith.constant 0 : i32
    %c0_i32_0 = arith.constant 0 : i32
    %c0_i32_1 = arith.constant 0 : i32
    %c0_i32_2 = arith.constant 0 : i32
    return %c0_i32, %c0_i32_0, %c0_i32_1 : i32, i32, i32
  }
  func.func @transform_15(%arg0: i32) -> (i32, i32, i32) {
    %c0_i32 = arith.constant 0 : i32
    %c0_i32_0 = arith.constant 0 : i32
    %c0_i32_1 = arith.constant 0 : i32
    %c0_i32_2 = arith.constant 0 : i32
    return %c0_i32, %c0_i32_0, %c0_i32_1 : i32, i32, i32
  }
  func.func @transform_16(%arg0: i32) -> (i32, i32, i32) {
    %c0_i32 = arith.constant 0 : i32
    %c0_i32_0 = arith.constant 0 : i32
    %c0_i32_1 = arith.constant 0 : i32
    %c0_i32_2 = arith.constant 0 : i32
    return %c0_i32, %c0_i32_0, %c0_i32_1 : i32, i32, i32
  }
  func.func @transform_17(%arg0: i32) -> (i32, i32, i32) {
    %c0_i32 = arith.constant 0 : i32
    %c0_i32_0 = arith.constant 0 : i32
    %c0_i32_1 = arith.constant 0 : i32
    %c0_i32_2 = arith.constant 0 : i32
    return %c0_i32, %c0_i32_0, %c0_i32_1 : i32, i32, i32
  }
  func.func @transform_18(%arg0: i32) -> (i32, i32, i32) {
    %c0_i32 = arith.constant 0 : i32
    %c0_i32_0 = arith.constant 0 : i32
    %c0_i32_1 = arith.constant 0 : i32
    %c0_i32_2 = arith.constant 0 : i32
    return %c0_i32, %c0_i32_0, %c0_i32_1 : i32, i32, i32
  }
  func.func @transform_19(%arg0: i32) -> (i32, i32) {
    %c0_i32 = arith.constant 0 : i32
    %c0_i32_0 = arith.constant 0 : i32
    %c0_i32_1 = arith.constant 0 : i32
    return %c0_i32, %c0_i32_0 : i32, i32
  }
  func.func @transform_20(%arg0: i32) -> (i32, i32) {
    %c0_i32 = arith.constant 0 : i32
    %c0_i32_0 = arith.constant 0 : i32
    %c0_i32_1 = arith.constant 0 : i32
    return %c0_i32, %c0_i32_0 : i32, i32
  }
  func.func @transform_21(%arg0: i32) -> (i32, i32) {
    %c0_i32 = arith.constant 0 : i32
    %c0_i32_0 = arith.constant 0 : i32
    %c0_i32_1 = arith.constant 0 : i32
    return %c0_i32, %c0_i32_0 : i32, i32
  }
  func.func @transform_22(%arg0: i32) -> (i32, i32) {
    %c0_i32 = arith.constant 0 : i32
    %c0_i32_0 = arith.constant 0 : i32
    %c0_i32_1 = arith.constant 0 : i32
    return %c0_i32, %c0_i32_0 : i32, i32
  }
  func.func @transform_23(%arg0: i32) -> (i32, i32) {
    %c0_i32 = arith.constant 0 : i32
    %c0_i32_0 = arith.constant 0 : i32
    %c0_i32_1 = arith.constant 0 : i32
    return %c0_i32, %c0_i32_0 : i32, i32
  }
  func.func @transform_24(%arg0: i32) -> (i32, i32) {
    %c0_i32 = arith.constant 0 : i32
    %c0_i32_0 = arith.constant 0 : i32
    %c0_i32_1 = arith.constant 0 : i32
    return %c0_i32, %c0_i32_0 : i32, i32
  }
  func.func @transform_25(%arg0: i32) -> (i32, i32) {
    %c0_i32 = arith.constant 0 : i32
    %c0_i32_0 = arith.constant 0 : i32
    %c0_i32_1 = arith.constant 0 : i32
    return %c0_i32, %c0_i32_0 : i32, i32
  }
  func.func @transform_26(%arg0: i32) -> (i32, i32) {
    %c0_i32 = arith.constant 0 : i32
    %c0_i32_0 = arith.constant 0 : i32
    %c0_i32_1 = arith.constant 0 : i32
    return %c0_i32, %c0_i32_0 : i32, i32
  }
  func.func @transform_27(%arg0: i32) -> (i32, i32) {
    %c0_i32 = arith.constant 0 : i32
    %c0_i32_0 = arith.constant 0 : i32
    %c0_i32_1 = arith.constant 0 : i32
    return %c0_i32, %c0_i32_0 : i32, i32
  }
  func.func @transform_28(%arg0: i32) -> (i32, i32) {
    %c0_i32 = arith.constant 0 : i32
    %c0_i32_0 = arith.constant 0 : i32
    %c0_i32_1 = arith.constant 0 : i32
    return %c0_i32, %c0_i32_0 : i32, i32
  }
  func.func @transform_29(%arg0: i32) -> (i32, i32, i32) {
    %c0_i32 = arith.constant 0 : i32
    %c0_i32_0 = arith.constant 0 : i32
    %c0_i32_1 = arith.constant 0 : i32
    return %arg0, %c0_i32, %c0_i32_0 : i32, i32, i32
  }
}

module attributes {stable_mosaic.version = 11 : i64} {
  func.func @_encoder_kernel(%arg0: i32, %arg1: memref<1x64x16xf32, #tpu.memory_space<vmem>>, %arg2: memref<3x16x64xbf16, #tpu.memory_space<vmem>>, %arg3: memref<1x64xf32, #tpu.memory_space<vmem>>, %arg4: memref<3x64x64xbf16, #tpu.memory_space<vmem>>, %arg5: memref<1x64xf32, #tpu.memory_space<vmem>>, %arg6: memref<32x64xf32, #tpu.memory_space<vmem>>, %arg7: memref<1x64xf32, #tpu.memory_space<vmem>>, %arg8: memref<1x64xf32, #tpu.memory_space<vmem>>, %arg9: memref<2x64x32xbf16, #tpu.memory_space<vmem>>, %arg10: memref<2x1x32xf32, #tpu.memory_space<vmem>>, %arg11: memref<2x64x32xbf16, #tpu.memory_space<vmem>>, %arg12: memref<2x64x32xbf16, #tpu.memory_space<vmem>>, %arg13: memref<2x1x32xf32, #tpu.memory_space<vmem>>, %arg14: memref<2x32x64xbf16, #tpu.memory_space<vmem>>, %arg15: memref<1x64xf32, #tpu.memory_space<vmem>>, %arg16: memref<1x64xf32, #tpu.memory_space<vmem>>, %arg17: memref<1x64xf32, #tpu.memory_space<vmem>>, %arg18: memref<64x128xbf16, #tpu.memory_space<vmem>>, %arg19: memref<1x128xf32, #tpu.memory_space<vmem>>, %arg20: memref<128x64xbf16, #tpu.memory_space<vmem>>, %arg21: memref<1x64xf32, #tpu.memory_space<vmem>>, %arg22: memref<1x64xf32, #tpu.memory_space<vmem>>, %arg23: memref<1x64xf32, #tpu.memory_space<vmem>>, %arg24: memref<1x32x64xbf16, #tpu.memory_space<vmem>>) attributes {dimension_semantics = [#tpu.dimension_semantics<parallel>], iteration_bounds = array<i64: 2>, scalar_prefetch = 0 : i64, scratch_operands = 0 : i64, tpu.core_type = #tpu.core_type<tc>, window_params = [{transform_indices = @transform_0, window_bounds = array<i64: 1, 64, 16>}, {pipeline_mode = #tpu.pipeline_mode<synchronous>, transform_indices = @transform_1, window_bounds = array<i64: 3, 16, 64>}, {pipeline_mode = #tpu.pipeline_mode<synchronous>, transform_indices = @transform_2, window_bounds = array<i64: 1, 64>}, {pipeline_mode = #tpu.pipeline_mode<synchronous>, transform_indices = @transform_3, window_bounds = array<i64: 3, 64, 64>}, {pipeline_mode = #tpu.pipeline_mode<synchronous>, transform_indices = @transform_4, window_bounds = array<i64: 1, 64>}, {pipeline_mode = #tpu.pipeline_mode<synchronous>, transform_indices = @transform_5, window_bounds = array<i64: 32, 64>}, {pipeline_mode = #tpu.pipeline_mode<synchronous>, transform_indices = @transform_6, window_bounds = array<i64: 1, 64>}, {pipeline_mode = #tpu.pipeline_mode<synchronous>, transform_indices = @transform_7, window_bounds = array<i64: 1, 64>}, {pipeline_mode = #tpu.pipeline_mode<synchronous>, transform_indices = @transform_8, window_bounds = array<i64: 2, 64, 32>}, {pipeline_mode = #tpu.pipeline_mode<synchronous>, transform_indices = @transform_9, window_bounds = array<i64: 2, 1, 32>}, {pipeline_mode = #tpu.pipeline_mode<synchronous>, transform_indices = @transform_10, window_bounds = array<i64: 2, 64, 32>}, {pipeline_mode = #tpu.pipeline_mode<synchronous>, transform_indices = @transform_11, window_bounds = array<i64: 2, 64, 32>}, {pipeline_mode = #tpu.pipeline_mode<synchronous>, transform_indices = @transform_12, window_bounds = array<i64: 2, 1, 32>}, {pipeline_mode = #tpu.pipeline_mode<synchronous>, transform_indices = @transform_13, window_bounds = array<i64: 2, 32, 64>}, {pipeline_mode = #tpu.pipeline_mode<synchronous>, transform_indices = @transform_14, window_bounds = array<i64: 1, 64>}, {pipeline_mode = #tpu.pipeline_mode<synchronous>, transform_indices = @transform_15, window_bounds = array<i64: 1, 64>}, {pipeline_mode = #tpu.pipeline_mode<synchronous>, transform_indices = @transform_16, window_bounds = array<i64: 1, 64>}, {pipeline_mode = #tpu.pipeline_mode<synchronous>, transform_indices = @transform_17, window_bounds = array<i64: 64, 128>}, {pipeline_mode = #tpu.pipeline_mode<synchronous>, transform_indices = @transform_18, window_bounds = array<i64: 1, 128>}, {pipeline_mode = #tpu.pipeline_mode<synchronous>, transform_indices = @transform_19, window_bounds = array<i64: 128, 64>}, {pipeline_mode = #tpu.pipeline_mode<synchronous>, transform_indices = @transform_20, window_bounds = array<i64: 1, 64>}, {pipeline_mode = #tpu.pipeline_mode<synchronous>, transform_indices = @transform_21, window_bounds = array<i64: 1, 64>}, {pipeline_mode = #tpu.pipeline_mode<synchronous>, transform_indices = @transform_22, window_bounds = array<i64: 1, 64>}, {transform_indices = @transform_23, window_bounds = array<i64: 1, 32, 64>}]} {
    %c0 = arith.constant 0 : index
    %c0_0 = arith.constant 0 : index
    %c0_1 = arith.constant 0 : index
    %0 = vector.load %arg1[%c0, %c0_0, %c0_1] : memref<1x64x16xf32, #tpu.memory_space<vmem>>, vector<1x64x16xf32>
    %1 = vector.shape_cast %0 : vector<1x64x16xf32> to vector<64x16xf32>
    %c0_2 = arith.constant 0 : index
    %c0_3 = arith.constant 0 : index
    %2 = vector.load %arg3[%c0_2, %c0_3] : memref<1x64xf32, #tpu.memory_space<vmem>>, vector<1x64xf32>
    %3 = tpu.iota {dimensions = array<i32: 0>} : vector<64x64xi32>
    %4 = tpu.iota {dimensions = array<i32: 1>} : vector<64x64xi32>
    %5 = arith.truncf %1 : vector<64x16xf32> to vector<64x16xbf16>
    %c1_i32 = arith.constant 1 : i32
    %6 = vector.broadcast %c1_i32 : i32 to vector<64x64xi32>
    %7 = arith.muli %6, %3 : vector<64x64xi32>
    %c-1_i32 = arith.constant -1 : i32
    %8 = vector.broadcast %c-1_i32 : i32 to vector<64x64xi32>
    %9 = arith.addi %7, %8 : vector<64x64xi32>
    %10 = arith.cmpi eq, %4, %9 : vector<64x64xi32>
    %cst = arith.constant 1.000000e+00 : f32
    %cst_4 = arith.constant 0.000000e+00 : f32
    %11 = vector.broadcast %cst : f32 to vector<64x64xf32>
    %12 = vector.broadcast %cst_4 : f32 to vector<64x64xf32>
    %13 = arith.select %10, %11, %12 : vector<64x64xi1>, vector<64x64xf32>
    %14 = arith.truncf %13 : vector<64x64xf32> to vector<64x64xbf16>
    %cst_5 = arith.constant dense<0.000000e+00> : vector<64x16xf32>
    %15 = tpu.matmul %14, %5, %cst_5 {dimension_numbers = #tpu.dot_dimension_numbers<[1], [0], [0], [1], [0, 0, 1, 1], [], []>} : vector<64x64xbf16>, vector<64x16xbf16>, vector<64x16xf32> -> vector<64x16xf32>
    %c0_6 = arith.constant 0 : index
    %c0_7 = arith.constant 0 : index
    %c0_8 = arith.constant 0 : index
    %16 = vector.load %arg2[%c0_6, %c0_7, %c0_8] : memref<3x16x64xbf16, #tpu.memory_space<vmem>>, vector<1x16x64xbf16>
    %17 = vector.shape_cast %16 : vector<1x16x64xbf16> to vector<16x64xbf16>
    %18 = arith.truncf %15 : vector<64x16xf32> to vector<64x16xbf16>
    %cst_9 = arith.constant dense<0.000000e+00> : vector<64x64xf32>
    %19 = tpu.matmul %18, %17, %cst_9 {dimension_numbers = #tpu.dot_dimension_numbers<[1], [0], [0], [1], [0, 0, 1, 1], [], []>} : vector<64x16xbf16>, vector<16x64xbf16>, vector<64x64xf32> -> vector<64x64xf32>
    %c1_i32_10 = arith.constant 1 : i32
    %20 = vector.broadcast %c1_i32_10 : i32 to vector<64x64xi32>
    %21 = arith.muli %20, %3 : vector<64x64xi32>
    %c0_i32 = arith.constant 0 : i32
    %22 = vector.broadcast %c0_i32 : i32 to vector<64x64xi32>
    %23 = arith.addi %21, %22 : vector<64x64xi32>
    %24 = arith.cmpi eq, %4, %23 : vector<64x64xi32>
    %cst_11 = arith.constant 1.000000e+00 : f32
    %cst_12 = arith.constant 0.000000e+00 : f32
    %25 = vector.broadcast %cst_11 : f32 to vector<64x64xf32>
    %26 = vector.broadcast %cst_12 : f32 to vector<64x64xf32>
    %27 = arith.select %24, %25, %26 : vector<64x64xi1>, vector<64x64xf32>
    %28 = arith.truncf %27 : vector<64x64xf32> to vector<64x64xbf16>
    %cst_13 = arith.constant dense<0.000000e+00> : vector<64x16xf32>
    %29 = tpu.matmul %28, %5, %cst_13 {dimension_numbers = #tpu.dot_dimension_numbers<[1], [0], [0], [1], [0, 0, 1, 1], [], []>} : vector<64x64xbf16>, vector<64x16xbf16>, vector<64x16xf32> -> vector<64x16xf32>
    %c1 = arith.constant 1 : index
    %c0_14 = arith.constant 0 : index
    %c0_15 = arith.constant 0 : index
    %30 = vector.load %arg2[%c1, %c0_14, %c0_15] : memref<3x16x64xbf16, #tpu.memory_space<vmem>>, vector<1x16x64xbf16>
    %31 = vector.shape_cast %30 : vector<1x16x64xbf16> to vector<16x64xbf16>
    %32 = arith.truncf %29 : vector<64x16xf32> to vector<64x16xbf16>
    %cst_16 = arith.constant dense<0.000000e+00> : vector<64x64xf32>
    %33 = tpu.matmul %32, %31, %cst_16 {dimension_numbers = #tpu.dot_dimension_numbers<[1], [0], [0], [1], [0, 0, 1, 1], [], []>} : vector<64x16xbf16>, vector<16x64xbf16>, vector<64x64xf32> -> vector<64x64xf32>
    %34 = arith.addf %19, %33 : vector<64x64xf32>
    %c1_i32_17 = arith.constant 1 : i32
    %35 = vector.broadcast %c1_i32_17 : i32 to vector<64x64xi32>
    %36 = arith.muli %35, %3 : vector<64x64xi32>
    %c1_i32_18 = arith.constant 1 : i32
    %37 = vector.broadcast %c1_i32_18 : i32 to vector<64x64xi32>
    %38 = arith.addi %36, %37 : vector<64x64xi32>
    %39 = arith.cmpi eq, %4, %38 : vector<64x64xi32>
    %cst_19 = arith.constant 1.000000e+00 : f32
    %cst_20 = arith.constant 0.000000e+00 : f32
    %40 = vector.broadcast %cst_19 : f32 to vector<64x64xf32>
    %41 = vector.broadcast %cst_20 : f32 to vector<64x64xf32>
    %42 = arith.select %39, %40, %41 : vector<64x64xi1>, vector<64x64xf32>
    %43 = arith.truncf %42 : vector<64x64xf32> to vector<64x64xbf16>
    %cst_21 = arith.constant dense<0.000000e+00> : vector<64x16xf32>
    %44 = tpu.matmul %43, %5, %cst_21 {dimension_numbers = #tpu.dot_dimension_numbers<[1], [0], [0], [1], [0, 0, 1, 1], [], []>} : vector<64x64xbf16>, vector<64x16xbf16>, vector<64x16xf32> -> vector<64x16xf32>
    %c2 = arith.constant 2 : index
    %c0_22 = arith.constant 0 : index
    %c0_23 = arith.constant 0 : index
    %45 = vector.load %arg2[%c2, %c0_22, %c0_23] : memref<3x16x64xbf16, #tpu.memory_space<vmem>>, vector<1x16x64xbf16>
    %46 = vector.shape_cast %45 : vector<1x16x64xbf16> to vector<16x64xbf16>
    %47 = arith.truncf %44 : vector<64x16xf32> to vector<64x16xbf16>
    %cst_24 = arith.constant dense<0.000000e+00> : vector<64x64xf32>
    %48 = tpu.matmul %47, %46, %cst_24 {dimension_numbers = #tpu.dot_dimension_numbers<[1], [0], [0], [1], [0, 0, 1, 1], [], []>} : vector<64x16xbf16>, vector<16x64xbf16>, vector<64x64xf32> -> vector<64x64xf32>
    %49 = arith.addf %34, %48 : vector<64x64xf32>
    %50 = vector.broadcast %2 : vector<1x64xf32> to vector<64x64xf32>
    %51 = arith.addf %49, %50 : vector<64x64xf32>
    %52 = arith.mulf %51, %51 : vector<64x64xf32>
    %53 = arith.mulf %51, %52 : vector<64x64xf32>
    %cst_25 = arith.constant 4.471500e-02 : f32
    %54 = vector.broadcast %cst_25 : f32 to vector<64x64xf32>
    %55 = arith.mulf %54, %53 : vector<64x64xf32>
    %56 = arith.addf %51, %55 : vector<64x64xf32>
    %cst_26 = arith.constant 0.797884583 : f32
    %57 = vector.broadcast %cst_26 : f32 to vector<64x64xf32>
    %58 = arith.mulf %57, %56 : vector<64x64xf32>
    %59 = math.tanh %58 : vector<64x64xf32>
    %cst_27 = arith.constant 1.000000e+00 : f32
    %60 = vector.broadcast %cst_27 : f32 to vector<64x64xf32>
    %61 = arith.addf %60, %59 : vector<64x64xf32>
    %cst_28 = arith.constant 5.000000e-01 : f32
    %62 = vector.broadcast %cst_28 : f32 to vector<64x64xf32>
    %63 = arith.mulf %62, %61 : vector<64x64xf32>
    %64 = arith.mulf %51, %63 : vector<64x64xf32>
    %c0_29 = arith.constant 0 : index
    %c0_30 = arith.constant 0 : index
    %65 = vector.load %arg5[%c0_29, %c0_30] : memref<1x64xf32, #tpu.memory_space<vmem>>, vector<1x64xf32>
    %66 = tpu.iota {dimensions = array<i32: 0>} : vector<32x64xi32>
    %67 = tpu.iota {dimensions = array<i32: 1>} : vector<32x64xi32>
    %68 = arith.truncf %64 : vector<64x64xf32> to vector<64x64xbf16>
    %c2_i32 = arith.constant 2 : i32
    %69 = vector.broadcast %c2_i32 : i32 to vector<32x64xi32>
    %70 = arith.muli %69, %66 : vector<32x64xi32>
    %c-1_i32_31 = arith.constant -1 : i32
    %71 = vector.broadcast %c-1_i32_31 : i32 to vector<32x64xi32>
    %72 = arith.addi %70, %71 : vector<32x64xi32>
    %73 = arith.cmpi eq, %67, %72 : vector<32x64xi32>
    %cst_32 = arith.constant 1.000000e+00 : f32
    %cst_33 = arith.constant 0.000000e+00 : f32
    %74 = vector.broadcast %cst_32 : f32 to vector<32x64xf32>
    %75 = vector.broadcast %cst_33 : f32 to vector<32x64xf32>
    %76 = arith.select %73, %74, %75 : vector<32x64xi1>, vector<32x64xf32>
    %77 = arith.truncf %76 : vector<32x64xf32> to vector<32x64xbf16>
    %cst_34 = arith.constant dense<0.000000e+00> : vector<32x64xf32>
    %78 = tpu.matmul %77, %68, %cst_34 {dimension_numbers = #tpu.dot_dimension_numbers<[1], [0], [0], [1], [0, 0, 1, 1], [], []>} : vector<32x64xbf16>, vector<64x64xbf16>, vector<32x64xf32> -> vector<32x64xf32>
    %c0_35 = arith.constant 0 : index
    %c0_36 = arith.constant 0 : index
    %c0_37 = arith.constant 0 : index
    %79 = vector.load %arg4[%c0_35, %c0_36, %c0_37] : memref<3x64x64xbf16, #tpu.memory_space<vmem>>, vector<1x64x64xbf16>
    %80 = vector.shape_cast %79 : vector<1x64x64xbf16> to vector<64x64xbf16>
    %81 = arith.truncf %78 : vector<32x64xf32> to vector<32x64xbf16>
    %cst_38 = arith.constant dense<0.000000e+00> : vector<32x64xf32>
    %82 = tpu.matmul %81, %80, %cst_38 {dimension_numbers = #tpu.dot_dimension_numbers<[1], [0], [0], [1], [0, 0, 1, 1], [], []>} : vector<32x64xbf16>, vector<64x64xbf16>, vector<32x64xf32> -> vector<32x64xf32>
    %c2_i32_39 = arith.constant 2 : i32
    %83 = vector.broadcast %c2_i32_39 : i32 to vector<32x64xi32>
    %84 = arith.muli %83, %66 : vector<32x64xi32>
    %c0_i32_40 = arith.constant 0 : i32
    %85 = vector.broadcast %c0_i32_40 : i32 to vector<32x64xi32>
    %86 = arith.addi %84, %85 : vector<32x64xi32>
    %87 = arith.cmpi eq, %67, %86 : vector<32x64xi32>
    %cst_41 = arith.constant 1.000000e+00 : f32
    %cst_42 = arith.constant 0.000000e+00 : f32
    %88 = vector.broadcast %cst_41 : f32 to vector<32x64xf32>
    %89 = vector.broadcast %cst_42 : f32 to vector<32x64xf32>
    %90 = arith.select %87, %88, %89 : vector<32x64xi1>, vector<32x64xf32>
    %91 = arith.truncf %90 : vector<32x64xf32> to vector<32x64xbf16>
    %cst_43 = arith.constant dense<0.000000e+00> : vector<32x64xf32>
    %92 = tpu.matmul %91, %68, %cst_43 {dimension_numbers = #tpu.dot_dimension_numbers<[1], [0], [0], [1], [0, 0, 1, 1], [], []>} : vector<32x64xbf16>, vector<64x64xbf16>, vector<32x64xf32> -> vector<32x64xf32>
    %c1_44 = arith.constant 1 : index
    %c0_45 = arith.constant 0 : index
    %c0_46 = arith.constant 0 : index
    %93 = vector.load %arg4[%c1_44, %c0_45, %c0_46] : memref<3x64x64xbf16, #tpu.memory_space<vmem>>, vector<1x64x64xbf16>
    %94 = vector.shape_cast %93 : vector<1x64x64xbf16> to vector<64x64xbf16>
    %95 = arith.truncf %92 : vector<32x64xf32> to vector<32x64xbf16>
    %cst_47 = arith.constant dense<0.000000e+00> : vector<32x64xf32>
    %96 = tpu.matmul %95, %94, %cst_47 {dimension_numbers = #tpu.dot_dimension_numbers<[1], [0], [0], [1], [0, 0, 1, 1], [], []>} : vector<32x64xbf16>, vector<64x64xbf16>, vector<32x64xf32> -> vector<32x64xf32>
    %97 = arith.addf %82, %96 : vector<32x64xf32>
    %c2_i32_48 = arith.constant 2 : i32
    %98 = vector.broadcast %c2_i32_48 : i32 to vector<32x64xi32>
    %99 = arith.muli %98, %66 : vector<32x64xi32>
    %c1_i32_49 = arith.constant 1 : i32
    %100 = vector.broadcast %c1_i32_49 : i32 to vector<32x64xi32>
    %101 = arith.addi %99, %100 : vector<32x64xi32>
    %102 = arith.cmpi eq, %67, %101 : vector<32x64xi32>
    %cst_50 = arith.constant 1.000000e+00 : f32
    %cst_51 = arith.constant 0.000000e+00 : f32
    %103 = vector.broadcast %cst_50 : f32 to vector<32x64xf32>
    %104 = vector.broadcast %cst_51 : f32 to vector<32x64xf32>
    %105 = arith.select %102, %103, %104 : vector<32x64xi1>, vector<32x64xf32>
    %106 = arith.truncf %105 : vector<32x64xf32> to vector<32x64xbf16>
    %cst_52 = arith.constant dense<0.000000e+00> : vector<32x64xf32>
    %107 = tpu.matmul %106, %68, %cst_52 {dimension_numbers = #tpu.dot_dimension_numbers<[1], [0], [0], [1], [0, 0, 1, 1], [], []>} : vector<32x64xbf16>, vector<64x64xbf16>, vector<32x64xf32> -> vector<32x64xf32>
    %c2_53 = arith.constant 2 : index
    %c0_54 = arith.constant 0 : index
    %c0_55 = arith.constant 0 : index
    %108 = vector.load %arg4[%c2_53, %c0_54, %c0_55] : memref<3x64x64xbf16, #tpu.memory_space<vmem>>, vector<1x64x64xbf16>
    %109 = vector.shape_cast %108 : vector<1x64x64xbf16> to vector<64x64xbf16>
    %110 = arith.truncf %107 : vector<32x64xf32> to vector<32x64xbf16>
    %cst_56 = arith.constant dense<0.000000e+00> : vector<32x64xf32>
    %111 = tpu.matmul %110, %109, %cst_56 {dimension_numbers = #tpu.dot_dimension_numbers<[1], [0], [0], [1], [0, 0, 1, 1], [], []>} : vector<32x64xbf16>, vector<64x64xbf16>, vector<32x64xf32> -> vector<32x64xf32>
    %112 = arith.addf %97, %111 : vector<32x64xf32>
    %113 = vector.broadcast %65 : vector<1x64xf32> to vector<32x64xf32>
    %114 = arith.addf %112, %113 : vector<32x64xf32>
    %115 = arith.mulf %114, %114 : vector<32x64xf32>
    %116 = arith.mulf %114, %115 : vector<32x64xf32>
    %cst_57 = arith.constant 4.471500e-02 : f32
    %117 = vector.broadcast %cst_57 : f32 to vector<32x64xf32>
    %118 = arith.mulf %117, %116 : vector<32x64xf32>
    %119 = arith.addf %114, %118 : vector<32x64xf32>
    %cst_58 = arith.constant 0.797884583 : f32
    %120 = vector.broadcast %cst_58 : f32 to vector<32x64xf32>
    %121 = arith.mulf %120, %119 : vector<32x64xf32>
    %122 = math.tanh %121 : vector<32x64xf32>
    %cst_59 = arith.constant 1.000000e+00 : f32
    %123 = vector.broadcast %cst_59 : f32 to vector<32x64xf32>
    %124 = arith.addf %123, %122 : vector<32x64xf32>
    %cst_60 = arith.constant 5.000000e-01 : f32
    %125 = vector.broadcast %cst_60 : f32 to vector<32x64xf32>
    %126 = arith.mulf %125, %124 : vector<32x64xf32>
    %127 = arith.mulf %114, %126 : vector<32x64xf32>
    %c0_61 = arith.constant 0 : index
    %c0_62 = arith.constant 0 : index
    %128 = vector.load %arg6[%c0_61, %c0_62] : memref<32x64xf32, #tpu.memory_space<vmem>>, vector<32x64xf32>
    %129 = arith.addf %127, %128 : vector<32x64xf32>
    %c0_63 = arith.constant 0 : index
    %c0_64 = arith.constant 0 : index
    %130 = vector.load %arg7[%c0_63, %c0_64] : memref<1x64xf32, #tpu.memory_space<vmem>>, vector<1x64xf32>
    %c0_65 = arith.constant 0 : index
    %c0_66 = arith.constant 0 : index
    %131 = vector.load %arg8[%c0_65, %c0_66] : memref<1x64xf32, #tpu.memory_space<vmem>>, vector<1x64xf32>
    %cst_67 = arith.constant dense<0.000000e+00> : vector<32xf32>
    %132 = vector.multi_reduction <add>, %129, %cst_67 [1] : vector<32x64xf32> to vector<32xf32>
    %133 = vector.shape_cast %132 : vector<32xf32> to vector<32x1xf32>
    %cst_68 = arith.constant 6.400000e+01 : f32
    %134 = vector.broadcast %cst_68 : f32 to vector<32x1xf32>
    %135 = arith.divf %133, %134 : vector<32x1xf32>
    %136 = vector.broadcast %135 : vector<32x1xf32> to vector<32x64xf32>
    %137 = arith.subf %129, %136 : vector<32x64xf32>
    %138 = arith.mulf %137, %137 : vector<32x64xf32>
    %cst_69 = arith.constant dense<0.000000e+00> : vector<32xf32>
    %139 = vector.multi_reduction <add>, %138, %cst_69 [1] : vector<32x64xf32> to vector<32xf32>
    %140 = vector.shape_cast %139 : vector<32xf32> to vector<32x1xf32>
    %cst_70 = arith.constant 6.400000e+01 : f32
    %141 = vector.broadcast %cst_70 : f32 to vector<32x1xf32>
    %142 = arith.divf %140, %141 : vector<32x1xf32>
    %cst_71 = arith.constant 9.99999974E-6 : f32
    %143 = vector.broadcast %cst_71 : f32 to vector<32x1xf32>
    %144 = arith.addf %142, %143 : vector<32x1xf32>
    %145 = math.rsqrt %144 : vector<32x1xf32>
    %146 = vector.broadcast %145 : vector<32x1xf32> to vector<32x64xf32>
    %147 = arith.mulf %137, %146 : vector<32x64xf32>
    %148 = vector.broadcast %130 : vector<1x64xf32> to vector<32x64xf32>
    %149 = arith.mulf %147, %148 : vector<32x64xf32>
    %150 = vector.broadcast %131 : vector<1x64xf32> to vector<32x64xf32>
    %151 = arith.addf %149, %150 : vector<32x64xf32>
    %c0_72 = arith.constant 0 : index
    %c0_73 = arith.constant 0 : index
    %152 = vector.load %arg15[%c0_72, %c0_73] : memref<1x64xf32, #tpu.memory_space<vmem>>, vector<1x64xf32>
    %c0_74 = arith.constant 0 : index
    %c0_75 = arith.constant 0 : index
    %c0_76 = arith.constant 0 : index
    %153 = vector.load %arg9[%c0_74, %c0_75, %c0_76] : memref<2x64x32xbf16, #tpu.memory_space<vmem>>, vector<1x64x32xbf16>
    %154 = vector.shape_cast %153 : vector<1x64x32xbf16> to vector<64x32xbf16>
    %155 = arith.truncf %151 : vector<32x64xf32> to vector<32x64xbf16>
    %cst_77 = arith.constant dense<0.000000e+00> : vector<32x32xf32>
    %156 = tpu.matmul %155, %154, %cst_77 {dimension_numbers = #tpu.dot_dimension_numbers<[1], [0], [0], [1], [0, 0, 1, 1], [], []>} : vector<32x64xbf16>, vector<64x32xbf16>, vector<32x32xf32> -> vector<32x32xf32>
    %c0_78 = arith.constant 0 : index
    %c0_79 = arith.constant 0 : index
    %c0_80 = arith.constant 0 : index
    %157 = vector.load %arg10[%c0_78, %c0_79, %c0_80] : memref<2x1x32xf32, #tpu.memory_space<vmem>>, vector<1x1x32xf32>
    %158 = vector.shape_cast %157 : vector<1x1x32xf32> to vector<1x32xf32>
    %159 = vector.broadcast %158 : vector<1x32xf32> to vector<32x32xf32>
    %160 = arith.addf %156, %159 : vector<32x32xf32>
    %c0_81 = arith.constant 0 : index
    %c0_82 = arith.constant 0 : index
    %c0_83 = arith.constant 0 : index
    %161 = vector.load %arg11[%c0_81, %c0_82, %c0_83] : memref<2x64x32xbf16, #tpu.memory_space<vmem>>, vector<1x64x32xbf16>
    %162 = vector.shape_cast %161 : vector<1x64x32xbf16> to vector<64x32xbf16>
    %163 = arith.truncf %151 : vector<32x64xf32> to vector<32x64xbf16>
    %cst_84 = arith.constant dense<0.000000e+00> : vector<32x32xf32>
    %164 = tpu.matmul %163, %162, %cst_84 {dimension_numbers = #tpu.dot_dimension_numbers<[1], [0], [0], [1], [0, 0, 1, 1], [], []>} : vector<32x64xbf16>, vector<64x32xbf16>, vector<32x32xf32> -> vector<32x32xf32>
    %c0_85 = arith.constant 0 : index
    %c0_86 = arith.constant 0 : index
    %c0_87 = arith.constant 0 : index
    %165 = vector.load %arg12[%c0_85, %c0_86, %c0_87] : memref<2x64x32xbf16, #tpu.memory_space<vmem>>, vector<1x64x32xbf16>
    %166 = vector.shape_cast %165 : vector<1x64x32xbf16> to vector<64x32xbf16>
    %167 = arith.truncf %151 : vector<32x64xf32> to vector<32x64xbf16>
    %cst_88 = arith.constant dense<0.000000e+00> : vector<32x32xf32>
    %168 = tpu.matmul %167, %166, %cst_88 {dimension_numbers = #tpu.dot_dimension_numbers<[1], [0], [0], [1], [0, 0, 1, 1], [], []>} : vector<32x64xbf16>, vector<64x32xbf16>, vector<32x32xf32> -> vector<32x32xf32>
    %c0_89 = arith.constant 0 : index
    %c0_90 = arith.constant 0 : index
    %c0_91 = arith.constant 0 : index
    %169 = vector.load %arg13[%c0_89, %c0_90, %c0_91] : memref<2x1x32xf32, #tpu.memory_space<vmem>>, vector<1x1x32xf32>
    %170 = vector.shape_cast %169 : vector<1x1x32xf32> to vector<1x32xf32>
    %171 = vector.broadcast %170 : vector<1x32xf32> to vector<32x32xf32>
    %172 = arith.addf %168, %171 : vector<32x32xf32>
    %173 = arith.truncf %160 : vector<32x32xf32> to vector<32x32xbf16>
    %174 = arith.truncf %164 : vector<32x32xf32> to vector<32x32xbf16>
    "tpu.trace_start"() <{level = 10 : i32, message = "qd,kd->qk"}> : () -> ()
    %cst_92 = arith.constant dense<0.000000e+00> : vector<32x32xf32>
    %175 = tpu.matmul %173, %174, %cst_92 {dimension_numbers = #tpu.dot_dimension_numbers<[1], [1], [0], [0], [0, 0, 1, 0], [], []>} : vector<32x32xbf16>, vector<32x32xbf16>, vector<32x32xf32> -> vector<32x32xf32>
    "tpu.trace_stop"() : () -> ()
    %cst_93 = arith.constant dense<0xFF800000> : vector<32xf32>
    %176 = vector.multi_reduction <maximumf>, %175, %cst_93 [1] : vector<32x32xf32> to vector<32xf32>
    %177 = vector.shape_cast %176 : vector<32xf32> to vector<32x1xf32>
    %178 = vector.broadcast %177 : vector<32x1xf32> to vector<32x32xf32>
    %179 = arith.subf %175, %178 : vector<32x32xf32>
    %180 = math.exp %179 : vector<32x32xf32>
    %cst_94 = arith.constant dense<0.000000e+00> : vector<32xf32>
    %181 = vector.multi_reduction <add>, %180, %cst_94 [1] : vector<32x32xf32> to vector<32xf32>
    %182 = vector.shape_cast %181 : vector<32xf32> to vector<32x1xf32>
    %183 = tpu.reciprocal %182 {approx = true} : vector<32x1xf32> -> vector<32x1xf32>
    %184 = vector.broadcast %183 : vector<32x1xf32> to vector<32x32xf32>
    %185 = arith.mulf %180, %184 : vector<32x32xf32>
    %186 = arith.truncf %185 : vector<32x32xf32> to vector<32x32xbf16>
    %187 = arith.truncf %172 : vector<32x32xf32> to vector<32x32xbf16>
    %cst_95 = arith.constant dense<0.000000e+00> : vector<32x32xf32>
    %188 = tpu.matmul %186, %187, %cst_95 {dimension_numbers = #tpu.dot_dimension_numbers<[1], [0], [0], [1], [0, 0, 1, 1], [], []>} : vector<32x32xbf16>, vector<32x32xbf16>, vector<32x32xf32> -> vector<32x32xf32>
    %c0_96 = arith.constant 0 : index
    %c0_97 = arith.constant 0 : index
    %c0_98 = arith.constant 0 : index
    %189 = vector.load %arg14[%c0_96, %c0_97, %c0_98] : memref<2x32x64xbf16, #tpu.memory_space<vmem>>, vector<1x32x64xbf16>
    %190 = vector.shape_cast %189 : vector<1x32x64xbf16> to vector<32x64xbf16>
    %191 = arith.truncf %188 : vector<32x32xf32> to vector<32x32xbf16>
    %cst_99 = arith.constant dense<0.000000e+00> : vector<32x64xf32>
    %192 = tpu.matmul %191, %190, %cst_99 {dimension_numbers = #tpu.dot_dimension_numbers<[1], [0], [0], [1], [0, 0, 1, 1], [], []>} : vector<32x32xbf16>, vector<32x64xbf16>, vector<32x64xf32> -> vector<32x64xf32>
    %c1_100 = arith.constant 1 : index
    %c0_101 = arith.constant 0 : index
    %c0_102 = arith.constant 0 : index
    %193 = vector.load %arg9[%c1_100, %c0_101, %c0_102] : memref<2x64x32xbf16, #tpu.memory_space<vmem>>, vector<1x64x32xbf16>
    %194 = vector.shape_cast %193 : vector<1x64x32xbf16> to vector<64x32xbf16>
    %195 = arith.truncf %151 : vector<32x64xf32> to vector<32x64xbf16>
    %cst_103 = arith.constant dense<0.000000e+00> : vector<32x32xf32>
    %196 = tpu.matmul %195, %194, %cst_103 {dimension_numbers = #tpu.dot_dimension_numbers<[1], [0], [0], [1], [0, 0, 1, 1], [], []>} : vector<32x64xbf16>, vector<64x32xbf16>, vector<32x32xf32> -> vector<32x32xf32>
    %c1_104 = arith.constant 1 : index
    %c0_105 = arith.constant 0 : index
    %c0_106 = arith.constant 0 : index
    %197 = vector.load %arg10[%c1_104, %c0_105, %c0_106] : memref<2x1x32xf32, #tpu.memory_space<vmem>>, vector<1x1x32xf32>
    %198 = vector.shape_cast %197 : vector<1x1x32xf32> to vector<1x32xf32>
    %199 = vector.broadcast %198 : vector<1x32xf32> to vector<32x32xf32>
    %200 = arith.addf %196, %199 : vector<32x32xf32>
    %c1_107 = arith.constant 1 : index
    %c0_108 = arith.constant 0 : index
    %c0_109 = arith.constant 0 : index
    %201 = vector.load %arg11[%c1_107, %c0_108, %c0_109] : memref<2x64x32xbf16, #tpu.memory_space<vmem>>, vector<1x64x32xbf16>
    %202 = vector.shape_cast %201 : vector<1x64x32xbf16> to vector<64x32xbf16>
    %203 = arith.truncf %151 : vector<32x64xf32> to vector<32x64xbf16>
    %cst_110 = arith.constant dense<0.000000e+00> : vector<32x32xf32>
    %204 = tpu.matmul %203, %202, %cst_110 {dimension_numbers = #tpu.dot_dimension_numbers<[1], [0], [0], [1], [0, 0, 1, 1], [], []>} : vector<32x64xbf16>, vector<64x32xbf16>, vector<32x32xf32> -> vector<32x32xf32>
    %c1_111 = arith.constant 1 : index
    %c0_112 = arith.constant 0 : index
    %c0_113 = arith.constant 0 : index
    %205 = vector.load %arg12[%c1_111, %c0_112, %c0_113] : memref<2x64x32xbf16, #tpu.memory_space<vmem>>, vector<1x64x32xbf16>
    %206 = vector.shape_cast %205 : vector<1x64x32xbf16> to vector<64x32xbf16>
    %207 = arith.truncf %151 : vector<32x64xf32> to vector<32x64xbf16>
    %cst_114 = arith.constant dense<0.000000e+00> : vector<32x32xf32>
    %208 = tpu.matmul %207, %206, %cst_114 {dimension_numbers = #tpu.dot_dimension_numbers<[1], [0], [0], [1], [0, 0, 1, 1], [], []>} : vector<32x64xbf16>, vector<64x32xbf16>, vector<32x32xf32> -> vector<32x32xf32>
    %c1_115 = arith.constant 1 : index
    %c0_116 = arith.constant 0 : index
    %c0_117 = arith.constant 0 : index
    %209 = vector.load %arg13[%c1_115, %c0_116, %c0_117] : memref<2x1x32xf32, #tpu.memory_space<vmem>>, vector<1x1x32xf32>
    %210 = vector.shape_cast %209 : vector<1x1x32xf32> to vector<1x32xf32>
    %211 = vector.broadcast %210 : vector<1x32xf32> to vector<32x32xf32>
    %212 = arith.addf %208, %211 : vector<32x32xf32>
    %213 = arith.truncf %200 : vector<32x32xf32> to vector<32x32xbf16>
    %214 = arith.truncf %204 : vector<32x32xf32> to vector<32x32xbf16>
    "tpu.trace_start"() <{level = 10 : i32, message = "qd,kd->qk"}> : () -> ()
    %cst_118 = arith.constant dense<0.000000e+00> : vector<32x32xf32>
    %215 = tpu.matmul %213, %214, %cst_118 {dimension_numbers = #tpu.dot_dimension_numbers<[1], [1], [0], [0], [0, 0, 1, 0], [], []>} : vector<32x32xbf16>, vector<32x32xbf16>, vector<32x32xf32> -> vector<32x32xf32>
    "tpu.trace_stop"() : () -> ()
    %cst_119 = arith.constant dense<0xFF800000> : vector<32xf32>
    %216 = vector.multi_reduction <maximumf>, %215, %cst_119 [1] : vector<32x32xf32> to vector<32xf32>
    %217 = vector.shape_cast %216 : vector<32xf32> to vector<32x1xf32>
    %218 = vector.broadcast %217 : vector<32x1xf32> to vector<32x32xf32>
    %219 = arith.subf %215, %218 : vector<32x32xf32>
    %220 = math.exp %219 : vector<32x32xf32>
    %cst_120 = arith.constant dense<0.000000e+00> : vector<32xf32>
    %221 = vector.multi_reduction <add>, %220, %cst_120 [1] : vector<32x32xf32> to vector<32xf32>
    %222 = vector.shape_cast %221 : vector<32xf32> to vector<32x1xf32>
    %223 = tpu.reciprocal %222 {approx = true} : vector<32x1xf32> -> vector<32x1xf32>
    %224 = vector.broadcast %223 : vector<32x1xf32> to vector<32x32xf32>
    %225 = arith.mulf %220, %224 : vector<32x32xf32>
    %226 = arith.truncf %225 : vector<32x32xf32> to vector<32x32xbf16>
    %227 = arith.truncf %212 : vector<32x32xf32> to vector<32x32xbf16>
    %cst_121 = arith.constant dense<0.000000e+00> : vector<32x32xf32>
    %228 = tpu.matmul %226, %227, %cst_121 {dimension_numbers = #tpu.dot_dimension_numbers<[1], [0], [0], [1], [0, 0, 1, 1], [], []>} : vector<32x32xbf16>, vector<32x32xbf16>, vector<32x32xf32> -> vector<32x32xf32>
    %c1_122 = arith.constant 1 : index
    %c0_123 = arith.constant 0 : index
    %c0_124 = arith.constant 0 : index
    %229 = vector.load %arg14[%c1_122, %c0_123, %c0_124] : memref<2x32x64xbf16, #tpu.memory_space<vmem>>, vector<1x32x64xbf16>
    %230 = vector.shape_cast %229 : vector<1x32x64xbf16> to vector<32x64xbf16>
    %231 = arith.truncf %228 : vector<32x32xf32> to vector<32x32xbf16>
    %cst_125 = arith.constant dense<0.000000e+00> : vector<32x64xf32>
    %232 = tpu.matmul %231, %230, %cst_125 {dimension_numbers = #tpu.dot_dimension_numbers<[1], [0], [0], [1], [0, 0, 1, 1], [], []>} : vector<32x32xbf16>, vector<32x64xbf16>, vector<32x64xf32> -> vector<32x64xf32>
    %233 = arith.addf %192, %232 : vector<32x64xf32>
    %234 = vector.broadcast %152 : vector<1x64xf32> to vector<32x64xf32>
    %235 = arith.addf %233, %234 : vector<32x64xf32>
    %236 = arith.addf %129, %235 : vector<32x64xf32>
    %c0_126 = arith.constant 0 : index
    %c0_127 = arith.constant 0 : index
    %237 = vector.load %arg16[%c0_126, %c0_127] : memref<1x64xf32, #tpu.memory_space<vmem>>, vector<1x64xf32>
    %c0_128 = arith.constant 0 : index
    %c0_129 = arith.constant 0 : index
    %238 = vector.load %arg17[%c0_128, %c0_129] : memref<1x64xf32, #tpu.memory_space<vmem>>, vector<1x64xf32>
    %cst_130 = arith.constant dense<0.000000e+00> : vector<32xf32>
    %239 = vector.multi_reduction <add>, %236, %cst_130 [1] : vector<32x64xf32> to vector<32xf32>
    %240 = vector.shape_cast %239 : vector<32xf32> to vector<32x1xf32>
    %cst_131 = arith.constant 6.400000e+01 : f32
    %241 = vector.broadcast %cst_131 : f32 to vector<32x1xf32>
    %242 = arith.divf %240, %241 : vector<32x1xf32>
    %243 = vector.broadcast %242 : vector<32x1xf32> to vector<32x64xf32>
    %244 = arith.subf %236, %243 : vector<32x64xf32>
    %245 = arith.mulf %244, %244 : vector<32x64xf32>
    %cst_132 = arith.constant dense<0.000000e+00> : vector<32xf32>
    %246 = vector.multi_reduction <add>, %245, %cst_132 [1] : vector<32x64xf32> to vector<32xf32>
    %247 = vector.shape_cast %246 : vector<32xf32> to vector<32x1xf32>
    %cst_133 = arith.constant 6.400000e+01 : f32
    %248 = vector.broadcast %cst_133 : f32 to vector<32x1xf32>
    %249 = arith.divf %247, %248 : vector<32x1xf32>
    %cst_134 = arith.constant 9.99999974E-6 : f32
    %250 = vector.broadcast %cst_134 : f32 to vector<32x1xf32>
    %251 = arith.addf %249, %250 : vector<32x1xf32>
    %252 = math.rsqrt %251 : vector<32x1xf32>
    %253 = vector.broadcast %252 : vector<32x1xf32> to vector<32x64xf32>
    %254 = arith.mulf %244, %253 : vector<32x64xf32>
    %255 = vector.broadcast %237 : vector<1x64xf32> to vector<32x64xf32>
    %256 = arith.mulf %254, %255 : vector<32x64xf32>
    %257 = vector.broadcast %238 : vector<1x64xf32> to vector<32x64xf32>
    %258 = arith.addf %256, %257 : vector<32x64xf32>
    %c0_135 = arith.constant 0 : index
    %c0_136 = arith.constant 0 : index
    %259 = vector.load %arg18[%c0_135, %c0_136] : memref<64x128xbf16, #tpu.memory_space<vmem>>, vector<64x128xbf16>
    %260 = arith.truncf %258 : vector<32x64xf32> to vector<32x64xbf16>
    %cst_137 = arith.constant dense<0.000000e+00> : vector<32x128xf32>
    %261 = tpu.matmul %260, %259, %cst_137 {dimension_numbers = #tpu.dot_dimension_numbers<[1], [0], [0], [1], [0, 0, 1, 1], [], []>} : vector<32x64xbf16>, vector<64x128xbf16>, vector<32x128xf32> -> vector<32x128xf32>
    %c0_138 = arith.constant 0 : index
    %c0_139 = arith.constant 0 : index
    %262 = vector.load %arg19[%c0_138, %c0_139] : memref<1x128xf32, #tpu.memory_space<vmem>>, vector<1x128xf32>
    %263 = vector.broadcast %262 : vector<1x128xf32> to vector<32x128xf32>
    %264 = arith.addf %261, %263 : vector<32x128xf32>
    %265 = arith.mulf %264, %264 : vector<32x128xf32>
    %266 = arith.mulf %264, %265 : vector<32x128xf32>
    %cst_140 = arith.constant 4.471500e-02 : f32
    %267 = vector.broadcast %cst_140 : f32 to vector<32x128xf32>
    %268 = arith.mulf %267, %266 : vector<32x128xf32>
    %269 = arith.addf %264, %268 : vector<32x128xf32>
    %cst_141 = arith.constant 0.797884583 : f32
    %270 = vector.broadcast %cst_141 : f32 to vector<32x128xf32>
    %271 = arith.mulf %270, %269 : vector<32x128xf32>
    %272 = math.tanh %271 : vector<32x128xf32>
    %cst_142 = arith.constant 1.000000e+00 : f32
    %273 = vector.broadcast %cst_142 : f32 to vector<32x128xf32>
    %274 = arith.addf %273, %272 : vector<32x128xf32>
    %cst_143 = arith.constant 5.000000e-01 : f32
    %275 = vector.broadcast %cst_143 : f32 to vector<32x128xf32>
    %276 = arith.mulf %275, %274 : vector<32x128xf32>
    %277 = arith.mulf %264, %276 : vector<32x128xf32>
    %c0_144 = arith.constant 0 : index
    %c0_145 = arith.constant 0 : index
    %278 = vector.load %arg20[%c0_144, %c0_145] : memref<128x64xbf16, #tpu.memory_space<vmem>>, vector<128x64xbf16>
    %279 = arith.truncf %277 : vector<32x128xf32> to vector<32x128xbf16>
    %cst_146 = arith.constant dense<0.000000e+00> : vector<32x64xf32>
    %280 = tpu.matmul %279, %278, %cst_146 {dimension_numbers = #tpu.dot_dimension_numbers<[1], [0], [0], [1], [0, 0, 1, 1], [], []>} : vector<32x128xbf16>, vector<128x64xbf16>, vector<32x64xf32> -> vector<32x64xf32>
    %281 = arith.addf %236, %280 : vector<32x64xf32>
    %c0_147 = arith.constant 0 : index
    %c0_148 = arith.constant 0 : index
    %282 = vector.load %arg21[%c0_147, %c0_148] : memref<1x64xf32, #tpu.memory_space<vmem>>, vector<1x64xf32>
    %283 = vector.broadcast %282 : vector<1x64xf32> to vector<32x64xf32>
    %284 = arith.addf %281, %283 : vector<32x64xf32>
    %c0_149 = arith.constant 0 : index
    %c0_150 = arith.constant 0 : index
    %285 = vector.load %arg22[%c0_149, %c0_150] : memref<1x64xf32, #tpu.memory_space<vmem>>, vector<1x64xf32>
    %c0_151 = arith.constant 0 : index
    %c0_152 = arith.constant 0 : index
    %286 = vector.load %arg23[%c0_151, %c0_152] : memref<1x64xf32, #tpu.memory_space<vmem>>, vector<1x64xf32>
    %cst_153 = arith.constant dense<0.000000e+00> : vector<32xf32>
    %287 = vector.multi_reduction <add>, %284, %cst_153 [1] : vector<32x64xf32> to vector<32xf32>
    %288 = vector.shape_cast %287 : vector<32xf32> to vector<32x1xf32>
    %cst_154 = arith.constant 6.400000e+01 : f32
    %289 = vector.broadcast %cst_154 : f32 to vector<32x1xf32>
    %290 = arith.divf %288, %289 : vector<32x1xf32>
    %291 = vector.broadcast %290 : vector<32x1xf32> to vector<32x64xf32>
    %292 = arith.subf %284, %291 : vector<32x64xf32>
    %293 = arith.mulf %292, %292 : vector<32x64xf32>
    %cst_155 = arith.constant dense<0.000000e+00> : vector<32xf32>
    %294 = vector.multi_reduction <add>, %293, %cst_155 [1] : vector<32x64xf32> to vector<32xf32>
    %295 = vector.shape_cast %294 : vector<32xf32> to vector<32x1xf32>
    %cst_156 = arith.constant 6.400000e+01 : f32
    %296 = vector.broadcast %cst_156 : f32 to vector<32x1xf32>
    %297 = arith.divf %295, %296 : vector<32x1xf32>
    %cst_157 = arith.constant 9.99999974E-6 : f32
    %298 = vector.broadcast %cst_157 : f32 to vector<32x1xf32>
    %299 = arith.addf %297, %298 : vector<32x1xf32>
    %300 = math.rsqrt %299 : vector<32x1xf32>
    %301 = vector.broadcast %300 : vector<32x1xf32> to vector<32x64xf32>
    %302 = arith.mulf %292, %301 : vector<32x64xf32>
    %303 = vector.broadcast %285 : vector<1x64xf32> to vector<32x64xf32>
    %304 = arith.mulf %302, %303 : vector<32x64xf32>
    %305 = vector.broadcast %286 : vector<1x64xf32> to vector<32x64xf32>
    %306 = arith.addf %304, %305 : vector<32x64xf32>
    %307 = arith.truncf %306 : vector<32x64xf32> to vector<32x64xbf16>
    %c0_158 = arith.constant 0 : index
    %c0_159 = arith.constant 0 : index
    %c0_160 = arith.constant 0 : index
    %308 = vector.load %arg24[%c0_158, %c0_159, %c0_160] : memref<1x32x64xbf16, #tpu.memory_space<vmem>>, vector<1x32x64xbf16>
    %309 = vector.shape_cast %308 : vector<1x32x64xbf16> to vector<32x64xbf16>
    %310 = vector.shape_cast %307 : vector<32x64xbf16> to vector<1x32x64xbf16>
    tpu.vector_store %arg24[%c0_158, %c0_159, %c0_160], %310 {strides = array<i32>} : memref<1x32x64xbf16, #tpu.memory_space<vmem>>, vector<1x32x64xbf16>,
    return
  }
  func.func @transform_0(%arg0: i32) -> (i32, i32, i32) {
    %c0_i32 = arith.constant 0 : i32
    %c0_i32_0 = arith.constant 0 : i32
    %c0_i32_1 = arith.constant 0 : i32
    return %arg0, %c0_i32, %c0_i32_0 : i32, i32, i32
  }
  func.func @transform_1(%arg0: i32) -> (i32, i32, i32) {
    %c0_i32 = arith.constant 0 : i32
    %c0_i32_0 = arith.constant 0 : i32
    %c0_i32_1 = arith.constant 0 : i32
    %c0_i32_2 = arith.constant 0 : i32
    return %c0_i32, %c0_i32_0, %c0_i32_1 : i32, i32, i32
  }
  func.func @transform_2(%arg0: i32) -> (i32, i32) {
    %c0_i32 = arith.constant 0 : i32
    %c0_i32_0 = arith.constant 0 : i32
    %c0_i32_1 = arith.constant 0 : i32
    return %c0_i32, %c0_i32_0 : i32, i32
  }
  func.func @transform_3(%arg0: i32) -> (i32, i32, i32) {
    %c0_i32 = arith.constant 0 : i32
    %c0_i32_0 = arith.constant 0 : i32
    %c0_i32_1 = arith.constant 0 : i32
    %c0_i32_2 = arith.constant 0 : i32
    return %c0_i32, %c0_i32_0, %c0_i32_1 : i32, i32, i32
  }
  func.func @transform_4(%arg0: i32) -> (i32, i32) {
    %c0_i32 = arith.constant 0 : i32
    %c0_i32_0 = arith.constant 0 : i32
    %c0_i32_1 = arith.constant 0 : i32
    return %c0_i32, %c0_i32_0 : i32, i32
  }
  func.func @transform_5(%arg0: i32) -> (i32, i32) {
    %c0_i32 = arith.constant 0 : i32
    %c0_i32_0 = arith.constant 0 : i32
    %c0_i32_1 = arith.constant 0 : i32
    return %c0_i32, %c0_i32_0 : i32, i32
  }
  func.func @transform_6(%arg0: i32) -> (i32, i32) {
    %c0_i32 = arith.constant 0 : i32
    %c0_i32_0 = arith.constant 0 : i32
    %c0_i32_1 = arith.constant 0 : i32
    return %c0_i32, %c0_i32_0 : i32, i32
  }
  func.func @transform_7(%arg0: i32) -> (i32, i32) {
    %c0_i32 = arith.constant 0 : i32
    %c0_i32_0 = arith.constant 0 : i32
    %c0_i32_1 = arith.constant 0 : i32
    return %c0_i32, %c0_i32_0 : i32, i32
  }
  func.func @transform_8(%arg0: i32) -> (i32, i32, i32) {
    %c0_i32 = arith.constant 0 : i32
    %c0_i32_0 = arith.constant 0 : i32
    %c0_i32_1 = arith.constant 0 : i32
    %c0_i32_2 = arith.constant 0 : i32
    return %c0_i32, %c0_i32_0, %c0_i32_1 : i32, i32, i32
  }
  func.func @transform_9(%arg0: i32) -> (i32, i32, i32) {
    %c0_i32 = arith.constant 0 : i32
    %c0_i32_0 = arith.constant 0 : i32
    %c0_i32_1 = arith.constant 0 : i32
    %c0_i32_2 = arith.constant 0 : i32
    return %c0_i32, %c0_i32_0, %c0_i32_1 : i32, i32, i32
  }
  func.func @transform_10(%arg0: i32) -> (i32, i32, i32) {
    %c0_i32 = arith.constant 0 : i32
    %c0_i32_0 = arith.constant 0 : i32
    %c0_i32_1 = arith.constant 0 : i32
    %c0_i32_2 = arith.constant 0 : i32
    return %c0_i32, %c0_i32_0, %c0_i32_1 : i32, i32, i32
  }
  func.func @transform_11(%arg0: i32) -> (i32, i32, i32) {
    %c0_i32 = arith.constant 0 : i32
    %c0_i32_0 = arith.constant 0 : i32
    %c0_i32_1 = arith.constant 0 : i32
    %c0_i32_2 = arith.constant 0 : i32
    return %c0_i32, %c0_i32_0, %c0_i32_1 : i32, i32, i32
  }
  func.func @transform_12(%arg0: i32) -> (i32, i32, i32) {
    %c0_i32 = arith.constant 0 : i32
    %c0_i32_0 = arith.constant 0 : i32
    %c0_i32_1 = arith.constant 0 : i32
    %c0_i32_2 = arith.constant 0 : i32
    return %c0_i32, %c0_i32_0, %c0_i32_1 : i32, i32, i32
  }
  func.func @transform_13(%arg0: i32) -> (i32, i32, i32) {
    %c0_i32 = arith.constant 0 : i32
    %c0_i32_0 = arith.constant 0 : i32
    %c0_i32_1 = arith.constant 0 : i32
    %c0_i32_2 = arith.constant 0 : i32
    return %c0_i32, %c0_i32_0, %c0_i32_1 : i32, i32, i32
  }
  func.func @transform_14(%arg0: i32) -> (i32, i32) {
    %c0_i32 = arith.constant 0 : i32
    %c0_i32_0 = arith.constant 0 : i32
    %c0_i32_1 = arith.constant 0 : i32
    return %c0_i32, %c0_i32_0 : i32, i32
  }
  func.func @transform_15(%arg0: i32) -> (i32, i32) {
    %c0_i32 = arith.constant 0 : i32
    %c0_i32_0 = arith.constant 0 : i32
    %c0_i32_1 = arith.constant 0 : i32
    return %c0_i32, %c0_i32_0 : i32, i32
  }
  func.func @transform_16(%arg0: i32) -> (i32, i32) {
    %c0_i32 = arith.constant 0 : i32
    %c0_i32_0 = arith.constant 0 : i32
    %c0_i32_1 = arith.constant 0 : i32
    return %c0_i32, %c0_i32_0 : i32, i32
  }
  func.func @transform_17(%arg0: i32) -> (i32, i32) {
    %c0_i32 = arith.constant 0 : i32
    %c0_i32_0 = arith.constant 0 : i32
    %c0_i32_1 = arith.constant 0 : i32
    return %c0_i32, %c0_i32_0 : i32, i32
  }
  func.func @transform_18(%arg0: i32) -> (i32, i32) {
    %c0_i32 = arith.constant 0 : i32
    %c0_i32_0 = arith.constant 0 : i32
    %c0_i32_1 = arith.constant 0 : i32
    return %c0_i32, %c0_i32_0 : i32, i32
  }
  func.func @transform_19(%arg0: i32) -> (i32, i32) {
    %c0_i32 = arith.constant 0 : i32
    %c0_i32_0 = arith.constant 0 : i32
    %c0_i32_1 = arith.constant 0 : i32
    return %c0_i32, %c0_i32_0 : i32, i32
  }
  func.func @transform_20(%arg0: i32) -> (i32, i32) {
    %c0_i32 = arith.constant 0 : i32
    %c0_i32_0 = arith.constant 0 : i32
    %c0_i32_1 = arith.constant 0 : i32
    return %c0_i32, %c0_i32_0 : i32, i32
  }
  func.func @transform_21(%arg0: i32) -> (i32, i32) {
    %c0_i32 = arith.constant 0 : i32
    %c0_i32_0 = arith.constant 0 : i32
    %c0_i32_1 = arith.constant 0 : i32
    return %c0_i32, %c0_i32_0 : i32, i32
  }
  func.func @transform_22(%arg0: i32) -> (i32, i32) {
    %c0_i32 = arith.constant 0 : i32
    %c0_i32_0 = arith.constant 0 : i32
    %c0_i32_1 = arith.constant 0 : i32
    return %c0_i32, %c0_i32_0 : i32, i32
  }
  func.func @transform_23(%arg0: i32) -> (i32, i32, i32) {
    %c0_i32 = arith.constant 0 : i32
    %c0_i32_0 = arith.constant 0 : i32
    %c0_i32_1 = arith.constant 0 : i32
    return %arg0, %c0_i32, %c0_i32_0 : i32, i32, i32
  }
}

</mosaic_0001>

<llo_original>
// kernel: whisper_forward.3
$region0: #{whisper_forward.3}
  #allocation0 [shape = 'u32[]', space=smem, size = 0x4, offset = 0x4, fixed_abs, tag = 'smem constant byte address 0x4 - core index']
  #allocation1 [shape = 'u32[144,128]{1,0:T(1,128)}', space=vmem, size = 0x12000, scoped, tag = 'internal scratch']
  %s0 = inlined_call_operand.smem [shape: u32[30], index: -1, kind: input, shape index: {}]
  %s1 = sld [smem:[%s0]]
  %s2 = scalar_lea.smem %s0, 1
  %s3 = sld [smem:[%s2]]
  %s4 = scalar_lea.smem %s0, 2
  %s5 = sld [smem:[%s4]]
  %s6 = scalar_lea.smem %s0, 3
  %s7 = sld [smem:[%s6]]
  %s8 = scalar_lea.smem %s0, 4
  %s9 = sld [smem:[%s8]]
  %s10 = scalar_lea.smem %s0, 5
  %s11 = sld [smem:[%s10]]
  %s12 = scalar_lea.smem %s0, 6
  %s13 = sld [smem:[%s12]]
  %s14 = scalar_lea.smem %s0, 7
  %s15 = sld [smem:[%s14]]
  %s16 = scalar_lea.smem %s0, 8
  %s17 = sld [smem:[%s16]]
  %s18 = scalar_lea.smem %s0, 9
  %s19 = sld [smem:[%s18]]
  %s20 = scalar_lea.smem %s0, 10
  %s21 = sld [smem:[%s20]]
  %s22 = scalar_lea.smem %s0, 11
  %s23 = sld [smem:[%s22]]
  %s24 = scalar_lea.smem %s0, 12
  %s25 = sld [smem:[%s24]]
  %s26 = scalar_lea.smem %s0, 13
  %s27 = sld [smem:[%s26]]
  %s28 = scalar_lea.smem %s0, 14
  %s29 = sld [smem:[%s28]]
  %s30 = scalar_lea.smem %s0, 15
  %s31 = sld [smem:[%s30]]
  %s32 = scalar_lea.smem %s0, 16
  %s33 = sld [smem:[%s32]]
  %s34 = scalar_lea.smem %s0, 17
  %s35 = sld [smem:[%s34]]
  %s36 = scalar_lea.smem %s0, 18
  %s37 = sld [smem:[%s36]]
  %s38 = scalar_lea.smem %s0, 19
  %s39 = sld [smem:[%s38]]
  %s40 = scalar_lea.smem %s0, 20
  %s41 = sld [smem:[%s40]]
  %s42 = scalar_lea.smem %s0, 21
  %s43 = sld [smem:[%s42]]
  %s44 = scalar_lea.smem %s0, 22
  %s45 = sld [smem:[%s44]]
  %s46 = scalar_lea.smem %s0, 23
  %s47 = sld [smem:[%s46]]
  %s48 = scalar_lea.smem %s0, 24
  %s49 = sld [smem:[%s48]]
  %s50 = scalar_lea.smem %s0, 25
  %s51 = sld [smem:[%s50]]
  %s52 = scalar_lea.smem %s0, 26
  %s53 = sld [smem:[%s52]]
  %s54 = scalar_lea.smem %s0, 27
  %s55 = sld [smem:[%s54]]
  %s56 = scalar_lea.smem %s0, 28
  %s57 = sld [smem:[%s56]]
  %s58 = scalar_lea.smem %s0, 29
  %s59 = sld [smem:[%s58]]
  %s60 = sld [smem:[#allocation0]]
  $region149: #{whisper_forward.3} parent=0
    _
  %s62 = ssub.s32 1, %s60
  %s63 = scalar_select 0, %s62, %s60
  loop: start=0, step=1, limit=4
  $region2: #{whisper_forward.3} parent=0 // loop_pre_header
    _
  $region3: #{whisper_forward.3} parent=0 // loop_header
    %s65 = sphi 0, %s69
    %p66 = scmp.ge.s32.totalorder %s65, 4
    %s75 = sphi 0, %s77
    %s78 = sphi 0, %s75
    %s79 = sphi 0, %s78
    %s95 = sphi 0, %s79
    %s101 = sphi 0, %s103
    %s104 = sphi 0, %s101
    %s105 = sphi 0, %s104
    %s121 = sphi 0, %s105
    %s125 = sphi 0, %s125
    %s127 = sphi 0, %s125
    %s128 = sphi 0, %s127
    %s142 = sphi 0, %s128
    %s146 = sphi 0, %s146
    %s148 = sphi 0, %s146
    %s149 = sphi 0, %s148
    %s163 = sphi 0, %s149
    %s167 = sphi 0, %s167
    %s169 = sphi 0, %s167
    %s170 = sphi 0, %s169
    %s184 = sphi 0, %s170
    %s188 = sphi 0, %s188
    %s190 = sphi 0, %s188
    %s191 = sphi 0, %s190
    %s205 = sphi 0, %s191
    %s209 = sphi 0, %s209
    %s211 = sphi 0, %s209
    %s212 = sphi 0, %s211
    %s226 = sphi 0, %s212
    %s230 = sphi 0, %s230
    %s232 = sphi 0, %s230
    %s233 = sphi 0, %s232
    %s247 = sphi 0, %s233
    %s251 = sphi 0, %s251
    %s253 = sphi 0, %s251
    %s254 = sphi 0, %s253
    %s268 = sphi 0, %s254
    %s272 = sphi 0, %s272
    %s274 = sphi 0, %s272
    %s275 = sphi 0, %s274
    %s289 = sphi 0, %s275
    %s293 = sphi 0, %s293
    %s295 = sphi 0, %s293
    %s296 = sphi 0, %s295
    %s310 = sphi 0, %s296
    %s314 = sphi 0, %s314
    %s316 = sphi 0, %s314
    %s317 = sphi 0, %s316
    %s331 = sphi 0, %s317
    %s335 = sphi 0, %s335
    %s337 = sphi 0, %s335
    %s338 = sphi 0, %s337
    %s352 = sphi 0, %s338
    %s356 = sphi 0, %s356
    %s358 = sphi 0, %s356
    %s359 = sphi 0, %s358
    %s373 = sphi 0, %s359
    %s377 = sphi 0, %s377
    %s379 = sphi 0, %s377
    %s380 = sphi 0, %s379
    %s394 = sphi 0, %s380
    %s398 = sphi 0, %s398
    %s400 = sphi 0, %s398
    %s401 = sphi 0, %s400
    %s415 = sphi 0, %s401
    %s419 = sphi 0, %s419
    %s421 = sphi 0, %s419
    %s422 = sphi 0, %s421
    %s436 = sphi 0, %s422
    %s440 = sphi 0, %s440
    %s442 = sphi 0, %s440
    %s443 = sphi 0, %s442
    %s457 = sphi 0, %s443
    %s461 = sphi 0, %s461
    %s463 = sphi 0, %s461
    %s464 = sphi 0, %s463
    %s478 = sphi 0, %s464
    %s482 = sphi 0, %s482
    %s484 = sphi 0, %s482
    %s485 = sphi 0, %s484
    %s499 = sphi 0, %s485
    %s503 = sphi 0, %s503
    %s505 = sphi 0, %s503
    %s506 = sphi 0, %s505
    %s520 = sphi 0, %s506
    %s524 = sphi 0, %s524
    %s526 = sphi 0, %s524
    %s527 = sphi 0, %s526
    %s541 = sphi 0, %s527
    %s545 = sphi 0, %s545
    %s547 = sphi 0, %s545
    %s548 = sphi 0, %s547
    %s562 = sphi 0, %s548
    %s566 = sphi 0, %s566
    %s568 = sphi 0, %s566
    %s569 = sphi 0, %s568
    %s583 = sphi 0, %s569
    %s587 = sphi 0, %s587
    %s589 = sphi 0, %s587
    %s590 = sphi 0, %s589
    %s604 = sphi 0, %s590
    %s608 = sphi 0, %s608
    %s610 = sphi 0, %s608
    %s611 = sphi 0, %s610
    %s625 = sphi 0, %s611
    %s629 = sphi 0, %s629
    %s631 = sphi 0, %s629
    %s632 = sphi 0, %s631
    %s646 = sphi 0, %s632
    %s650 = sphi 0, %s650
    %s652 = sphi 0, %s650
    %s653 = sphi 0, %s652
    %s667 = sphi 0, %s653
    %s671 = sphi 0, %s671
    %s673 = sphi 0, %s671
    %s674 = sphi 0, %s673
    %s688 = sphi 0, %s674
    %s694 = sphi 0, %s696
    %s697 = sphi 0, %s694
    %s698 = sphi 0, %s697
    %s714 = sphi 0, %s698
  $region4: #{whisper_forward.3} parent=0 // loop_header_branch
    %68 = sbr.rel (%p66) target = $region8
  $region5: #{whisper_forward.3} parent=0 // loop_body
    %s70 = ssub.s32 %s65, 1
    %s71 = ssub.s32 %s65, 2
    %s72 = sadd.s32 %s65, 1
    %s73 = ssub.s32 %s65, %s72
    %p74 = scmp.eq.s32.totalorder %s73, 0
    %s76 = sadd.s32 %s75, 1
    %s77 = scalar_select %p74, %s75, %s76
    %p80 = pneg %p74
    %p81 = scmp.eq.s32.totalorder %s65, 1
    %p82 = por %p80, %p81
    %p83 = scmp.ne.s32.totalorder %s75, %s78
    %p84 = scmp.eq.s32.totalorder %s65, 0
    %p85 = por %p83, %p84
    %p86 = scmp.ne.s32.totalorder %s75, %s78
    %p87 = scmp.eq.s32.totalorder %s70, 1
    %p88 = por %p86, %p87
    %p89 = scmp.ne.s32.totalorder %s78, %s79
    %p90 = scmp.eq.s32.totalorder %s70, 0
    %p91 = por %p89, %p90
    %p92 = scmp.ne.s32.totalorder %s78, %s79
    %p93 = scmp.eq.s32.totalorder %s71, 1
    %p94 = por %p92, %p93
    %p96 = scmp.ne.s32.totalorder %s79, %s95
    %p97 = scmp.eq.s32.totalorder %s71, 0
    %p98 = por %p96, %p97
    %s99 = ssub.s32 %s65, %s72
    %p100 = scmp.eq.s32.totalorder %s99, 0
    %s102 = sadd.s32 %s101, 1
    %s103 = scalar_select %p100, %s101, %s102
    %p106 = pneg %p100
    %p107 = scmp.eq.s32.totalorder %s65, 1
    %p108 = por %p106, %p107
    %p109 = scmp.ne.s32.totalorder %s101, %s104
    %p110 = scmp.eq.s32.totalorder %s65, 0
    %p111 = por %p109, %p110
    %p112 = scmp.ne.s32.totalorder %s101, %s104
    %p113 = scmp.eq.s32.totalorder %s70, 1
    %p114 = por %p112, %p113
    %p115 = scmp.ne.s32.totalorder %s104, %s105
    %p116 = scmp.eq.s32.totalorder %s70, 0
    %p117 = por %p115, %p116
    %p118 = scmp.ne.s32.totalorder %s104, %s105
    %p119 = scmp.eq.s32.totalorder %s71, 1
    %p120 = por %p118, %p119
    %p122 = scmp.ne.s32.totalorder %s105, %s121
    %p123 = scmp.eq.s32.totalorder %s71, 0
    %p124 = por %p122, %p123
    %s126 = sadd.s32 %s125, 1
    %p129 = scmp.eq.s32.totalorder %s65, 1
    %p130 = scmp.ne.s32.totalorder %s125, %s127
    %p131 = scmp.eq.s32.totalorder %s65, 0
    %p132 = por %p130, %p131
    %p133 = scmp.ne.s32.totalorder %s125, %s127
    %p134 = scmp.eq.s32.totalorder %s70, 1
    %p135 = por %p133, %p134
    %p136 = scmp.ne.s32.totalorder %s127, %s128
    %p137 = scmp.eq.s32.totalorder %s70, 0
    %p138 = por %p136, %p137
    %p139 = scmp.ne.s32.totalorder %s127, %s128
    %p140 = scmp.eq.s32.totalorder %s71, 1
    %p141 = por %p139, %p140
    %p143 = scmp.ne.s32.totalorder %s128, %s142
    %p144 = scmp.eq.s32.totalorder %s71, 0
    %p145 = por %p143, %p144
    %s147 = sadd.s32 %s146, 1
    %p150 = scmp.eq.s32.totalorder %s65, 1
    %p151 = scmp.ne.s32.totalorder %s146, %s148
    %p152 = scmp.eq.s32.totalorder %s65, 0
    %p153 = por %p151, %p152
    %p154 = scmp.ne.s32.totalorder %s146, %s148
    %p155 = scmp.eq.s32.totalorder %s70, 1
    %p156 = por %p154, %p155
    %p157 = scmp.ne.s32.totalorder %s148, %s149
    %p158 = scmp.eq.s32.totalorder %s70, 0
    %p159 = por %p157, %p158
    %p160 = scmp.ne.s32.totalorder %s148, %s149
    %p161 = scmp.eq.s32.totalorder %s71, 1
    %p162 = por %p160, %p161
    %p164 = scmp.ne.s32.totalorder %s149, %s163
    %p165 = scmp.eq.s32.totalorder %s71, 0
    %p166 = por %p164, %p165
    %s168 = sadd.s32 %s167, 1
    %p171 = scmp.eq.s32.totalorder %s65, 1
    %p172 = scmp.ne.s32.totalorder %s167, %s169
    %p173 = scmp.eq.s32.totalorder %s65, 0
    %p174 = por %p172, %p173
    %p175 = scmp.ne.s32.totalorder %s167, %s169
    %p176 = scmp.eq.s32.totalorder %s70, 1
    %p177 = por %p175, %p176
    %p178 = scmp.ne.s32.totalorder %s169, %s170
    %p179 = scmp.eq.s32.totalorder %s70, 0
    %p180 = por %p178, %p179
    %p181 = scmp.ne.s32.totalorder %s169, %s170
    %p182 = scmp.eq.s32.totalorder %s71, 1
    %p183 = por %p181, %p182
    %p185 = scmp.ne.s32.totalorder %s170, %s184
    %p186 = scmp.eq.s32.totalorder %s71, 0
    %p187 = por %p185, %p186
    %s189 = sadd.s32 %s188, 1
    %p192 = scmp.eq.s32.totalorder %s65, 1
    %p193 = scmp.ne.s32.totalorder %s188, %s190
    %p194 = scmp.eq.s32.totalorder %s65, 0
    %p195 = por %p193, %p194
    %p196 = scmp.ne.s32.totalorder %s188, %s190
    %p197 = scmp.eq.s32.totalorder %s70, 1
    %p198 = por %p196, %p197
    %p199 = scmp.ne.s32.totalorder %s190, %s191
    %p200 = scmp.eq.s32.totalorder %s70, 0
    %p201 = por %p199, %p200
    %p202 = scmp.ne.s32.totalorder %s190, %s191
    %p203 = scmp.eq.s32.totalorder %s71, 1
    %p204 = por %p202, %p203
    %p206 = scmp.ne.s32.totalorder %s191, %s205
    %p207 = scmp.eq.s32.totalorder %s71, 0
    %p208 = por %p206, %p207
    %s210 = sadd.s32 %s209, 1
    %p213 = scmp.eq.s32.totalorder %s65, 1
    %p214 = scmp.ne.s32.totalorder %s209, %s211
    %p215 = scmp.eq.s32.totalorder %s65, 0
    %p216 = por %p214, %p215
    %p217 = scmp.ne.s32.totalorder %s209, %s211
    %p218 = scmp.eq.s32.totalorder %s70, 1
    %p219 = por %p217, %p218
    %p220 = scmp.ne.s32.totalorder %s211, %s212
    %p221 = scmp.eq.s32.totalorder %s70, 0
    %p222 = por %p220, %p221
    %p223 = scmp.ne.s32.totalorder %s211, %s212
    %p224 = scmp.eq.s32.totalorder %s71, 1
    %p225 = por %p223, %p224
    %p227 = scmp.ne.s32.totalorder %s212, %s226
    %p228 = scmp.eq.s32.totalorder %s71, 0
    %p229 = por %p227, %p228
    %s231 = sadd.s32 %s230, 1
    %p234 = scmp.eq.s32.totalorder %s65, 1
    %p235 = scmp.ne.s32.totalorder %s230, %s232
    %p236 = scmp.eq.s32.totalorder %s65, 0
    %p237 = por %p235, %p236
    %p238 = scmp.ne.s32.totalorder %s230, %s232
    %p239 = scmp.eq.s32.totalorder %s70, 1
    %p240 = por %p238, %p239
    %p241 = scmp.ne.s32.totalorder %s232, %s233
    %p242 = scmp.eq.s32.totalorder %s70, 0
    %p243 = por %p241, %p242
    %p244 = scmp.ne.s32.totalorder %s232, %s233
    %p245 = scmp.eq.s32.totalorder %s71, 1
    %p246 = por %p244, %p245
    %p248 = scmp.ne.s32.totalorder %s233, %s247
    %p249 = scmp.eq.s32.totalorder %s71, 0
    %p250 = por %p248, %p249
    %s252 = sadd.s32 %s251, 1
    %p255 = scmp.eq.s32.totalorder %s65, 1
    %p256 = scmp.ne.s32.totalorder %s251, %s253
    %p257 = scmp.eq.s32.totalorder %s65, 0
    %p258 = por %p256, %p257
    %p259 = scmp.ne.s32.totalorder %s251, %s253
    %p260 = scmp.eq.s32.totalorder %s70, 1
    %p261 = por %p259, %p260
    %p262 = scmp.ne.s32.totalorder %s253, %s254
    %p263 = scmp.eq.s32.totalorder %s70, 0
    %p264 = por %p262, %p263
    %p265 = scmp.ne.s32.totalorder %s253, %s254
    %p266 = scmp.eq.s32.totalorder %s71, 1
    %p267 = por %p265, %p266
    %p269 = scmp.ne.s32.totalorder %s254, %s268
    %p270 = scmp.eq.s32.totalorder %s71, 0
    %p271 = por %p269, %p270
    %s273 = sadd.s32 %s272, 1
    %p276 = scmp.eq.s32.totalorder %s65, 1
    %p277 = scmp.ne.s32.totalorder %s272, %s274
    %p278 = scmp.eq.s32.totalorder %s65, 0
    %p279 = por %p277, %p278
    %p280 = scmp.ne.s32.totalorder %s272, %s274
    %p281 = scmp.eq.s32.totalorder %s70, 1
    %p282 = por %p280, %p281
    %p283 = scmp.ne.s32.totalorder %s274, %s275
    %p284 = scmp.eq.s32.totalorder %s70, 0
    %p285 = por %p283, %p284
    %p286 = scmp.ne.s32.totalorder %s274, %s275
    %p287 = scmp.eq.s32.totalorder %s71, 1
    %p288 = por %p286, %p287
    %p290 = scmp.ne.s32.totalorder %s275, %s289
    %p291 = scmp.eq.s32.totalorder %s71, 0
    %p292 = por %p290, %p291
    %s294 = sadd.s32 %s293, 1
    %p297 = scmp.eq.s32.totalorder %s65, 1
    %p298 = scmp.ne.s32.totalorder %s293, %s295
    %p299 = scmp.eq.s32.totalorder %s65, 0
    %p300 = por %p298, %p299
    %p301 = scmp.ne.s32.totalorder %s293, %s295
    %p302 = scmp.eq.s32.totalorder %s70, 1
    %p303 = por %p301, %p302
    %p304 = scmp.ne.s32.totalorder %s295, %s296
    %p305 = scmp.eq.s32.totalorder %s70, 0
    %p306 = por %p304, %p305
    %p307 = scmp.ne.s32.totalorder %s295, %s296
    %p308 = scmp.eq.s32.totalorder %s71, 1
    %p309 = por %p307, %p308
    %p311 = scmp.ne.s32.totalorder %s296, %s310
    %p312 = scmp.eq.s32.totalorder %s71, 0
    %p313 = por %p311, %p312
    %s315 = sadd.s32 %s314, 1
    %p318 = scmp.eq.s32.totalorder %s65, 1
    %p319 = scmp.ne.s32.totalorder %s314, %s316
    %p320 = scmp.eq.s32.totalorder %s65, 0
    %p321 = por %p319, %p320
    %p322 = scmp.ne.s32.totalorder %s314, %s316
    %p323 = scmp.eq.s32.totalorder %s70, 1
    %p324 = por %p322, %p323
    %p325 = scmp.ne.s32.totalorder %s316, %s317
    %p326 = scmp.eq.s32.totalorder %s70, 0
    %p327 = por %p325, %p326
    %p328 = scmp.ne.s32.totalorder %s316, %s317
    %p329 = scmp.eq.s32.totalorder %s71, 1
    %p330 = por %p328, %p329
    %p332 = scmp.ne.s32.totalorder %s317, %s331
    %p333 = scmp.eq.s32.totalorder %s71, 0
    %p334 = por %p332, %p333
    %s336 = sadd.s32 %s335, 1
    %p339 = scmp.eq.s32.totalorder %s65, 1
    %p340 = scmp.ne.s32.totalorder %s335, %s337
    %p341 = scmp.eq.s32.totalorder %s65, 0
    %p342 = por %p340, %p341
    %p343 = scmp.ne.s32.totalorder %s335, %s337
    %p344 = scmp.eq.s32.totalorder %s70, 1
    %p345 = por %p343, %p344
    %p346 = scmp.ne.s32.totalorder %s337, %s338
    %p347 = scmp.eq.s32.totalorder %s70, 0
    %p348 = por %p346, %p347
    %p349 = scmp.ne.s32.totalorder %s337, %s338
    %p350 = scmp.eq.s32.totalorder %s71, 1
    %p351 = por %p349, %p350
    %p353 = scmp.ne.s32.totalorder %s338, %s352
    %p354 = scmp.eq.s32.totalorder %s71, 0
    %p355 = por %p353, %p354
    %s357 = sadd.s32 %s356, 1
    %p360 = scmp.eq.s32.totalorder %s65, 1
    %p361 = scmp.ne.s32.totalorder %s356, %s358
    %p362 = scmp.eq.s32.totalorder %s65, 0
    %p363 = por %p361, %p362
    %p364 = scmp.ne.s32.totalorder %s356, %s358
    %p365 = scmp.eq.s32.totalorder %s70, 1
    %p366 = por %p364, %p365
    %p367 = scmp.ne.s32.totalorder %s358, %s359
    %p368 = scmp.eq.s32.totalorder %s70, 0
    %p369 = por %p367, %p368
    %p370 = scmp.ne.s32.totalorder %s358, %s359
    %p371 = scmp.eq.s32.totalorder %s71, 1
    %p372 = por %p370, %p371
    %p374 = scmp.ne.s32.totalorder %s359, %s373
    %p375 = scmp.eq.s32.totalorder %s71, 0
    %p376 = por %p374, %p375
    %s378 = sadd.s32 %s377, 1
    %p381 = scmp.eq.s32.totalorder %s65, 1
    %p382 = scmp.ne.s32.totalorder %s377, %s379
    %p383 = scmp.eq.s32.totalorder %s65, 0
    %p384 = por %p382, %p383
    %p385 = scmp.ne.s32.totalorder %s377, %s379
    %p386 = scmp.eq.s32.totalorder %s70, 1
    %p387 = por %p385, %p386
    %p388 = scmp.ne.s32.totalorder %s379, %s380
    %p389 = scmp.eq.s32.totalorder %s70, 0
    %p390 = por %p388, %p389
    %p391 = scmp.ne.s32.totalorder %s379, %s380
    %p392 = scmp.eq.s32.totalorder %s71, 1
    %p393 = por %p391, %p392
    %p395 = scmp.ne.s32.totalorder %s380, %s394
    %p396 = scmp.eq.s32.totalorder %s71, 0
    %p397 = por %p395, %p396
    %s399 = sadd.s32 %s398, 1
    %p402 = scmp.eq.s32.totalorder %s65, 1
    %p403 = scmp.ne.s32.totalorder %s398, %s400
    %p404 = scmp.eq.s32.totalorder %s65, 0
    %p405 = por %p403, %p404
    %p406 = scmp.ne.s32.totalorder %s398, %s400
    %p407 = scmp.eq.s32.totalorder %s70, 1
    %p408 = por %p406, %p407
    %p409 = scmp.ne.s32.totalorder %s400, %s401
    %p410 = scmp.eq.s32.totalorder %s70, 0
    %p411 = por %p409, %p410
    %p412 = scmp.ne.s32.totalorder %s400, %s401
    %p413 = scmp.eq.s32.totalorder %s71, 1
    %p414 = por %p412, %p413
    %p416 = scmp.ne.s32.totalorder %s401, %s415
    %p417 = scmp.eq.s32.totalorder %s71, 0
    %p418 = por %p416, %p417
    %s420 = sadd.s32 %s419, 1
    %p423 = scmp.eq.s32.totalorder %s65, 1
    %p424 = scmp.ne.s32.totalorder %s419, %s421
    %p425 = scmp.eq.s32.totalorder %s65, 0
    %p426 = por %p424, %p425
    %p427 = scmp.ne.s32.totalorder %s419, %s421
    %p428 = scmp.eq.s32.totalorder %s70, 1
    %p429 = por %p427, %p428
    %p430 = scmp.ne.s32.totalorder %s421, %s422
    %p431 = scmp.eq.s32.totalorder %s70, 0
    %p432 = por %p430, %p431
    %p433 = scmp.ne.s32.totalorder %s421, %s422
    %p434 = scmp.eq.s32.totalorder %s71, 1
    %p435 = por %p433, %p434
    %p437 = scmp.ne.s32.totalorder %s422, %s436
    %p438 = scmp.eq.s32.totalorder %s71, 0
    %p439 = por %p437, %p438
    %s441 = sadd.s32 %s440, 1
    %p444 = scmp.eq.s32.totalorder %s65, 1
    %p445 = scmp.ne.s32.totalorder %s440, %s442
    %p446 = scmp.eq.s32.totalorder %s65, 0
    %p447 = por %p445, %p446
    %p448 = scmp.ne.s32.totalorder %s440, %s442
    %p449 = scmp.eq.s32.totalorder %s70, 1
    %p450 = por %p448, %p449
    %p451 = scmp.ne.s32.totalorder %s442, %s443
    %p452 = scmp.eq.s32.totalorder %s70, 0
    %p453 = por %p451, %p452
    %p454 = scmp.ne.s32.totalorder %s442, %s443
    %p455 = scmp.eq.s32.totalorder %s71, 1
    %p456 = por %p454, %p455
    %p458 = scmp.ne.s32.totalorder %s443, %s457
    %p459 = scmp.eq.s32.totalorder %s71, 0
    %p460 = por %p458, %p459
    %s462 = sadd.s32 %s461, 1
    %p465 = scmp.eq.s32.totalorder %s65, 1
    %p466 = scmp.ne.s32.totalorder %s461, %s463
    %p467 = scmp.eq.s32.totalorder %s65, 0
    %p468 = por %p466, %p467
    %p469 = scmp.ne.s32.totalorder %s461, %s463
    %p470 = scmp.eq.s32.totalorder %s70, 1
    %p471 = por %p469, %p470
    %p472 = scmp.ne.s32.totalorder %s463, %s464
    %p473 = scmp.eq.s32.totalorder %s70, 0
    %p474 = por %p472, %p473
    %p475 = scmp.ne.s32.totalorder %s463, %s464
    %p476 = scmp.eq.s32.totalorder %s71, 1
    %p477 = por %p475, %p476
    %p479 = scmp.ne.s32.totalorder %s464, %s478
    %p480 = scmp.eq.s32.totalorder %s71, 0
    %p481 = por %p479, %p480
    %s483 = sadd.s32 %s482, 1
    %p486 = scmp.eq.s32.totalorder %s65, 1
    %p487 = scmp.ne.s32.totalorder %s482, %s484
    %p488 = scmp.eq.s32.totalorder %s65, 0
    %p489 = por %p487, %p488
    %p490 = scmp.ne.s32.totalorder %s482, %s484
    %p491 = scmp.eq.s32.totalorder %s70, 1
    %p492 = por %p490, %p491
    %p493 = scmp.ne.s32.totalorder %s484, %s485
    %p494 = scmp.eq.s32.totalorder %s70, 0
    %p495 = por %p493, %p494
    %p496 = scmp.ne.s32.totalorder %s484, %s485
    %p497 = scmp.eq.s32.totalorder %s71, 1
    %p498 = por %p496, %p497
    %p500 = scmp.ne.s32.totalorder %s485, %s499
    %p501 = scmp.eq.s32.totalorder %s71, 0
    %p502 = por %p500, %p501
    %s504 = sadd.s32 %s503, 1
    %p507 = scmp.eq.s32.totalorder %s65, 1
    %p508 = scmp.ne.s32.totalorder %s503, %s505
    %p509 = scmp.eq.s32.totalorder %s65, 0
    %p510 = por %p508, %p509
    %p511 = scmp.ne.s32.totalorder %s503, %s505
    %p512 = scmp.eq.s32.totalorder %s70, 1
    %p513 = por %p511, %p512
    %p514 = scmp.ne.s32.totalorder %s505, %s506
    %p515 = scmp.eq.s32.totalorder %s70, 0
    %p516 = por %p514, %p515
    %p517 = scmp.ne.s32.totalorder %s505, %s506
    %p518 = scmp.eq.s32.totalorder %s71, 1
    %p519 = por %p517, %p518
    %p521 = scmp.ne.s32.totalorder %s506, %s520
    %p522 = scmp.eq.s32.totalorder %s71, 0
    %p523 = por %p521, %p522
    %s525 = sadd.s32 %s524, 1
    %p528 = scmp.eq.s32.totalorder %s65, 1
    %p529 = scmp.ne.s32.totalorder %s524, %s526
    %p530 = scmp.eq.s32.totalorder %s65, 0
    %p531 = por %p529, %p530
    %p532 = scmp.ne.s32.totalorder %s524, %s526
    %p533 = scmp.eq.s32.totalorder %s70, 1
    %p534 = por %p532, %p533
    %p535 = scmp.ne.s32.totalorder %s526, %s527
    %p536 = scmp.eq.s32.totalorder %s70, 0
    %p537 = por %p535, %p536
    %p538 = scmp.ne.s32.totalorder %s526, %s527
    %p539 = scmp.eq.s32.totalorder %s71, 1
    %p540 = por %p538, %p539
    %p542 = scmp.ne.s32.totalorder %s527, %s541
    %p543 = scmp.eq.s32.totalorder %s71, 0
    %p544 = por %p542, %p543
    %s546 = sadd.s32 %s545, 1
    %p549 = scmp.eq.s32.totalorder %s65, 1
    %p550 = scmp.ne.s32.totalorder %s545, %s547
    %p551 = scmp.eq.s32.totalorder %s65, 0
    %p552 = por %p550, %p551
    %p553 = scmp.ne.s32.totalorder %s545, %s547
    %p554 = scmp.eq.s32.totalorder %s70, 1
    %p555 = por %p553, %p554
    %p556 = scmp.ne.s32.totalorder %s547, %s548
    %p557 = scmp.eq.s32.totalorder %s70, 0
    %p558 = por %p556, %p557
    %p559 = scmp.ne.s32.totalorder %s547, %s548
    %p560 = scmp.eq.s32.totalorder %s71, 1
    %p561 = por %p559, %p560
    %p563 = scmp.ne.s32.totalorder %s548, %s562
    %p564 = scmp.eq.s32.totalorder %s71, 0
    %p565 = por %p563, %p564
    %s567 = sadd.s32 %s566, 1
    %p570 = scmp.eq.s32.totalorder %s65, 1
    %p571 = scmp.ne.s32.totalorder %s566, %s568
    %p572 = scmp.eq.s32.totalorder %s65, 0
    %p573 = por %p571, %p572
    %p574 = scmp.ne.s32.totalorder %s566, %s568
    %p575 = scmp.eq.s32.totalorder %s70, 1
    %p576 = por %p574, %p575
    %p577 = scmp.ne.s32.totalorder %s568, %s569
    %p578 = scmp.eq.s32.totalorder %s70, 0
    %p579 = por %p577, %p578
    %p580 = scmp.ne.s32.totalorder %s568, %s569
    %p581 = scmp.eq.s32.totalorder %s71, 1
    %p582 = por %p580, %p581
    %p584 = scmp.ne.s32.totalorder %s569, %s583
    %p585 = scmp.eq.s32.totalorder %s71, 0
    %p586 = por %p584, %p585
    %s588 = sadd.s32 %s587, 1
    %p591 = scmp.eq.s32.totalorder %s65, 1
    %p592 = scmp.ne.s32.totalorder %s587, %s589
    %p593 = scmp.eq.s32.totalorder %s65, 0
    %p594 = por %p592, %p593
    %p595 = scmp.ne.s32.totalorder %s587, %s589
    %p596 = scmp.eq.s32.totalorder %s70, 1
    %p597 = por %p595, %p596
    %p598 = scmp.ne.s32.totalorder %s589, %s590
    %p599 = scmp.eq.s32.totalorder %s70, 0
    %p600 = por %p598, %p599
    %p601 = scmp.ne.s32.totalorder %s589, %s590
    %p602 = scmp.eq.s32.totalorder %s71, 1
    %p603 = por %p601, %p602
    %p605 = scmp.ne.s32.totalorder %s590, %s604
    %p606 = scmp.eq.s32.totalorder %s71, 0
    %p607 = por %p605, %p606
    %s609 = sadd.s32 %s608, 1
    %p612 = scmp.eq.s32.totalorder %s65, 1
    %p613 = scmp.ne.s32.totalorder %s608, %s610
    %p614 = scmp.eq.s32.totalorder %s65, 0
    %p615 = por %p613, %p614
    %p616 = scmp.ne.s32.totalorder %s608, %s610
    %p617 = scmp.eq.s32.totalorder %s70, 1
    %p618 = por %p616, %p617
    %p619 = scmp.ne.s32.totalorder %s610, %s611
    %p620 = scmp.eq.s32.totalorder %s70, 0
    %p621 = por %p619, %p620
    %p622 = scmp.ne.s32.totalorder %s610, %s611
    %p623 = scmp.eq.s32.totalorder %s71, 1
    %p624 = por %p622, %p623
    %p626 = scmp.ne.s32.totalorder %s611, %s625
    %p627 = scmp.eq.s32.totalorder %s71, 0
    %p628 = por %p626, %p627
    %s630 = sadd.s32 %s629, 1
    %p633 = scmp.eq.s32.totalorder %s65, 1
    %p634 = scmp.ne.s32.totalorder %s629, %s631
    %p635 = scmp.eq.s32.totalorder %s65, 0
    %p636 = por %p634, %p635
    %p637 = scmp.ne.s32.totalorder %s629, %s631
    %p638 = scmp.eq.s32.totalorder %s70, 1
    %p639 = por %p637, %p638
    %p640 = scmp.ne.s32.totalorder %s631, %s632
    %p641 = scmp.eq.s32.totalorder %s70, 0
    %p642 = por %p640, %p641
    %p643 = scmp.ne.s32.totalorder %s631, %s632
    %p644 = scmp.eq.s32.totalorder %s71, 1
    %p645 = por %p643, %p644
    %p647 = scmp.ne.s32.totalorder %s632, %s646
    %p648 = scmp.eq.s32.totalorder %s71, 0
    %p649 = por %p647, %p648
    %s651 = sadd.s32 %s650, 1
    %p654 = scmp.eq.s32.totalorder %s65, 1
    %p655 = scmp.ne.s32.totalorder %s650, %s652
    %p656 = scmp.eq.s32.totalorder %s65, 0
    %p657 = por %p655, %p656
    %p658 = scmp.ne.s32.totalorder %s650, %s652
    %p659 = scmp.eq.s32.totalorder %s70, 1
    %p660 = por %p658, %p659
    %p661 = scmp.ne.s32.totalorder %s652, %s653
    %p662 = scmp.eq.s32.totalorder %s70, 0
    %p663 = por %p661, %p662
    %p664 = scmp.ne.s32.totalorder %s652, %s653
    %p665 = scmp.eq.s32.totalorder %s71, 1
    %p666 = por %p664, %p665
    %p668 = scmp.ne.s32.totalorder %s653, %s667
    %p669 = scmp.eq.s32.totalorder %s71, 0
    %p670 = por %p668, %p669
    %s672 = sadd.s32 %s671, 1
    %p675 = scmp.eq.s32.totalorder %s65, 1
    %p676 = scmp.ne.s32.totalorder %s671, %s673
    %p677 = scmp.eq.s32.totalorder %s65, 0
    %p678 = por %p676, %p677
    %p679 = scmp.ne.s32.totalorder %s671, %s673
    %p680 = scmp.eq.s32.totalorder %s70, 1
    %p681 = por %p679, %p680
    %p682 = scmp.ne.s32.totalorder %s673, %s674
    %p683 = scmp.eq.s32.totalorder %s70, 0
    %p684 = por %p682, %p683
    %p685 = scmp.ne.s32.totalorder %s673, %s674
    %p686 = scmp.eq.s32.totalorder %s71, 1
    %p687 = por %p685, %p686
    %p689 = scmp.ne.s32.totalorder %s674, %s688
    %p690 = scmp.eq.s32.totalorder %s71, 0
    %p691 = por %p689, %p690
    %s692 = ssub.s32 %s65, %s72
    %p693 = scmp.eq.s32.totalorder %s692, 0
    %s695 = sadd.s32 %s694, 1
    %s696 = scalar_select %p693, %s694, %s695
    %p699 = pneg %p693
    %p700 = scmp.eq.s32.totalorder %s65, 1
    %p701 = por %p699, %p700
    %p702 = scmp.ne.s32.totalorder %s694, %s697
    %p703 = scmp.eq.s32.totalorder %s65, 0
    %p704 = por %p702, %p703
    %p705 = scmp.ne.s32.totalorder %s694, %s697
    %p706 = scmp.eq.s32.totalorder %s70, 1
    %p707 = por %p705, %p706
    %p708 = scmp.ne.s32.totalorder %s697, %s698
    %p709 = scmp.eq.s32.totalorder %s70, 0
    %p710 = por %p708, %p709
    %p711 = scmp.ne.s32.totalorder %s697, %s698
    %p712 = scmp.eq.s32.totalorder %s71, 1
    %p713 = por %p711, %p712
    %p715 = scmp.ne.s32.totalorder %s698, %s714
    %p716 = scmp.eq.s32.totalorder %s71, 0
    %p717 = por %p715, %p716
    %p718 = scmp.le.s32.totalorder 1, %s65
    %p719 = scmp.lt.s32.totalorder %s65, 3
    %p720 = pnand %p718, %p719
    %p721 = pneg %p720
    // Predicated region
    $region9: #{whisper_forward.3} parent=5 // pred_check
      _
    $region10: #{whisper_forward.3} parent=5 // pred_check_branch
      %723 = sbr.rel (%p720) target = $region12
    $region11: #{whisper_forward.3} parent=5 // pred_region
      %s724 = ssub.s32 %s65, 1
      // Predicated region
      $region13: #{whisper_forward.3} parent=11 // pred_check
        %p725 = pneg %p138
      $region14: #{whisper_forward.3} parent=11 // pred_check_branch
        %727 = sbr.rel (%p725) target = $region16
      $region15: #{whisper_forward.3} parent=11 // pred_region
        _
      $region16: #{whisper_forward.3} parent=11 // pred_fallthru
        _
      // Predicated region
      $region17: #{whisper_forward.3} parent=11 // pred_check
        %p728 = pneg %p159
      $region18: #{whisper_forward.3} parent=11 // pred_check_branch
        %730 = sbr.rel (%p728) target = $region20
      $region19: #{whisper_forward.3} parent=11 // pred_region
        _
      $region20: #{whisper_forward.3} parent=11 // pred_fallthru
        _
      // Predicated region
      $region21: #{whisper_forward.3} parent=11 // pred_check
        %p731 = pneg %p180
      $region22: #{whisper_forward.3} parent=11 // pred_check_branch
        %733 = sbr.rel (%p731) target = $region24
      $region23: #{whisper_forward.3} parent=11 // pred_region
        _
      $region24: #{whisper_forward.3} parent=11 // pred_fallthru
        _
      // Predicated region
      $region25: #{whisper_forward.3} parent=11 // pred_check
        %p734 = pneg %p201
      $region26: #{whisper_forward.3} parent=11 // pred_check_branch
        %736 = sbr.rel (%p734) target = $region28
      $region27: #{whisper_forward.3} parent=11 // pred_region
        _
      $region28: #{whisper_forward.3} parent=11 // pred_fallthru
        _
      // Predicated region
      $region29: #{whisper_forward.3} parent=11 // pred_check
        %p737 = pneg %p222
      $region30: #{whisper_forward.3} parent=11 // pred_check_branch
        %739 = sbr.rel (%p737) target = $region32
      $region31: #{whisper_forward.3} parent=11 // pred_region
        _
      $region32: #{whisper_forward.3} parent=11 // pred_fallthru
        _
      // Predicated region
      $region33: #{whisper_forward.3} parent=11 // pred_check
        %p740 = pneg %p243
      $region34: #{whisper_forward.3} parent=11 // pred_check_branch
        %742 = sbr.rel (%p740) target = $region36
      $region35: #{whisper_forward.3} parent=11 // pred_region
        _
      $region36: #{whisper_forward.3} parent=11 // pred_fallthru
        _
      // Predicated region
      $region37: #{whisper_forward.3} parent=11 // pred_check
        %p743 = pneg %p264
      $region38: #{whisper_forward.3} parent=11 // pred_check_branch
        %745 = sbr.rel (%p743) target = $region40
      $region39: #{whisper_forward.3} parent=11 // pred_region
        _
      $region40: #{whisper_forward.3} parent=11 // pred_fallthru
        _
      // Predicated region
      $region41: #{whisper_forward.3} parent=11 // pred_check
        %p746 = pneg %p285
      $region42: #{whisper_forward.3} parent=11 // pred_check_branch
        %748 = sbr.rel (%p746) target = $region44
      $region43: #{whisper_forward.3} parent=11 // pred_region
        _
      $region44: #{whisper_forward.3} parent=11 // pred_fallthru
        _
      // Predicated region
      $region45: #{whisper_forward.3} parent=11 // pred_check
        %p749 = pneg %p306
      $region46: #{whisper_forward.3} parent=11 // pred_check_branch
        %751 = sbr.rel (%p749) target = $region48
      $region47: #{whisper_forward.3} parent=11 // pred_region
        _
      $region48: #{whisper_forward.3} parent=11 // pred_fallthru
        _
      // Predicated region
      $region49: #{whisper_forward.3} parent=11 // pred_check
        %p752 = pneg %p327
      $region50: #{whisper_forward.3} parent=11 // pred_check_branch
        %754 = sbr.rel (%p752) target = $region52
      $region51: #{whisper_forward.3} parent=11 // pred_region
        _
      $region52: #{whisper_forward.3} parent=11 // pred_fallthru
        _
      // Predicated region
      $region53: #{whisper_forward.3} parent=11 // pred_check
        %p755 = pneg %p348
      $region54: #{whisper_forward.3} parent=11 // pred_check_branch
        %757 = sbr.rel (%p755) target = $region56
      $region55: #{whisper_forward.3} parent=11 // pred_region
        _
      $region56: #{whisper_forward.3} parent=11 // pred_fallthru
        _
      // Predicated region
      $region57: #{whisper_forward.3} parent=11 // pred_check
        %p758 = pneg %p369
      $region58: #{whisper_forward.3} parent=11 // pred_check_branch
        %760 = sbr.rel (%p758) target = $region60
      $region59: #{whisper_forward.3} parent=11 // pred_region
        _
      $region60: #{whisper_forward.3} parent=11 // pred_fallthru
        _
      // Predicated region
      $region61: #{whisper_forward.3} parent=11 // pred_check
        %p761 = pneg %p390
      $region62: #{whisper_forward.3} parent=11 // pred_check_branch
        %763 = sbr.rel (%p761) target = $region64
      $region63: #{whisper_forward.3} parent=11 // pred_region
        _
      $region64: #{whisper_forward.3} parent=11 // pred_fallthru
        _
      // Predicated region
      $region65: #{whisper_forward.3} parent=11 // pred_check
        %p764 = pneg %p411
      $region66: #{whisper_forward.3} parent=11 // pred_check_branch
        %766 = sbr.rel (%p764) target = $region68
      $region67: #{whisper_forward.3} parent=11 // pred_region
        _
      $region68: #{whisper_forward.3} parent=11 // pred_fallthru
        _
      // Predicated region
      $region69: #{whisper_forward.3} parent=11 // pred_check
        %p767 = pneg %p432
      $region70: #{whisper_forward.3} parent=11 // pred_check_branch
        %769 = sbr.rel (%p767) target = $region72
      $region71: #{whisper_forward.3} parent=11 // pred_region
        _
      $region72: #{whisper_forward.3} parent=11 // pred_fallthru
        _
      // Predicated region
      $region73: #{whisper_forward.3} parent=11 // pred_check
        %p770 = pneg %p453
      $region74: #{whisper_forward.3} parent=11 // pred_check_branch
        %772 = sbr.rel (%p770) target = $region76
      $region75: #{whisper_forward.3} parent=11 // pred_region
        _
      $region76: #{whisper_forward.3} parent=11 // pred_fallthru
        _
      // Predicated region
      $region77: #{whisper_forward.3} parent=11 // pred_check
        %p773 = pneg %p474
      $region78: #{whisper_forward.3} parent=11 // pred_check_branch
        %775 = sbr.rel (%p773) target = $region80
      $region79: #{whisper_forward.3} parent=11 // pred_region
        _
      $region80: #{whisper_forward.3} parent=11 // pred_fallthru
        _
      // Predicated region
      $region81: #{whisper_forward.3} parent=11 // pred_check
        %p776 = pneg %p495
      $region82: #{whisper_forward.3} parent=11 // pred_check_branch
        %778 = sbr.rel (%p776) target = $region84
      $region83: #{whisper_forward.3} parent=11 // pred_region
        _
      $region84: #{whisper_forward.3} parent=11 // pred_fallthru
        _
      // Predicated region
      $region85: #{whisper_forward.3} parent=11 // pred_check
        %p779 = pneg %p516
      $region86: #{whisper_forward.3} parent=11 // pred_check_branch
        %781 = sbr.rel (%p779) target = $region88
      $region87: #{whisper_forward.3} parent=11 // pred_region
        _
      $region88: #{whisper_forward.3} parent=11 // pred_fallthru
        _
      // Predicated region
      $region89: #{whisper_forward.3} parent=11 // pred_check
        %p782 = pneg %p537
      $region90: #{whisper_forward.3} parent=11 // pred_check_branch
        %784 = sbr.rel (%p782) target = $region92
      $region91: #{whisper_forward.3} parent=11 // pred_region
        _
      $region92: #{whisper_forward.3} parent=11 // pred_fallthru
        _
      // Predicated region
      $region93: #{whisper_forward.3} parent=11 // pred_check
        %p785 = pneg %p558
      $region94: #{whisper_forward.3} parent=11 // pred_check_branch
        %787 = sbr.rel (%p785) target = $region96
      $region95: #{whisper_forward.3} parent=11 // pred_region
        _
      $region96: #{whisper_forward.3} parent=11 // pred_fallthru
        _
      // Predicated region
      $region97: #{whisper_forward.3} parent=11 // pred_check
        %p788 = pneg %p579
      $region98: #{whisper_forward.3} parent=11 // pred_check_branch
        %790 = sbr.rel (%p788) target = $region100
      $region99: #{whisper_forward.3} parent=11 // pred_region
        _
      $region100: #{whisper_forward.3} parent=11 // pred_fallthru
        _
      // Predicated region
      $region101: #{whisper_forward.3} parent=11 // pred_check
        %p791 = pneg %p600
      $region102: #{whisper_forward.3} parent=11 // pred_check_branch
        %793 = sbr.rel (%p791) target = $region104
      $region103: #{whisper_forward.3} parent=11 // pred_region
        _
      $region104: #{whisper_forward.3} parent=11 // pred_fallthru
        _
      // Predicated region
      $region105: #{whisper_forward.3} parent=11 // pred_check
        %p794 = pneg %p621
      $region106: #{whisper_forward.3} parent=11 // pred_check_branch
        %796 = sbr.rel (%p794) target = $region108
      $region107: #{whisper_forward.3} parent=11 // pred_region
        _
      $region108: #{whisper_forward.3} parent=11 // pred_fallthru
        _
      // Predicated region
      $region109: #{whisper_forward.3} parent=11 // pred_check
        %p797 = pneg %p642
      $region110: #{whisper_forward.3} parent=11 // pred_check_branch
        %799 = sbr.rel (%p797) target = $region112
      $region111: #{whisper_forward.3} parent=11 // pred_region
        _
      $region112: #{whisper_forward.3} parent=11 // pred_fallthru
        _
      // Predicated region
      $region113: #{whisper_forward.3} parent=11 // pred_check
        %p800 = pneg %p663
      $region114: #{whisper_forward.3} parent=11 // pred_check_branch
        %802 = sbr.rel (%p800) target = $region116
      $region115: #{whisper_forward.3} parent=11 // pred_region
        _
      $region116: #{whisper_forward.3} parent=11 // pred_fallthru
        _
      // Predicated region
      $region117: #{whisper_forward.3} parent=11 // pred_check
        %p803 = pneg %p684
      $region118: #{whisper_forward.3} parent=11 // pred_check_branch
        %805 = sbr.rel (%p803) target = $region120
      $region119: #{whisper_forward.3} parent=11 // pred_region
        _
      $region120: #{whisper_forward.3} parent=11 // pred_fallthru
        _
    $region12: #{whisper_forward.3} parent=5 // pred_fallthru
      _
    %p806 = scmp.lt.s32.totalorder %s65, 2
    // Predicated region
    $region121: #{whisper_forward.3} parent=5 // pred_check
      %p807 = pneg %p806
    $region122: #{whisper_forward.3} parent=5 // pred_check_branch
      %809 = sbr.rel (%p807) target = $region124
    $region123: #{whisper_forward.3} parent=5 // pred_region
      // Predicated region
      $region125: #{whisper_forward.3} parent=123 // pred_check
        %p810 = pneg %p85
      $region126: #{whisper_forward.3} parent=123 // pred_check_branch
        %812 = sbr.rel (%p810) target = $region128
      $region127: #{whisper_forward.3} parent=123 // pred_region
        %p813 = scmp.lt.s32.totalorder %s65, 1
        %s814 = scalar_select %p813, %s65, 1
        %s815 = smul.addr %s814, 8
        %s816 = scalar_lea.vmem %s1, %s815
      $region128: #{whisper_forward.3} parent=123 // pred_fallthru
        _
      // Predicated region
      $region129: #{whisper_forward.3} parent=123 // pred_check
        %p817 = pneg %p111
      $region130: #{whisper_forward.3} parent=123 // pred_check_branch
        %819 = sbr.rel (%p817) target = $region132
      $region131: #{whisper_forward.3} parent=123 // pred_region
        %p820 = scmp.lt.s32.totalorder %s65, 1
        %s821 = scalar_select %p820, %s65, 1
        %s822 = smul.addr %s821, 4
        %s823 = smul.addr %s822, 4
        %s824 = scalar_lea.vmem %s3, %s823
      $region132: #{whisper_forward.3} parent=123 // pred_fallthru
        _
    $region124: #{whisper_forward.3} parent=5 // pred_fallthru
      _
    %p825 = scmp.le.s32.totalorder 1, %s65
    %p826 = scmp.lt.s32.totalorder %s65, 3
    %p827 = pnand %p825, %p826
    %p828 = pneg %p827
    // Predicated region
    $region133: #{whisper_forward.3} parent=5 // pred_check
      _
    $region134: #{whisper_forward.3} parent=5 // pred_check_branch
      %830 = sbr.rel (%p827) target = $region136
    $region135: #{whisper_forward.3} parent=5 // pred_region
      %s831 = ssub.s32 %s65, 1
      %p832 = scmp.lt.s32.totalorder %s70, 1
      %s833 = scalar_select %p832, %s70, 1
      %s834 = smul.addr %s833, 8
      %s835 = scalar_lea.vmem %s1, %s834
      %p836 = pneg %p91
      %p837 = pneg %p88
      %p838 = scmp.lt.s32.totalorder %s70, 1
      %s839 = scalar_select %p838, %s70, 1
      %s840 = smul.addr %s839, 4
      %s841 = smul.addr %s840, 4
      %s842 = scalar_lea.vmem %s3, %s841
      %p843 = pneg %p117
      %p844 = pneg %p114
      %p845 = pneg %p138
      %p846 = pneg %p135
      %p847 = pneg %p159
      %p848 = pneg %p156
      %p849 = pneg %p180
      %p850 = pneg %p177
      %p851 = pneg %p201
      %p852 = pneg %p198
      %p853 = pneg %p222
      %p854 = pneg %p219
      %p855 = pneg %p243
      %p856 = pneg %p240
      %p857 = pneg %p264
      %p858 = pneg %p261
      %p859 = pneg %p285
      %p860 = pneg %p282
      %p861 = pneg %p306
      %p862 = pneg %p303
      %p863 = pneg %p327
      %p864 = pneg %p324
      %p865 = pneg %p348
      %p866 = pneg %p345
      %p867 = pneg %p369
      %p868 = pneg %p366
      %p869 = pneg %p390
      %p870 = pneg %p387
      %p871 = pneg %p411
      %p872 = pneg %p408
      %p873 = pneg %p432
      %p874 = pneg %p429
      %p875 = pneg %p453
      %p876 = pneg %p450
      %p877 = pneg %p474
      %p878 = pneg %p471
      %p879 = pneg %p495
      %p880 = pneg %p492
      %p881 = pneg %p516
      %p882 = pneg %p513
      %p883 = pneg %p537
      %p884 = pneg %p534
      %p885 = pneg %p558
      %p886 = pneg %p555
      %p887 = pneg %p579
      %p888 = pneg %p576
      %p889 = pneg %p600
      %p890 = pneg %p597
      %p891 = pneg %p621
      %p892 = pneg %p618
      %p893 = pneg %p642
      %p894 = pneg %p639
      %p895 = pneg %p663
      %p896 = pneg %p660
      %p897 = pneg %p684
      %p898 = pneg %p681
      %p899 = pneg %p710
      %p900 = pneg %p707
      %p901 = scmp.lt.s32.totalorder %s70, 1
      %s902 = scalar_select %p901, %s70, 1
      %s903 = smul.addr %s902, 8
      %s904 = scalar_lea.vmem %s59, %s903
      %p905 = scmp.lt.s32.totalorder %s70, 1
      %s906 = scalar_select %p905, %s70, 1
      %s907 = smul.addr %s906, 8
      %s908 = scalar_lea.vmem %s1, %s907
      %p909 = scmp.lt.s32.totalorder %s70, 1
      %s910 = scalar_select %p909, %s70, 1
      %s911 = smul.addr %s910, 4
      %s912 = smul.addr %s911, 4
      %s913 = scalar_lea.vmem %s3, %s912
      %p914 = scmp.lt.s32.totalorder %s70, 1
      %s915 = scalar_select %p914, %s70, 1
      %s916 = smul.addr %s915, 8
      %s917 = scalar_lea.vmem %s59, %s916
      %v919 = vld [vmem:[%s908] sm:$0xff]
      %v920 = vld [vmem:[%s913] sm:$0xf]
      %v921 = vld [vmem:[%s913 + $0x4] sm:$0xf]
      %v922 = vld [vmem:[%s913 + $0x8] sm:$0xf]
      %v923 = vld [vmem:[%s913 + $0xc] sm:$0xf]
      %v924 = vlaneseq
      %v925 = vshrl.u32 %v924, 7
      %v926 = vlaneseq
      %v927 = vand.u32 %v926, 127
      %vm928 = vcmp.ge.s32.totalorder %v925, %v927
      %v929 = vsel %vm928, 0.0, -1e+09
      %v930 = vld [vmem:[%s5] sm:$0x1]
      %v931 = vld [vmem:[%s7] sm:$0x1]
      %vm932 = vcmask 523264
      %v933 = vsel %vm932, %v919, 0.0
      %934 = vadd.xlane.f32.xlu0 %v933
      %v935 = vpop.xlane.xlu0 %934
      %v936 = vrcp.pop 64.0
      %v937 = vmul.f32 %v935, %v936
      %v938 = vsub.f32 %v919, %v937
      %v939 = vmul.f32 %v938, %v938
      %v940 = vsel %vm932, %v939, 0.0
      %941 = vadd.xlane.f32.xlu0 %v940
      %v942 = vpop.xlane.xlu0 %941
      %v943 = vmul.f32 %v942, %v936
      %v944 = vadd.f32 %v943, 1e-05
      %v945 = vrsqrt.pop %v944
      %v946 = vmul.f32 %v938, %v945
      %v948 = vlaneseq
      %v949 = vshrl.u32 %v948, 7
      %v950 = vsub.s32 0, %v949
      %v951 = vrot.slane %v930, %v950
      %v953 = vmul.f32 %v946, %v951
      %v955 = vlaneseq
      %v956 = vshrl.u32 %v955, 7
      %v957 = vsub.s32 0, %v956
      %v958 = vrot.slane %v931, %v957
      %v960 = vadd.f32 %v953, %v958
      %v961 = vld [vmem:[%s21] sm:$0x1]
      %v962 = vld [vmem:[%s9] sm:$0xf]
      %v963 = vld [vmem:[%s9 + $0x4] sm:$0xf]
      %v964 = vld [vmem:[%s9 + $0x8] sm:$0xf]
      %v965 = vld [vmem:[%s9 + $0xc] sm:$0xf]
      %v966 = vld [vmem:[%s9 + $0x10] sm:$0xf]
      %v967 = vld [vmem:[%s9 + $0x14] sm:$0xf]
      %v968 = vld [vmem:[%s9 + $0x18] sm:$0xf]
      %v969 = vld [vmem:[%s9 + $0x1c] sm:$0xf]
      %v970 = vpack.c.bf16 %v960, %v960
      %v971 = vld [vmem:[%s11] sm:$0x1]
      %v973 = vlaneseq
      %v974 = vshrl.u32 %v973, 7
      %v975 = vsub.s32 0, %v974
      %v976 = vrot.slane %v971, %v975
      %v986 = vunpack.c.l.b16 %v962
      %v987 = vunpack.c.l.b16 %v963
      %v988 = vunpack.c.l.b16 %v964
      %v989 = vunpack.c.l.b16 %v965
      %v990 = vunpack.c.l.b16 %v966
      %v991 = vunpack.c.l.b16 %v967
      %v992 = vunpack.c.l.b16 %v968
      %v993 = vunpack.c.l.b16 %v969
      %v994 = vpack.c.b16 %v987, %v986
      %v995 = vpack.c.b16 %v989, %v988
      %v996 = vpack.c.b16 %v991, %v990
      %v997 = vpack.c.b16 %v993, %v992
      %v1003 = vsel %vm932, %v970, 0
      %1005 = vmatprep.subr.bf16.mxu0 0
      %1006 = vmatpush1.bf16.msra.mxu0 %v994
      %1007 = vmatprep.subr.bf16.mxu0 0
      %1008 = vmatpush1.bf16.msra.mxu0 %v995
      %1009 = vmatprep.subr.bf16.mxu0 0
      %1010 = vmatpush1.bf16.msra.mxu0 %v996
      %1011 = vmatprep.subr.bf16.mxu0 0
      %1012 = vmatpush1.bf16.msra.mxu0 %v997
      %1013 = vmatprep.subr.bf16.mxu0 0
      %1014 = vmatpush1.bf16.msra.mxu0 0
      %1015 = vmatprep.subr.bf16.mxu0 0
      %1016 = vmatpush1.bf16.msra.mxu0 0
      %1017 = vmatprep.subr.bf16.mxu0 0
      %1018 = vmatpush1.bf16.msra.mxu0 0
      %1019 = vmatprep.subr.bf16.mxu0 0
      %1020 = vmatpush1.bf16.msra.mxu0 0
      %1021 = vmatprep.subr.bf16.mxu0 0
      %1022 = vmatpush1.bf16.msra.mxu0 0
      %1023 = vmatprep.subr.bf16.mxu0 0
      %1024 = vmatpush1.bf16.msra.mxu0 0
      %1025 = vmatprep.subr.bf16.mxu0 0
      %1026 = vmatpush1.bf16.msra.mxu0 0
      %1027 = vmatprep.subr.bf16.mxu0 0
      %1028 = vmatpush1.bf16.msra.mxu0 0
      %1029 = vmatprep.subr.bf16.mxu0 0
      %1030 = vmatpush1.bf16.msra.mxu0 0
      %1031 = vmatprep.subr.bf16.mxu0 0
      %1032 = vmatpush1.bf16.msra.mxu0 0
      %1033 = vmatprep.subr.bf16.mxu0 0
      %1034 = vmatpush1.bf16.msra.mxu0 0
      %1035 = vmatprep.subr.bf16.mxu0 0
      %1036 = vmatpush1.bf16.msra.mxu0 0
      %1037 = vmatprep.mubr.bf16.mxu0 0
      %1038 = vmatmul.mubr.bf16.gmra.mrb[0].mxu0 %v1003
      %v1039 = vpop.f32.mrb[0].mxu0
      %v1040 = vadd.f32 %v976, %v1039
      %v1041 = vpop.f32.mrb[0].mxu0
      %v1042 = vpop.f32.mrb[0].mxu0
      %v1043 = vpop.f32.mrb[0].mxu0
      %1044 = vdwg.mxu0
      %v1045 = vld [vmem:[%s13] sm:$0xf]
      %v1046 = vld [vmem:[%s13 + $0x4] sm:$0xf]
      %v1047 = vld [vmem:[%s13 + $0x8] sm:$0xf]
      %v1048 = vld [vmem:[%s13 + $0xc] sm:$0xf]
      %v1049 = vld [vmem:[%s13 + $0x10] sm:$0xf]
      %v1050 = vld [vmem:[%s13 + $0x14] sm:$0xf]
      %v1051 = vld [vmem:[%s13 + $0x18] sm:$0xf]
      %v1052 = vld [vmem:[%s13 + $0x1c] sm:$0xf]
      %v1061 = vunpack.c.l.b16 %v1045
      %v1062 = vunpack.c.l.b16 %v1046
      %v1063 = vunpack.c.l.b16 %v1047
      %v1064 = vunpack.c.l.b16 %v1048
      %v1065 = vunpack.c.l.b16 %v1049
      %v1066 = vunpack.c.l.b16 %v1050
      %v1067 = vunpack.c.l.b16 %v1051
      %v1068 = vunpack.c.l.b16 %v1052
      %v1069 = vpack.c.b16 %v1062, %v1061
      %v1070 = vpack.c.b16 %v1064, %v1063
      %v1071 = vpack.c.b16 %v1066, %v1065
      %v1072 = vpack.c.b16 %v1068, %v1067
      %1077 = vmatprep.subr.bf16.mxu0 0
      %1078 = vmatpush1.bf16.msra.mxu0 %v1069
      %1079 = vmatprep.subr.bf16.mxu0 0
      %1080 = vmatpush1.bf16.msra.mxu0 %v1070
      %1081 = vmatprep.subr.bf16.mxu0 0
      %1082 = vmatpush1.bf16.msra.mxu0 %v1071
      %1083 = vmatprep.subr.bf16.mxu0 0
      %1084 = vmatpush1.bf16.msra.mxu0 %v1072
      %1085 = vmatprep.subr.bf16.mxu0 0
      %1086 = vmatpush1.bf16.msra.mxu0 0
      %1087 = vmatprep.subr.bf16.mxu0 0
      %1088 = vmatpush1.bf16.msra.mxu0 0
      %1089 = vmatprep.subr.bf16.mxu0 0
      %1090 = vmatpush1.bf16.msra.mxu0 0
      %1091 = vmatprep.subr.bf16.mxu0 0
      %1092 = vmatpush1.bf16.msra.mxu0 0
      %1093 = vmatprep.subr.bf16.mxu0 0
      %1094 = vmatpush1.bf16.msra.mxu0 0
      %1095 = vmatprep.subr.bf16.mxu0 0
      %1096 = vmatpush1.bf16.msra.mxu0 0
      %1097 = vmatprep.subr.bf16.mxu0 0
      %1098 = vmatpush1.bf16.msra.mxu0 0
      %1099 = vmatprep.subr.bf16.mxu0 0
      %1100 = vmatpush1.bf16.msra.mxu0 0
      %1101 = vmatprep.subr.bf16.mxu0 0
      %1102 = vmatpush1.bf16.msra.mxu0 0
      %1103 = vmatprep.subr.bf16.mxu0 0
      %1104 = vmatpush1.bf16.msra.mxu0 0
      %1105 = vmatprep.subr.bf16.mxu0 0
      %1106 = vmatpush1.bf16.msra.mxu0 0
      %1107 = vmatprep.subr.bf16.mxu0 0
      %1108 = vmatpush1.bf16.msra.mxu0 0
      %1109 = vmatprep.mubr.bf16.mxu0 0
      %1110 = vmatmul.mubr.bf16.gmra.mrb[0].mxu0 %v1003
      %v1111 = vpop.f32.mrb[0].mxu0
      %v1112 = vadd.f32 0.0, %v1111
      %v1113 = vpop.f32.mrb[0].mxu0
      %v1114 = vpop.f32.mrb[0].mxu0
      %v1115 = vpop.f32.mrb[0].mxu0
      %1116 = vdwg.mxu0
      %v1117 = vld [vmem:[%s15] sm:$0xf]
      %v1118 = vld [vmem:[%s15 + $0x4] sm:$0xf]
      %v1119 = vld [vmem:[%s15 + $0x8] sm:$0xf]
      %v1120 = vld [vmem:[%s15 + $0xc] sm:$0xf]
      %v1121 = vld [vmem:[%s15 + $0x10] sm:$0xf]
      %v1122 = vld [vmem:[%s15 + $0x14] sm:$0xf]
      %v1123 = vld [vmem:[%s15 + $0x18] sm:$0xf]
      %v1124 = vld [vmem:[%s15 + $0x1c] sm:$0xf]
      %v1125 = vld [vmem:[%s17] sm:$0x1]
      %v1127 = vlaneseq
      %v1128 = vshrl.u32 %v1127, 7
      %v1129 = vsub.s32 0, %v1128
      %v1130 = vrot.slane %v1125, %v1129
      %v1140 = vunpack.c.l.b16 %v1117
      %v1141 = vunpack.c.l.b16 %v1118
      %v1142 = vunpack.c.l.b16 %v1119
      %v1143 = vunpack.c.l.b16 %v1120
      %v1144 = vunpack.c.l.b16 %v1121
      %v1145 = vunpack.c.l.b16 %v1122
      %v1146 = vunpack.c.l.b16 %v1123
      %v1147 = vunpack.c.l.b16 %v1124
      %v1148 = vpack.c.b16 %v1141, %v1140
      %v1149 = vpack.c.b16 %v1143, %v1142
      %v1150 = vpack.c.b16 %v1145, %v1144
      %v1151 = vpack.c.b16 %v1147, %v1146
      %1156 = vmatprep.subr.bf16.mxu0 0
      %1157 = vmatpush1.bf16.msra.mxu0 %v1148
      %1158 = vmatprep.subr.bf16.mxu0 0
      %1159 = vmatpush1.bf16.msra.mxu0 %v1149
      %1160 = vmatprep.subr.bf16.mxu0 0
      %1161 = vmatpush1.bf16.msra.mxu0 %v1150
      %1162 = vmatprep.subr.bf16.mxu0 0
      %1163 = vmatpush1.bf16.msra.mxu0 %v1151
      %1164 = vmatprep.subr.bf16.mxu0 0
      %1165 = vmatpush1.bf16.msra.mxu0 0
      %1166 = vmatprep.subr.bf16.mxu0 0
      %1167 = vmatpush1.bf16.msra.mxu0 0
      %1168 = vmatprep.subr.bf16.mxu0 0
      %1169 = vmatpush1.bf16.msra.mxu0 0
      %1170 = vmatprep.subr.bf16.mxu0 0
      %1171 = vmatpush1.bf16.msra.mxu0 0
      %1172 = vmatprep.subr.bf16.mxu0 0
      %1173 = vmatpush1.bf16.msra.mxu0 0
      %1174 = vmatprep.subr.bf16.mxu0 0
      %1175 = vmatpush1.bf16.msra.mxu0 0
      %1176 = vmatprep.subr.bf16.mxu0 0
      %1177 = vmatpush1.bf16.msra.mxu0 0
      %1178 = vmatprep.subr.bf16.mxu0 0
      %1179 = vmatpush1.bf16.msra.mxu0 0
      %1180 = vmatprep.subr.bf16.mxu0 0
      %1181 = vmatpush1.bf16.msra.mxu0 0
      %1182 = vmatprep.subr.bf16.mxu0 0
      %1183 = vmatpush1.bf16.msra.mxu0 0
      %1184 = vmatprep.subr.bf16.mxu0 0
      %1185 = vmatpush1.bf16.msra.mxu0 0
      %1186 = vmatprep.subr.bf16.mxu0 0
      %1187 = vmatpush1.bf16.msra.mxu0 0
      %1188 = vmatprep.mubr.bf16.mxu0 0
      %1189 = vmatmul.mubr.bf16.gmra.mrb[0].mxu0 %v1003
      %v1190 = vpop.f32.mrb[0].mxu0
      %v1191 = vadd.f32 %v1130, %v1190
      %v1192 = vpop.f32.mrb[0].mxu0
      %v1193 = vpop.f32.mrb[0].mxu0
      %v1194 = vpop.f32.mrb[0].mxu0
      %1195 = vdwg.mxu0
      %v1196 = vpack.c.bf16 %v1040, %v1040
      %v1197 = vpack.c.bf16 %v1112, %v1112
      %vm1198 = vcmask 261120
      %v1200 = vsel %vm1198, %v1196, 0
      %v1203 = vsel %vm1198, %v1197, 0
      %1205 = vmatprep.subr.bf16.mxu0 0
      %1206 = vmatpush1.bf16.xpose.msra.mxu0 %v1203
      %1207 = vmatprep.subr.bf16.mxu0 0
      %1208 = vmatpush1.bf16.xpose.msra.mxu0 0
      %1209 = vmatprep.subr.bf16.mxu0 0
      %1210 = vmatpush1.bf16.xpose.msra.mxu0 0
      %1211 = vmatprep.subr.bf16.mxu0 0
      %1212 = vmatpush1.bf16.xpose.msra.mxu0 0
      %1213 = vmatprep.subr.bf16.mxu0 0
      %1214 = vmatpush1.bf16.xpose.msra.mxu0 0
      %1215 = vmatprep.subr.bf16.mxu0 0
      %1216 = vmatpush1.bf16.xpose.msra.mxu0 0
      %1217 = vmatprep.subr.bf16.mxu0 0
      %1218 = vmatpush1.bf16.xpose.msra.mxu0 0
      %1219 = vmatprep.subr.bf16.mxu0 0
      %1220 = vmatpush1.bf16.xpose.msra.mxu0 0
      %1221 = vmatprep.subr.bf16.mxu0 0
      %1222 = vmatpush1.bf16.xpose.msra.mxu0 0
      %1223 = vmatprep.subr.bf16.mxu0 0
      %1224 = vmatpush1.bf16.xpose.msra.mxu0 0
      %1225 = vmatprep.subr.bf16.mxu0 0
      %1226 = vmatpush1.bf16.xpose.msra.mxu0 0
      %1227 = vmatprep.subr.bf16.mxu0 0
      %1228 = vmatpush1.bf16.xpose.msra.mxu0 0
      %1229 = vmatprep.subr.bf16.mxu0 0
      %1230 = vmatpush1.bf16.xpose.msra.mxu0 0
      %1231 = vmatprep.subr.bf16.mxu0 0
      %1232 = vmatpush1.bf16.xpose.msra.mxu0 0
      %1233 = vmatprep.subr.bf16.mxu0 0
      %1234 = vmatpush1.bf16.xpose.msra.mxu0 0
      %1235 = vmatprep.subr.bf16.mxu0 0
      %1236 = vmatpush1.bf16.xpose.msra.mxu0 0
      %1237 = vmatprep.mubr.bf16.mxu0 0
      %1238 = vmatmul.mubr.bf16.gmra.mrb[0].mxu0 %v1200
      %v1239 = vpop.f32.mrb[0].mxu0
      %v1240 = vadd.f32 %v929, %v1239
      %v1241 = vpop.f32.mrb[0].mxu0
      %v1242 = vpop.f32.mrb[0].mxu0
      %v1243 = vpop.f32.mrb[0].mxu0
      %1244 = vdwg.mxu0
      %vm1245 = vcmask 64512
      %v1246 = vsel %vm1245, %v1240, -inf
      %1247 = vmax.xlane.f32.xlu0 %v1246
      %v1248 = vpop.xlane.xlu0 %1247
      %v1249 = vsub.f32 %v1240, %v1248
      %v1250 = vmul.f32 %v1249, 1.442695
      %v1251 = vpow.pop %v1250
      %v1252 = vsel %vm1245, %v1251, 0.0
      %1253 = vadd.xlane.f32.xlu0 %v1252
      %v1254 = vpop.xlane.xlu0 %1253
      %v1255 = vrcp.pop %v1254
      %v1256 = vmul.f32 %v1251, %v1255
      %v1257 = vpack.c.bf16 %v1256, %v1256
      %v1258 = vpack.c.bf16 %v1191, %v1191
      %v1260 = vsel %vm1245, %v1257, 0
      %vm1262 = vcmask 1043456
      %v1264 = vsel %vm1262, %v1258, 0
      %1266 = vmatprep.subr.bf16.mxu0 0
      %1267 = vmatpush1.bf16.msra.mxu0 %v1264
      %1268 = vmatprep.subr.bf16.mxu0 0
      %1269 = vmatpush1.bf16.msra.mxu0 0
      %1270 = vmatprep.subr.bf16.mxu0 0
      %1271 = vmatpush1.bf16.msra.mxu0 0
      %1272 = vmatprep.subr.bf16.mxu0 0
      %1273 = vmatpush1.bf16.msra.mxu0 0
      %1274 = vmatprep.subr.bf16.mxu0 0
      %1275 = vmatpush1.bf16.msra.mxu0 0
      %1276 = vmatprep.subr.bf16.mxu0 0
      %1277 = vmatpush1.bf16.msra.mxu0 0
      %1278 = vmatprep.subr.bf16.mxu0 0
      %1279 = vmatpush1.bf16.msra.mxu0 0
      %1280 = vmatprep.subr.bf16.mxu0 0
      %1281 = vmatpush1.bf16.msra.mxu0 0
      %1282 = vmatprep.subr.bf16.mxu0 0
      %1283 = vmatpush1.bf16.msra.mxu0 0
      %1284 = vmatprep.subr.bf16.mxu0 0
      %1285 = vmatpush1.bf16.msra.mxu0 0
      %1286 = vmatprep.subr.bf16.mxu0 0
      %1287 = vmatpush1.bf16.msra.mxu0 0
      %1288 = vmatprep.subr.bf16.mxu0 0
      %1289 = vmatpush1.bf16.msra.mxu0 0
      %1290 = vmatprep.subr.bf16.mxu0 0
      %1291 = vmatpush1.bf16.msra.mxu0 0
      %1292 = vmatprep.subr.bf16.mxu0 0
      %1293 = vmatpush1.bf16.msra.mxu0 0
      %1294 = vmatprep.subr.bf16.mxu0 0
      %1295 = vmatpush1.bf16.msra.mxu0 0
      %1296 = vmatprep.subr.bf16.mxu0 0
      %1297 = vmatpush1.bf16.msra.mxu0 0
      %1298 = vmatprep.mubr.bf16.mxu0 0
      %1299 = vmatmul.mubr.bf16.gmra.mrb[0].mxu0 %v1260
      %v1300 = vpop.f32.mrb[0].mxu0
      %v1301 = vadd.f32 0.0, %v1300
      %v1302 = vpop.f32.mrb[0].mxu0
      %v1303 = vpop.f32.mrb[0].mxu0
      %v1304 = vpop.f32.mrb[0].mxu0
      %1305 = vdwg.mxu0
      %v1306 = vld [vmem:[%s19] sm:$0xf]
      %v1307 = vld [vmem:[%s19 + $0x4] sm:$0xf]
      %v1308 = vld [vmem:[%s19 + $0x8] sm:$0xf]
      %v1309 = vld [vmem:[%s19 + $0xc] sm:$0xf]
      %v1310 = vpack.c.bf16 %v1301, %v1301
      %s1311 = scalar_lea.vmem %s9, 32
      %v1312 = vld [vmem:[%s1311] sm:$0xf]
      %v1313 = vld [vmem:[%s1311 + $0x4] sm:$0xf]
      %v1314 = vld [vmem:[%s1311 + $0x8] sm:$0xf]
      %v1315 = vld [vmem:[%s1311 + $0xc] sm:$0xf]
      %v1316 = vld [vmem:[%s1311 + $0x10] sm:$0xf]
      %v1317 = vld [vmem:[%s1311 + $0x14] sm:$0xf]
      %v1318 = vld [vmem:[%s1311 + $0x18] sm:$0xf]
      %v1319 = vld [vmem:[%s1311 + $0x1c] sm:$0xf]
      %s1320 = scalar_lea.vmem %s11, 1
      %v1321 = vld [vmem:[%s1320] sm:$0x1]
      %v1323 = vlaneseq
      %v1324 = vshrl.u32 %v1323, 7
      %v1325 = vsub.s32 0, %v1324
      %v1326 = vrot.slane %v1321, %v1325
      %v1336 = vunpack.c.l.b16 %v1312
      %v1337 = vunpack.c.l.b16 %v1313
      %v1338 = vunpack.c.l.b16 %v1314
      %v1339 = vunpack.c.l.b16 %v1315
      %v1340 = vunpack.c.l.b16 %v1316
      %v1341 = vunpack.c.l.b16 %v1317
      %v1342 = vunpack.c.l.b16 %v1318
      %v1343 = vunpack.c.l.b16 %v1319
      %v1344 = vpack.c.b16 %v1337, %v1336
      %v1345 = vpack.c.b16 %v1339, %v1338
      %v1346 = vpack.c.b16 %v1341, %v1340
      %v1347 = vpack.c.b16 %v1343, %v1342
      %1352 = vmatprep.subr.bf16.mxu0 0
      %1353 = vmatpush1.bf16.msra.mxu0 %v1344
      %1354 = vmatprep.subr.bf16.mxu0 0
      %1355 = vmatpush1.bf16.msra.mxu0 %v1345
      %1356 = vmatprep.subr.bf16.mxu0 0
      %1357 = vmatpush1.bf16.msra.mxu0 %v1346
      %1358 = vmatprep.subr.bf16.mxu0 0
      %1359 = vmatpush1.bf16.msra.mxu0 %v1347
      %1360 = vmatprep.subr.bf16.mxu0 0
      %1361 = vmatpush1.bf16.msra.mxu0 0
      %1362 = vmatprep.subr.bf16.mxu0 0
      %1363 = vmatpush1.bf16.msra.mxu0 0
      %1364 = vmatprep.subr.bf16.mxu0 0
      %1365 = vmatpush1.bf16.msra.mxu0 0
      %1366 = vmatprep.subr.bf16.mxu0 0
      %1367 = vmatpush1.bf16.msra.mxu0 0
      %1368 = vmatprep.subr.bf16.mxu0 0
      %1369 = vmatpush1.bf16.msra.mxu0 0
      %1370 = vmatprep.subr.bf16.mxu0 0
      %1371 = vmatpush1.bf16.msra.mxu0 0
      %1372 = vmatprep.subr.bf16.mxu0 0
      %1373 = vmatpush1.bf16.msra.mxu0 0
      %1374 = vmatprep.subr.bf16.mxu0 0
      %1375 = vmatpush1.bf16.msra.mxu0 0
      %1376 = vmatprep.subr.bf16.mxu0 0
      %1377 = vmatpush1.bf16.msra.mxu0 0
      %1378 = vmatprep.subr.bf16.mxu0 0
      %1379 = vmatpush1.bf16.msra.mxu0 0
      %1380 = vmatprep.subr.bf16.mxu0 0
      %1381 = vmatpush1.bf16.msra.mxu0 0
      %1382 = vmatprep.subr.bf16.mxu0 0
      %1383 = vmatpush1.bf16.msra.mxu0 0
      %1384 = vmatprep.mubr.bf16.mxu0 0
      %1385 = vmatmul.mubr.bf16.gmra.mrb[0].mxu0 %v1003
      %v1386 = vpop.f32.mrb[0].mxu0
      %v1387 = vadd.f32 %v1326, %v1386
      %v1388 = vpop.f32.mrb[0].mxu0
      %v1389 = vpop.f32.mrb[0].mxu0
      %v1390 = vpop.f32.mrb[0].mxu0
      %1391 = vdwg.mxu0
      %s1392 = scalar_lea.vmem %s13, 32
      %v1393 = vld [vmem:[%s1392] sm:$0xf]
      %v1394 = vld [vmem:[%s1392 + $0x4] sm:$0xf]
      %v1395 = vld [vmem:[%s1392 + $0x8] sm:$0xf]
      %v1396 = vld [vmem:[%s1392 + $0xc] sm:$0xf]
      %v1397 = vld [vmem:[%s1392 + $0x10] sm:$0xf]
      %v1398 = vld [vmem:[%s1392 + $0x14] sm:$0xf]
      %v1399 = vld [vmem:[%s1392 + $0x18] sm:$0xf]
      %v1400 = vld [vmem:[%s1392 + $0x1c] sm:$0xf]
      %v1409 = vunpack.c.l.b16 %v1393
      %v1410 = vunpack.c.l.b16 %v1394
      %v1411 = vunpack.c.l.b16 %v1395
      %v1412 = vunpack.c.l.b16 %v1396
      %v1413 = vunpack.c.l.b16 %v1397
      %v1414 = vunpack.c.l.b16 %v1398
      %v1415 = vunpack.c.l.b16 %v1399
      %v1416 = vunpack.c.l.b16 %v1400
      %v1417 = vpack.c.b16 %v1410, %v1409
      %v1418 = vpack.c.b16 %v1412, %v1411
      %v1419 = vpack.c.b16 %v1414, %v1413
      %v1420 = vpack.c.b16 %v1416, %v1415
      %1425 = vmatprep.subr.bf16.mxu0 0
      %1426 = vmatpush1.bf16.msra.mxu0 %v1417
      %1427 = vmatprep.subr.bf16.mxu0 0
      %1428 = vmatpush1.bf16.msra.mxu0 %v1418
      %1429 = vmatprep.subr.bf16.mxu0 0
      %1430 = vmatpush1.bf16.msra.mxu0 %v1419
      %1431 = vmatprep.subr.bf16.mxu0 0
      %1432 = vmatpush1.bf16.msra.mxu0 %v1420
      %1433 = vmatprep.subr.bf16.mxu0 0
      %1434 = vmatpush1.bf16.msra.mxu0 0
      %1435 = vmatprep.subr.bf16.mxu0 0
      %1436 = vmatpush1.bf16.msra.mxu0 0
      %1437 = vmatprep.subr.bf16.mxu0 0
      %1438 = vmatpush1.bf16.msra.mxu0 0
      %1439 = vmatprep.subr.bf16.mxu0 0
      %1440 = vmatpush1.bf16.msra.mxu0 0
      %1441 = vmatprep.subr.bf16.mxu0 0
      %1442 = vmatpush1.bf16.msra.mxu0 0
      %1443 = vmatprep.subr.bf16.mxu0 0
      %1444 = vmatpush1.bf16.msra.mxu0 0
      %1445 = vmatprep.subr.bf16.mxu0 0
      %1446 = vmatpush1.bf16.msra.mxu0 0
      %1447 = vmatprep.subr.bf16.mxu0 0
      %1448 = vmatpush1.bf16.msra.mxu0 0
      %1449 = vmatprep.subr.bf16.mxu0 0
      %1450 = vmatpush1.bf16.msra.mxu0 0
      %1451 = vmatprep.subr.bf16.mxu0 0
      %1452 = vmatpush1.bf16.msra.mxu0 0
      %1453 = vmatprep.subr.bf16.mxu0 0
      %1454 = vmatpush1.bf16.msra.mxu0 0
      %1455 = vmatprep.subr.bf16.mxu0 0
      %1456 = vmatpush1.bf16.msra.mxu0 0
      %1457 = vmatprep.mubr.bf16.mxu0 0
      %1458 = vmatmul.mubr.bf16.gmra.mrb[0].mxu0 %v1003
      %v1459 = vpop.f32.mrb[0].mxu0
      %v1460 = vadd.f32 0.0, %v1459
      %v1461 = vpop.f32.mrb[0].mxu0
      %v1462 = vpop.f32.mrb[0].mxu0
      %v1463 = vpop.f32.mrb[0].mxu0
      %1464 = vdwg.mxu0
      %s1465 = scalar_lea.vmem %s15, 32
      %v1466 = vld [vmem:[%s1465] sm:$0xf]
      %v1467 = vld [vmem:[%s1465 + $0x4] sm:$0xf]
      %v1468 = vld [vmem:[%s1465 + $0x8] sm:$0xf]
      %v1469 = vld [vmem:[%s1465 + $0xc] sm:$0xf]
      %v1470 = vld [vmem:[%s1465 + $0x10] sm:$0xf]
      %v1471 = vld [vmem:[%s1465 + $0x14] sm:$0xf]
      %v1472 = vld [vmem:[%s1465 + $0x18] sm:$0xf]
      %v1473 = vld [vmem:[%s1465 + $0x1c] sm:$0xf]
      %s1474 = scalar_lea.vmem %s17, 1
      %v1475 = vld [vmem:[%s1474] sm:$0x1]
      %v1477 = vlaneseq
      %v1478 = vshrl.u32 %v1477, 7
      %v1479 = vsub.s32 0, %v1478
      %v1480 = vrot.slane %v1475, %v1479
      %v1490 = vunpack.c.l.b16 %v1466
      %v1491 = vunpack.c.l.b16 %v1467
      %v1492 = vunpack.c.l.b16 %v1468
      %v1493 = vunpack.c.l.b16 %v1469
      %v1494 = vunpack.c.l.b16 %v1470
      %v1495 = vunpack.c.l.b16 %v1471
      %v1496 = vunpack.c.l.b16 %v1472
      %v1497 = vunpack.c.l.b16 %v1473
      %v1498 = vpack.c.b16 %v1491, %v1490
      %v1499 = vpack.c.b16 %v1493, %v1492
      %v1500 = vpack.c.b16 %v1495, %v1494
      %v1501 = vpack.c.b16 %v1497, %v1496
      %1506 = vmatprep.subr.bf16.mxu0 0
      %1507 = vmatpush1.bf16.msra.mxu0 %v1498
      %1508 = vmatprep.subr.bf16.mxu0 0
      %1509 = vmatpush1.bf16.msra.mxu0 %v1499
      %1510 = vmatprep.subr.bf16.mxu0 0
      %1511 = vmatpush1.bf16.msra.mxu0 %v1500
      %1512 = vmatprep.subr.bf16.mxu0 0
      %1513 = vmatpush1.bf16.msra.mxu0 %v1501
      %1514 = vmatprep.subr.bf16.mxu0 0
      %1515 = vmatpush1.bf16.msra.mxu0 0
      %1516 = vmatprep.subr.bf16.mxu0 0
      %1517 = vmatpush1.bf16.msra.mxu0 0
      %1518 = vmatprep.subr.bf16.mxu0 0
      %1519 = vmatpush1.bf16.msra.mxu0 0
      %1520 = vmatprep.subr.bf16.mxu0 0
      %1521 = vmatpush1.bf16.msra.mxu0 0
      %1522 = vmatprep.subr.bf16.mxu0 0
      %1523 = vmatpush1.bf16.msra.mxu0 0
      %1524 = vmatprep.subr.bf16.mxu0 0
      %1525 = vmatpush1.bf16.msra.mxu0 0
      %1526 = vmatprep.subr.bf16.mxu0 0
      %1527 = vmatpush1.bf16.msra.mxu0 0
      %1528 = vmatprep.subr.bf16.mxu0 0
      %1529 = vmatpush1.bf16.msra.mxu0 0
      %1530 = vmatprep.subr.bf16.mxu0 0
      %1531 = vmatpush1.bf16.msra.mxu0 0
      %1532 = vmatprep.subr.bf16.mxu0 0
      %1533 = vmatpush1.bf16.msra.mxu0 0
      %1534 = vmatprep.subr.bf16.mxu0 0
      %1535 = vmatpush1.bf16.msra.mxu0 0
      %1536 = vmatprep.subr.bf16.mxu0 0
      %1537 = vmatpush1.bf16.msra.mxu0 0
      %1538 = vmatprep.mubr.bf16.mxu0 0
      %1539 = vmatmul.mubr.bf16.gmra.mrb[0].mxu0 %v1003
      %v1540 = vpop.f32.mrb[0].mxu0
      %v1541 = vadd.f32 %v1480, %v1540
      %v1542 = vpop.f32.mrb[0].mxu0
      %v1543 = vpop.f32.mrb[0].mxu0
      %v1544 = vpop.f32.mrb[0].mxu0
      %1545 = vdwg.mxu0
      %v1546 = vpack.c.bf16 %v1387, %v1387
      %v1547 = vpack.c.bf16 %v1460, %v1460
      %v1549 = vsel %vm1198, %v1546, 0
      %v1552 = vsel %vm1198, %v1547, 0
      %1554 = vmatprep.subr.bf16.mxu0 0
      %1555 = vmatpush1.bf16.xpose.msra.mxu0 %v1552
      %1556 = vmatprep.subr.bf16.mxu0 0
      %1557 = vmatpush1.bf16.xpose.msra.mxu0 0
      %1558 = vmatprep.subr.bf16.mxu0 0
      %1559 = vmatpush1.bf16.xpose.msra.mxu0 0
      %1560 = vmatprep.subr.bf16.mxu0 0
      %1561 = vmatpush1.bf16.xpose.msra.mxu0 0
      %1562 = vmatprep.subr.bf16.mxu0 0
      %1563 = vmatpush1.bf16.xpose.msra.mxu0 0
      %1564 = vmatprep.subr.bf16.mxu0 0
      %1565 = vmatpush1.bf16.xpose.msra.mxu0 0
      %1566 = vmatprep.subr.bf16.mxu0 0
      %1567 = vmatpush1.bf16.xpose.msra.mxu0 0
      %1568 = vmatprep.subr.bf16.mxu0 0
      %1569 = vmatpush1.bf16.xpose.msra.mxu0 0
      %1570 = vmatprep.subr.bf16.mxu0 0
      %1571 = vmatpush1.bf16.xpose.msra.mxu0 0
      %1572 = vmatprep.subr.bf16.mxu0 0
      %1573 = vmatpush1.bf16.xpose.msra.mxu0 0
      %1574 = vmatprep.subr.bf16.mxu0 0
      %1575 = vmatpush1.bf16.xpose.msra.mxu0 0
      %1576 = vmatprep.subr.bf16.mxu0 0
      %1577 = vmatpush1.bf16.xpose.msra.mxu0 0
      %1578 = vmatprep.subr.bf16.mxu0 0
      %1579 = vmatpush1.bf16.xpose.msra.mxu0 0
      %1580 = vmatprep.subr.bf16.mxu0 0
      %1581 = vmatpush1.bf16.xpose.msra.mxu0 0
      %1582 = vmatprep.subr.bf16.mxu0 0
      %1583 = vmatpush1.bf16.xpose.msra.mxu0 0
      %1584 = vmatprep.subr.bf16.mxu0 0
      %1585 = vmatpush1.bf16.xpose.msra.mxu0 0
      %1586 = vmatprep.mubr.bf16.mxu0 0
      %1587 = vmatmul.mubr.bf16.gmra.mrb[0].mxu0 %v1549
      %v1588 = vpop.f32.mrb[0].mxu0
      %v1589 = vadd.f32 %v929, %v1588
      %v1590 = vpop.f32.mrb[0].mxu0
      %v1591 = vpop.f32.mrb[0].mxu0
      %v1592 = vpop.f32.mrb[0].mxu0
      %1593 = vdwg.mxu0
      %v1594 = vsel %vm1245, %v1589, -inf
      %1595 = vmax.xlane.f32.xlu0 %v1594
      %v1596 = vpop.xlane.xlu0 %1595
      %v1597 = vsub.f32 %v1589, %v1596
      %v1598 = vmul.f32 %v1597, 1.442695
      %v1599 = vpow.pop %v1598
      %v1600 = vsel %vm1245, %v1599, 0.0
      %1601 = vadd.xlane.f32.xlu0 %v1600
      %v1602 = vpop.xlane.xlu0 %1601
      %v1603 = vrcp.pop %v1602
      %v1604 = vmul.f32 %v1599, %v1603
      %v1605 = vpack.c.bf16 %v1604, %v1604
      %v1606 = vpack.c.bf16 %v1541, %v1541
      %v1608 = vsel %vm1245, %v1605, 0
      %v1611 = vsel %vm1262, %v1606, 0
      %1613 = vmatprep.subr.bf16.mxu0 0
      %1614 = vmatpush1.bf16.msra.mxu0 %v1611
      %1615 = vmatprep.subr.bf16.mxu0 0
      %1616 = vmatpush1.bf16.msra.mxu0 0
      %1617 = vmatprep.subr.bf16.mxu0 0
      %1618 = vmatpush1.bf16.msra.mxu0 0
      %1619 = vmatprep.subr.bf16.mxu0 0
      %1620 = vmatpush1.bf16.msra.mxu0 0
      %1621 = vmatprep.subr.bf16.mxu0 0
      %1622 = vmatpush1.bf16.msra.mxu0 0
      %1623 = vmatprep.subr.bf16.mxu0 0
      %1624 = vmatpush1.bf16.msra.mxu0 0
      %1625 = vmatprep.subr.bf16.mxu0 0
      %1626 = vmatpush1.bf16.msra.mxu0 0
      %1627 = vmatprep.subr.bf16.mxu0 0
      %1628 = vmatpush1.bf16.msra.mxu0 0
      %1629 = vmatprep.subr.bf16.mxu0 0
      %1630 = vmatpush1.bf16.msra.mxu0 0
      %1631 = vmatprep.subr.bf16.mxu0 0
      %1632 = vmatpush1.bf16.msra.mxu0 0
      %1633 = vmatprep.subr.bf16.mxu0 0
      %1634 = vmatpush1.bf16.msra.mxu0 0
      %1635 = vmatprep.subr.bf16.mxu0 0
      %1636 = vmatpush1.bf16.msra.mxu0 0
      %1637 = vmatprep.subr.bf16.mxu0 0
      %1638 = vmatpush1.bf16.msra.mxu0 0
      %1639 = vmatprep.subr.bf16.mxu0 0
      %1640 = vmatpush1.bf16.msra.mxu0 0
      %1641 = vmatprep.subr.bf16.mxu0 0
      %1642 = vmatpush1.bf16.msra.mxu0 0
      %1643 = vmatprep.subr.bf16.mxu0 0
      %1644 = vmatpush1.bf16.msra.mxu0 0
      %1645 = vmatprep.mubr.bf16.mxu0 0
      %1646 = vmatmul.mubr.bf16.gmra.mrb[0].mxu0 %v1608
      %v1647 = vpop.f32.mrb[0].mxu0
      %v1648 = vadd.f32 0.0, %v1647
      %v1649 = vpop.f32.mrb[0].mxu0
      %v1650 = vpop.f32.mrb[0].mxu0
      %v1651 = vpop.f32.mrb[0].mxu0
      %1652 = vdwg.mxu0
      %s1653 = scalar_lea.vmem %s19, 16
      %v1654 = vld [vmem:[%s1653] sm:$0xf]
      %v1655 = vld [vmem:[%s1653 + $0x4] sm:$0xf]
      %v1656 = vld [vmem:[%s1653 + $0x8] sm:$0xf]
      %v1657 = vld [vmem:[%s1653 + $0xc] sm:$0xf]
      %v1658 = vpack.c.bf16 %v1648, %v1648
      %v1663 = vunpack.c.l.b16 %v1654
      %v1664 = vunpack.c.l.b16 %v1655
      %v1665 = vunpack.c.l.b16 %v1656
      %v1666 = vunpack.c.l.b16 %v1657
      %v1667 = vpack.c.b16 %v1664, %v1663
      %v1668 = vpack.c.b16 %v1666, %v1665
      %v1672 = vsel %vm1198, %v1658, 0
      %1674 = vmatprep.subr.bf16.mxu0 0
      %1675 = vmatpush1.bf16.msra.mxu0 %v1667
      %1676 = vmatprep.subr.bf16.mxu0 0
      %1677 = vmatpush1.bf16.msra.mxu0 %v1668
      %1678 = vmatprep.subr.bf16.mxu0 0
      %1679 = vmatpush1.bf16.msra.mxu0 0
      %1680 = vmatprep.subr.bf16.mxu0 0
      %1681 = vmatpush1.bf16.msra.mxu0 0
      %1682 = vmatprep.subr.bf16.mxu0 0
      %1683 = vmatpush1.bf16.msra.mxu0 0
      %1684 = vmatprep.subr.bf16.mxu0 0
      %1685 = vmatpush1.bf16.msra.mxu0 0
      %1686 = vmatprep.subr.bf16.mxu0 0
      %1687 = vmatpush1.bf16.msra.mxu0 0
      %1688 = vmatprep.subr.bf16.mxu0 0
      %1689 = vmatpush1.bf16.msra.mxu0 0
      %1690 = vmatprep.subr.bf16.mxu0 0
      %1691 = vmatpush1.bf16.msra.mxu0 0
      %1692 = vmatprep.subr.bf16.mxu0 0
      %1693 = vmatpush1.bf16.msra.mxu0 0
      %1694 = vmatprep.subr.bf16.mxu0 0
      %1695 = vmatpush1.bf16.msra.mxu0 0
      %1696 = vmatprep.subr.bf16.mxu0 0
      %1697 = vmatpush1.bf16.msra.mxu0 0
      %1698 = vmatprep.subr.bf16.mxu0 0
      %1699 = vmatpush1.bf16.msra.mxu0 0
      %1700 = vmatprep.subr.bf16.mxu0 0
      %1701 = vmatpush1.bf16.msra.mxu0 0
      %1702 = vmatprep.subr.bf16.mxu0 0
      %1703 = vmatpush1.bf16.msra.mxu0 0
      %1704 = vmatprep.subr.bf16.mxu0 0
      %1705 = vmatpush1.bf16.msra.mxu0 0
      %1706 = vmatprep.mubr.bf16.mxu0 0
      %1707 = vmatmul.mubr.bf16.gmra.mrb[0].mxu0 %v1672
      %v1708 = vpop.f32.mrb[0].mxu0
      %v1709 = vadd.f32 0.0, %v1708
      %v1710 = vpop.f32.mrb[0].mxu0
      %v1711 = vpop.f32.mrb[0].mxu0
      %v1712 = vpop.f32.mrb[0].mxu0
      %1713 = vdwg.mxu0
      %v1718 = vunpack.c.l.b16 %v1306
      %v1719 = vunpack.c.l.b16 %v1307
      %v1720 = vunpack.c.l.b16 %v1308
      %v1721 = vunpack.c.l.b16 %v1309
      %v1722 = vpack.c.b16 %v1719, %v1718
      %v1723 = vpack.c.b16 %v1721, %v1720
      %v1727 = vsel %vm1198, %v1310, 0
      %1729 = vmatprep.subr.bf16.mxu0 0
      %1730 = vmatpush1.bf16.msra.mxu0 %v1722
      %1731 = vmatprep.subr.bf16.mxu0 0
      %1732 = vmatpush1.bf16.msra.mxu0 %v1723
      %1733 = vmatprep.subr.bf16.mxu0 0
      %1734 = vmatpush1.bf16.msra.mxu0 0
      %1735 = vmatprep.subr.bf16.mxu0 0
      %1736 = vmatpush1.bf16.msra.mxu0 0
      %1737 = vmatprep.subr.bf16.mxu0 0
      %1738 = vmatpush1.bf16.msra.mxu0 0
      %1739 = vmatprep.subr.bf16.mxu0 0
      %1740 = vmatpush1.bf16.msra.mxu0 0
      %1741 = vmatprep.subr.bf16.mxu0 0
      %1742 = vmatpush1.bf16.msra.mxu0 0
      %1743 = vmatprep.subr.bf16.mxu0 0
      %1744 = vmatpush1.bf16.msra.mxu0 0
      %1745 = vmatprep.subr.bf16.mxu0 0
      %1746 = vmatpush1.bf16.msra.mxu0 0
      %1747 = vmatprep.subr.bf16.mxu0 0
      %1748 = vmatpush1.bf16.msra.mxu0 0
      %1749 = vmatprep.subr.bf16.mxu0 0
      %1750 = vmatpush1.bf16.msra.mxu0 0
      %1751 = vmatprep.subr.bf16.mxu0 0
      %1752 = vmatpush1.bf16.msra.mxu0 0
      %1753 = vmatprep.subr.bf16.mxu0 0
      %1754 = vmatpush1.bf16.msra.mxu0 0
      %1755 = vmatprep.subr.bf16.mxu0 0
      %1756 = vmatpush1.bf16.msra.mxu0 0
      %1757 = vmatprep.subr.bf16.mxu0 0
      %1758 = vmatpush1.bf16.msra.mxu0 0
      %1759 = vmatprep.subr.bf16.mxu0 0
      %1760 = vmatpush1.bf16.msra.mxu0 0
      %1761 = vmatprep.mubr.bf16.mxu0 0
      %1762 = vmatmul.mubr.bf16.gmra.mrb[0].mxu0 %v1727
      %v1763 = vpop.f32.mrb[0].mxu0
      %v1764 = vadd.f32 %v1709, %v1763
      %v1765 = vpop.f32.mrb[0].mxu0
      %v1766 = vpop.f32.mrb[0].mxu0
      %v1767 = vpop.f32.mrb[0].mxu0
      %1768 = vdwg.mxu0
      %v1770 = vlaneseq
      %v1771 = vshrl.u32 %v1770, 7
      %v1772 = vsub.s32 0, %v1771
      %v1773 = vrot.slane %v961, %v1772
      %v1775 = vadd.f32 %v1764, %v1773
      %v1776 = vadd.f32 %v919, %v1775
      %v1777 = vld [vmem:[%s23] sm:$0x1]
      %v1778 = vld [vmem:[%s25] sm:$0x1]
      %v1779 = vsel %vm932, %v1776, 0.0
      %1780 = vadd.xlane.f32.xlu0 %v1779
      %v1781 = vpop.xlane.xlu0 %1780
      %v1782 = vmul.f32 %v1781, %v936
      %v1783 = vsub.f32 %v1776, %v1782
      %v1784 = vmul.f32 %v1783, %v1783
      %v1785 = vsel %vm932, %v1784, 0.0
      %1786 = vadd.xlane.f32.xlu0 %v1785
      %v1787 = vpop.xlane.xlu0 %1786
      %v1788 = vmul.f32 %v1787, %v936
      %v1789 = vadd.f32 %v1788, 1e-05
      %v1790 = vrsqrt.pop %v1789
      %v1791 = vmul.f32 %v1783, %v1790
      %v1793 = vlaneseq
      %v1794 = vshrl.u32 %v1793, 7
      %v1795 = vsub.s32 0, %v1794
      %v1796 = vrot.slane %v1777, %v1795
      %v1798 = vmul.f32 %v1791, %v1796
      %v1800 = vlaneseq
      %v1801 = vshrl.u32 %v1800, 7
      %v1802 = vsub.s32 0, %v1801
      %v1803 = vrot.slane %v1778, %v1802
      %v1805 = vadd.f32 %v1798, %v1803
      %v1806 = vld [vmem:[%s39] sm:$0x1]
      %v1807 = vld [vmem:[%s27] sm:$0xf]
      %v1808 = vld [vmem:[%s27 + $0x4] sm:$0xf]
      %v1809 = vld [vmem:[%s27 + $0x8] sm:$0xf]
      %v1810 = vld [vmem:[%s27 + $0xc] sm:$0xf]
      %v1811 = vld [vmem:[%s27 + $0x10] sm:$0xf]
      %v1812 = vld [vmem:[%s27 + $0x14] sm:$0xf]
      %v1813 = vld [vmem:[%s27 + $0x18] sm:$0xf]
      %v1814 = vld [vmem:[%s27 + $0x1c] sm:$0xf]
      %v1815 = vpack.c.bf16 %v1805, %v1805
      %v1816 = vld [vmem:[%s29] sm:$0x1]
      %v1818 = vlaneseq
      %v1819 = vshrl.u32 %v1818, 7
      %v1820 = vsub.s32 0, %v1819
      %v1821 = vrot.slane %v1816, %v1820
      %v1831 = vunpack.c.l.b16 %v1807
      %v1832 = vunpack.c.l.b16 %v1808
      %v1833 = vunpack.c.l.b16 %v1809
      %v1834 = vunpack.c.l.b16 %v1810
      %v1835 = vunpack.c.l.b16 %v1811
      %v1836 = vunpack.c.l.b16 %v1812
      %v1837 = vunpack.c.l.b16 %v1813
      %v1838 = vunpack.c.l.b16 %v1814
      %v1839 = vpack.c.b16 %v1832, %v1831
      %v1840 = vpack.c.b16 %v1834, %v1833
      %v1841 = vpack.c.b16 %v1836, %v1835
      %v1842 = vpack.c.b16 %v1838, %v1837
      %v1848 = vsel %vm932, %v1815, 0
      %1850 = vmatprep.subr.bf16.mxu0 0
      %1851 = vmatpush1.bf16.msra.mxu0 %v1839
      %1852 = vmatprep.subr.bf16.mxu0 0
      %1853 = vmatpush1.bf16.msra.mxu0 %v1840
      %1854 = vmatprep.subr.bf16.mxu0 0
      %1855 = vmatpush1.bf16.msra.mxu0 %v1841
      %1856 = vmatprep.subr.bf16.mxu0 0
      %1857 = vmatpush1.bf16.msra.mxu0 %v1842
      %1858 = vmatprep.subr.bf16.mxu0 0
      %1859 = vmatpush1.bf16.msra.mxu0 0
      %1860 = vmatprep.subr.bf16.mxu0 0
      %1861 = vmatpush1.bf16.msra.mxu0 0
      %1862 = vmatprep.subr.bf16.mxu0 0
      %1863 = vmatpush1.bf16.msra.mxu0 0
      %1864 = vmatprep.subr.bf16.mxu0 0
      %1865 = vmatpush1.bf16.msra.mxu0 0
      %1866 = vmatprep.subr.bf16.mxu0 0
      %1867 = vmatpush1.bf16.msra.mxu0 0
      %1868 = vmatprep.subr.bf16.mxu0 0
      %1869 = vmatpush1.bf16.msra.mxu0 0
      %1870 = vmatprep.subr.bf16.mxu0 0
      %1871 = vmatpush1.bf16.msra.mxu0 0
      %1872 = vmatprep.subr.bf16.mxu0 0
      %1873 = vmatpush1.bf16.msra.mxu0 0
      %1874 = vmatprep.subr.bf16.mxu0 0
      %1875 = vmatpush1.bf16.msra.mxu0 0
      %1876 = vmatprep.subr.bf16.mxu0 0
      %1877 = vmatpush1.bf16.msra.mxu0 0
      %1878 = vmatprep.subr.bf16.mxu0 0
      %1879 = vmatpush1.bf16.msra.mxu0 0
      %1880 = vmatprep.subr.bf16.mxu0 0
      %1881 = vmatpush1.bf16.msra.mxu0 0
      %1882 = vmatprep.mubr.bf16.mxu0 0
      %1883 = vmatmul.mubr.bf16.gmra.mrb[0].mxu0 %v1848
      %v1884 = vpop.f32.mrb[0].mxu0
      %v1885 = vadd.f32 %v1821, %v1884
      %v1886 = vpop.f32.mrb[0].mxu0
      %v1887 = vpop.f32.mrb[0].mxu0
      %v1888 = vpop.f32.mrb[0].mxu0
      %1889 = vdwg.mxu0
      %v1890 = vld [vmem:[%s31] sm:$0xf]
      %v1891 = vld [vmem:[%s31 + $0x4] sm:$0xf]
      %v1892 = vld [vmem:[%s31 + $0x8] sm:$0xf]
      %v1893 = vld [vmem:[%s31 + $0xc] sm:$0xf]
      %v1894 = vld [vmem:[%s31 + $0x10] sm:$0xf]
      %v1895 = vld [vmem:[%s31 + $0x14] sm:$0xf]
      %v1896 = vld [vmem:[%s31 + $0x18] sm:$0xf]
      %v1897 = vld [vmem:[%s31 + $0x1c] sm:$0xf]
      %v1902 = vunpack.c.l.b16 %v920
      %v1903 = vunpack.c.l.b16 %v921
      %v1904 = vunpack.c.l.b16 %v922
      %v1905 = vunpack.c.l.b16 %v923
      %v1906 = vpack.c.b16 %v1903, %v1902
      %v1907 = vpack.c.b16 %v1905, %v1904
      %v1916 = vunpack.c.l.b16 %v1890
      %v1917 = vunpack.c.l.b16 %v1891
      %v1918 = vunpack.c.l.b16 %v1892
      %v1919 = vunpack.c.l.b16 %v1893
      %v1920 = vunpack.c.l.b16 %v1894
      %v1921 = vunpack.c.l.b16 %v1895
      %v1922 = vunpack.c.l.b16 %v1896
      %v1923 = vunpack.c.l.b16 %v1897
      %v1924 = vpack.c.b16 %v1917, %v1916
      %v1925 = vpack.c.b16 %v1919, %v1918
      %v1926 = vpack.c.b16 %v1921, %v1920
      %v1927 = vpack.c.b16 %v1923, %v1922
      %v1933 = vsel %vm932, %v1906, 0
      %v1936 = vsel %vm932, %v1907, 0
      %1938 = vmatprep.subr.bf16.mxu0 0
      %1939 = vmatpush1.bf16.msra.mxu0 %v1924
      %1940 = vmatprep.subr.bf16.mxu0 0
      %1941 = vmatpush1.bf16.msra.mxu0 %v1925
      %1942 = vmatprep.subr.bf16.mxu0 0
      %1943 = vmatpush1.bf16.msra.mxu0 %v1926
      %1944 = vmatprep.subr.bf16.mxu0 0
      %1945 = vmatpush1.bf16.msra.mxu0 %v1927
      %1946 = vmatprep.subr.bf16.mxu0 0
      %1947 = vmatpush1.bf16.msra.mxu0 0
      %1948 = vmatprep.subr.bf16.mxu0 0
      %1949 = vmatpush1.bf16.msra.mxu0 0
      %1950 = vmatprep.subr.bf16.mxu0 0
      %1951 = vmatpush1.bf16.msra.mxu0 0
      %1952 = vmatprep.subr.bf16.mxu0 0
      %1953 = vmatpush1.bf16.msra.mxu0 0
      %1954 = vmatprep.subr.bf16.mxu0 0
      %1955 = vmatpush1.bf16.msra.mxu0 0
      %1956 = vmatprep.subr.bf16.mxu0 0
      %1957 = vmatpush1.bf16.msra.mxu0 0
      %1958 = vmatprep.subr.bf16.mxu0 0
      %1959 = vmatpush1.bf16.msra.mxu0 0
      %1960 = vmatprep.subr.bf16.mxu0 0
      %1961 = vmatpush1.bf16.msra.mxu0 0
      %1962 = vmatprep.subr.bf16.mxu0 0
      %1963 = vmatpush1.bf16.msra.mxu0 0
      %1964 = vmatprep.subr.bf16.mxu0 0
      %1965 = vmatpush1.bf16.msra.mxu0 0
      %1966 = vmatprep.subr.bf16.mxu0 0
      %1967 = vmatpush1.bf16.msra.mxu0 0
      %1968 = vmatprep.subr.bf16.mxu0 0
      %1969 = vmatpush1.bf16.msra.mxu0 0
      %1970 = vmatprep.mubr.bf16.mxu0 0
      %1971 = vmatmul.mubr.bf16.gmra.mrb[0].mxu0 %v1933
      %v1972 = vpop.f32.mrb[0].mxu0
      %v1973 = vadd.f32 0.0, %v1972
      %v1974 = vpop.f32.mrb[0].mxu0
      %v1975 = vpop.f32.mrb[0].mxu0
      %v1976 = vadd.f32 0.0, %v1975
      %v1977 = vpop.f32.mrb[0].mxu0
      %1978 = vmatprep.mubr.bf16.mxu0 0
      %1979 = vmatmul.mubr.bf16.gmra.mrb[0].mxu0 %v1936
      %v1980 = vpop.f32.mrb[0].mxu0
      %v1981 = vadd.f32 0.0, %v1980
      %v1982 = vpop.f32.mrb[0].mxu0
      %v1983 = vpop.f32.mrb[0].mxu0
      %v1984 = vadd.f32 0.0, %v1983
      %v1985 = vpop.f32.mrb[0].mxu0
      %1986 = vdwg.mxu0
      %v1987 = vld [vmem:[%s33] sm:$0xf]
      %v1988 = vld [vmem:[%s33 + $0x4] sm:$0xf]
      %v1989 = vld [vmem:[%s33 + $0x8] sm:$0xf]
      %v1990 = vld [vmem:[%s33 + $0xc] sm:$0xf]
      %v1991 = vld [vmem:[%s33 + $0x10] sm:$0xf]
      %v1992 = vld [vmem:[%s33 + $0x14] sm:$0xf]
      %v1993 = vld [vmem:[%s33 + $0x18] sm:$0xf]
      %v1994 = vld [vmem:[%s33 + $0x1c] sm:$0xf]
      %v1995 = vld [vmem:[%s35] sm:$0x1]
      %v1997 = vlaneseq
      %v1998 = vshrl.u32 %v1997, 7
      %v1999 = vsub.s32 0, %v1998
      %v2000 = vrot.slane %v1995, %v1999
      %v2010 = vunpack.c.l.b16 %v1987
      %v2011 = vunpack.c.l.b16 %v1988
      %v2012 = vunpack.c.l.b16 %v1989
      %v2013 = vunpack.c.l.b16 %v1990
      %v2014 = vunpack.c.l.b16 %v1991
      %v2015 = vunpack.c.l.b16 %v1992
      %v2016 = vunpack.c.l.b16 %v1993
      %v2017 = vunpack.c.l.b16 %v1994
      %v2018 = vpack.c.b16 %v2011, %v2010
      %v2019 = vpack.c.b16 %v2013, %v2012
      %v2020 = vpack.c.b16 %v2015, %v2014
      %v2021 = vpack.c.b16 %v2017, %v2016
      %2026 = vmatprep.subr.bf16.mxu0 0
      %2027 = vmatpush1.bf16.msra.mxu0 %v2018
      %2028 = vmatprep.subr.bf16.mxu0 0
      %2029 = vmatpush1.bf16.msra.mxu0 %v2019
      %2030 = vmatprep.subr.bf16.mxu0 0
      %2031 = vmatpush1.bf16.msra.mxu0 %v2020
      %2032 = vmatprep.subr.bf16.mxu0 0
      %2033 = vmatpush1.bf16.msra.mxu0 %v2021
      %2034 = vmatprep.subr.bf16.mxu0 0
      %2035 = vmatpush1.bf16.msra.mxu0 0
      %2036 = vmatprep.subr.bf16.mxu0 0
      %2037 = vmatpush1.bf16.msra.mxu0 0
      %2038 = vmatprep.subr.bf16.mxu0 0
      %2039 = vmatpush1.bf16.msra.mxu0 0
      %2040 = vmatprep.subr.bf16.mxu0 0
      %2041 = vmatpush1.bf16.msra.mxu0 0
      %2042 = vmatprep.subr.bf16.mxu0 0
      %2043 = vmatpush1.bf16.msra.mxu0 0
      %2044 = vmatprep.subr.bf16.mxu0 0
      %2045 = vmatpush1.bf16.msra.mxu0 0
      %2046 = vmatprep.subr.bf16.mxu0 0
      %2047 = vmatpush1.bf16.msra.mxu0 0
      %2048 = vmatprep.subr.bf16.mxu0 0
      %2049 = vmatpush1.bf16.msra.mxu0 0
      %2050 = vmatprep.subr.bf16.mxu0 0
      %2051 = vmatpush1.bf16.msra.mxu0 0
      %2052 = vmatprep.subr.bf16.mxu0 0
      %2053 = vmatpush1.bf16.msra.mxu0 0
      %2054 = vmatprep.subr.bf16.mxu0 0
      %2055 = vmatpush1.bf16.msra.mxu0 0
      %2056 = vmatprep.subr.bf16.mxu0 0
      %2057 = vmatpush1.bf16.msra.mxu0 0
      %2058 = vmatprep.mubr.bf16.mxu0 0
      %2059 = vmatmul.mubr.bf16.gmra.mrb[0].mxu0 %v1933
      %v2060 = vpop.f32.mrb[0].mxu0
      %v2061 = vadd.f32 %v2000, %v2060
      %v2062 = vpop.f32.mrb[0].mxu0
      %v2063 = vpop.f32.mrb[0].mxu0
      %v2064 = vadd.f32 %v2000, %v2063
      %v2065 = vpop.f32.mrb[0].mxu0
      %2066 = vmatprep.mubr.bf16.mxu0 0
      %2067 = vmatmul.mubr.bf16.gmra.mrb[0].mxu0 %v1936
      %v2068 = vpop.f32.mrb[0].mxu0
      %v2069 = vadd.f32 %v2000, %v2068
      %v2070 = vpop.f32.mrb[0].mxu0
      %v2071 = vpop.f32.mrb[0].mxu0
      %v2072 = vadd.f32 %v2000, %v2071
      %v2073 = vpop.f32.mrb[0].mxu0
      %2074 = vdwg.mxu0
      %v2075 = vpack.c.bf16 %v1885, %v1885
      %v2076 = vpack.c.bf16 %v1976, %v1973
      %v2077 = vpack.c.bf16 %v1984, %v1981
      %v2079 = vsel %vm1198, %v2075, 0
      %v2082 = vsel %vm1198, %v2076, 0
      %v2085 = vsel %vm1198, %v2077, 0
      %2087 = vmatprep.subr.bf16.mxu0 0
      %2088 = vmatpush1.bf16.xpose.msra.mxu0 %v2082
      %2089 = vmatprep.subr.bf16.mxu0 0
      %2090 = vmatpush1.bf16.xpose.msra.mxu0 %v2085
      %2091 = vmatprep.subr.bf16.mxu0 0
      %2092 = vmatpush1.bf16.xpose.msra.mxu0 0
      %2093 = vmatprep.subr.bf16.mxu0 0
      %2094 = vmatpush1.bf16.xpose.msra.mxu0 0
      %2095 = vmatprep.subr.bf16.mxu0 0
      %2096 = vmatpush1.bf16.xpose.msra.mxu0 0
      %2097 = vmatprep.subr.bf16.mxu0 0
      %2098 = vmatpush1.bf16.xpose.msra.mxu0 0
      %2099 = vmatprep.subr.bf16.mxu0 0
      %2100 = vmatpush1.bf16.xpose.msra.mxu0 0
      %2101 = vmatprep.subr.bf16.mxu0 0
      %2102 = vmatpush1.bf16.xpose.msra.mxu0 0
      %2103 = vmatprep.subr.bf16.mxu0 0
      %2104 = vmatpush1.bf16.xpose.msra.mxu0 0
      %2105 = vmatprep.subr.bf16.mxu0 0
      %2106 = vmatpush1.bf16.xpose.msra.mxu0 0
      %2107 = vmatprep.subr.bf16.mxu0 0
      %2108 = vmatpush1.bf16.xpose.msra.mxu0 0
      %2109 = vmatprep.subr.bf16.mxu0 0
      %2110 = vmatpush1.bf16.xpose.msra.mxu0 0
      %2111 = vmatprep.subr.bf16.mxu0 0
      %2112 = vmatpush1.bf16.xpose.msra.mxu0 0
      %2113 = vmatprep.subr.bf16.mxu0 0
      %2114 = vmatpush1.bf16.xpose.msra.mxu0 0
      %2115 = vmatprep.subr.bf16.mxu0 0
      %2116 = vmatpush1.bf16.xpose.msra.mxu0 0
      %2117 = vmatprep.subr.bf16.mxu0 0
      %2118 = vmatpush1.bf16.xpose.msra.mxu0 0
      %2119 = vmatprep.mubr.bf16.mxu0 0
      %2120 = vmatmul.mubr.bf16.gmra.mrb[0].mxu0 %v2079
      %v2121 = vpop.f32.mrb[0].mxu0
      %v2122 = vadd.f32 0.0, %v2121
      %v2123 = vpop.f32.mrb[0].mxu0
      %v2124 = vpop.f32.mrb[0].mxu0
      %v2125 = vpop.f32.mrb[0].mxu0
      %2126 = vdwg.mxu0
      %v2127 = vsel %vm1198, %v2122, -inf
      %2128 = vmax.xlane.f32.xlu0 %v2127
      %v2129 = vpop.xlane.xlu0 %2128
      %v2130 = vsub.f32 %v2122, %v2129
      %v2131 = vmul.f32 %v2130, 1.442695
      %v2132 = vpow.pop %v2131
      %v2133 = vsel %vm1198, %v2132, 0.0
      %2134 = vadd.xlane.f32.xlu0 %v2133
      %v2135 = vpop.xlane.xlu0 %2134
      %v2136 = vrcp.pop %v2135
      %v2137 = vmul.f32 %v2132, %v2136
      %v2138 = vpack.c.bf16 %v2137, %v2137
      %v2139 = vpack.c.bf16 %v2064, %v2061
      %v2140 = vpack.c.bf16 %v2072, %v2069
      %v2142 = vsel %vm1198, %v2138, 0
      %2144 = vmatprep.subr.bf16.mxu0 0
      %2145 = vmatpush1.bf16.msra.mxu0 %v2139
      %2146 = vmatprep.subr.bf16.mxu0 0
      %2147 = vmatpush1.bf16.msra.mxu0 %v2140
      %2148 = vmatprep.subr.bf16.mxu0 0
      %2149 = vmatpush1.bf16.msra.mxu0 0
      %2150 = vmatprep.subr.bf16.mxu0 0
      %2151 = vmatpush1.bf16.msra.mxu0 0
      %2152 = vmatprep.subr.bf16.mxu0 0
      %2153 = vmatpush1.bf16.msra.mxu0 0
      %2154 = vmatprep.subr.bf16.mxu0 0
      %2155 = vmatpush1.bf16.msra.mxu0 0
      %2156 = vmatprep.subr.bf16.mxu0 0
      %2157 = vmatpush1.bf16.msra.mxu0 0
      %2158 = vmatprep.subr.bf16.mxu0 0
      %2159 = vmatpush1.bf16.msra.mxu0 0
      %2160 = vmatprep.subr.bf16.mxu0 0
      %2161 = vmatpush1.bf16.msra.mxu0 0
      %2162 = vmatprep.subr.bf16.mxu0 0
      %2163 = vmatpush1.bf16.msra.mxu0 0
      %2164 = vmatprep.subr.bf16.mxu0 0
      %2165 = vmatpush1.bf16.msra.mxu0 0
      %2166 = vmatprep.subr.bf16.mxu0 0
      %2167 = vmatpush1.bf16.msra.mxu0 0
      %2168 = vmatprep.subr.bf16.mxu0 0
      %2169 = vmatpush1.bf16.msra.mxu0 0
      %2170 = vmatprep.subr.bf16.mxu0 0
      %2171 = vmatpush1.bf16.msra.mxu0 0
      %2172 = vmatprep.subr.bf16.mxu0 0
      %2173 = vmatpush1.bf16.msra.mxu0 0
      %2174 = vmatprep.subr.bf16.mxu0 0
      %2175 = vmatpush1.bf16.msra.mxu0 0
      %2176 = vmatprep.mubr.bf16.mxu0 0
      %2177 = vmatmul.mubr.bf16.gmra.mrb[0].mxu0 %v2142
      %v2178 = vpop.f32.mrb[0].mxu0
      %v2179 = vadd.f32 0.0, %v2178
      %v2180 = vpop.f32.mrb[0].mxu0
      %v2181 = vpop.f32.mrb[0].mxu0
      %v2182 = vpop.f32.mrb[0].mxu0
      %2183 = vdwg.mxu0
      %v2184 = vld [vmem:[%s37] sm:$0xf]
      %v2185 = vld [vmem:[%s37 + $0x4] sm:$0xf]
      %v2186 = vld [vmem:[%s37 + $0x8] sm:$0xf]
      %v2187 = vld [vmem:[%s37 + $0xc] sm:$0xf]
      %v2188 = vpack.c.bf16 %v2179, %v2179
      %s2189 = scalar_lea.vmem %s27, 32
      %v2190 = vld [vmem:[%s2189] sm:$0xf]
      %v2191 = vld [vmem:[%s2189 + $0x4] sm:$0xf]
      %v2192 = vld [vmem:[%s2189 + $0x8] sm:$0xf]
      %v2193 = vld [vmem:[%s2189 + $0xc] sm:$0xf]
      %v2194 = vld [vmem:[%s2189 + $0x10] sm:$0xf]
      %v2195 = vld [vmem:[%s2189 + $0x14] sm:$0xf]
      %v2196 = vld [vmem:[%s2189 + $0x18] sm:$0xf]
      %v2197 = vld [vmem:[%s2189 + $0x1c] sm:$0xf]
      %s2198 = scalar_lea.vmem %s29, 1
      %v2199 = vld [vmem:[%s2198] sm:$0x1]
      %v2201 = vlaneseq
      %v2202 = vshrl.u32 %v2201, 7
      %v2203 = vsub.s32 0, %v2202
      %v2204 = vrot.slane %v2199, %v2203
      %v2214 = vunpack.c.l.b16 %v2190
      %v2215 = vunpack.c.l.b16 %v2191
      %v2216 = vunpack.c.l.b16 %v2192
      %v2217 = vunpack.c.l.b16 %v2193
      %v2218 = vunpack.c.l.b16 %v2194
      %v2219 = vunpack.c.l.b16 %v2195
      %v2220 = vunpack.c.l.b16 %v2196
      %v2221 = vunpack.c.l.b16 %v2197
      %v2222 = vpack.c.b16 %v2215, %v2214
      %v2223 = vpack.c.b16 %v2217, %v2216
      %v2224 = vpack.c.b16 %v2219, %v2218
      %v2225 = vpack.c.b16 %v2221, %v2220
      %2230 = vmatprep.subr.bf16.mxu0 0
      %2231 = vmatpush1.bf16.msra.mxu0 %v2222
      %2232 = vmatprep.subr.bf16.mxu0 0
      %2233 = vmatpush1.bf16.msra.mxu0 %v2223
      %2234 = vmatprep.subr.bf16.mxu0 0
      %2235 = vmatpush1.bf16.msra.mxu0 %v2224
      %2236 = vmatprep.subr.bf16.mxu0 0
      %2237 = vmatpush1.bf16.msra.mxu0 %v2225
      %2238 = vmatprep.subr.bf16.mxu0 0
      %2239 = vmatpush1.bf16.msra.mxu0 0
      %2240 = vmatprep.subr.bf16.mxu0 0
      %2241 = vmatpush1.bf16.msra.mxu0 0
      %2242 = vmatprep.subr.bf16.mxu0 0
      %2243 = vmatpush1.bf16.msra.mxu0 0
      %2244 = vmatprep.subr.bf16.mxu0 0
      %2245 = vmatpush1.bf16.msra.mxu0 0
      %2246 = vmatprep.subr.bf16.mxu0 0
      %2247 = vmatpush1.bf16.msra.mxu0 0
      %2248 = vmatprep.subr.bf16.mxu0 0
      %2249 = vmatpush1.bf16.msra.mxu0 0
      %2250 = vmatprep.subr.bf16.mxu0 0
      %2251 = vmatpush1.bf16.msra.mxu0 0
      %2252 = vmatprep.subr.bf16.mxu0 0
      %2253 = vmatpush1.bf16.msra.mxu0 0
      %2254 = vmatprep.subr.bf16.mxu0 0
      %2255 = vmatpush1.bf16.msra.mxu0 0
      %2256 = vmatprep.subr.bf16.mxu0 0
      %2257 = vmatpush1.bf16.msra.mxu0 0
      %2258 = vmatprep.subr.bf16.mxu0 0
      %2259 = vmatpush1.bf16.msra.mxu0 0
      %2260 = vmatprep.subr.bf16.mxu0 0
      %2261 = vmatpush1.bf16.msra.mxu0 0
      %2262 = vmatprep.mubr.bf16.mxu0 0
      %2263 = vmatmul.mubr.bf16.gmra.mrb[0].mxu0 %v1848
      %v2264 = vpop.f32.mrb[0].mxu0
      %v2265 = vadd.f32 %v2204, %v2264
      %v2266 = vpop.f32.mrb[0].mxu0
      %v2267 = vpop.f32.mrb[0].mxu0
      %v2268 = vpop.f32.mrb[0].mxu0
      %2269 = vdwg.mxu0
      %s2270 = scalar_lea.vmem %s31, 32
      %v2271 = vld [vmem:[%s2270] sm:$0xf]
      %v2272 = vld [vmem:[%s2270 + $0x4] sm:$0xf]
      %v2273 = vld [vmem:[%s2270 + $0x8] sm:$0xf]
      %v2274 = vld [vmem:[%s2270 + $0xc] sm:$0xf]
      %v2275 = vld [vmem:[%s2270 + $0x10] sm:$0xf]
      %v2276 = vld [vmem:[%s2270 + $0x14] sm:$0xf]
      %v2277 = vld [vmem:[%s2270 + $0x18] sm:$0xf]
      %v2278 = vld [vmem:[%s2270 + $0x1c] sm:$0xf]
      %v2287 = vunpack.c.l.b16 %v2271
      %v2288 = vunpack.c.l.b16 %v2272
      %v2289 = vunpack.c.l.b16 %v2273
      %v2290 = vunpack.c.l.b16 %v2274
      %v2291 = vunpack.c.l.b16 %v2275
      %v2292 = vunpack.c.l.b16 %v2276
      %v2293 = vunpack.c.l.b16 %v2277
      %v2294 = vunpack.c.l.b16 %v2278
      %v2295 = vpack.c.b16 %v2288, %v2287
      %v2296 = vpack.c.b16 %v2290, %v2289
      %v2297 = vpack.c.b16 %v2292, %v2291
      %v2298 = vpack.c.b16 %v2294, %v2293
      %2303 = vmatprep.subr.bf16.mxu0 0
      %2304 = vmatpush1.bf16.msra.mxu0 %v2295
      %2305 = vmatprep.subr.bf16.mxu0 0
      %2306 = vmatpush1.bf16.msra.mxu0 %v2296
      %2307 = vmatprep.subr.bf16.mxu0 0
      %2308 = vmatpush1.bf16.msra.mxu0 %v2297
      %2309 = vmatprep.subr.bf16.mxu0 0
      %2310 = vmatpush1.bf16.msra.mxu0 %v2298
      %2311 = vmatprep.subr.bf16.mxu0 0
      %2312 = vmatpush1.bf16.msra.mxu0 0
      %2313 = vmatprep.subr.bf16.mxu0 0
      %2314 = vmatpush1.bf16.msra.mxu0 0
      %2315 = vmatprep.subr.bf16.mxu0 0
      %2316 = vmatpush1.bf16.msra.mxu0 0
      %2317 = vmatprep.subr.bf16.mxu0 0
      %2318 = vmatpush1.bf16.msra.mxu0 0
      %2319 = vmatprep.subr.bf16.mxu0 0
      %2320 = vmatpush1.bf16.msra.mxu0 0
      %2321 = vmatprep.subr.bf16.mxu0 0
      %2322 = vmatpush1.bf16.msra.mxu0 0
      %2323 = vmatprep.subr.bf16.mxu0 0
      %2324 = vmatpush1.bf16.msra.mxu0 0
      %2325 = vmatprep.subr.bf16.mxu0 0
      %2326 = vmatpush1.bf16.msra.mxu0 0
      %2327 = vmatprep.subr.bf16.mxu0 0
      %2328 = vmatpush1.bf16.msra.mxu0 0
      %2329 = vmatprep.subr.bf16.mxu0 0
      %2330 = vmatpush1.bf16.msra.mxu0 0
      %2331 = vmatprep.subr.bf16.mxu0 0
      %2332 = vmatpush1.bf16.msra.mxu0 0
      %2333 = vmatprep.subr.bf16.mxu0 0
      %2334 = vmatpush1.bf16.msra.mxu0 0
      %2335 = vmatprep.mubr.bf16.mxu0 0
      %2336 = vmatmul.mubr.bf16.gmra.mrb[0].mxu0 %v1933
      %v2337 = vpop.f32.mrb[0].mxu0
      %v2338 = vadd.f32 0.0, %v2337
      %v2339 = vpop.f32.mrb[0].mxu0
      %v2340 = vpop.f32.mrb[0].mxu0
      %v2341 = vadd.f32 0.0, %v2340
      %v2342 = vpop.f32.mrb[0].mxu0
      %2343 = vmatprep.mubr.bf16.mxu0 0
      %2344 = vmatmul.mubr.bf16.gmra.mrb[0].mxu0 %v1936
      %v2345 = vpop.f32.mrb[0].mxu0
      %v2346 = vadd.f32 0.0, %v2345
      %v2347 = vpop.f32.mrb[0].mxu0
      %v2348 = vpop.f32.mrb[0].mxu0
      %v2349 = vadd.f32 0.0, %v2348
      %v2350 = vpop.f32.mrb[0].mxu0
      %2351 = vdwg.mxu0
      %s2352 = scalar_lea.vmem %s33, 32
      %v2353 = vld [vmem:[%s2352] sm:$0xf]
      %v2354 = vld [vmem:[%s2352 + $0x4] sm:$0xf]
      %v2355 = vld [vmem:[%s2352 + $0x8] sm:$0xf]
      %v2356 = vld [vmem:[%s2352 + $0xc] sm:$0xf]
      %v2357 = vld [vmem:[%s2352 + $0x10] sm:$0xf]
      %v2358 = vld [vmem:[%s2352 + $0x14] sm:$0xf]
      %v2359 = vld [vmem:[%s2352 + $0x18] sm:$0xf]
      %v2360 = vld [vmem:[%s2352 + $0x1c] sm:$0xf]
      %s2361 = scalar_lea.vmem %s35, 1
      %v2362 = vld [vmem:[%s2361] sm:$0x1]
      %v2364 = vlaneseq
      %v2365 = vshrl.u32 %v2364, 7
      %v2366 = vsub.s32 0, %v2365
      %v2367 = vrot.slane %v2362, %v2366
      %v2377 = vunpack.c.l.b16 %v2353
      %v2378 = vunpack.c.l.b16 %v2354
      %v2379 = vunpack.c.l.b16 %v2355
      %v2380 = vunpack.c.l.b16 %v2356
      %v2381 = vunpack.c.l.b16 %v2357
      %v2382 = vunpack.c.l.b16 %v2358
      %v2383 = vunpack.c.l.b16 %v2359
      %v2384 = vunpack.c.l.b16 %v2360
      %v2385 = vpack.c.b16 %v2378, %v2377
      %v2386 = vpack.c.b16 %v2380, %v2379
      %v2387 = vpack.c.b16 %v2382, %v2381
      %v2388 = vpack.c.b16 %v2384, %v2383
      %2393 = vmatprep.subr.bf16.mxu0 0
      %2394 = vmatpush1.bf16.msra.mxu0 %v2385
      %2395 = vmatprep.subr.bf16.mxu0 0
      %2396 = vmatpush1.bf16.msra.mxu0 %v2386
      %2397 = vmatprep.subr.bf16.mxu0 0
      %2398 = vmatpush1.bf16.msra.mxu0 %v2387
      %2399 = vmatprep.subr.bf16.mxu0 0
      %2400 = vmatpush1.bf16.msra.mxu0 %v2388
      %2401 = vmatprep.subr.bf16.mxu0 0
      %2402 = vmatpush1.bf16.msra.mxu0 0
      %2403 = vmatprep.subr.bf16.mxu0 0
      %2404 = vmatpush1.bf16.msra.mxu0 0
      %2405 = vmatprep.subr.bf16.mxu0 0
      %2406 = vmatpush1.bf16.msra.mxu0 0
      %2407 = vmatprep.subr.bf16.mxu0 0
      %2408 = vmatpush1.bf16.msra.mxu0 0
      %2409 = vmatprep.subr.bf16.mxu0 0
      %2410 = vmatpush1.bf16.msra.mxu0 0
      %2411 = vmatprep.subr.bf16.mxu0 0
      %2412 = vmatpush1.bf16.msra.mxu0 0
      %2413 = vmatprep.subr.bf16.mxu0 0
      %2414 = vmatpush1.bf16.msra.mxu0 0
      %2415 = vmatprep.subr.bf16.mxu0 0
      %2416 = vmatpush1.bf16.msra.mxu0 0
      %2417 = vmatprep.subr.bf16.mxu0 0
      %2418 = vmatpush1.bf16.msra.mxu0 0
      %2419 = vmatprep.subr.bf16.mxu0 0
      %2420 = vmatpush1.bf16.msra.mxu0 0
      %2421 = vmatprep.subr.bf16.mxu0 0
      %2422 = vmatpush1.bf16.msra.mxu0 0
      %2423 = vmatprep.subr.bf16.mxu0 0
      %2424 = vmatpush1.bf16.msra.mxu0 0
      %2425 = vmatprep.mubr.bf16.mxu0 0
      %2426 = vmatmul.mubr.bf16.gmra.mrb[0].mxu0 %v1933
      %v2427 = vpop.f32.mrb[0].mxu0
      %v2428 = vadd.f32 %v2367, %v2427
      %v2429 = vpop.f32.mrb[0].mxu0
      %v2430 = vpop.f32.mrb[0].mxu0
      %v2431 = vadd.f32 %v2367, %v2430
      %v2432 = vpop.f32.mrb[0].mxu0
      %2433 = vmatprep.mubr.bf16.mxu0 0
      %2434 = vmatmul.mubr.bf16.gmra.mrb[0].mxu0 %v1936
      %v2435 = vpop.f32.mrb[0].mxu0
      %v2436 = vadd.f32 %v2367, %v2435
      %v2437 = vpop.f32.mrb[0].mxu0
      %v2438 = vpop.f32.mrb[0].mxu0
      %v2439 = vadd.f32 %v2367, %v2438
      %v2440 = vpop.f32.mrb[0].mxu0
      %2441 = vdwg.mxu0
      %v2442 = vpack.c.bf16 %v2265, %v2265
      %v2443 = vpack.c.bf16 %v2341, %v2338
      %v2444 = vpack.c.bf16 %v2349, %v2346
      %v2446 = vsel %vm1198, %v2442, 0
      %v2449 = vsel %vm1198, %v2443, 0
      %v2452 = vsel %vm1198, %v2444, 0
      %2454 = vmatprep.subr.bf16.mxu0 0
      %2455 = vmatpush1.bf16.xpose.msra.mxu0 %v2449
      %2456 = vmatprep.subr.bf16.mxu0 0
      %2457 = vmatpush1.bf16.xpose.msra.mxu0 %v2452
      %2458 = vmatprep.subr.bf16.mxu0 0
      %2459 = vmatpush1.bf16.xpose.msra.mxu0 0
      %2460 = vmatprep.subr.bf16.mxu0 0
      %2461 = vmatpush1.bf16.xpose.msra.mxu0 0
      %2462 = vmatprep.subr.bf16.mxu0 0
      %2463 = vmatpush1.bf16.xpose.msra.mxu0 0
      %2464 = vmatprep.subr.bf16.mxu0 0
      %2465 = vmatpush1.bf16.xpose.msra.mxu0 0
      %2466 = vmatprep.subr.bf16.mxu0 0
      %2467 = vmatpush1.bf16.xpose.msra.mxu0 0
      %2468 = vmatprep.subr.bf16.mxu0 0
      %2469 = vmatpush1.bf16.xpose.msra.mxu0 0
      %2470 = vmatprep.subr.bf16.mxu0 0
      %2471 = vmatpush1.bf16.xpose.msra.mxu0 0
      %2472 = vmatprep.subr.bf16.mxu0 0
      %2473 = vmatpush1.bf16.xpose.msra.mxu0 0
      %2474 = vmatprep.subr.bf16.mxu0 0
      %2475 = vmatpush1.bf16.xpose.msra.mxu0 0
      %2476 = vmatprep.subr.bf16.mxu0 0
      %2477 = vmatpush1.bf16.xpose.msra.mxu0 0
      %2478 = vmatprep.subr.bf16.mxu0 0
      %2479 = vmatpush1.bf16.xpose.msra.mxu0 0
      %2480 = vmatprep.subr.bf16.mxu0 0
      %2481 = vmatpush1.bf16.xpose.msra.mxu0 0
      %2482 = vmatprep.subr.bf16.mxu0 0
      %2483 = vmatpush1.bf16.xpose.msra.mxu0 0
      %2484 = vmatprep.subr.bf16.mxu0 0
      %2485 = vmatpush1.bf16.xpose.msra.mxu0 0
      %2486 = vmatprep.mubr.bf16.mxu0 0
      %2487 = vmatmul.mubr.bf16.gmra.mrb[0].mxu0 %v2446
      %v2488 = vpop.f32.mrb[0].mxu0
      %v2489 = vadd.f32 0.0, %v2488
      %v2490 = vpop.f32.mrb[0].mxu0
      %v2491 = vpop.f32.mrb[0].mxu0
      %v2492 = vpop.f32.mrb[0].mxu0
      %2493 = vdwg.mxu0
      %v2494 = vsel %vm1198, %v2489, -inf
      %2495 = vmax.xlane.f32.xlu0 %v2494
      %v2496 = vpop.xlane.xlu0 %2495
      %v2497 = vsub.f32 %v2489, %v2496
      %v2498 = vmul.f32 %v2497, 1.442695
      %v2499 = vpow.pop %v2498
      %v2500 = vsel %vm1198, %v2499, 0.0
      %2501 = vadd.xlane.f32.xlu0 %v2500
      %v2502 = vpop.xlane.xlu0 %2501
      %v2503 = vrcp.pop %v2502
      %v2504 = vmul.f32 %v2499, %v2503
      %v2505 = vpack.c.bf16 %v2504, %v2504
      %v2506 = vpack.c.bf16 %v2431, %v2428
      %v2507 = vpack.c.bf16 %v2439, %v2436
      %v2509 = vsel %vm1198, %v2505, 0
      %2511 = vmatprep.subr.bf16.mxu0 0
      %2512 = vmatpush1.bf16.msra.mxu0 %v2506
      %2513 = vmatprep.subr.bf16.mxu0 0
      %2514 = vmatpush1.bf16.msra.mxu0 %v2507
      %2515 = vmatprep.subr.bf16.mxu0 0
      %2516 = vmatpush1.bf16.msra.mxu0 0
      %2517 = vmatprep.subr.bf16.mxu0 0
      %2518 = vmatpush1.bf16.msra.mxu0 0
      %2519 = vmatprep.subr.bf16.mxu0 0
      %2520 = vmatpush1.bf16.msra.mxu0 0
      %2521 = vmatprep.subr.bf16.mxu0 0
      %2522 = vmatpush1.bf16.msra.mxu0 0
      %2523 = vmatprep.subr.bf16.mxu0 0
      %2524 = vmatpush1.bf16.msra.mxu0 0
      %2525 = vmatprep.subr.bf16.mxu0 0
      %2526 = vmatpush1.bf16.msra.mxu0 0
      %2527 = vmatprep.subr.bf16.mxu0 0
      %2528 = vmatpush1.bf16.msra.mxu0 0
      %2529 = vmatprep.subr.bf16.mxu0 0
      %2530 = vmatpush1.bf16.msra.mxu0 0
      %2531 = vmatprep.subr.bf16.mxu0 0
      %2532 = vmatpush1.bf16.msra.mxu0 0
      %2533 = vmatprep.subr.bf16.mxu0 0
      %2534 = vmatpush1.bf16.msra.mxu0 0
      %2535 = vmatprep.subr.bf16.mxu0 0
      %2536 = vmatpush1.bf16.msra.mxu0 0
      %2537 = vmatprep.subr.bf16.mxu0 0
      %2538 = vmatpush1.bf16.msra.mxu0 0
      %2539 = vmatprep.subr.bf16.mxu0 0
      %2540 = vmatpush1.bf16.msra.mxu0 0
      %2541 = vmatprep.subr.bf16.mxu0 0
      %2542 = vmatpush1.bf16.msra.mxu0 0
      %2543 = vmatprep.mubr.bf16.mxu0 0
      %2544 = vmatmul.mubr.bf16.gmra.mrb[0].mxu0 %v2509
      %v2545 = vpop.f32.mrb[0].mxu0
      %v2546 = vadd.f32 0.0, %v2545
      %v2547 = vpop.f32.mrb[0].mxu0
      %v2548 = vpop.f32.mrb[0].mxu0
      %v2549 = vpop.f32.mrb[0].mxu0
      %2550 = vdwg.mxu0
      %s2551 = scalar_lea.vmem %s37, 16
      %v2552 = vld [vmem:[%s2551] sm:$0xf]
      %v2553 = vld [vmem:[%s2551 + $0x4] sm:$0xf]
      %v2554 = vld [vmem:[%s2551 + $0x8] sm:$0xf]
      %v2555 = vld [vmem:[%s2551 + $0xc] sm:$0xf]
      %v2556 = vpack.c.bf16 %v2546, %v2546
      %v2561 = vunpack.c.l.b16 %v2552
      %v2562 = vunpack.c.l.b16 %v2553
      %v2563 = vunpack.c.l.b16 %v2554
      %v2564 = vunpack.c.l.b16 %v2555
      %v2565 = vpack.c.b16 %v2562, %v2561
      %v2566 = vpack.c.b16 %v2564, %v2563
      %v2570 = vsel %vm1198, %v2556, 0
      %2572 = vmatprep.subr.bf16.mxu0 0
      %2573 = vmatpush1.bf16.msra.mxu0 %v2565
      %2574 = vmatprep.subr.bf16.mxu0 0
      %2575 = vmatpush1.bf16.msra.mxu0 %v2566
      %2576 = vmatprep.subr.bf16.mxu0 0
      %2577 = vmatpush1.bf16.msra.mxu0 0
      %2578 = vmatprep.subr.bf16.mxu0 0
      %2579 = vmatpush1.bf16.msra.mxu0 0
      %2580 = vmatprep.subr.bf16.mxu0 0
      %2581 = vmatpush1.bf16.msra.mxu0 0
      %2582 = vmatprep.subr.bf16.mxu0 0
      %2583 = vmatpush1.bf16.msra.mxu0 0
      %2584 = vmatprep.subr.bf16.mxu0 0
      %2585 = vmatpush1.bf16.msra.mxu0 0
      %2586 = vmatprep.subr.bf16.mxu0 0
      %2587 = vmatpush1.bf16.msra.mxu0 0
      %2588 = vmatprep.subr.bf16.mxu0 0
      %2589 = vmatpush1.bf16.msra.mxu0 0
      %2590 = vmatprep.subr.bf16.mxu0 0
      %2591 = vmatpush1.bf16.msra.mxu0 0
      %2592 = vmatprep.subr.bf16.mxu0 0
      %2593 = vmatpush1.bf16.msra.mxu0 0
      %2594 = vmatprep.subr.bf16.mxu0 0
      %2595 = vmatpush1.bf16.msra.mxu0 0
      %2596 = vmatprep.subr.bf16.mxu0 0
      %2597 = vmatpush1.bf16.msra.mxu0 0
      %2598 = vmatprep.subr.bf16.mxu0 0
      %2599 = vmatpush1.bf16.msra.mxu0 0
      %2600 = vmatprep.subr.bf16.mxu0 0
      %2601 = vmatpush1.bf16.msra.mxu0 0
      %2602 = vmatprep.subr.bf16.mxu0 0
      %2603 = vmatpush1.bf16.msra.mxu0 0
      %2604 = vmatprep.mubr.bf16.mxu0 0
      %2605 = vmatmul.mubr.bf16.gmra.mrb[0].mxu0 %v2570
      %v2606 = vpop.f32.mrb[0].mxu0
      %v2607 = vadd.f32 0.0, %v2606
      %v2608 = vpop.f32.mrb[0].mxu0
      %v2609 = vpop.f32.mrb[0].mxu0
      %v2610 = vpop.f32.mrb[0].mxu0
      %2611 = vdwg.mxu0
      %v2616 = vunpack.c.l.b16 %v2184
      %v2617 = vunpack.c.l.b16 %v2185
      %v2618 = vunpack.c.l.b16 %v2186
      %v2619 = vunpack.c.l.b16 %v2187
      %v2620 = vpack.c.b16 %v2617, %v2616
      %v2621 = vpack.c.b16 %v2619, %v2618
      %v2625 = vsel %vm1198, %v2188, 0
      %2627 = vmatprep.subr.bf16.mxu0 0
      %2628 = vmatpush1.bf16.msra.mxu0 %v2620
      %2629 = vmatprep.subr.bf16.mxu0 0
      %2630 = vmatpush1.bf16.msra.mxu0 %v2621
      %2631 = vmatprep.subr.bf16.mxu0 0
      %2632 = vmatpush1.bf16.msra.mxu0 0
      %2633 = vmatprep.subr.bf16.mxu0 0
      %2634 = vmatpush1.bf16.msra.mxu0 0
      %2635 = vmatprep.subr.bf16.mxu0 0
      %2636 = vmatpush1.bf16.msra.mxu0 0
      %2637 = vmatprep.subr.bf16.mxu0 0
      %2638 = vmatpush1.bf16.msra.mxu0 0
      %2639 = vmatprep.subr.bf16.mxu0 0
      %2640 = vmatpush1.bf16.msra.mxu0 0
      %2641 = vmatprep.subr.bf16.mxu0 0
      %2642 = vmatpush1.bf16.msra.mxu0 0
      %2643 = vmatprep.subr.bf16.mxu0 0
      %2644 = vmatpush1.bf16.msra.mxu0 0
      %2645 = vmatprep.subr.bf16.mxu0 0
      %2646 = vmatpush1.bf16.msra.mxu0 0
      %2647 = vmatprep.subr.bf16.mxu0 0
      %2648 = vmatpush1.bf16.msra.mxu0 0
      %2649 = vmatprep.subr.bf16.mxu0 0
      %2650 = vmatpush1.bf16.msra.mxu0 0
      %2651 = vmatprep.subr.bf16.mxu0 0
      %2652 = vmatpush1.bf16.msra.mxu0 0
      %2653 = vmatprep.subr.bf16.mxu0 0
      %2654 = vmatpush1.bf16.msra.mxu0 0
      %2655 = vmatprep.subr.bf16.mxu0 0
      %2656 = vmatpush1.bf16.msra.mxu0 0
      %2657 = vmatprep.subr.bf16.mxu0 0
      %2658 = vmatpush1.bf16.msra.mxu0 0
      %2659 = vmatprep.mubr.bf16.mxu0 0
      %2660 = vmatmul.mubr.bf16.gmra.mrb[0].mxu0 %v2625
      %v2661 = vpop.f32.mrb[0].mxu0
      %v2662 = vadd.f32 %v2607, %v2661
      %v2663 = vpop.f32.mrb[0].mxu0
      %v2664 = vpop.f32.mrb[0].mxu0
      %v2665 = vpop.f32.mrb[0].mxu0
      %2666 = vdwg.mxu0
      %v2668 = vlaneseq
      %v2669 = vshrl.u32 %v2668, 7
      %v2670 = vsub.s32 0, %v2669
      %v2671 = vrot.slane %v1806, %v2670
      %v2673 = vadd.f32 %v2662, %v2671
      %v2674 = vadd.f32 %v1776, %v2673
      %v2675 = vld [vmem:[%s41] sm:$0x1]
      %v2676 = vld [vmem:[%s43] sm:$0x1]
      %v2677 = vsel %vm932, %v2674, 0.0
      %2678 = vadd.xlane.f32.xlu0 %v2677
      %v2679 = vpop.xlane.xlu0 %2678
      %v2680 = vmul.f32 %v2679, %v936
      %v2681 = vsub.f32 %v2674, %v2680
      %v2682 = vmul.f32 %v2681, %v2681
      %v2683 = vsel %vm932, %v2682, 0.0
      %2684 = vadd.xlane.f32.xlu0 %v2683
      %v2685 = vpop.xlane.xlu0 %2684
      %v2686 = vmul.f32 %v2685, %v936
      %v2687 = vadd.f32 %v2686, 1e-05
      %v2688 = vrsqrt.pop %v2687
      %v2689 = vmul.f32 %v2681, %v2688
      %v2691 = vlaneseq
      %v2692 = vshrl.u32 %v2691, 7
      %v2693 = vsub.s32 0, %v2692
      %v2694 = vrot.slane %v2675, %v2693
      %v2696 = vmul.f32 %v2689, %v2694
      %v2698 = vlaneseq
      %v2699 = vshrl.u32 %v2698, 7
      %v2700 = vsub.s32 0, %v2699
      %v2701 = vrot.slane %v2676, %v2700
      %v2703 = vadd.f32 %v2696, %v2701
      %v2704 = vld [vmem:[%s45] sm:$0xf]
      %v2705 = vld [vmem:[%s45 + $0x4] sm:$0xf]
      %v2706 = vld [vmem:[%s45 + $0x8] sm:$0xf]
      %v2707 = vld [vmem:[%s45 + $0xc] sm:$0xf]
      %v2708 = vld [vmem:[%s45 + $0x10] sm:$0xf]
      %v2709 = vld [vmem:[%s45 + $0x14] sm:$0xf]
      %v2710 = vld [vmem:[%s45 + $0x18] sm:$0xf]
      %v2711 = vld [vmem:[%s45 + $0x1c] sm:$0xf]
      %v2712 = vpack.c.bf16 %v2703, %v2703
      %v2713 = vld [vmem:[%s47] sm:$0x1]
      %v2715 = vlaneseq
      %v2716 = vshrl.u32 %v2715, 7
      %v2717 = vsub.s32 0, %v2716
      %v2718 = vrot.slane %v2713, %v2717
      %v2728 = vunpack.c.l.b16 %v2704
      %v2729 = vunpack.c.l.b16 %v2705
      %v2730 = vunpack.c.l.b16 %v2706
      %v2731 = vunpack.c.l.b16 %v2707
      %v2732 = vunpack.c.l.b16 %v2708
      %v2733 = vunpack.c.l.b16 %v2709
      %v2734 = vunpack.c.l.b16 %v2710
      %v2735 = vunpack.c.l.b16 %v2711
      %v2736 = vpack.c.b16 %v2729, %v2728
      %v2737 = vpack.c.b16 %v2731, %v2730
      %v2738 = vpack.c.b16 %v2733, %v2732
      %v2739 = vpack.c.b16 %v2735, %v2734
      %v2745 = vsel %vm932, %v2712, 0
      %2747 = vmatprep.subr.bf16.mxu0 0
      %2748 = vmatpush1.bf16.msra.mxu0 %v2736
      %2749 = vmatprep.subr.bf16.mxu0 0
      %2750 = vmatpush1.bf16.msra.mxu0 %v2737
      %2751 = vmatprep.subr.bf16.mxu0 0
      %2752 = vmatpush1.bf16.msra.mxu0 %v2738
      %2753 = vmatprep.subr.bf16.mxu0 0
      %2754 = vmatpush1.bf16.msra.mxu0 %v2739
      %2755 = vmatprep.subr.bf16.mxu0 0
      %2756 = vmatpush1.bf16.msra.mxu0 0
      %2757 = vmatprep.subr.bf16.mxu0 0
      %2758 = vmatpush1.bf16.msra.mxu0 0
      %2759 = vmatprep.subr.bf16.mxu0 0
      %2760 = vmatpush1.bf16.msra.mxu0 0
      %2761 = vmatprep.subr.bf16.mxu0 0
      %2762 = vmatpush1.bf16.msra.mxu0 0
      %2763 = vmatprep.subr.bf16.mxu0 0
      %2764 = vmatpush1.bf16.msra.mxu0 0
      %2765 = vmatprep.subr.bf16.mxu0 0
      %2766 = vmatpush1.bf16.msra.mxu0 0
      %2767 = vmatprep.subr.bf16.mxu0 0
      %2768 = vmatpush1.bf16.msra.mxu0 0
      %2769 = vmatprep.subr.bf16.mxu0 0
      %2770 = vmatpush1.bf16.msra.mxu0 0
      %2771 = vmatprep.subr.bf16.mxu0 0
      %2772 = vmatpush1.bf16.msra.mxu0 0
      %2773 = vmatprep.subr.bf16.mxu0 0
      %2774 = vmatpush1.bf16.msra.mxu0 0
      %2775 = vmatprep.subr.bf16.mxu0 0
      %2776 = vmatpush1.bf16.msra.mxu0 0
      %2777 = vmatprep.subr.bf16.mxu0 0
      %2778 = vmatpush1.bf16.msra.mxu0 0
      %2779 = vmatprep.mubr.bf16.mxu0 0
      %2780 = vmatmul.mubr.bf16.gmra.mrb[0].mxu0 %v2745
      %v2781 = vpop.f32.mrb[0].mxu0
      %v2782 = vadd.f32 %v2718, %v2781
      %v2783 = vpop.f32.mrb[0].mxu0
      %v2784 = vpop.f32.mrb[0].mxu0
      %v2785 = vpop.f32.mrb[0].mxu0
      %2786 = vdwg.mxu0
      %v2787 = vmul.f32 %v2782, %v2782
      %v2788 = vmul.f32 %v2782, %v2787
      %v2789 = vmul.f32 %v2788, 0.044715
      %v2790 = vadd.f32 %v2782, %v2789
      %v2791 = vmul.f32 %v2790, 0.7978846
      %v2792 = vtanh.pop %v2791
      %v2793 = vadd.f32 %v2792, 1.0
      %v2794 = vmul.f32 %v2793, 0.5
      %v2795 = vmul.f32 %v2782, %v2794
      %v2796 = vld [vmem:[%s49] sm:$0xf]
      %v2797 = vld [vmem:[%s49 + $0x4] sm:$0xf]
      %v2798 = vld [vmem:[%s49 + $0x8] sm:$0xf]
      %v2799 = vld [vmem:[%s49 + $0xc] sm:$0xf]
      %v2800 = vld [vmem:[%s49 + $0x10] sm:$0xf]
      %v2801 = vld [vmem:[%s49 + $0x14] sm:$0xf]
      %v2802 = vld [vmem:[%s49 + $0x18] sm:$0xf]
      %v2803 = vld [vmem:[%s49 + $0x1c] sm:$0xf]
      %v2804 = vld [vmem:[%s49 + $0x20] sm:$0xf]
      %v2805 = vld [vmem:[%s49 + $0x24] sm:$0xf]
      %v2806 = vld [vmem:[%s49 + $0x28] sm:$0xf]
      %v2807 = vld [vmem:[%s49 + $0x2c] sm:$0xf]
      %v2808 = vld [vmem:[%s49 + $0x30] sm:$0xf]
      %v2809 = vld [vmem:[%s49 + $0x34] sm:$0xf]
      %v2810 = vld [vmem:[%s49 + $0x38] sm:$0xf]
      %v2811 = vld [vmem:[%s49 + $0x3c] sm:$0xf]
      %v2812 = vpack.c.bf16 %v2795, %v2795
      %v2829 = vunpack.c.l.b16 %v2796
      %v2830 = vunpack.c.l.b16 %v2797
      %v2831 = vunpack.c.l.b16 %v2798
      %v2832 = vunpack.c.l.b16 %v2799
      %v2833 = vunpack.c.l.b16 %v2800
      %v2834 = vunpack.c.l.b16 %v2801
      %v2835 = vunpack.c.l.b16 %v2802
      %v2836 = vunpack.c.l.b16 %v2803
      %v2837 = vunpack.c.l.b16 %v2804
      %v2838 = vunpack.c.l.b16 %v2805
      %v2839 = vunpack.c.l.b16 %v2806
      %v2840 = vunpack.c.l.b16 %v2807
      %v2841 = vunpack.c.l.b16 %v2808
      %v2842 = vunpack.c.l.b16 %v2809
      %v2843 = vunpack.c.l.b16 %v2810
      %v2844 = vunpack.c.l.b16 %v2811
      %v2845 = vpack.c.b16 %v2830, %v2829
      %v2846 = vpack.c.b16 %v2832, %v2831
      %v2847 = vpack.c.b16 %v2834, %v2833
      %v2848 = vpack.c.b16 %v2836, %v2835
      %v2849 = vpack.c.b16 %v2838, %v2837
      %v2850 = vpack.c.b16 %v2840, %v2839
      %v2851 = vpack.c.b16 %v2842, %v2841
      %v2852 = vpack.c.b16 %v2844, %v2843
      %2861 = vmatprep.subr.bf16.mxu0 0
      %2862 = vmatpush1.bf16.msra.mxu0 %v2845
      %2863 = vmatprep.subr.bf16.mxu0 0
      %2864 = vmatpush1.bf16.msra.mxu0 %v2846
      %2865 = vmatprep.subr.bf16.mxu0 0
      %2866 = vmatpush1.bf16.msra.mxu0 %v2847
      %2867 = vmatprep.subr.bf16.mxu0 0
      %2868 = vmatpush1.bf16.msra.mxu0 %v2848
      %2869 = vmatprep.subr.bf16.mxu0 0
      %2870 = vmatpush1.bf16.msra.mxu0 %v2849
      %2871 = vmatprep.subr.bf16.mxu0 0
      %2872 = vmatpush1.bf16.msra.mxu0 %v2850
      %2873 = vmatprep.subr.bf16.mxu0 0
      %2874 = vmatpush1.bf16.msra.mxu0 %v2851
      %2875 = vmatprep.subr.bf16.mxu0 0
      %2876 = vmatpush1.bf16.msra.mxu0 %v2852
      %2877 = vmatprep.subr.bf16.mxu0 0
      %2878 = vmatpush1.bf16.msra.mxu0 0
      %2879 = vmatprep.subr.bf16.mxu0 0
      %2880 = vmatpush1.bf16.msra.mxu0 0
      %2881 = vmatprep.subr.bf16.mxu0 0
      %2882 = vmatpush1.bf16.msra.mxu0 0
      %2883 = vmatprep.subr.bf16.mxu0 0
      %2884 = vmatpush1.bf16.msra.mxu0 0
      %2885 = vmatprep.subr.bf16.mxu0 0
      %2886 = vmatpush1.bf16.msra.mxu0 0
      %2887 = vmatprep.subr.bf16.mxu0 0
      %2888 = vmatpush1.bf16.msra.mxu0 0
      %2889 = vmatprep.subr.bf16.mxu0 0
      %2890 = vmatpush1.bf16.msra.mxu0 0
      %2891 = vmatprep.subr.bf16.mxu0 0
      %2892 = vmatpush1.bf16.msra.mxu0 0
      %2893 = vmatprep.mubr.bf16.mxu0 0
      %2894 = vmatmul.mubr.bf16.gmra.mrb[0].mxu0 %v2812
      %v2895 = vpop.f32.mrb[0].mxu0
      %v2896 = vadd.f32 0.0, %v2895
      %v2897 = vpop.f32.mrb[0].mxu0
      %v2898 = vpop.f32.mrb[0].mxu0
      %v2899 = vpop.f32.mrb[0].mxu0
      %2900 = vdwg.mxu0
      %v2901 = vadd.f32 %v2674, %v2896
      %v2902 = vld [vmem:[%s51] sm:$0x1]
      %v2904 = vlaneseq
      %v2905 = vshrl.u32 %v2904, 7
      %v2906 = vsub.s32 0, %v2905
      %v2907 = vrot.slane %v2902, %v2906
      %v2909 = vadd.f32 %v2901, %v2907
      %v2910 = vld [vmem:[%s53] sm:$0x1]
      %v2911 = vld [vmem:[%s55] sm:$0x1]
      %v2912 = vsel %vm932, %v2909, 0.0
      %2913 = vadd.xlane.f32.xlu0 %v2912
      %v2914 = vpop.xlane.xlu0 %2913
      %v2915 = vmul.f32 %v2914, %v936
      %v2916 = vsub.f32 %v2909, %v2915
      %v2917 = vmul.f32 %v2916, %v2916
      %v2918 = vsel %vm932, %v2917, 0.0
      %2919 = vadd.xlane.f32.xlu0 %v2918
      %v2920 = vpop.xlane.xlu0 %2919
      %v2921 = vmul.f32 %v2920, %v936
      %v2922 = vadd.f32 %v2921, 1e-05
      %v2923 = vrsqrt.pop %v2922
      %v2924 = vmul.f32 %v2916, %v2923
      %v2926 = vlaneseq
      %v2927 = vshrl.u32 %v2926, 7
      %v2928 = vsub.s32 0, %v2927
      %v2929 = vrot.slane %v2910, %v2928
      %v2931 = vmul.f32 %v2924, %v2929
      %v2933 = vlaneseq
      %v2934 = vshrl.u32 %v2933, 7
      %v2935 = vsub.s32 0, %v2934
      %v2936 = vrot.slane %v2911, %v2935
      %v2938 = vadd.f32 %v2931, %v2936
      %v2939 = vpack.c.bf16 %v2938, %v2938
      %v2940 = vld [vmem:[%s57] sm:$0xf]
      %v2941 = vld [vmem:[%s57 + $0x4] sm:$0xf]
      %v2942 = vld [vmem:[%s57 + $0x8] sm:$0xf]
      %v2943 = vld [vmem:[%s57 + $0xc] sm:$0xf]
      %v2944 = vld [vmem:[%s57 + $0x10] sm:$0xf]
      %v2945 = vld [vmem:[%s57 + $0x14] sm:$0xf]
      %v2946 = vld [vmem:[%s57 + $0x18] sm:$0xf]
      %v2947 = vld [vmem:[%s57 + $0x1c] sm:$0xf]
      %v2948 = vld [vmem:[%s57 + $0x20] sm:$0xf]
      %v2949 = vld [vmem:[%s57 + $0x24] sm:$0xf]
      %v2950 = vld [vmem:[%s57 + $0x28] sm:$0xf]
      %v2951 = vld [vmem:[%s57 + $0x2c] sm:$0xf]
      %v2952 = vld [vmem:[%s57 + $0x30] sm:$0xf]
      %v2953 = vld [vmem:[%s57 + $0x34] sm:$0xf]
      %v2954 = vld [vmem:[%s57 + $0x38] sm:$0xf]
      %v2955 = vld [vmem:[%s57 + $0x3c] sm:$0xf]
      %v2972 = vunpack.c.l.b16 %v2940
      %v2973 = vunpack.c.l.b16 %v2941
      %v2974 = vunpack.c.l.b16 %v2942
      %v2975 = vunpack.c.l.b16 %v2943
      %v2976 = vunpack.c.l.b16 %v2944
      %v2977 = vunpack.c.l.b16 %v2945
      %v2978 = vunpack.c.l.b16 %v2946
      %v2979 = vunpack.c.l.b16 %v2947
      %v2980 = vunpack.c.l.b16 %v2948
      %v2981 = vunpack.c.l.b16 %v2949
      %v2982 = vunpack.c.l.b16 %v2950
      %v2983 = vunpack.c.l.b16 %v2951
      %v2984 = vunpack.c.l.b16 %v2952
      %v2985 = vunpack.c.l.b16 %v2953
      %v2986 = vunpack.c.l.b16 %v2954
      %v2987 = vunpack.c.l.b16 %v2955
      %v2988 = vpack.c.b16 %v2973, %v2972
      %v2989 = vpack.c.b16 %v2975, %v2974
      %v2990 = vpack.c.b16 %v2977, %v2976
      %v2991 = vpack.c.b16 %v2979, %v2978
      %v2992 = vpack.c.b16 %v2981, %v2980
      %v2993 = vpack.c.b16 %v2983, %v2982
      %v2994 = vpack.c.b16 %v2985, %v2984
      %v2995 = vpack.c.b16 %v2987, %v2986
      %v2997 = vsel %vm932, %v2939, 0
      %v3000 = vsel %vm932, %v2988, 0
      %v3003 = vsel %vm932, %v2989, 0
      %v3006 = vsel %vm932, %v2990, 0
      %v3009 = vsel %vm932, %v2991, 0
      %v3012 = vsel %vm932, %v2992, 0
      %v3015 = vsel %vm932, %v2993, 0
      %v3018 = vsel %vm932, %v2994, 0
      %v3021 = vsel %vm932, %v2995, 0
      %3023 = vmatprep.subr.bf16.mxu0 0
      %3024 = vmatpush1.bf16.xpose.msra.mxu0 %v3000
      %3025 = vmatprep.subr.bf16.mxu0 0
      %3026 = vmatpush1.bf16.xpose.msra.mxu0 %v3003
      %3027 = vmatprep.subr.bf16.mxu0 0
      %3028 = vmatpush1.bf16.xpose.msra.mxu0 %v3006
      %3029 = vmatprep.subr.bf16.mxu0 0
      %3030 = vmatpush1.bf16.xpose.msra.mxu0 %v3009
      %3031 = vmatprep.subr.bf16.mxu0 0
      %3032 = vmatpush1.bf16.xpose.msra.mxu0 %v3012
      %3033 = vmatprep.subr.bf16.mxu0 0
      %3034 = vmatpush1.bf16.xpose.msra.mxu0 %v3015
      %3035 = vmatprep.subr.bf16.mxu0 0
      %3036 = vmatpush1.bf16.xpose.msra.mxu0 %v3018
      %3037 = vmatprep.subr.bf16.mxu0 0
      %3038 = vmatpush1.bf16.xpose.msra.mxu0 %v3021
      %3039 = vmatprep.subr.bf16.mxu0 0
      %3040 = vmatpush1.bf16.xpose.msra.mxu0 0
      %3041 = vmatprep.subr.bf16.mxu0 0
      %3042 = vmatpush1.bf16.xpose.msra.mxu0 0
      %3043 = vmatprep.subr.bf16.mxu0 0
      %3044 = vmatpush1.bf16.xpose.msra.mxu0 0
      %3045 = vmatprep.subr.bf16.mxu0 0
      %3046 = vmatpush1.bf16.xpose.msra.mxu0 0
      %3047 = vmatprep.subr.bf16.mxu0 0
      %3048 = vmatpush1.bf16.xpose.msra.mxu0 0
      %3049 = vmatprep.subr.bf16.mxu0 0
      %3050 = vmatpush1.bf16.xpose.msra.mxu0 0
      %3051 = vmatprep.subr.bf16.mxu0 0
      %3052 = vmatpush1.bf16.xpose.msra.mxu0 0
      %3053 = vmatprep.subr.bf16.mxu0 0
      %3054 = vmatpush1.bf16.xpose.msra.mxu0 0
      %3055 = vmatprep.mubr.bf16.mxu0 0
      %3056 = vmatmul.mubr.bf16.gmra.mrb[0].mxu0 %v2997
      %v3057 = vpop.f32.mrb[0].mxu0
      %v3058 = vadd.f32 0.0, %v3057
      %v3059 = vpop.f32.mrb[0].mxu0
      %v3060 = vpop.f32.mrb[0].mxu0
      %v3061 = vpop.f32.mrb[0].mxu0
      %3062 = vdwg.mxu0
      %3063 = vst [vmem:[%s917] sm:$0xff] %v3058
      %p3064 = scmp.lt.s32.totalorder %s70, 1
      %s3065 = scalar_select %p3064, %s70, 1
      %s3066 = smul.addr %s3065, 8
      %s3067 = scalar_lea.vmem %s59, %s3066
      // Predicated region
      $region137: #{whisper_forward.3} parent=135 // pred_check
        %p3068 = pneg %p707
      $region138: #{whisper_forward.3} parent=135 // pred_check_branch
        %3070 = sbr.rel (%p3068) target = $region140
      $region139: #{whisper_forward.3} parent=135 // pred_region
        _
      $region140: #{whisper_forward.3} parent=135 // pred_fallthru
        _
    $region136: #{whisper_forward.3} parent=5 // pred_fallthru
      _
    %p3071 = scmp.le.s32.totalorder 2, %s65
    // Predicated region
    $region141: #{whisper_forward.3} parent=5 // pred_check
      %p3072 = pneg %p3071
    $region142: #{whisper_forward.3} parent=5 // pred_check_branch
      %3074 = sbr.rel (%p3072) target = $region144
    $region143: #{whisper_forward.3} parent=5 // pred_region
      %s3075 = ssub.s32 %s65, 2
      // Predicated region
      $region145: #{whisper_forward.3} parent=143 // pred_check
        %p3076 = pneg %p713
      $region146: #{whisper_forward.3} parent=143 // pred_check_branch
        %3078 = sbr.rel (%p3076) target = $region148
      $region147: #{whisper_forward.3} parent=143 // pred_region
        %p3079 = scmp.lt.s32.totalorder %s71, 1
        %s3080 = scalar_select %p3079, %s71, 1
        %s3081 = smul.addr %s3080, 8
        %s3082 = scalar_lea.vmem %s59, %s3081
      $region148: #{whisper_forward.3} parent=143 // pred_fallthru
        _
    $region144: #{whisper_forward.3} parent=5 // pred_fallthru
      _
  $region6: #{whisper_forward.3} parent=0 // loop_footer
    %s69 = sadd.s32 1, %s65
  $region7: #{whisper_forward.3} parent=0 // loop_footer_branch
    %64 = sbr.rel target = $region3
  $region8: #{whisper_forward.3} parent=0 // loop_exit
    _

// kernel: whisper_forward.2
$region0: #{whisper_forward.2}
  #allocation0 [shape = 'u32[]', space=smem, size = 0x4, offset = 0x4, fixed_abs, tag = 'smem constant byte address 0x4 - core index']
  #allocation1 [shape = 'u32[144,128]{1,0:T(1,128)}', space=vmem, size = 0x12000, scoped, tag = 'internal scratch']
  %s0 = inlined_call_operand.vmem [shape: f32[2,64,16], index: 0, kind: input, shape index: {}]
  %s1 = inlined_call_operand.vmem [shape: bf16[3,16,64], index: 1, kind: input, shape index: {}]
  %s2 = inlined_call_operand.vmem [shape: f32[1,64], index: 2, kind: input, shape index: {}]
  %s3 = inlined_call_operand.vmem [shape: bf16[3,64,64], index: 3, kind: input, shape index: {}]
  %s4 = inlined_call_operand.vmem [shape: f32[1,64], index: 4, kind: input, shape index: {}]
  %s5 = inlined_call_operand.vmem [shape: f32[32,64], index: 5, kind: input, shape index: {}]
  %s6 = inlined_call_operand.vmem [shape: f32[1,64], index: 6, kind: input, shape index: {}]
  %s7 = inlined_call_operand.vmem [shape: f32[1,64], index: 7, kind: input, shape index: {}]
  %s8 = inlined_call_operand.vmem [shape: bf16[2,64,32], index: 8, kind: input, shape index: {}]
  %s9 = inlined_call_operand.vmem [shape: f32[2,1,32], index: 9, kind: input, shape index: {}]
  %s10 = inlined_call_operand.vmem [shape: bf16[2,64,32], index: 10, kind: input, shape index: {}]
  %s11 = inlined_call_operand.vmem [shape: bf16[2,64,32], index: 11, kind: input, shape index: {}]
  %s12 = inlined_call_operand.vmem [shape: f32[2,1,32], index: 12, kind: input, shape index: {}]
  %s13 = inlined_call_operand.vmem [shape: bf16[2,32,64], index: 13, kind: input, shape index: {}]
  %s14 = inlined_call_operand.vmem [shape: f32[1,64], index: 14, kind: input, shape index: {}]
  %s15 = inlined_call_operand.vmem [shape: f32[1,64], index: 15, kind: input, shape index: {}]
  %s16 = inlined_call_operand.vmem [shape: f32[1,64], index: 16, kind: input, shape index: {}]
  %s17 = inlined_call_operand.vmem [shape: bf16[64,128], index: 17, kind: input, shape index: {}]
  %s18 = inlined_call_operand.vmem [shape: f32[1,128], index: 18, kind: input, shape index: {}]
  %s19 = inlined_call_operand.vmem [shape: bf16[128,64], index: 19, kind: input, shape index: {}]
  %s20 = inlined_call_operand.vmem [shape: f32[1,64], index: 20, kind: input, shape index: {}]
  %s21 = inlined_call_operand.vmem [shape: f32[1,64], index: 21, kind: input, shape index: {}]
  %s22 = inlined_call_operand.vmem [shape: f32[1,64], index: 22, kind: input, shape index: {}]
  %s23 = inlined_call_operand.vmem [shape: bf16[2,32,64], index: 23, kind: output, shape index: {}]
  %s24 = sld [smem:[#allocation0]]
  $region125: #{whisper_forward.2} parent=0
    _
  %s26 = ssub.s32 1, %s24
  %s27 = scalar_select 0, %s26, %s24
  loop: start=0, step=1, limit=4
  $region2: #{whisper_forward.2} parent=0 // loop_pre_header
    _
  $region3: #{whisper_forward.2} parent=0 // loop_header
    %s29 = sphi 0, %s33
    %p30 = scmp.ge.s32.totalorder %s29, 4
    %s39 = sphi 0, %s41
    %s42 = sphi 0, %s39
    %s43 = sphi 0, %s42
    %s59 = sphi 0, %s43
    %s63 = sphi 0, %s63
    %s65 = sphi 0, %s63
    %s66 = sphi 0, %s65
    %s80 = sphi 0, %s66
    %s84 = sphi 0, %s84
    %s86 = sphi 0, %s84
    %s87 = sphi 0, %s86
    %s101 = sphi 0, %s87
    %s105 = sphi 0, %s105
    %s107 = sphi 0, %s105
    %s108 = sphi 0, %s107
    %s122 = sphi 0, %s108
    %s126 = sphi 0, %s126
    %s128 = sphi 0, %s126
    %s129 = sphi 0, %s128
    %s143 = sphi 0, %s129
    %s147 = sphi 0, %s147
    %s149 = sphi 0, %s147
    %s150 = sphi 0, %s149
    %s164 = sphi 0, %s150
    %s168 = sphi 0, %s168
    %s170 = sphi 0, %s168
    %s171 = sphi 0, %s170
    %s185 = sphi 0, %s171
    %s189 = sphi 0, %s189
    %s191 = sphi 0, %s189
    %s192 = sphi 0, %s191
    %s206 = sphi 0, %s192
    %s210 = sphi 0, %s210
    %s212 = sphi 0, %s210
    %s213 = sphi 0, %s212
    %s227 = sphi 0, %s213
    %s231 = sphi 0, %s231
    %s233 = sphi 0, %s231
    %s234 = sphi 0, %s233
    %s248 = sphi 0, %s234
    %s252 = sphi 0, %s252
    %s254 = sphi 0, %s252
    %s255 = sphi 0, %s254
    %s269 = sphi 0, %s255
    %s273 = sphi 0, %s273
    %s275 = sphi 0, %s273
    %s276 = sphi 0, %s275
    %s290 = sphi 0, %s276
    %s294 = sphi 0, %s294
    %s296 = sphi 0, %s294
    %s297 = sphi 0, %s296
    %s311 = sphi 0, %s297
    %s315 = sphi 0, %s315
    %s317 = sphi 0, %s315
    %s318 = sphi 0, %s317
    %s332 = sphi 0, %s318
    %s336 = sphi 0, %s336
    %s338 = sphi 0, %s336
    %s339 = sphi 0, %s338
    %s353 = sphi 0, %s339
    %s357 = sphi 0, %s357
    %s359 = sphi 0, %s357
    %s360 = sphi 0, %s359
    %s374 = sphi 0, %s360
    %s378 = sphi 0, %s378
    %s380 = sphi 0, %s378
    %s381 = sphi 0, %s380
    %s395 = sphi 0, %s381
    %s399 = sphi 0, %s399
    %s401 = sphi 0, %s399
    %s402 = sphi 0, %s401
    %s416 = sphi 0, %s402
    %s420 = sphi 0, %s420
    %s422 = sphi 0, %s420
    %s423 = sphi 0, %s422
    %s437 = sphi 0, %s423
    %s441 = sphi 0, %s441
    %s443 = sphi 0, %s441
    %s444 = sphi 0, %s443
    %s458 = sphi 0, %s444
    %s462 = sphi 0, %s462
    %s464 = sphi 0, %s462
    %s465 = sphi 0, %s464
    %s479 = sphi 0, %s465
    %s483 = sphi 0, %s483
    %s485 = sphi 0, %s483
    %s486 = sphi 0, %s485
    %s500 = sphi 0, %s486
    %s504 = sphi 0, %s504
    %s506 = sphi 0, %s504
    %s507 = sphi 0, %s506
    %s521 = sphi 0, %s507
    %s527 = sphi 0, %s529
    %s530 = sphi 0, %s527
    %s531 = sphi 0, %s530
    %s547 = sphi 0, %s531
  $region4: #{whisper_forward.2} parent=0 // loop_header_branch
    %32 = sbr.rel (%p30) target = $region8
  $region5: #{whisper_forward.2} parent=0 // loop_body
    %s34 = ssub.s32 %s29, 1
    %s35 = ssub.s32 %s29, 2
    %s36 = sadd.s32 %s29, 1
    %s37 = ssub.s32 %s29, %s36
    %p38 = scmp.eq.s32.totalorder %s37, 0
    %s40 = sadd.s32 %s39, 1
    %s41 = scalar_select %p38, %s39, %s40
    %p44 = pneg %p38
    %p45 = scmp.eq.s32.totalorder %s29, 1
    %p46 = por %p44, %p45
    %p47 = scmp.ne.s32.totalorder %s39, %s42
    %p48 = scmp.eq.s32.totalorder %s29, 0
    %p49 = por %p47, %p48
    %p50 = scmp.ne.s32.totalorder %s39, %s42
    %p51 = scmp.eq.s32.totalorder %s34, 1
    %p52 = por %p50, %p51
    %p53 = scmp.ne.s32.totalorder %s42, %s43
    %p54 = scmp.eq.s32.totalorder %s34, 0
    %p55 = por %p53, %p54
    %p56 = scmp.ne.s32.totalorder %s42, %s43
    %p57 = scmp.eq.s32.totalorder %s35, 1
    %p58 = por %p56, %p57
    %p60 = scmp.ne.s32.totalorder %s43, %s59
    %p61 = scmp.eq.s32.totalorder %s35, 0
    %p62 = por %p60, %p61
    %s64 = sadd.s32 %s63, 1
    %p67 = scmp.eq.s32.totalorder %s29, 1
    %p68 = scmp.ne.s32.totalorder %s63, %s65
    %p69 = scmp.eq.s32.totalorder %s29, 0
    %p70 = por %p68, %p69
    %p71 = scmp.ne.s32.totalorder %s63, %s65
    %p72 = scmp.eq.s32.totalorder %s34, 1
    %p73 = por %p71, %p72
    %p74 = scmp.ne.s32.totalorder %s65, %s66
    %p75 = scmp.eq.s32.totalorder %s34, 0
    %p76 = por %p74, %p75
    %p77 = scmp.ne.s32.totalorder %s65, %s66
    %p78 = scmp.eq.s32.totalorder %s35, 1
    %p79 = por %p77, %p78
    %p81 = scmp.ne.s32.totalorder %s66, %s80
    %p82 = scmp.eq.s32.totalorder %s35, 0
    %p83 = por %p81, %p82
    %s85 = sadd.s32 %s84, 1
    %p88 = scmp.eq.s32.totalorder %s29, 1
    %p89 = scmp.ne.s32.totalorder %s84, %s86
    %p90 = scmp.eq.s32.totalorder %s29, 0
    %p91 = por %p89, %p90
    %p92 = scmp.ne.s32.totalorder %s84, %s86
    %p93 = scmp.eq.s32.totalorder %s34, 1
    %p94 = por %p92, %p93
    %p95 = scmp.ne.s32.totalorder %s86, %s87
    %p96 = scmp.eq.s32.totalorder %s34, 0
    %p97 = por %p95, %p96
    %p98 = scmp.ne.s32.totalorder %s86, %s87
    %p99 = scmp.eq.s32.totalorder %s35, 1
    %p100 = por %p98, %p99
    %p102 = scmp.ne.s32.totalorder %s87, %s101
    %p103 = scmp.eq.s32.totalorder %s35, 0
    %p104 = por %p102, %p103
    %s106 = sadd.s32 %s105, 1
    %p109 = scmp.eq.s32.totalorder %s29, 1
    %p110 = scmp.ne.s32.totalorder %s105, %s107
    %p111 = scmp.eq.s32.totalorder %s29, 0
    %p112 = por %p110, %p111
    %p113 = scmp.ne.s32.totalorder %s105, %s107
    %p114 = scmp.eq.s32.totalorder %s34, 1
    %p115 = por %p113, %p114
    %p116 = scmp.ne.s32.totalorder %s107, %s108
    %p117 = scmp.eq.s32.totalorder %s34, 0
    %p118 = por %p116, %p117
    %p119 = scmp.ne.s32.totalorder %s107, %s108
    %p120 = scmp.eq.s32.totalorder %s35, 1
    %p121 = por %p119, %p120
    %p123 = scmp.ne.s32.totalorder %s108, %s122
    %p124 = scmp.eq.s32.totalorder %s35, 0
    %p125 = por %p123, %p124
    %s127 = sadd.s32 %s126, 1
    %p130 = scmp.eq.s32.totalorder %s29, 1
    %p131 = scmp.ne.s32.totalorder %s126, %s128
    %p132 = scmp.eq.s32.totalorder %s29, 0
    %p133 = por %p131, %p132
    %p134 = scmp.ne.s32.totalorder %s126, %s128
    %p135 = scmp.eq.s32.totalorder %s34, 1
    %p136 = por %p134, %p135
    %p137 = scmp.ne.s32.totalorder %s128, %s129
    %p138 = scmp.eq.s32.totalorder %s34, 0
    %p139 = por %p137, %p138
    %p140 = scmp.ne.s32.totalorder %s128, %s129
    %p141 = scmp.eq.s32.totalorder %s35, 1
    %p142 = por %p140, %p141
    %p144 = scmp.ne.s32.totalorder %s129, %s143
    %p145 = scmp.eq.s32.totalorder %s35, 0
    %p146 = por %p144, %p145
    %s148 = sadd.s32 %s147, 1
    %p151 = scmp.eq.s32.totalorder %s29, 1
    %p152 = scmp.ne.s32.totalorder %s147, %s149
    %p153 = scmp.eq.s32.totalorder %s29, 0
    %p154 = por %p152, %p153
    %p155 = scmp.ne.s32.totalorder %s147, %s149
    %p156 = scmp.eq.s32.totalorder %s34, 1
    %p157 = por %p155, %p156
    %p158 = scmp.ne.s32.totalorder %s149, %s150
    %p159 = scmp.eq.s32.totalorder %s34, 0
    %p160 = por %p158, %p159
    %p161 = scmp.ne.s32.totalorder %s149, %s150
    %p162 = scmp.eq.s32.totalorder %s35, 1
    %p163 = por %p161, %p162
    %p165 = scmp.ne.s32.totalorder %s150, %s164
    %p166 = scmp.eq.s32.totalorder %s35, 0
    %p167 = por %p165, %p166
    %s169 = sadd.s32 %s168, 1
    %p172 = scmp.eq.s32.totalorder %s29, 1
    %p173 = scmp.ne.s32.totalorder %s168, %s170
    %p174 = scmp.eq.s32.totalorder %s29, 0
    %p175 = por %p173, %p174
    %p176 = scmp.ne.s32.totalorder %s168, %s170
    %p177 = scmp.eq.s32.totalorder %s34, 1
    %p178 = por %p176, %p177
    %p179 = scmp.ne.s32.totalorder %s170, %s171
    %p180 = scmp.eq.s32.totalorder %s34, 0
    %p181 = por %p179, %p180
    %p182 = scmp.ne.s32.totalorder %s170, %s171
    %p183 = scmp.eq.s32.totalorder %s35, 1
    %p184 = por %p182, %p183
    %p186 = scmp.ne.s32.totalorder %s171, %s185
    %p187 = scmp.eq.s32.totalorder %s35, 0
    %p188 = por %p186, %p187
    %s190 = sadd.s32 %s189, 1
    %p193 = scmp.eq.s32.totalorder %s29, 1
    %p194 = scmp.ne.s32.totalorder %s189, %s191
    %p195 = scmp.eq.s32.totalorder %s29, 0
    %p196 = por %p194, %p195
    %p197 = scmp.ne.s32.totalorder %s189, %s191
    %p198 = scmp.eq.s32.totalorder %s34, 1
    %p199 = por %p197, %p198
    %p200 = scmp.ne.s32.totalorder %s191, %s192
    %p201 = scmp.eq.s32.totalorder %s34, 0
    %p202 = por %p200, %p201
    %p203 = scmp.ne.s32.totalorder %s191, %s192
    %p204 = scmp.eq.s32.totalorder %s35, 1
    %p205 = por %p203, %p204
    %p207 = scmp.ne.s32.totalorder %s192, %s206
    %p208 = scmp.eq.s32.totalorder %s35, 0
    %p209 = por %p207, %p208
    %s211 = sadd.s32 %s210, 1
    %p214 = scmp.eq.s32.totalorder %s29, 1
    %p215 = scmp.ne.s32.totalorder %s210, %s212
    %p216 = scmp.eq.s32.totalorder %s29, 0
    %p217 = por %p215, %p216
    %p218 = scmp.ne.s32.totalorder %s210, %s212
    %p219 = scmp.eq.s32.totalorder %s34, 1
    %p220 = por %p218, %p219
    %p221 = scmp.ne.s32.totalorder %s212, %s213
    %p222 = scmp.eq.s32.totalorder %s34, 0
    %p223 = por %p221, %p222
    %p224 = scmp.ne.s32.totalorder %s212, %s213
    %p225 = scmp.eq.s32.totalorder %s35, 1
    %p226 = por %p224, %p225
    %p228 = scmp.ne.s32.totalorder %s213, %s227
    %p229 = scmp.eq.s32.totalorder %s35, 0
    %p230 = por %p228, %p229
    %s232 = sadd.s32 %s231, 1
    %p235 = scmp.eq.s32.totalorder %s29, 1
    %p236 = scmp.ne.s32.totalorder %s231, %s233
    %p237 = scmp.eq.s32.totalorder %s29, 0
    %p238 = por %p236, %p237
    %p239 = scmp.ne.s32.totalorder %s231, %s233
    %p240 = scmp.eq.s32.totalorder %s34, 1
    %p241 = por %p239, %p240
    %p242 = scmp.ne.s32.totalorder %s233, %s234
    %p243 = scmp.eq.s32.totalorder %s34, 0
    %p244 = por %p242, %p243
    %p245 = scmp.ne.s32.totalorder %s233, %s234
    %p246 = scmp.eq.s32.totalorder %s35, 1
    %p247 = por %p245, %p246
    %p249 = scmp.ne.s32.totalorder %s234, %s248
    %p250 = scmp.eq.s32.totalorder %s35, 0
    %p251 = por %p249, %p250
    %s253 = sadd.s32 %s252, 1
    %p256 = scmp.eq.s32.totalorder %s29, 1
    %p257 = scmp.ne.s32.totalorder %s252, %s254
    %p258 = scmp.eq.s32.totalorder %s29, 0
    %p259 = por %p257, %p258
    %p260 = scmp.ne.s32.totalorder %s252, %s254
    %p261 = scmp.eq.s32.totalorder %s34, 1
    %p262 = por %p260, %p261
    %p263 = scmp.ne.s32.totalorder %s254, %s255
    %p264 = scmp.eq.s32.totalorder %s34, 0
    %p265 = por %p263, %p264
    %p266 = scmp.ne.s32.totalorder %s254, %s255
    %p267 = scmp.eq.s32.totalorder %s35, 1
    %p268 = por %p266, %p267
    %p270 = scmp.ne.s32.totalorder %s255, %s269
    %p271 = scmp.eq.s32.totalorder %s35, 0
    %p272 = por %p270, %p271
    %s274 = sadd.s32 %s273, 1
    %p277 = scmp.eq.s32.totalorder %s29, 1
    %p278 = scmp.ne.s32.totalorder %s273, %s275
    %p279 = scmp.eq.s32.totalorder %s29, 0
    %p280 = por %p278, %p279
    %p281 = scmp.ne.s32.totalorder %s273, %s275
    %p282 = scmp.eq.s32.totalorder %s34, 1
    %p283 = por %p281, %p282
    %p284 = scmp.ne.s32.totalorder %s275, %s276
    %p285 = scmp.eq.s32.totalorder %s34, 0
    %p286 = por %p284, %p285
    %p287 = scmp.ne.s32.totalorder %s275, %s276
    %p288 = scmp.eq.s32.totalorder %s35, 1
    %p289 = por %p287, %p288
    %p291 = scmp.ne.s32.totalorder %s276, %s290
    %p292 = scmp.eq.s32.totalorder %s35, 0
    %p293 = por %p291, %p292
    %s295 = sadd.s32 %s294, 1
    %p298 = scmp.eq.s32.totalorder %s29, 1
    %p299 = scmp.ne.s32.totalorder %s294, %s296
    %p300 = scmp.eq.s32.totalorder %s29, 0
    %p301 = por %p299, %p300
    %p302 = scmp.ne.s32.totalorder %s294, %s296
    %p303 = scmp.eq.s32.totalorder %s34, 1
    %p304 = por %p302, %p303
    %p305 = scmp.ne.s32.totalorder %s296, %s297
    %p306 = scmp.eq.s32.totalorder %s34, 0
    %p307 = por %p305, %p306
    %p308 = scmp.ne.s32.totalorder %s296, %s297
    %p309 = scmp.eq.s32.totalorder %s35, 1
    %p310 = por %p308, %p309
    %p312 = scmp.ne.s32.totalorder %s297, %s311
    %p313 = scmp.eq.s32.totalorder %s35, 0
    %p314 = por %p312, %p313
    %s316 = sadd.s32 %s315, 1
    %p319 = scmp.eq.s32.totalorder %s29, 1
    %p320 = scmp.ne.s32.totalorder %s315, %s317
    %p321 = scmp.eq.s32.totalorder %s29, 0
    %p322 = por %p320, %p321
    %p323 = scmp.ne.s32.totalorder %s315, %s317
    %p324 = scmp.eq.s32.totalorder %s34, 1
    %p325 = por %p323, %p324
    %p326 = scmp.ne.s32.totalorder %s317, %s318
    %p327 = scmp.eq.s32.totalorder %s34, 0
    %p328 = por %p326, %p327
    %p329 = scmp.ne.s32.totalorder %s317, %s318
    %p330 = scmp.eq.s32.totalorder %s35, 1
    %p331 = por %p329, %p330
    %p333 = scmp.ne.s32.totalorder %s318, %s332
    %p334 = scmp.eq.s32.totalorder %s35, 0
    %p335 = por %p333, %p334
    %s337 = sadd.s32 %s336, 1
    %p340 = scmp.eq.s32.totalorder %s29, 1
    %p341 = scmp.ne.s32.totalorder %s336, %s338
    %p342 = scmp.eq.s32.totalorder %s29, 0
    %p343 = por %p341, %p342
    %p344 = scmp.ne.s32.totalorder %s336, %s338
    %p345 = scmp.eq.s32.totalorder %s34, 1
    %p346 = por %p344, %p345
    %p347 = scmp.ne.s32.totalorder %s338, %s339
    %p348 = scmp.eq.s32.totalorder %s34, 0
    %p349 = por %p347, %p348
    %p350 = scmp.ne.s32.totalorder %s338, %s339
    %p351 = scmp.eq.s32.totalorder %s35, 1
    %p352 = por %p350, %p351
    %p354 = scmp.ne.s32.totalorder %s339, %s353
    %p355 = scmp.eq.s32.totalorder %s35, 0
    %p356 = por %p354, %p355
    %s358 = sadd.s32 %s357, 1
    %p361 = scmp.eq.s32.totalorder %s29, 1
    %p362 = scmp.ne.s32.totalorder %s357, %s359
    %p363 = scmp.eq.s32.totalorder %s29, 0
    %p364 = por %p362, %p363
    %p365 = scmp.ne.s32.totalorder %s357, %s359
    %p366 = scmp.eq.s32.totalorder %s34, 1
    %p367 = por %p365, %p366
    %p368 = scmp.ne.s32.totalorder %s359, %s360
    %p369 = scmp.eq.s32.totalorder %s34, 0
    %p370 = por %p368, %p369
    %p371 = scmp.ne.s32.totalorder %s359, %s360
    %p372 = scmp.eq.s32.totalorder %s35, 1
    %p373 = por %p371, %p372
    %p375 = scmp.ne.s32.totalorder %s360, %s374
    %p376 = scmp.eq.s32.totalorder %s35, 0
    %p377 = por %p375, %p376
    %s379 = sadd.s32 %s378, 1
    %p382 = scmp.eq.s32.totalorder %s29, 1
    %p383 = scmp.ne.s32.totalorder %s378, %s380
    %p384 = scmp.eq.s32.totalorder %s29, 0
    %p385 = por %p383, %p384
    %p386 = scmp.ne.s32.totalorder %s378, %s380
    %p387 = scmp.eq.s32.totalorder %s34, 1
    %p388 = por %p386, %p387
    %p389 = scmp.ne.s32.totalorder %s380, %s381
    %p390 = scmp.eq.s32.totalorder %s34, 0
    %p391 = por %p389, %p390
    %p392 = scmp.ne.s32.totalorder %s380, %s381
    %p393 = scmp.eq.s32.totalorder %s35, 1
    %p394 = por %p392, %p393
    %p396 = scmp.ne.s32.totalorder %s381, %s395
    %p397 = scmp.eq.s32.totalorder %s35, 0
    %p398 = por %p396, %p397
    %s400 = sadd.s32 %s399, 1
    %p403 = scmp.eq.s32.totalorder %s29, 1
    %p404 = scmp.ne.s32.totalorder %s399, %s401
    %p405 = scmp.eq.s32.totalorder %s29, 0
    %p406 = por %p404, %p405
    %p407 = scmp.ne.s32.totalorder %s399, %s401
    %p408 = scmp.eq.s32.totalorder %s34, 1
    %p409 = por %p407, %p408
    %p410 = scmp.ne.s32.totalorder %s401, %s402
    %p411 = scmp.eq.s32.totalorder %s34, 0
    %p412 = por %p410, %p411
    %p413 = scmp.ne.s32.totalorder %s401, %s402
    %p414 = scmp.eq.s32.totalorder %s35, 1
    %p415 = por %p413, %p414
    %p417 = scmp.ne.s32.totalorder %s402, %s416
    %p418 = scmp.eq.s32.totalorder %s35, 0
    %p419 = por %p417, %p418
    %s421 = sadd.s32 %s420, 1
    %p424 = scmp.eq.s32.totalorder %s29, 1
    %p425 = scmp.ne.s32.totalorder %s420, %s422
    %p426 = scmp.eq.s32.totalorder %s29, 0
    %p427 = por %p425, %p426
    %p428 = scmp.ne.s32.totalorder %s420, %s422
    %p429 = scmp.eq.s32.totalorder %s34, 1
    %p430 = por %p428, %p429
    %p431 = scmp.ne.s32.totalorder %s422, %s423
    %p432 = scmp.eq.s32.totalorder %s34, 0
    %p433 = por %p431, %p432
    %p434 = scmp.ne.s32.totalorder %s422, %s423
    %p435 = scmp.eq.s32.totalorder %s35, 1
    %p436 = por %p434, %p435
    %p438 = scmp.ne.s32.totalorder %s423, %s437
    %p439 = scmp.eq.s32.totalorder %s35, 0
    %p440 = por %p438, %p439
    %s442 = sadd.s32 %s441, 1
    %p445 = scmp.eq.s32.totalorder %s29, 1
    %p446 = scmp.ne.s32.totalorder %s441, %s443
    %p447 = scmp.eq.s32.totalorder %s29, 0
    %p448 = por %p446, %p447
    %p449 = scmp.ne.s32.totalorder %s441, %s443
    %p450 = scmp.eq.s32.totalorder %s34, 1
    %p451 = por %p449, %p450
    %p452 = scmp.ne.s32.totalorder %s443, %s444
    %p453 = scmp.eq.s32.totalorder %s34, 0
    %p454 = por %p452, %p453
    %p455 = scmp.ne.s32.totalorder %s443, %s444
    %p456 = scmp.eq.s32.totalorder %s35, 1
    %p457 = por %p455, %p456
    %p459 = scmp.ne.s32.totalorder %s444, %s458
    %p460 = scmp.eq.s32.totalorder %s35, 0
    %p461 = por %p459, %p460
    %s463 = sadd.s32 %s462, 1
    %p466 = scmp.eq.s32.totalorder %s29, 1
    %p467 = scmp.ne.s32.totalorder %s462, %s464
    %p468 = scmp.eq.s32.totalorder %s29, 0
    %p469 = por %p467, %p468
    %p470 = scmp.ne.s32.totalorder %s462, %s464
    %p471 = scmp.eq.s32.totalorder %s34, 1
    %p472 = por %p470, %p471
    %p473 = scmp.ne.s32.totalorder %s464, %s465
    %p474 = scmp.eq.s32.totalorder %s34, 0
    %p475 = por %p473, %p474
    %p476 = scmp.ne.s32.totalorder %s464, %s465
    %p477 = scmp.eq.s32.totalorder %s35, 1
    %p478 = por %p476, %p477
    %p480 = scmp.ne.s32.totalorder %s465, %s479
    %p481 = scmp.eq.s32.totalorder %s35, 0
    %p482 = por %p480, %p481
    %s484 = sadd.s32 %s483, 1
    %p487 = scmp.eq.s32.totalorder %s29, 1
    %p488 = scmp.ne.s32.totalorder %s483, %s485
    %p489 = scmp.eq.s32.totalorder %s29, 0
    %p490 = por %p488, %p489
    %p491 = scmp.ne.s32.totalorder %s483, %s485
    %p492 = scmp.eq.s32.totalorder %s34, 1
    %p493 = por %p491, %p492
    %p494 = scmp.ne.s32.totalorder %s485, %s486
    %p495 = scmp.eq.s32.totalorder %s34, 0
    %p496 = por %p494, %p495
    %p497 = scmp.ne.s32.totalorder %s485, %s486
    %p498 = scmp.eq.s32.totalorder %s35, 1
    %p499 = por %p497, %p498
    %p501 = scmp.ne.s32.totalorder %s486, %s500
    %p502 = scmp.eq.s32.totalorder %s35, 0
    %p503 = por %p501, %p502
    %s505 = sadd.s32 %s504, 1
    %p508 = scmp.eq.s32.totalorder %s29, 1
    %p509 = scmp.ne.s32.totalorder %s504, %s506
    %p510 = scmp.eq.s32.totalorder %s29, 0
    %p511 = por %p509, %p510
    %p512 = scmp.ne.s32.totalorder %s504, %s506
    %p513 = scmp.eq.s32.totalorder %s34, 1
    %p514 = por %p512, %p513
    %p515 = scmp.ne.s32.totalorder %s506, %s507
    %p516 = scmp.eq.s32.totalorder %s34, 0
    %p517 = por %p515, %p516
    %p518 = scmp.ne.s32.totalorder %s506, %s507
    %p519 = scmp.eq.s32.totalorder %s35, 1
    %p520 = por %p518, %p519
    %p522 = scmp.ne.s32.totalorder %s507, %s521
    %p523 = scmp.eq.s32.totalorder %s35, 0
    %p524 = por %p522, %p523
    %s525 = ssub.s32 %s29, %s36
    %p526 = scmp.eq.s32.totalorder %s525, 0
    %s528 = sadd.s32 %s527, 1
    %s529 = scalar_select %p526, %s527, %s528
    %p532 = pneg %p526
    %p533 = scmp.eq.s32.totalorder %s29, 1
    %p534 = por %p532, %p533
    %p535 = scmp.ne.s32.totalorder %s527, %s530
    %p536 = scmp.eq.s32.totalorder %s29, 0
    %p537 = por %p535, %p536
    %p538 = scmp.ne.s32.totalorder %s527, %s530
    %p539 = scmp.eq.s32.totalorder %s34, 1
    %p540 = por %p538, %p539
    %p541 = scmp.ne.s32.totalorder %s530, %s531
    %p542 = scmp.eq.s32.totalorder %s34, 0
    %p543 = por %p541, %p542
    %p544 = scmp.ne.s32.totalorder %s530, %s531
    %p545 = scmp.eq.s32.totalorder %s35, 1
    %p546 = por %p544, %p545
    %p548 = scmp.ne.s32.totalorder %s531, %s547
    %p549 = scmp.eq.s32.totalorder %s35, 0
    %p550 = por %p548, %p549
    %p551 = scmp.le.s32.totalorder 1, %s29
    %p552 = scmp.lt.s32.totalorder %s29, 3
    %p553 = pnand %p551, %p552
    %p554 = pneg %p553
    // Predicated region
    $region9: #{whisper_forward.2} parent=5 // pred_check
      _
    $region10: #{whisper_forward.2} parent=5 // pred_check_branch
      %556 = sbr.rel (%p553) target = $region12
    $region11: #{whisper_forward.2} parent=5 // pred_region
      %s557 = ssub.s32 %s29, 1
      // Predicated region
      $region13: #{whisper_forward.2} parent=11 // pred_check
        %p558 = pneg %p76
      $region14: #{whisper_forward.2} parent=11 // pred_check_branch
        %560 = sbr.rel (%p558) target = $region16
      $region15: #{whisper_forward.2} parent=11 // pred_region
        _
      $region16: #{whisper_forward.2} parent=11 // pred_fallthru
        _
      // Predicated region
      $region17: #{whisper_forward.2} parent=11 // pred_check
        %p561 = pneg %p97
      $region18: #{whisper_forward.2} parent=11 // pred_check_branch
        %563 = sbr.rel (%p561) target = $region20
      $region19: #{whisper_forward.2} parent=11 // pred_region
        _
      $region20: #{whisper_forward.2} parent=11 // pred_fallthru
        _
      // Predicated region
      $region21: #{whisper_forward.2} parent=11 // pred_check
        %p564 = pneg %p118
      $region22: #{whisper_forward.2} parent=11 // pred_check_branch
        %566 = sbr.rel (%p564) target = $region24
      $region23: #{whisper_forward.2} parent=11 // pred_region
        _
      $region24: #{whisper_forward.2} parent=11 // pred_fallthru
        _
      // Predicated region
      $region25: #{whisper_forward.2} parent=11 // pred_check
        %p567 = pneg %p139
      $region26: #{whisper_forward.2} parent=11 // pred_check_branch
        %569 = sbr.rel (%p567) target = $region28
      $region27: #{whisper_forward.2} parent=11 // pred_region
        _
      $region28: #{whisper_forward.2} parent=11 // pred_fallthru
        _
      // Predicated region
      $region29: #{whisper_forward.2} parent=11 // pred_check
        %p570 = pneg %p160
      $region30: #{whisper_forward.2} parent=11 // pred_check_branch
        %572 = sbr.rel (%p570) target = $region32
      $region31: #{whisper_forward.2} parent=11 // pred_region
        _
      $region32: #{whisper_forward.2} parent=11 // pred_fallthru
        _
      // Predicated region
      $region33: #{whisper_forward.2} parent=11 // pred_check
        %p573 = pneg %p181
      $region34: #{whisper_forward.2} parent=11 // pred_check_branch
        %575 = sbr.rel (%p573) target = $region36
      $region35: #{whisper_forward.2} parent=11 // pred_region
        _
      $region36: #{whisper_forward.2} parent=11 // pred_fallthru
        _
      // Predicated region
      $region37: #{whisper_forward.2} parent=11 // pred_check
        %p576 = pneg %p202
      $region38: #{whisper_forward.2} parent=11 // pred_check_branch
        %578 = sbr.rel (%p576) target = $region40
      $region39: #{whisper_forward.2} parent=11 // pred_region
        _
      $region40: #{whisper_forward.2} parent=11 // pred_fallthru
        _
      // Predicated region
      $region41: #{whisper_forward.2} parent=11 // pred_check
        %p579 = pneg %p223
      $region42: #{whisper_forward.2} parent=11 // pred_check_branch
        %581 = sbr.rel (%p579) target = $region44
      $region43: #{whisper_forward.2} parent=11 // pred_region
        _
      $region44: #{whisper_forward.2} parent=11 // pred_fallthru
        _
      // Predicated region
      $region45: #{whisper_forward.2} parent=11 // pred_check
        %p582 = pneg %p244
      $region46: #{whisper_forward.2} parent=11 // pred_check_branch
        %584 = sbr.rel (%p582) target = $region48
      $region47: #{whisper_forward.2} parent=11 // pred_region
        _
      $region48: #{whisper_forward.2} parent=11 // pred_fallthru
        _
      // Predicated region
      $region49: #{whisper_forward.2} parent=11 // pred_check
        %p585 = pneg %p265
      $region50: #{whisper_forward.2} parent=11 // pred_check_branch
        %587 = sbr.rel (%p585) target = $region52
      $region51: #{whisper_forward.2} parent=11 // pred_region
        _
      $region52: #{whisper_forward.2} parent=11 // pred_fallthru
        _
      // Predicated region
      $region53: #{whisper_forward.2} parent=11 // pred_check
        %p588 = pneg %p286
      $region54: #{whisper_forward.2} parent=11 // pred_check_branch
        %590 = sbr.rel (%p588) target = $region56
      $region55: #{whisper_forward.2} parent=11 // pred_region
        _
      $region56: #{whisper_forward.2} parent=11 // pred_fallthru
        _
      // Predicated region
      $region57: #{whisper_forward.2} parent=11 // pred_check
        %p591 = pneg %p307
      $region58: #{whisper_forward.2} parent=11 // pred_check_branch
        %593 = sbr.rel (%p591) target = $region60
      $region59: #{whisper_forward.2} parent=11 // pred_region
        _
      $region60: #{whisper_forward.2} parent=11 // pred_fallthru
        _
      // Predicated region
      $region61: #{whisper_forward.2} parent=11 // pred_check
        %p594 = pneg %p328
      $region62: #{whisper_forward.2} parent=11 // pred_check_branch
        %596 = sbr.rel (%p594) target = $region64
      $region63: #{whisper_forward.2} parent=11 // pred_region
        _
      $region64: #{whisper_forward.2} parent=11 // pred_fallthru
        _
      // Predicated region
      $region65: #{whisper_forward.2} parent=11 // pred_check
        %p597 = pneg %p349
      $region66: #{whisper_forward.2} parent=11 // pred_check_branch
        %599 = sbr.rel (%p597) target = $region68
      $region67: #{whisper_forward.2} parent=11 // pred_region
        _
      $region68: #{whisper_forward.2} parent=11 // pred_fallthru
        _
      // Predicated region
      $region69: #{whisper_forward.2} parent=11 // pred_check
        %p600 = pneg %p370
      $region70: #{whisper_forward.2} parent=11 // pred_check_branch
        %602 = sbr.rel (%p600) target = $region72
      $region71: #{whisper_forward.2} parent=11 // pred_region
        _
      $region72: #{whisper_forward.2} parent=11 // pred_fallthru
        _
      // Predicated region
      $region73: #{whisper_forward.2} parent=11 // pred_check
        %p603 = pneg %p391
      $region74: #{whisper_forward.2} parent=11 // pred_check_branch
        %605 = sbr.rel (%p603) target = $region76
      $region75: #{whisper_forward.2} parent=11 // pred_region
        _
      $region76: #{whisper_forward.2} parent=11 // pred_fallthru
        _
      // Predicated region
      $region77: #{whisper_forward.2} parent=11 // pred_check
        %p606 = pneg %p412
      $region78: #{whisper_forward.2} parent=11 // pred_check_branch
        %608 = sbr.rel (%p606) target = $region80
      $region79: #{whisper_forward.2} parent=11 // pred_region
        _
      $region80: #{whisper_forward.2} parent=11 // pred_fallthru
        _
      // Predicated region
      $region81: #{whisper_forward.2} parent=11 // pred_check
        %p609 = pneg %p433
      $region82: #{whisper_forward.2} parent=11 // pred_check_branch
        %611 = sbr.rel (%p609) target = $region84
      $region83: #{whisper_forward.2} parent=11 // pred_region
        _
      $region84: #{whisper_forward.2} parent=11 // pred_fallthru
        _
      // Predicated region
      $region85: #{whisper_forward.2} parent=11 // pred_check
        %p612 = pneg %p454
      $region86: #{whisper_forward.2} parent=11 // pred_check_branch
        %614 = sbr.rel (%p612) target = $region88
      $region87: #{whisper_forward.2} parent=11 // pred_region
        _
      $region88: #{whisper_forward.2} parent=11 // pred_fallthru
        _
      // Predicated region
      $region89: #{whisper_forward.2} parent=11 // pred_check
        %p615 = pneg %p475
      $region90: #{whisper_forward.2} parent=11 // pred_check_branch
        %617 = sbr.rel (%p615) target = $region92
      $region91: #{whisper_forward.2} parent=11 // pred_region
        _
      $region92: #{whisper_forward.2} parent=11 // pred_fallthru
        _
      // Predicated region
      $region93: #{whisper_forward.2} parent=11 // pred_check
        %p618 = pneg %p496
      $region94: #{whisper_forward.2} parent=11 // pred_check_branch
        %620 = sbr.rel (%p618) target = $region96
      $region95: #{whisper_forward.2} parent=11 // pred_region
        _
      $region96: #{whisper_forward.2} parent=11 // pred_fallthru
        _
      // Predicated region
      $region97: #{whisper_forward.2} parent=11 // pred_check
        %p621 = pneg %p517
      $region98: #{whisper_forward.2} parent=11 // pred_check_branch
        %623 = sbr.rel (%p621) target = $region100
      $region99: #{whisper_forward.2} parent=11 // pred_region
        _
      $region100: #{whisper_forward.2} parent=11 // pred_fallthru
        _
    $region12: #{whisper_forward.2} parent=5 // pred_fallthru
      _
    %p624 = scmp.lt.s32.totalorder %s29, 2
    // Predicated region
    $region101: #{whisper_forward.2} parent=5 // pred_check
      %p625 = pneg %p624
    $region102: #{whisper_forward.2} parent=5 // pred_check_branch
      %627 = sbr.rel (%p625) target = $region104
    $region103: #{whisper_forward.2} parent=5 // pred_region
      // Predicated region
      $region105: #{whisper_forward.2} parent=103 // pred_check
        %p628 = pneg %p49
      $region106: #{whisper_forward.2} parent=103 // pred_check_branch
        %630 = sbr.rel (%p628) target = $region108
      $region107: #{whisper_forward.2} parent=103 // pred_region
        %p631 = scmp.lt.s32.totalorder %s29, 1
        %s632 = scalar_select %p631, %s29, 1
        %s633 = smul.addr %s632, 8
        %s634 = smul.addr %s633, 8
        %s635 = scalar_lea.vmem %s0, %s634
      $region108: #{whisper_forward.2} parent=103 // pred_fallthru
        _
    $region104: #{whisper_forward.2} parent=5 // pred_fallthru
      _
    %p636 = scmp.le.s32.totalorder 1, %s29
    %p637 = scmp.lt.s32.totalorder %s29, 3
    %p638 = pnand %p636, %p637
    %p639 = pneg %p638
    // Predicated region
    $region109: #{whisper_forward.2} parent=5 // pred_check
      _
    $region110: #{whisper_forward.2} parent=5 // pred_check_branch
      %641 = sbr.rel (%p638) target = $region112
    $region111: #{whisper_forward.2} parent=5 // pred_region
      %s642 = ssub.s32 %s29, 1
      %p643 = scmp.lt.s32.totalorder %s34, 1
      %s644 = scalar_select %p643, %s34, 1
      %s645 = smul.addr %s644, 8
      %s646 = smul.addr %s645, 8
      %s647 = scalar_lea.vmem %s0, %s646
      %p648 = pneg %p55
      %p649 = pneg %p52
      %p650 = pneg %p76
      %p651 = pneg %p73
      %p652 = pneg %p97
      %p653 = pneg %p94
      %p654 = pneg %p118
      %p655 = pneg %p115
      %p656 = pneg %p139
      %p657 = pneg %p136
      %p658 = pneg %p160
      %p659 = pneg %p157
      %p660 = pneg %p181
      %p661 = pneg %p178
      %p662 = pneg %p202
      %p663 = pneg %p199
      %p664 = pneg %p223
      %p665 = pneg %p220
      %p666 = pneg %p244
      %p667 = pneg %p241
      %p668 = pneg %p265
      %p669 = pneg %p262
      %p670 = pneg %p286
      %p671 = pneg %p283
      %p672 = pneg %p307
      %p673 = pneg %p304
      %p674 = pneg %p328
      %p675 = pneg %p325
      %p676 = pneg %p349
      %p677 = pneg %p346
      %p678 = pneg %p370
      %p679 = pneg %p367
      %p680 = pneg %p391
      %p681 = pneg %p388
      %p682 = pneg %p412
      %p683 = pneg %p409
      %p684 = pneg %p433
      %p685 = pneg %p430
      %p686 = pneg %p454
      %p687 = pneg %p451
      %p688 = pneg %p475
      %p689 = pneg %p472
      %p690 = pneg %p496
      %p691 = pneg %p493
      %p692 = pneg %p517
      %p693 = pneg %p514
      %p694 = pneg %p543
      %p695 = pneg %p540
      %p696 = scmp.lt.s32.totalorder %s34, 1
      %s697 = scalar_select %p696, %s34, 1
      %s698 = smul.addr %s697, 4
      %s699 = smul.addr %s698, 4
      %s700 = scalar_lea.vmem %s23, %s699
      %p701 = scmp.lt.s32.totalorder %s34, 1
      %s702 = scalar_select %p701, %s34, 1
      %s703 = smul.addr %s702, 8
      %s704 = smul.addr %s703, 8
      %s705 = scalar_lea.vmem %s0, %s704
      %p706 = scmp.lt.s32.totalorder %s34, 1
      %s707 = scalar_select %p706, %s34, 1
      %s708 = smul.addr %s707, 4
      %s709 = smul.addr %s708, 4
      %s710 = scalar_lea.vmem %s23, %s709
      %v712 = vld [vmem:[%s705] sm:$0xff]
      %v713 = vld [vmem:[%s705 + $0x8] sm:$0xff]
      %v714 = vld [vmem:[%s705 + $0x10] sm:$0xff]
      %v715 = vld [vmem:[%s705 + $0x18] sm:$0xff]
      %v716 = vld [vmem:[%s705 + $0x20] sm:$0xff]
      %v717 = vld [vmem:[%s705 + $0x28] sm:$0xff]
      %v718 = vld [vmem:[%s705 + $0x30] sm:$0xff]
      %v719 = vld [vmem:[%s705 + $0x38] sm:$0xff]
      %v720 = vld [vmem:[%s2] sm:$0x1]
      %v721 = vlaneseq
      %v722 = vshrl.u32 %v721, 7
      %v723 = vadd.s32 %v722, 8
      %v724 = vadd.s32 %v722, 16
      %v725 = vadd.s32 %v722, 24
      %v726 = vadd.s32 %v722, 32
      %v727 = vadd.s32 %v722, 40
      %v728 = vadd.s32 %v722, 48
      %v729 = vadd.s32 %v722, 56
      %v730 = vlaneseq
      %v731 = vand.u32 %v730, 127
      %v732 = vpack.c.bf16 %v713, %v712
      %v733 = vpack.c.bf16 %v715, %v714
      %v734 = vpack.c.bf16 %v717, %v716
      %v735 = vpack.c.bf16 %v719, %v718
      %v736 = vadd.s32 %v722, 4294967295
      %v737 = vadd.s32 %v723, 4294967295
      %v738 = vadd.s32 %v724, 4294967295
      %v739 = vadd.s32 %v725, 4294967295
      %v740 = vadd.s32 %v726, 4294967295
      %v741 = vadd.s32 %v727, 4294967295
      %v742 = vadd.s32 %v728, 4294967295
      %v743 = vadd.s32 %v729, 4294967295
      %vm744 = vcmp.eq.s32.totalorder %v731, %v736
      %vm745 = vcmp.eq.s32.totalorder %v731, %v737
      %vm746 = vcmp.eq.s32.totalorder %v731, %v738
      %vm747 = vcmp.eq.s32.totalorder %v731, %v739
      %vm748 = vcmp.eq.s32.totalorder %v731, %v740
      %vm749 = vcmp.eq.s32.totalorder %v731, %v741
      %vm750 = vcmp.eq.s32.totalorder %v731, %v742
      %vm751 = vcmp.eq.s32.totalorder %v731, %v743
      %v752 = vsel %vm744, 1.0, 0.0
      %v753 = vsel %vm745, 1.0, 0.0
      %v754 = vsel %vm746, 1.0, 0.0
      %v755 = vsel %vm747, 1.0, 0.0
      %v756 = vsel %vm748, 1.0, 0.0
      %v757 = vsel %vm749, 1.0, 0.0
      %v758 = vsel %vm750, 1.0, 0.0
      %v759 = vsel %vm751, 1.0, 0.0
      %v760 = vpack.c.bf16 %v753, %v752
      %v761 = vpack.c.bf16 %v755, %v754
      %v762 = vpack.c.bf16 %v757, %v756
      %v763 = vpack.c.bf16 %v759, %v758
      %vm764 = vcmask 523264
      %v766 = vsel %vm764, %v760, 0
      %v769 = vsel %vm764, %v761, 0
      %v772 = vsel %vm764, %v762, 0
      %v775 = vsel %vm764, %v763, 0
      %777 = vmatprep.subr.bf16.mxu0 0
      %778 = vmatpush1.bf16.msra.mxu0 %v732
      %779 = vmatprep.subr.bf16.mxu0 0
      %780 = vmatpush1.bf16.msra.mxu0 %v733
      %781 = vmatprep.subr.bf16.mxu0 0
      %782 = vmatpush1.bf16.msra.mxu0 %v734
      %783 = vmatprep.subr.bf16.mxu0 0
      %784 = vmatpush1.bf16.msra.mxu0 %v735
      %785 = vmatprep.subr.bf16.mxu0 0
      %786 = vmatpush1.bf16.msra.mxu0 0
      %787 = vmatprep.subr.bf16.mxu0 0
      %788 = vmatpush1.bf16.msra.mxu0 0
      %789 = vmatprep.subr.bf16.mxu0 0
      %790 = vmatpush1.bf16.msra.mxu0 0
      %791 = vmatprep.subr.bf16.mxu0 0
      %792 = vmatpush1.bf16.msra.mxu0 0
      %793 = vmatprep.subr.bf16.mxu0 0
      %794 = vmatpush1.bf16.msra.mxu0 0
      %795 = vmatprep.subr.bf16.mxu0 0
      %796 = vmatpush1.bf16.msra.mxu0 0
      %797 = vmatprep.subr.bf16.mxu0 0
      %798 = vmatpush1.bf16.msra.mxu0 0
      %799 = vmatprep.subr.bf16.mxu0 0
      %800 = vmatpush1.bf16.msra.mxu0 0
      %801 = vmatprep.subr.bf16.mxu0 0
      %802 = vmatpush1.bf16.msra.mxu0 0
      %803 = vmatprep.subr.bf16.mxu0 0
      %804 = vmatpush1.bf16.msra.mxu0 0
      %805 = vmatprep.subr.bf16.mxu0 0
      %806 = vmatpush1.bf16.msra.mxu0 0
      %807 = vmatprep.subr.bf16.mxu0 0
      %808 = vmatpush1.bf16.msra.mxu0 0
      %809 = vmatprep.mubr.bf16.mxu0 0
      %810 = vmatmul.mubr.bf16.gmra.mrb[0].mxu0 %v766
      %v811 = vpop.f32.mrb[0].mxu0
      %v812 = vadd.f32 0.0, %v811
      %v813 = vpop.f32.mrb[0].mxu0
      %v814 = vpop.f32.mrb[0].mxu0
      %v815 = vadd.f32 0.0, %v814
      %v816 = vpop.f32.mrb[0].mxu0
      %817 = vmatprep.mubr.bf16.mxu0 0
      %818 = vmatmul.mubr.bf16.gmra.mrb[0].mxu0 %v769
      %v819 = vpop.f32.mrb[0].mxu0
      %v820 = vadd.f32 0.0, %v819
      %v821 = vpop.f32.mrb[0].mxu0
      %v822 = vpop.f32.mrb[0].mxu0
      %v823 = vadd.f32 0.0, %v822
      %v824 = vpop.f32.mrb[0].mxu0
      %825 = vmatprep.mubr.bf16.mxu0 0
      %826 = vmatmul.mubr.bf16.gmra.mrb[0].mxu0 %v772
      %v827 = vpop.f32.mrb[0].mxu0
      %v828 = vadd.f32 0.0, %v827
      %v829 = vpop.f32.mrb[0].mxu0
      %v830 = vpop.f32.mrb[0].mxu0
      %v831 = vadd.f32 0.0, %v830
      %v832 = vpop.f32.mrb[0].mxu0
      %833 = vmatprep.mubr.bf16.mxu0 0
      %834 = vmatmul.mubr.bf16.gmra.mrb[0].mxu0 %v775
      %v835 = vpop.f32.mrb[0].mxu0
      %v836 = vadd.f32 0.0, %v835
      %v837 = vpop.f32.mrb[0].mxu0
      %v838 = vpop.f32.mrb[0].mxu0
      %v839 = vadd.f32 0.0, %v838
      %v840 = vpop.f32.mrb[0].mxu0
      %841 = vdwg.mxu0
      %v842 = vld [vmem:[%s1] sm:$0xf]
      %v843 = vld [vmem:[%s1 + $0x4] sm:$0xf]
      %v844 = vpack.c.bf16 %v815, %v812
      %v845 = vpack.c.bf16 %v823, %v820
      %v846 = vpack.c.bf16 %v831, %v828
      %v847 = vpack.c.bf16 %v839, %v836
      %vm848 = vcmp.eq.s32.totalorder %v731, %v722
      %vm849 = vcmp.eq.s32.totalorder %v731, %v723
      %vm850 = vcmp.eq.s32.totalorder %v731, %v724
      %vm851 = vcmp.eq.s32.totalorder %v731, %v725
      %vm852 = vcmp.eq.s32.totalorder %v731, %v726
      %vm853 = vcmp.eq.s32.totalorder %v731, %v727
      %vm854 = vcmp.eq.s32.totalorder %v731, %v728
      %vm855 = vcmp.eq.s32.totalorder %v731, %v729
      %v856 = vsel %vm848, 1.0, 0.0
      %v857 = vsel %vm849, 1.0, 0.0
      %v858 = vsel %vm850, 1.0, 0.0
      %v859 = vsel %vm851, 1.0, 0.0
      %v860 = vsel %vm852, 1.0, 0.0
      %v861 = vsel %vm853, 1.0, 0.0
      %v862 = vsel %vm854, 1.0, 0.0
      %v863 = vsel %vm855, 1.0, 0.0
      %v864 = vpack.c.bf16 %v857, %v856
      %v865 = vpack.c.bf16 %v859, %v858
      %v866 = vpack.c.bf16 %v861, %v860
      %v867 = vpack.c.bf16 %v863, %v862
      %v869 = vsel %vm764, %v864, 0
      %v872 = vsel %vm764, %v865, 0
      %v875 = vsel %vm764, %v866, 0
      %v878 = vsel %vm764, %v867, 0
      %880 = vmatprep.subr.bf16.mxu0 0
      %881 = vmatpush1.bf16.msra.mxu0 %v732
      %882 = vmatprep.subr.bf16.mxu0 0
      %883 = vmatpush1.bf16.msra.mxu0 %v733
      %884 = vmatprep.subr.bf16.mxu0 0
      %885 = vmatpush1.bf16.msra.mxu0 %v734
      %886 = vmatprep.subr.bf16.mxu0 0
      %887 = vmatpush1.bf16.msra.mxu0 %v735
      %888 = vmatprep.subr.bf16.mxu0 0
      %889 = vmatpush1.bf16.msra.mxu0 0
      %890 = vmatprep.subr.bf16.mxu0 0
      %891 = vmatpush1.bf16.msra.mxu0 0
      %892 = vmatprep.subr.bf16.mxu0 0
      %893 = vmatpush1.bf16.msra.mxu0 0
      %894 = vmatprep.subr.bf16.mxu0 0
      %895 = vmatpush1.bf16.msra.mxu0 0
      %896 = vmatprep.subr.bf16.mxu0 0
      %897 = vmatpush1.bf16.msra.mxu0 0
      %898 = vmatprep.subr.bf16.mxu0 0
      %899 = vmatpush1.bf16.msra.mxu0 0
      %900 = vmatprep.subr.bf16.mxu0 0
      %901 = vmatpush1.bf16.msra.mxu0 0
      %902 = vmatprep.subr.bf16.mxu0 0
      %903 = vmatpush1.bf16.msra.mxu0 0
      %904 = vmatprep.subr.bf16.mxu0 0
      %905 = vmatpush1.bf16.msra.mxu0 0
      %906 = vmatprep.subr.bf16.mxu0 0
      %907 = vmatpush1.bf16.msra.mxu0 0
      %908 = vmatprep.subr.bf16.mxu0 0
      %909 = vmatpush1.bf16.msra.mxu0 0
      %910 = vmatprep.subr.bf16.mxu0 0
      %911 = vmatpush1.bf16.msra.mxu0 0
      %912 = vmatprep.mubr.bf16.mxu0 0
      %913 = vmatmul.mubr.bf16.gmra.mrb[0].mxu0 %v869
      %v914 = vpop.f32.mrb[0].mxu0
      %v915 = vadd.f32 0.0, %v914
      %v916 = vpop.f32.mrb[0].mxu0
      %v917 = vpop.f32.mrb[0].mxu0
      %v918 = vadd.f32 0.0, %v917
      %v919 = vpop.f32.mrb[0].mxu0
      %920 = vmatprep.mubr.bf16.mxu0 0
      %921 = vmatmul.mubr.bf16.gmra.mrb[0].mxu0 %v872
      %v922 = vpop.f32.mrb[0].mxu0
      %v923 = vadd.f32 0.0, %v922
      %v924 = vpop.f32.mrb[0].mxu0
      %v925 = vpop.f32.mrb[0].mxu0
      %v926 = vadd.f32 0.0, %v925
      %v927 = vpop.f32.mrb[0].mxu0
      %928 = vmatprep.mubr.bf16.mxu0 0
      %929 = vmatmul.mubr.bf16.gmra.mrb[0].mxu0 %v875
      %v930 = vpop.f32.mrb[0].mxu0
      %v931 = vadd.f32 0.0, %v930
      %v932 = vpop.f32.mrb[0].mxu0
      %v933 = vpop.f32.mrb[0].mxu0
      %v934 = vadd.f32 0.0, %v933
      %v935 = vpop.f32.mrb[0].mxu0
      %936 = vmatprep.mubr.bf16.mxu0 0
      %937 = vmatmul.mubr.bf16.gmra.mrb[0].mxu0 %v878
      %v938 = vpop.f32.mrb[0].mxu0
      %v939 = vadd.f32 0.0, %v938
      %v940 = vpop.f32.mrb[0].mxu0
      %v941 = vpop.f32.mrb[0].mxu0
      %v942 = vadd.f32 0.0, %v941
      %v943 = vpop.f32.mrb[0].mxu0
      %944 = vdwg.mxu0
      %s945 = scalar_lea.vmem %s1, 8
      %v946 = vld [vmem:[%s945] sm:$0xf]
      %v947 = vld [vmem:[%s945 + $0x4] sm:$0xf]
      %v948 = vpack.c.bf16 %v918, %v915
      %v949 = vpack.c.bf16 %v926, %v923
      %v950 = vpack.c.bf16 %v934, %v931
      %v951 = vpack.c.bf16 %v942, %v939
      %v954 = vunpack.c.l.b16 %v946
      %v955 = vunpack.c.l.b16 %v947
      %v956 = vpack.c.b16 %v955, %v954
      %vm958 = vcmask 130048
      %v960 = vsel %vm958, %v948, 0
      %v963 = vsel %vm958, %v949, 0
      %v966 = vsel %vm958, %v950, 0
      %v969 = vsel %vm958, %v951, 0
      %971 = vmatprep.subr.bf16.mxu0 0
      %972 = vmatpush1.bf16.msra.mxu0 %v956
      %973 = vmatprep.subr.bf16.mxu0 0
      %974 = vmatpush1.bf16.msra.mxu0 0
      %975 = vmatprep.subr.bf16.mxu0 0
      %976 = vmatpush1.bf16.msra.mxu0 0
      %977 = vmatprep.subr.bf16.mxu0 0
      %978 = vmatpush1.bf16.msra.mxu0 0
      %979 = vmatprep.subr.bf16.mxu0 0
      %980 = vmatpush1.bf16.msra.mxu0 0
      %981 = vmatprep.subr.bf16.mxu0 0
      %982 = vmatpush1.bf16.msra.mxu0 0
      %983 = vmatprep.subr.bf16.mxu0 0
      %984 = vmatpush1.bf16.msra.mxu0 0
      %985 = vmatprep.subr.bf16.mxu0 0
      %986 = vmatpush1.bf16.msra.mxu0 0
      %987 = vmatprep.subr.bf16.mxu0 0
      %988 = vmatpush1.bf16.msra.mxu0 0
      %989 = vmatprep.subr.bf16.mxu0 0
      %990 = vmatpush1.bf16.msra.mxu0 0
      %991 = vmatprep.subr.bf16.mxu0 0
      %992 = vmatpush1.bf16.msra.mxu0 0
      %993 = vmatprep.subr.bf16.mxu0 0
      %994 = vmatpush1.bf16.msra.mxu0 0
      %995 = vmatprep.subr.bf16.mxu0 0
      %996 = vmatpush1.bf16.msra.mxu0 0
      %997 = vmatprep.subr.bf16.mxu0 0
      %998 = vmatpush1.bf16.msra.mxu0 0
      %999 = vmatprep.subr.bf16.mxu0 0
      %1000 = vmatpush1.bf16.msra.mxu0 0
      %1001 = vmatprep.subr.bf16.mxu0 0
      %1002 = vmatpush1.bf16.msra.mxu0 0
      %1003 = vmatprep.mubr.bf16.mxu0 0
      %1004 = vmatmul.mubr.bf16.gmra.mrb[0].mxu0 %v960
      %v1005 = vpop.f32.mrb[0].mxu0
      %v1006 = vadd.f32 0.0, %v1005
      %v1007 = vpop.f32.mrb[0].mxu0
      %v1008 = vpop.f32.mrb[0].mxu0
      %v1009 = vadd.f32 0.0, %v1008
      %v1010 = vpop.f32.mrb[0].mxu0
      %1011 = vmatprep.mubr.bf16.mxu0 0
      %1012 = vmatmul.mubr.bf16.gmra.mrb[0].mxu0 %v963
      %v1013 = vpop.f32.mrb[0].mxu0
      %v1014 = vadd.f32 0.0, %v1013
      %v1015 = vpop.f32.mrb[0].mxu0
      %v1016 = vpop.f32.mrb[0].mxu0
      %v1017 = vadd.f32 0.0, %v1016
      %v1018 = vpop.f32.mrb[0].mxu0
      %1019 = vmatprep.mubr.bf16.mxu0 0
      %1020 = vmatmul.mubr.bf16.gmra.mrb[0].mxu0 %v966
      %v1021 = vpop.f32.mrb[0].mxu0
      %v1022 = vadd.f32 0.0, %v1021
      %v1023 = vpop.f32.mrb[0].mxu0
      %v1024 = vpop.f32.mrb[0].mxu0
      %v1025 = vadd.f32 0.0, %v1024
      %v1026 = vpop.f32.mrb[0].mxu0
      %1027 = vmatprep.mubr.bf16.mxu0 0
      %1028 = vmatmul.mubr.bf16.gmra.mrb[0].mxu0 %v969
      %v1029 = vpop.f32.mrb[0].mxu0
      %v1030 = vadd.f32 0.0, %v1029
      %v1031 = vpop.f32.mrb[0].mxu0
      %v1032 = vpop.f32.mrb[0].mxu0
      %v1033 = vadd.f32 0.0, %v1032
      %v1034 = vpop.f32.mrb[0].mxu0
      %1035 = vdwg.mxu0
      %v1038 = vunpack.c.l.b16 %v842
      %v1039 = vunpack.c.l.b16 %v843
      %v1040 = vpack.c.b16 %v1039, %v1038
      %v1043 = vsel %vm958, %v844, 0
      %v1046 = vsel %vm958, %v845, 0
      %v1049 = vsel %vm958, %v846, 0
      %v1052 = vsel %vm958, %v847, 0
      %1054 = vmatprep.subr.bf16.mxu0 0
      %1055 = vmatpush1.bf16.msra.mxu0 %v1040
      %1056 = vmatprep.subr.bf16.mxu0 0
      %1057 = vmatpush1.bf16.msra.mxu0 0
      %1058 = vmatprep.subr.bf16.mxu0 0
      %1059 = vmatpush1.bf16.msra.mxu0 0
      %1060 = vmatprep.subr.bf16.mxu0 0
      %1061 = vmatpush1.bf16.msra.mxu0 0
      %1062 = vmatprep.subr.bf16.mxu0 0
      %1063 = vmatpush1.bf16.msra.mxu0 0
      %1064 = vmatprep.subr.bf16.mxu0 0
      %1065 = vmatpush1.bf16.msra.mxu0 0
      %1066 = vmatprep.subr.bf16.mxu0 0
      %1067 = vmatpush1.bf16.msra.mxu0 0
      %1068 = vmatprep.subr.bf16.mxu0 0
      %1069 = vmatpush1.bf16.msra.mxu0 0
      %1070 = vmatprep.subr.bf16.mxu0 0
      %1071 = vmatpush1.bf16.msra.mxu0 0
      %1072 = vmatprep.subr.bf16.mxu0 0
      %1073 = vmatpush1.bf16.msra.mxu0 0
      %1074 = vmatprep.subr.bf16.mxu0 0
      %1075 = vmatpush1.bf16.msra.mxu0 0
      %1076 = vmatprep.subr.bf16.mxu0 0
      %1077 = vmatpush1.bf16.msra.mxu0 0
      %1078 = vmatprep.subr.bf16.mxu0 0
      %1079 = vmatpush1.bf16.msra.mxu0 0
      %1080 = vmatprep.subr.bf16.mxu0 0
      %1081 = vmatpush1.bf16.msra.mxu0 0
      %1082 = vmatprep.subr.bf16.mxu0 0
      %1083 = vmatpush1.bf16.msra.mxu0 0
      %1084 = vmatprep.subr.bf16.mxu0 0
      %1085 = vmatpush1.bf16.msra.mxu0 0
      %1086 = vmatprep.mubr.bf16.mxu0 0
      %1087 = vmatmul.mubr.bf16.gmra.mrb[0].mxu0 %v1043
      %v1088 = vpop.f32.mrb[0].mxu0
      %v1089 = vadd.f32 %v1006, %v1088
      %v1090 = vpop.f32.mrb[0].mxu0
      %v1091 = vpop.f32.mrb[0].mxu0
      %v1092 = vadd.f32 %v1009, %v1091
      %v1093 = vpop.f32.mrb[0].mxu0
      %1094 = vmatprep.mubr.bf16.mxu0 0
      %1095 = vmatmul.mubr.bf16.gmra.mrb[0].mxu0 %v1046
      %v1096 = vpop.f32.mrb[0].mxu0
      %v1097 = vadd.f32 %v1014, %v1096
      %v1098 = vpop.f32.mrb[0].mxu0
      %v1099 = vpop.f32.mrb[0].mxu0
      %v1100 = vadd.f32 %v1017, %v1099
      %v1101 = vpop.f32.mrb[0].mxu0
      %1102 = vmatprep.mubr.bf16.mxu0 0
      %1103 = vmatmul.mubr.bf16.gmra.mrb[0].mxu0 %v1049
      %v1104 = vpop.f32.mrb[0].mxu0
      %v1105 = vadd.f32 %v1022, %v1104
      %v1106 = vpop.f32.mrb[0].mxu0
      %v1107 = vpop.f32.mrb[0].mxu0
      %v1108 = vadd.f32 %v1025, %v1107
      %v1109 = vpop.f32.mrb[0].mxu0
      %1110 = vmatprep.mubr.bf16.mxu0 0
      %1111 = vmatmul.mubr.bf16.gmra.mrb[0].mxu0 %v1052
      %v1112 = vpop.f32.mrb[0].mxu0
      %v1113 = vadd.f32 %v1030, %v1112
      %v1114 = vpop.f32.mrb[0].mxu0
      %v1115 = vpop.f32.mrb[0].mxu0
      %v1116 = vadd.f32 %v1033, %v1115
      %v1117 = vpop.f32.mrb[0].mxu0
      %1118 = vdwg.mxu0
      %v1119 = vadd.s32 %v722, 1
      %v1120 = vadd.s32 %v723, 1
      %v1121 = vadd.s32 %v724, 1
      %v1122 = vadd.s32 %v725, 1
      %v1123 = vadd.s32 %v726, 1
      %v1124 = vadd.s32 %v727, 1
      %v1125 = vadd.s32 %v728, 1
      %v1126 = vadd.s32 %v729, 1
      %vm1127 = vcmp.eq.s32.totalorder %v731, %v1119
      %vm1128 = vcmp.eq.s32.totalorder %v731, %v1120
      %vm1129 = vcmp.eq.s32.totalorder %v731, %v1121
      %vm1130 = vcmp.eq.s32.totalorder %v731, %v1122
      %vm1131 = vcmp.eq.s32.totalorder %v731, %v1123
      %vm1132 = vcmp.eq.s32.totalorder %v731, %v1124
      %vm1133 = vcmp.eq.s32.totalorder %v731, %v1125
      %vm1134 = vcmp.eq.s32.totalorder %v731, %v1126
      %v1135 = vsel %vm1127, 1.0, 0.0
      %v1136 = vsel %vm1128, 1.0, 0.0
      %v1137 = vsel %vm1129, 1.0, 0.0
      %v1138 = vsel %vm1130, 1.0, 0.0
      %v1139 = vsel %vm1131, 1.0, 0.0
      %v1140 = vsel %vm1132, 1.0, 0.0
      %v1141 = vsel %vm1133, 1.0, 0.0
      %v1142 = vsel %vm1134, 1.0, 0.0
      %v1143 = vpack.c.bf16 %v1136, %v1135
      %v1144 = vpack.c.bf16 %v1138, %v1137
      %v1145 = vpack.c.bf16 %v1140, %v1139
      %v1146 = vpack.c.bf16 %v1142, %v1141
      %v1148 = vsel %vm764, %v1143, 0
      %v1151 = vsel %vm764, %v1144, 0
      %v1154 = vsel %vm764, %v1145, 0
      %v1157 = vsel %vm764, %v1146, 0
      %1159 = vmatprep.subr.bf16.mxu0 0
      %1160 = vmatpush1.bf16.msra.mxu0 %v732
      %1161 = vmatprep.subr.bf16.mxu0 0
      %1162 = vmatpush1.bf16.msra.mxu0 %v733
      %1163 = vmatprep.subr.bf16.mxu0 0
      %1164 = vmatpush1.bf16.msra.mxu0 %v734
      %1165 = vmatprep.subr.bf16.mxu0 0
      %1166 = vmatpush1.bf16.msra.mxu0 %v735
      %1167 = vmatprep.subr.bf16.mxu0 0
      %1168 = vmatpush1.bf16.msra.mxu0 0
      %1169 = vmatprep.subr.bf16.mxu0 0
      %1170 = vmatpush1.bf16.msra.mxu0 0
      %1171 = vmatprep.subr.bf16.mxu0 0
      %1172 = vmatpush1.bf16.msra.mxu0 0
      %1173 = vmatprep.subr.bf16.mxu0 0
      %1174 = vmatpush1.bf16.msra.mxu0 0
      %1175 = vmatprep.subr.bf16.mxu0 0
      %1176 = vmatpush1.bf16.msra.mxu0 0
      %1177 = vmatprep.subr.bf16.mxu0 0
      %1178 = vmatpush1.bf16.msra.mxu0 0
      %1179 = vmatprep.subr.bf16.mxu0 0
      %1180 = vmatpush1.bf16.msra.mxu0 0
      %1181 = vmatprep.subr.bf16.mxu0 0
      %1182 = vmatpush1.bf16.msra.mxu0 0
      %1183 = vmatprep.subr.bf16.mxu0 0
      %1184 = vmatpush1.bf16.msra.mxu0 0
      %1185 = vmatprep.subr.bf16.mxu0 0
      %1186 = vmatpush1.bf16.msra.mxu0 0
      %1187 = vmatprep.subr.bf16.mxu0 0
      %1188 = vmatpush1.bf16.msra.mxu0 0
      %1189 = vmatprep.subr.bf16.mxu0 0
      %1190 = vmatpush1.bf16.msra.mxu0 0
      %1191 = vmatprep.mubr.bf16.mxu0 0
      %1192 = vmatmul.mubr.bf16.gmra.mrb[0].mxu0 %v1148
      %v1193 = vpop.f32.mrb[0].mxu0
      %v1194 = vadd.f32 0.0, %v1193
      %v1195 = vpop.f32.mrb[0].mxu0
      %v1196 = vpop.f32.mrb[0].mxu0
      %v1197 = vadd.f32 0.0, %v1196
      %v1198 = vpop.f32.mrb[0].mxu0
      %1199 = vmatprep.mubr.bf16.mxu0 0
      %1200 = vmatmul.mubr.bf16.gmra.mrb[0].mxu0 %v1151
      %v1201 = vpop.f32.mrb[0].mxu0
      %v1202 = vadd.f32 0.0, %v1201
      %v1203 = vpop.f32.mrb[0].mxu0
      %v1204 = vpop.f32.mrb[0].mxu0
      %v1205 = vadd.f32 0.0, %v1204
      %v1206 = vpop.f32.mrb[0].mxu0
      %1207 = vmatprep.mubr.bf16.mxu0 0
      %1208 = vmatmul.mubr.bf16.gmra.mrb[0].mxu0 %v1154
      %v1209 = vpop.f32.mrb[0].mxu0
      %v1210 = vadd.f32 0.0, %v1209
      %v1211 = vpop.f32.mrb[0].mxu0
      %v1212 = vpop.f32.mrb[0].mxu0
      %v1213 = vadd.f32 0.0, %v1212
      %v1214 = vpop.f32.mrb[0].mxu0
      %1215 = vmatprep.mubr.bf16.mxu0 0
      %1216 = vmatmul.mubr.bf16.gmra.mrb[0].mxu0 %v1157
      %v1217 = vpop.f32.mrb[0].mxu0
      %v1218 = vadd.f32 0.0, %v1217
      %v1219 = vpop.f32.mrb[0].mxu0
      %v1220 = vpop.f32.mrb[0].mxu0
      %v1221 = vadd.f32 0.0, %v1220
      %v1222 = vpop.f32.mrb[0].mxu0
      %1223 = vdwg.mxu0
      %s1224 = scalar_lea.vmem %s1, 16
      %v1225 = vld [vmem:[%s1224] sm:$0xf]
      %v1226 = vld [vmem:[%s1224 + $0x4] sm:$0xf]
      %v1227 = vpack.c.bf16 %v1197, %v1194
      %v1228 = vpack.c.bf16 %v1205, %v1202
      %v1229 = vpack.c.bf16 %v1213, %v1210
      %v1230 = vpack.c.bf16 %v1221, %v1218
      %v1233 = vunpack.c.l.b16 %v1225
      %v1234 = vunpack.c.l.b16 %v1226
      %v1235 = vpack.c.b16 %v1234, %v1233
      %v1238 = vsel %vm958, %v1227, 0
      %v1241 = vsel %vm958, %v1228, 0
      %v1244 = vsel %vm958, %v1229, 0
      %v1247 = vsel %vm958, %v1230, 0
      %1249 = vmatprep.subr.bf16.mxu0 0
      %1250 = vmatpush1.bf16.msra.mxu0 %v1235
      %1251 = vmatprep.subr.bf16.mxu0 0
      %1252 = vmatpush1.bf16.msra.mxu0 0
      %1253 = vmatprep.subr.bf16.mxu0 0
      %1254 = vmatpush1.bf16.msra.mxu0 0
      %1255 = vmatprep.subr.bf16.mxu0 0
      %1256 = vmatpush1.bf16.msra.mxu0 0
      %1257 = vmatprep.subr.bf16.mxu0 0
      %1258 = vmatpush1.bf16.msra.mxu0 0
      %1259 = vmatprep.subr.bf16.mxu0 0
      %1260 = vmatpush1.bf16.msra.mxu0 0
      %1261 = vmatprep.subr.bf16.mxu0 0
      %1262 = vmatpush1.bf16.msra.mxu0 0
      %1263 = vmatprep.subr.bf16.mxu0 0
      %1264 = vmatpush1.bf16.msra.mxu0 0
      %1265 = vmatprep.subr.bf16.mxu0 0
      %1266 = vmatpush1.bf16.msra.mxu0 0
      %1267 = vmatprep.subr.bf16.mxu0 0
      %1268 = vmatpush1.bf16.msra.mxu0 0
      %1269 = vmatprep.subr.bf16.mxu0 0
      %1270 = vmatpush1.bf16.msra.mxu0 0
      %1271 = vmatprep.subr.bf16.mxu0 0
      %1272 = vmatpush1.bf16.msra.mxu0 0
      %1273 = vmatprep.subr.bf16.mxu0 0
      %1274 = vmatpush1.bf16.msra.mxu0 0
      %1275 = vmatprep.subr.bf16.mxu0 0
      %1276 = vmatpush1.bf16.msra.mxu0 0
      %1277 = vmatprep.subr.bf16.mxu0 0
      %1278 = vmatpush1.bf16.msra.mxu0 0
      %1279 = vmatprep.subr.bf16.mxu0 0
      %1280 = vmatpush1.bf16.msra.mxu0 0
      %1281 = vmatprep.mubr.bf16.mxu0 0
      %1282 = vmatmul.mubr.bf16.gmra.mrb[0].mxu0 %v1238
      %v1283 = vpop.f32.mrb[0].mxu0
      %v1284 = vadd.f32 0.0, %v1283
      %v1285 = vpop.f32.mrb[0].mxu0
      %v1286 = vpop.f32.mrb[0].mxu0
      %v1287 = vadd.f32 0.0, %v1286
      %v1288 = vpop.f32.mrb[0].mxu0
      %1289 = vmatprep.mubr.bf16.mxu0 0
      %1290 = vmatmul.mubr.bf16.gmra.mrb[0].mxu0 %v1241
      %v1291 = vpop.f32.mrb[0].mxu0
      %v1292 = vadd.f32 0.0, %v1291
      %v1293 = vpop.f32.mrb[0].mxu0
      %v1294 = vpop.f32.mrb[0].mxu0
      %v1295 = vadd.f32 0.0, %v1294
      %v1296 = vpop.f32.mrb[0].mxu0
      %1297 = vmatprep.mubr.bf16.mxu0 0
      %1298 = vmatmul.mubr.bf16.gmra.mrb[0].mxu0 %v1244
      %v1299 = vpop.f32.mrb[0].mxu0
      %v1300 = vadd.f32 0.0, %v1299
      %v1301 = vpop.f32.mrb[0].mxu0
      %v1302 = vpop.f32.mrb[0].mxu0
      %v1303 = vadd.f32 0.0, %v1302
      %v1304 = vpop.f32.mrb[0].mxu0
      %1305 = vmatprep.mubr.bf16.mxu0 0
      %1306 = vmatmul.mubr.bf16.gmra.mrb[0].mxu0 %v1247
      %v1307 = vpop.f32.mrb[0].mxu0
      %v1308 = vadd.f32 0.0, %v1307
      %v1309 = vpop.f32.mrb[0].mxu0
      %v1310 = vpop.f32.mrb[0].mxu0
      %v1311 = vadd.f32 0.0, %v1310
      %v1312 = vpop.f32.mrb[0].mxu0
      %1313 = vdwg.mxu0
      %v1314 = vadd.f32 %v1089, %v1284
      %v1315 = vadd.f32 %v1092, %v1287
      %v1316 = vadd.f32 %v1097, %v1292
      %v1317 = vadd.f32 %v1100, %v1295
      %v1318 = vadd.f32 %v1105, %v1300
      %v1319 = vadd.f32 %v1108, %v1303
      %v1320 = vadd.f32 %v1113, %v1308
      %v1321 = vadd.f32 %v1116, %v1311
      %v1323 = vlaneseq
      %v1324 = vshrl.u32 %v1323, 7
      %v1325 = vsub.s32 0, %v1324
      %v1326 = vrot.slane %v720, %v1325
      %v1328 = vadd.f32 %v1314, %v1326
      %v1329 = vadd.f32 %v1315, %v1326
      %v1330 = vadd.f32 %v1316, %v1326
      %v1331 = vadd.f32 %v1317, %v1326
      %v1332 = vadd.f32 %v1318, %v1326
      %v1333 = vadd.f32 %v1319, %v1326
      %v1334 = vadd.f32 %v1320, %v1326
      %v1335 = vadd.f32 %v1321, %v1326
      %v1336 = vmul.f32 %v1328, %v1328
      %v1337 = vmul.f32 %v1329, %v1329
      %v1338 = vmul.f32 %v1330, %v1330
      %v1339 = vmul.f32 %v1331, %v1331
      %v1340 = vmul.f32 %v1332, %v1332
      %v1341 = vmul.f32 %v1333, %v1333
      %v1342 = vmul.f32 %v1334, %v1334
      %v1343 = vmul.f32 %v1335, %v1335
      %v1344 = vmul.f32 %v1328, %v1336
      %v1345 = vmul.f32 %v1329, %v1337
      %v1346 = vmul.f32 %v1330, %v1338
      %v1347 = vmul.f32 %v1331, %v1339
      %v1348 = vmul.f32 %v1332, %v1340
      %v1349 = vmul.f32 %v1333, %v1341
      %v1350 = vmul.f32 %v1334, %v1342
      %v1351 = vmul.f32 %v1335, %v1343
      %v1352 = vmul.f32 %v1344, 0.044715
      %v1353 = vmul.f32 %v1345, 0.044715
      %v1354 = vmul.f32 %v1346, 0.044715
      %v1355 = vmul.f32 %v1347, 0.044715
      %v1356 = vmul.f32 %v1348, 0.044715
      %v1357 = vmul.f32 %v1349, 0.044715
      %v1358 = vmul.f32 %v1350, 0.044715
      %v1359 = vmul.f32 %v1351, 0.044715
      %v1360 = vadd.f32 %v1328, %v1352
      %v1361 = vadd.f32 %v1329, %v1353
      %v1362 = vadd.f32 %v1330, %v1354
      %v1363 = vadd.f32 %v1331, %v1355
      %v1364 = vadd.f32 %v1332, %v1356
      %v1365 = vadd.f32 %v1333, %v1357
      %v1366 = vadd.f32 %v1334, %v1358
      %v1367 = vadd.f32 %v1335, %v1359
      %v1368 = vmul.f32 %v1360, 0.7978846
      %v1369 = vmul.f32 %v1361, 0.7978846
      %v1370 = vmul.f32 %v1362, 0.7978846
      %v1371 = vmul.f32 %v1363, 0.7978846
      %v1372 = vmul.f32 %v1364, 0.7978846
      %v1373 = vmul.f32 %v1365, 0.7978846
      %v1374 = vmul.f32 %v1366, 0.7978846
      %v1375 = vmul.f32 %v1367, 0.7978846
      %v1376 = vtanh.pop %v1368
      %v1377 = vtanh.pop %v1369
      %v1378 = vtanh.pop %v1370
      %v1379 = vtanh.pop %v1371
      %v1380 = vtanh.pop %v1372
      %v1381 = vtanh.pop %v1373
      %v1382 = vtanh.pop %v1374
      %v1383 = vtanh.pop %v1375
      %v1384 = vadd.f32 %v1376, 1.0
      %v1385 = vadd.f32 %v1377, 1.0
      %v1386 = vadd.f32 %v1378, 1.0
      %v1387 = vadd.f32 %v1379, 1.0
      %v1388 = vadd.f32 %v1380, 1.0
      %v1389 = vadd.f32 %v1381, 1.0
      %v1390 = vadd.f32 %v1382, 1.0
      %v1391 = vadd.f32 %v1383, 1.0
      %v1392 = vmul.f32 %v1384, 0.5
      %v1393 = vmul.f32 %v1385, 0.5
      %v1394 = vmul.f32 %v1386, 0.5
      %v1395 = vmul.f32 %v1387, 0.5
      %v1396 = vmul.f32 %v1388, 0.5
      %v1397 = vmul.f32 %v1389, 0.5
      %v1398 = vmul.f32 %v1390, 0.5
      %v1399 = vmul.f32 %v1391, 0.5
      %v1400 = vmul.f32 %v1328, %v1392
      %v1401 = vmul.f32 %v1329, %v1393
      %v1402 = vmul.f32 %v1330, %v1394
      %v1403 = vmul.f32 %v1331, %v1395
      %v1404 = vmul.f32 %v1332, %v1396
      %v1405 = vmul.f32 %v1333, %v1397
      %v1406 = vmul.f32 %v1334, %v1398
      %v1407 = vmul.f32 %v1335, %v1399
      %v1408 = vld [vmem:[%s4] sm:$0x1]
      %v1409 = vpack.c.bf16 %v1401, %v1400
      %v1410 = vpack.c.bf16 %v1403, %v1402
      %v1411 = vpack.c.bf16 %v1405, %v1404
      %v1412 = vpack.c.bf16 %v1407, %v1406
      %v1413 = vmul.u32 %v722, 2
      %v1414 = vmul.u32 %v723, 2
      %v1415 = vmul.u32 %v724, 2
      %v1416 = vmul.u32 %v725, 2
      %v1417 = vadd.s32 %v1413, 4294967295
      %v1418 = vadd.s32 %v1414, 4294967295
      %v1419 = vadd.s32 %v1415, 4294967295
      %v1420 = vadd.s32 %v1416, 4294967295
      %vm1421 = vcmp.eq.s32.totalorder %v731, %v1417
      %vm1422 = vcmp.eq.s32.totalorder %v731, %v1418
      %vm1423 = vcmp.eq.s32.totalorder %v731, %v1419
      %vm1424 = vcmp.eq.s32.totalorder %v731, %v1420
      %v1425 = vsel %vm1421, 1.0, 0.0
      %v1426 = vsel %vm1422, 1.0, 0.0
      %v1427 = vsel %vm1423, 1.0, 0.0
      %v1428 = vsel %vm1424, 1.0, 0.0
      %v1429 = vpack.c.bf16 %v1426, %v1425
      %v1430 = vpack.c.bf16 %v1428, %v1427
      %v1432 = vsel %vm764, %v1429, 0
      %v1435 = vsel %vm764, %v1430, 0
      %1437 = vmatprep.subr.bf16.mxu0 0
      %1438 = vmatpush1.bf16.msra.mxu0 %v1409
      %1439 = vmatprep.subr.bf16.mxu0 0
      %1440 = vmatpush1.bf16.msra.mxu0 %v1410
      %1441 = vmatprep.subr.bf16.mxu0 0
      %1442 = vmatpush1.bf16.msra.mxu0 %v1411
      %1443 = vmatprep.subr.bf16.mxu0 0
      %1444 = vmatpush1.bf16.msra.mxu0 %v1412
      %1445 = vmatprep.subr.bf16.mxu0 0
      %1446 = vmatpush1.bf16.msra.mxu0 0
      %1447 = vmatprep.subr.bf16.mxu0 0
      %1448 = vmatpush1.bf16.msra.mxu0 0
      %1449 = vmatprep.subr.bf16.mxu0 0
      %1450 = vmatpush1.bf16.msra.mxu0 0
      %1451 = vmatprep.subr.bf16.mxu0 0
      %1452 = vmatpush1.bf16.msra.mxu0 0
      %1453 = vmatprep.subr.bf16.mxu0 0
      %1454 = vmatpush1.bf16.msra.mxu0 0
      %1455 = vmatprep.subr.bf16.mxu0 0
      %1456 = vmatpush1.bf16.msra.mxu0 0
      %1457 = vmatprep.subr.bf16.mxu0 0
      %1458 = vmatpush1.bf16.msra.mxu0 0
      %1459 = vmatprep.subr.bf16.mxu0 0
      %1460 = vmatpush1.bf16.msra.mxu0 0
      %1461 = vmatprep.subr.bf16.mxu0 0
      %1462 = vmatpush1.bf16.msra.mxu0 0
      %1463 = vmatprep.subr.bf16.mxu0 0
      %1464 = vmatpush1.bf16.msra.mxu0 0
      %1465 = vmatprep.subr.bf16.mxu0 0
      %1466 = vmatpush1.bf16.msra.mxu0 0
      %1467 = vmatprep.subr.bf16.mxu0 0
      %1468 = vmatpush1.bf16.msra.mxu0 0
      %1469 = vmatprep.mubr.bf16.mxu0 0
      %1470 = vmatmul.mubr.bf16.gmra.mrb[0].mxu0 %v1432
      %v1471 = vpop.f32.mrb[0].mxu0
      %v1472 = vadd.f32 0.0, %v1471
      %v1473 = vpop.f32.mrb[0].mxu0
      %v1474 = vpop.f32.mrb[0].mxu0
      %v1475 = vadd.f32 0.0, %v1474
      %v1476 = vpop.f32.mrb[0].mxu0
      %1477 = vmatprep.mubr.bf16.mxu0 0
      %1478 = vmatmul.mubr.bf16.gmra.mrb[0].mxu0 %v1435
      %v1479 = vpop.f32.mrb[0].mxu0
      %v1480 = vadd.f32 0.0, %v1479
      %v1481 = vpop.f32.mrb[0].mxu0
      %v1482 = vpop.f32.mrb[0].mxu0
      %v1483 = vadd.f32 0.0, %v1482
      %v1484 = vpop.f32.mrb[0].mxu0
      %1485 = vdwg.mxu0
      %v1486 = vld [vmem:[%s3] sm:$0xf]
      %v1487 = vld [vmem:[%s3 + $0x4] sm:$0xf]
      %v1488 = vld [vmem:[%s3 + $0x8] sm:$0xf]
      %v1489 = vld [vmem:[%s3 + $0xc] sm:$0xf]
      %v1490 = vld [vmem:[%s3 + $0x10] sm:$0xf]
      %v1491 = vld [vmem:[%s3 + $0x14] sm:$0xf]
      %v1492 = vld [vmem:[%s3 + $0x18] sm:$0xf]
      %v1493 = vld [vmem:[%s3 + $0x1c] sm:$0xf]
      %v1494 = vpack.c.bf16 %v1475, %v1472
      %v1495 = vpack.c.bf16 %v1483, %v1480
      %vm1496 = vcmp.eq.s32.totalorder %v731, %v1413
      %vm1497 = vcmp.eq.s32.totalorder %v731, %v1414
      %vm1498 = vcmp.eq.s32.totalorder %v731, %v1415
      %vm1499 = vcmp.eq.s32.totalorder %v731, %v1416
      %v1500 = vsel %vm1496, 1.0, 0.0
      %v1501 = vsel %vm1497, 1.0, 0.0
      %v1502 = vsel %vm1498, 1.0, 0.0
      %v1503 = vsel %vm1499, 1.0, 0.0
      %v1504 = vpack.c.bf16 %v1501, %v1500
      %v1505 = vpack.c.bf16 %v1503, %v1502
      %v1507 = vsel %vm764, %v1504, 0
      %v1510 = vsel %vm764, %v1505, 0
      %1512 = vmatprep.subr.bf16.mxu0 0
      %1513 = vmatpush1.bf16.msra.mxu0 %v1409
      %1514 = vmatprep.subr.bf16.mxu0 0
      %1515 = vmatpush1.bf16.msra.mxu0 %v1410
      %1516 = vmatprep.subr.bf16.mxu0 0
      %1517 = vmatpush1.bf16.msra.mxu0 %v1411
      %1518 = vmatprep.subr.bf16.mxu0 0
      %1519 = vmatpush1.bf16.msra.mxu0 %v1412
      %1520 = vmatprep.subr.bf16.mxu0 0
      %1521 = vmatpush1.bf16.msra.mxu0 0
      %1522 = vmatprep.subr.bf16.mxu0 0
      %1523 = vmatpush1.bf16.msra.mxu0 0
      %1524 = vmatprep.subr.bf16.mxu0 0
      %1525 = vmatpush1.bf16.msra.mxu0 0
      %1526 = vmatprep.subr.bf16.mxu0 0
      %1527 = vmatpush1.bf16.msra.mxu0 0
      %1528 = vmatprep.subr.bf16.mxu0 0
      %1529 = vmatpush1.bf16.msra.mxu0 0
      %1530 = vmatprep.subr.bf16.mxu0 0
      %1531 = vmatpush1.bf16.msra.mxu0 0
      %1532 = vmatprep.subr.bf16.mxu0 0
      %1533 = vmatpush1.bf16.msra.mxu0 0
      %1534 = vmatprep.subr.bf16.mxu0 0
      %1535 = vmatpush1.bf16.msra.mxu0 0
      %1536 = vmatprep.subr.bf16.mxu0 0
      %1537 = vmatpush1.bf16.msra.mxu0 0
      %1538 = vmatprep.subr.bf16.mxu0 0
      %1539 = vmatpush1.bf16.msra.mxu0 0
      %1540 = vmatprep.subr.bf16.mxu0 0
      %1541 = vmatpush1.bf16.msra.mxu0 0
      %1542 = vmatprep.subr.bf16.mxu0 0
      %1543 = vmatpush1.bf16.msra.mxu0 0
      %1544 = vmatprep.mubr.bf16.mxu0 0
      %1545 = vmatmul.mubr.bf16.gmra.mrb[0].mxu0 %v1507
      %v1546 = vpop.f32.mrb[0].mxu0
      %v1547 = vadd.f32 0.0, %v1546
      %v1548 = vpop.f32.mrb[0].mxu0
      %v1549 = vpop.f32.mrb[0].mxu0
      %v1550 = vadd.f32 0.0, %v1549
      %v1551 = vpop.f32.mrb[0].mxu0
      %1552 = vmatprep.mubr.bf16.mxu0 0
      %1553 = vmatmul.mubr.bf16.gmra.mrb[0].mxu0 %v1510
      %v1554 = vpop.f32.mrb[0].mxu0
      %v1555 = vadd.f32 0.0, %v1554
      %v1556 = vpop.f32.mrb[0].mxu0
      %v1557 = vpop.f32.mrb[0].mxu0
      %v1558 = vadd.f32 0.0, %v1557
      %v1559 = vpop.f32.mrb[0].mxu0
      %1560 = vdwg.mxu0
      %s1561 = scalar_lea.vmem %s3, 32
      %v1562 = vld [vmem:[%s1561] sm:$0xf]
      %v1563 = vld [vmem:[%s1561 + $0x4] sm:$0xf]
      %v1564 = vld [vmem:[%s1561 + $0x8] sm:$0xf]
      %v1565 = vld [vmem:[%s1561 + $0xc] sm:$0xf]
      %v1566 = vld [vmem:[%s1561 + $0x10] sm:$0xf]
      %v1567 = vld [vmem:[%s1561 + $0x14] sm:$0xf]
      %v1568 = vld [vmem:[%s1561 + $0x18] sm:$0xf]
      %v1569 = vld [vmem:[%s1561 + $0x1c] sm:$0xf]
      %v1570 = vpack.c.bf16 %v1550, %v1547
      %v1571 = vpack.c.bf16 %v1558, %v1555
      %v1580 = vunpack.c.l.b16 %v1562
      %v1581 = vunpack.c.l.b16 %v1563
      %v1582 = vunpack.c.l.b16 %v1564
      %v1583 = vunpack.c.l.b16 %v1565
      %v1584 = vunpack.c.l.b16 %v1566
      %v1585 = vunpack.c.l.b16 %v1567
      %v1586 = vunpack.c.l.b16 %v1568
      %v1587 = vunpack.c.l.b16 %v1569
      %v1588 = vpack.c.b16 %v1581, %v1580
      %v1589 = vpack.c.b16 %v1583, %v1582
      %v1590 = vpack.c.b16 %v1585, %v1584
      %v1591 = vpack.c.b16 %v1587, %v1586
      %v1597 = vsel %vm764, %v1570, 0
      %v1600 = vsel %vm764, %v1571, 0
      %1602 = vmatprep.subr.bf16.mxu0 0
      %1603 = vmatpush1.bf16.msra.mxu0 %v1588
      %1604 = vmatprep.subr.bf16.mxu0 0
      %1605 = vmatpush1.bf16.msra.mxu0 %v1589
      %1606 = vmatprep.subr.bf16.mxu0 0
      %1607 = vmatpush1.bf16.msra.mxu0 %v1590
      %1608 = vmatprep.subr.bf16.mxu0 0
      %1609 = vmatpush1.bf16.msra.mxu0 %v1591
      %1610 = vmatprep.subr.bf16.mxu0 0
      %1611 = vmatpush1.bf16.msra.mxu0 0
      %1612 = vmatprep.subr.bf16.mxu0 0
      %1613 = vmatpush1.bf16.msra.mxu0 0
      %1614 = vmatprep.subr.bf16.mxu0 0
      %1615 = vmatpush1.bf16.msra.mxu0 0
      %1616 = vmatprep.subr.bf16.mxu0 0
      %1617 = vmatpush1.bf16.msra.mxu0 0
      %1618 = vmatprep.subr.bf16.mxu0 0
      %1619 = vmatpush1.bf16.msra.mxu0 0
      %1620 = vmatprep.subr.bf16.mxu0 0
      %1621 = vmatpush1.bf16.msra.mxu0 0
      %1622 = vmatprep.subr.bf16.mxu0 0
      %1623 = vmatpush1.bf16.msra.mxu0 0
      %1624 = vmatprep.subr.bf16.mxu0 0
      %1625 = vmatpush1.bf16.msra.mxu0 0
      %1626 = vmatprep.subr.bf16.mxu0 0
      %1627 = vmatpush1.bf16.msra.mxu0 0
      %1628 = vmatprep.subr.bf16.mxu0 0
      %1629 = vmatpush1.bf16.msra.mxu0 0
      %1630 = vmatprep.subr.bf16.mxu0 0
      %1631 = vmatpush1.bf16.msra.mxu0 0
      %1632 = vmatprep.subr.bf16.mxu0 0
      %1633 = vmatpush1.bf16.msra.mxu0 0
      %1634 = vmatprep.mubr.bf16.mxu0 0
      %1635 = vmatmul.mubr.bf16.gmra.mrb[0].mxu0 %v1597
      %v1636 = vpop.f32.mrb[0].mxu0
      %v1637 = vadd.f32 0.0, %v1636
      %v1638 = vpop.f32.mrb[0].mxu0
      %v1639 = vpop.f32.mrb[0].mxu0
      %v1640 = vadd.f32 0.0, %v1639
      %v1641 = vpop.f32.mrb[0].mxu0
      %1642 = vmatprep.mubr.bf16.mxu0 0
      %1643 = vmatmul.mubr.bf16.gmra.mrb[0].mxu0 %v1600
      %v1644 = vpop.f32.mrb[0].mxu0
      %v1645 = vadd.f32 0.0, %v1644
      %v1646 = vpop.f32.mrb[0].mxu0
      %v1647 = vpop.f32.mrb[0].mxu0
      %v1648 = vadd.f32 0.0, %v1647
      %v1649 = vpop.f32.mrb[0].mxu0
      %1650 = vdwg.mxu0
      %v1659 = vunpack.c.l.b16 %v1486
      %v1660 = vunpack.c.l.b16 %v1487
      %v1661 = vunpack.c.l.b16 %v1488
      %v1662 = vunpack.c.l.b16 %v1489
      %v1663 = vunpack.c.l.b16 %v1490
      %v1664 = vunpack.c.l.b16 %v1491
      %v1665 = vunpack.c.l.b16 %v1492
      %v1666 = vunpack.c.l.b16 %v1493
      %v1667 = vpack.c.b16 %v1660, %v1659
      %v1668 = vpack.c.b16 %v1662, %v1661
      %v1669 = vpack.c.b16 %v1664, %v1663
      %v1670 = vpack.c.b16 %v1666, %v1665
      %v1676 = vsel %vm764, %v1494, 0
      %v1679 = vsel %vm764, %v1495, 0
      %1681 = vmatprep.subr.bf16.mxu0 0
      %1682 = vmatpush1.bf16.msra.mxu0 %v1667
      %1683 = vmatprep.subr.bf16.mxu0 0
      %1684 = vmatpush1.bf16.msra.mxu0 %v1668
      %1685 = vmatprep.subr.bf16.mxu0 0
      %1686 = vmatpush1.bf16.msra.mxu0 %v1669
      %1687 = vmatprep.subr.bf16.mxu0 0
      %1688 = vmatpush1.bf16.msra.mxu0 %v1670
      %1689 = vmatprep.subr.bf16.mxu0 0
      %1690 = vmatpush1.bf16.msra.mxu0 0
      %1691 = vmatprep.subr.bf16.mxu0 0
      %1692 = vmatpush1.bf16.msra.mxu0 0
      %1693 = vmatprep.subr.bf16.mxu0 0
      %1694 = vmatpush1.bf16.msra.mxu0 0
      %1695 = vmatprep.subr.bf16.mxu0 0
      %1696 = vmatpush1.bf16.msra.mxu0 0
      %1697 = vmatprep.subr.bf16.mxu0 0
      %1698 = vmatpush1.bf16.msra.mxu0 0
      %1699 = vmatprep.subr.bf16.mxu0 0
      %1700 = vmatpush1.bf16.msra.mxu0 0
      %1701 = vmatprep.subr.bf16.mxu0 0
      %1702 = vmatpush1.bf16.msra.mxu0 0
      %1703 = vmatprep.subr.bf16.mxu0 0
      %1704 = vmatpush1.bf16.msra.mxu0 0
      %1705 = vmatprep.subr.bf16.mxu0 0
      %1706 = vmatpush1.bf16.msra.mxu0 0
      %1707 = vmatprep.subr.bf16.mxu0 0
      %1708 = vmatpush1.bf16.msra.mxu0 0
      %1709 = vmatprep.subr.bf16.mxu0 0
      %1710 = vmatpush1.bf16.msra.mxu0 0
      %1711 = vmatprep.subr.bf16.mxu0 0
      %1712 = vmatpush1.bf16.msra.mxu0 0
      %1713 = vmatprep.mubr.bf16.mxu0 0
      %1714 = vmatmul.mubr.bf16.gmra.mrb[0].mxu0 %v1676
      %v1715 = vpop.f32.mrb[0].mxu0
      %v1716 = vadd.f32 %v1637, %v1715
      %v1717 = vpop.f32.mrb[0].mxu0
      %v1718 = vpop.f32.mrb[0].mxu0
      %v1719 = vadd.f32 %v1640, %v1718
      %v1720 = vpop.f32.mrb[0].mxu0
      %1721 = vmatprep.mubr.bf16.mxu0 0
      %1722 = vmatmul.mubr.bf16.gmra.mrb[0].mxu0 %v1679
      %v1723 = vpop.f32.mrb[0].mxu0
      %v1724 = vadd.f32 %v1645, %v1723
      %v1725 = vpop.f32.mrb[0].mxu0
      %v1726 = vpop.f32.mrb[0].mxu0
      %v1727 = vadd.f32 %v1648, %v1726
      %v1728 = vpop.f32.mrb[0].mxu0
      %1729 = vdwg.mxu0
      %v1730 = vadd.s32 %v1413, 1
      %v1731 = vadd.s32 %v1414, 1
      %v1732 = vadd.s32 %v1415, 1
      %v1733 = vadd.s32 %v1416, 1
      %vm1734 = vcmp.eq.s32.totalorder %v731, %v1730
      %vm1735 = vcmp.eq.s32.totalorder %v731, %v1731
      %vm1736 = vcmp.eq.s32.totalorder %v731, %v1732
      %vm1737 = vcmp.eq.s32.totalorder %v731, %v1733
      %v1738 = vsel %vm1734, 1.0, 0.0
      %v1739 = vsel %vm1735, 1.0, 0.0
      %v1740 = vsel %vm1736, 1.0, 0.0
      %v1741 = vsel %vm1737, 1.0, 0.0
      %v1742 = vpack.c.bf16 %v1739, %v1738
      %v1743 = vpack.c.bf16 %v1741, %v1740
      %v1745 = vsel %vm764, %v1742, 0
      %v1748 = vsel %vm764, %v1743, 0
      %1750 = vmatprep.subr.bf16.mxu0 0
      %1751 = vmatpush1.bf16.msra.mxu0 %v1409
      %1752 = vmatprep.subr.bf16.mxu0 0
      %1753 = vmatpush1.bf16.msra.mxu0 %v1410
      %1754 = vmatprep.subr.bf16.mxu0 0
      %1755 = vmatpush1.bf16.msra.mxu0 %v1411
      %1756 = vmatprep.subr.bf16.mxu0 0
      %1757 = vmatpush1.bf16.msra.mxu0 %v1412
      %1758 = vmatprep.subr.bf16.mxu0 0
      %1759 = vmatpush1.bf16.msra.mxu0 0
      %1760 = vmatprep.subr.bf16.mxu0 0
      %1761 = vmatpush1.bf16.msra.mxu0 0
      %1762 = vmatprep.subr.bf16.mxu0 0
      %1763 = vmatpush1.bf16.msra.mxu0 0
      %1764 = vmatprep.subr.bf16.mxu0 0
      %1765 = vmatpush1.bf16.msra.mxu0 0
      %1766 = vmatprep.subr.bf16.mxu0 0
      %1767 = vmatpush1.bf16.msra.mxu0 0
      %1768 = vmatprep.subr.bf16.mxu0 0
      %1769 = vmatpush1.bf16.msra.mxu0 0
      %1770 = vmatprep.subr.bf16.mxu0 0
      %1771 = vmatpush1.bf16.msra.mxu0 0
      %1772 = vmatprep.subr.bf16.mxu0 0
      %1773 = vmatpush1.bf16.msra.mxu0 0
      %1774 = vmatprep.subr.bf16.mxu0 0
      %1775 = vmatpush1.bf16.msra.mxu0 0
      %1776 = vmatprep.subr.bf16.mxu0 0
      %1777 = vmatpush1.bf16.msra.mxu0 0
      %1778 = vmatprep.subr.bf16.mxu0 0
      %1779 = vmatpush1.bf16.msra.mxu0 0
      %1780 = vmatprep.subr.bf16.mxu0 0
      %1781 = vmatpush1.bf16.msra.mxu0 0
      %1782 = vmatprep.mubr.bf16.mxu0 0
      %1783 = vmatmul.mubr.bf16.gmra.mrb[0].mxu0 %v1745
      %v1784 = vpop.f32.mrb[0].mxu0
      %v1785 = vadd.f32 0.0, %v1784
      %v1786 = vpop.f32.mrb[0].mxu0
      %v1787 = vpop.f32.mrb[0].mxu0
      %v1788 = vadd.f32 0.0, %v1787
      %v1789 = vpop.f32.mrb[0].mxu0
      %1790 = vmatprep.mubr.bf16.mxu0 0
      %1791 = vmatmul.mubr.bf16.gmra.mrb[0].mxu0 %v1748
      %v1792 = vpop.f32.mrb[0].mxu0
      %v1793 = vadd.f32 0.0, %v1792
      %v1794 = vpop.f32.mrb[0].mxu0
      %v1795 = vpop.f32.mrb[0].mxu0
      %v1796 = vadd.f32 0.0, %v1795
      %v1797 = vpop.f32.mrb[0].mxu0
      %1798 = vdwg.mxu0
      %s1799 = scalar_lea.vmem %s3, 64
      %v1800 = vld [vmem:[%s1799] sm:$0xf]
      %v1801 = vld [vmem:[%s1799 + $0x4] sm:$0xf]
      %v1802 = vld [vmem:[%s1799 + $0x8] sm:$0xf]
      %v1803 = vld [vmem:[%s1799 + $0xc] sm:$0xf]
      %v1804 = vld [vmem:[%s1799 + $0x10] sm:$0xf]
      %v1805 = vld [vmem:[%s1799 + $0x14] sm:$0xf]
      %v1806 = vld [vmem:[%s1799 + $0x18] sm:$0xf]
      %v1807 = vld [vmem:[%s1799 + $0x1c] sm:$0xf]
      %v1808 = vpack.c.bf16 %v1788, %v1785
      %v1809 = vpack.c.bf16 %v1796, %v1793
      %v1818 = vunpack.c.l.b16 %v1800
      %v1819 = vunpack.c.l.b16 %v1801
      %v1820 = vunpack.c.l.b16 %v1802
      %v1821 = vunpack.c.l.b16 %v1803
      %v1822 = vunpack.c.l.b16 %v1804
      %v1823 = vunpack.c.l.b16 %v1805
      %v1824 = vunpack.c.l.b16 %v1806
      %v1825 = vunpack.c.l.b16 %v1807
      %v1826 = vpack.c.b16 %v1819, %v1818
      %v1827 = vpack.c.b16 %v1821, %v1820
      %v1828 = vpack.c.b16 %v1823, %v1822
      %v1829 = vpack.c.b16 %v1825, %v1824
      %v1835 = vsel %vm764, %v1808, 0
      %v1838 = vsel %vm764, %v1809, 0
      %1840 = vmatprep.subr.bf16.mxu0 0
      %1841 = vmatpush1.bf16.msra.mxu0 %v1826
      %1842 = vmatprep.subr.bf16.mxu0 0
      %1843 = vmatpush1.bf16.msra.mxu0 %v1827
      %1844 = vmatprep.subr.bf16.mxu0 0
      %1845 = vmatpush1.bf16.msra.mxu0 %v1828
      %1846 = vmatprep.subr.bf16.mxu0 0
      %1847 = vmatpush1.bf16.msra.mxu0 %v1829
      %1848 = vmatprep.subr.bf16.mxu0 0
      %1849 = vmatpush1.bf16.msra.mxu0 0
      %1850 = vmatprep.subr.bf16.mxu0 0
      %1851 = vmatpush1.bf16.msra.mxu0 0
      %1852 = vmatprep.subr.bf16.mxu0 0
      %1853 = vmatpush1.bf16.msra.mxu0 0
      %1854 = vmatprep.subr.bf16.mxu0 0
      %1855 = vmatpush1.bf16.msra.mxu0 0
      %1856 = vmatprep.subr.bf16.mxu0 0
      %1857 = vmatpush1.bf16.msra.mxu0 0
      %1858 = vmatprep.subr.bf16.mxu0 0
      %1859 = vmatpush1.bf16.msra.mxu0 0
      %1860 = vmatprep.subr.bf16.mxu0 0
      %1861 = vmatpush1.bf16.msra.mxu0 0
      %1862 = vmatprep.subr.bf16.mxu0 0
      %1863 = vmatpush1.bf16.msra.mxu0 0
      %1864 = vmatprep.subr.bf16.mxu0 0
      %1865 = vmatpush1.bf16.msra.mxu0 0
      %1866 = vmatprep.subr.bf16.mxu0 0
      %1867 = vmatpush1.bf16.msra.mxu0 0
      %1868 = vmatprep.subr.bf16.mxu0 0
      %1869 = vmatpush1.bf16.msra.mxu0 0
      %1870 = vmatprep.subr.bf16.mxu0 0
      %1871 = vmatpush1.bf16.msra.mxu0 0
      %1872 = vmatprep.mubr.bf16.mxu0 0
      %1873 = vmatmul.mubr.bf16.gmra.mrb[0].mxu0 %v1835
      %v1874 = vpop.f32.mrb[0].mxu0
      %v1875 = vadd.f32 0.0, %v1874
      %v1876 = vpop.f32.mrb[0].mxu0
      %v1877 = vpop.f32.mrb[0].mxu0
      %v1878 = vadd.f32 0.0, %v1877
      %v1879 = vpop.f32.mrb[0].mxu0
      %1880 = vmatprep.mubr.bf16.mxu0 0
      %1881 = vmatmul.mubr.bf16.gmra.mrb[0].mxu0 %v1838
      %v1882 = vpop.f32.mrb[0].mxu0
      %v1883 = vadd.f32 0.0, %v1882
      %v1884 = vpop.f32.mrb[0].mxu0
      %v1885 = vpop.f32.mrb[0].mxu0
      %v1886 = vadd.f32 0.0, %v1885
      %v1887 = vpop.f32.mrb[0].mxu0
      %1888 = vdwg.mxu0
      %v1889 = vadd.f32 %v1716, %v1875
      %v1890 = vadd.f32 %v1719, %v1878
      %v1891 = vadd.f32 %v1724, %v1883
      %v1892 = vadd.f32 %v1727, %v1886
      %v1894 = vlaneseq
      %v1895 = vshrl.u32 %v1894, 7
      %v1896 = vsub.s32 0, %v1895
      %v1897 = vrot.slane %v1408, %v1896
      %v1899 = vadd.f32 %v1889, %v1897
      %v1900 = vadd.f32 %v1890, %v1897
      %v1901 = vadd.f32 %v1891, %v1897
      %v1902 = vadd.f32 %v1892, %v1897
      %v1903 = vmul.f32 %v1899, %v1899
      %v1904 = vmul.f32 %v1900, %v1900
      %v1905 = vmul.f32 %v1901, %v1901
      %v1906 = vmul.f32 %v1902, %v1902
      %v1907 = vmul.f32 %v1899, %v1903
      %v1908 = vmul.f32 %v1900, %v1904
      %v1909 = vmul.f32 %v1901, %v1905
      %v1910 = vmul.f32 %v1902, %v1906
      %v1911 = vmul.f32 %v1907, 0.044715
      %v1912 = vmul.f32 %v1908, 0.044715
      %v1913 = vmul.f32 %v1909, 0.044715
      %v1914 = vmul.f32 %v1910, 0.044715
      %v1915 = vadd.f32 %v1899, %v1911
      %v1916 = vadd.f32 %v1900, %v1912
      %v1917 = vadd.f32 %v1901, %v1913
      %v1918 = vadd.f32 %v1902, %v1914
      %v1919 = vmul.f32 %v1915, 0.7978846
      %v1920 = vmul.f32 %v1916, 0.7978846
      %v1921 = vmul.f32 %v1917, 0.7978846
      %v1922 = vmul.f32 %v1918, 0.7978846
      %v1923 = vtanh.pop %v1919
      %v1924 = vtanh.pop %v1920
      %v1925 = vtanh.pop %v1921
      %v1926 = vtanh.pop %v1922
      %v1927 = vadd.f32 %v1923, 1.0
      %v1928 = vadd.f32 %v1924, 1.0
      %v1929 = vadd.f32 %v1925, 1.0
      %v1930 = vadd.f32 %v1926, 1.0
      %v1931 = vmul.f32 %v1927, 0.5
      %v1932 = vmul.f32 %v1928, 0.5
      %v1933 = vmul.f32 %v1929, 0.5
      %v1934 = vmul.f32 %v1930, 0.5
      %v1935 = vmul.f32 %v1899, %v1931
      %v1936 = vmul.f32 %v1900, %v1932
      %v1937 = vmul.f32 %v1901, %v1933
      %v1938 = vmul.f32 %v1902, %v1934
      %v1939 = vld [vmem:[%s5] sm:$0xff]
      %v1940 = vld [vmem:[%s5 + $0x8] sm:$0xff]
      %v1941 = vld [vmem:[%s5 + $0x10] sm:$0xff]
      %v1942 = vld [vmem:[%s5 + $0x18] sm:$0xff]
      %v1943 = vadd.f32 %v1935, %v1939
      %v1944 = vadd.f32 %v1936, %v1940
      %v1945 = vadd.f32 %v1937, %v1941
      %v1946 = vadd.f32 %v1938, %v1942
      %v1947 = vld [vmem:[%s6] sm:$0x1]
      %v1948 = vld [vmem:[%s7] sm:$0x1]
      %v1949 = vsel %vm764, %v1943, 0.0
      %1950 = vadd.xlane.f32.xlu0 %v1949
      %v1951 = vpop.xlane.xlu0 %1950
      %v1952 = vsel %vm764, %v1944, 0.0
      %1953 = vadd.xlane.f32.xlu0 %v1952
      %v1954 = vpop.xlane.xlu0 %1953
      %v1955 = vsel %vm764, %v1945, 0.0
      %1956 = vadd.xlane.f32.xlu0 %v1955
      %v1957 = vpop.xlane.xlu0 %1956
      %v1958 = vsel %vm764, %v1946, 0.0
      %1959 = vadd.xlane.f32.xlu0 %v1958
      %v1960 = vpop.xlane.xlu0 %1959
      %v1961 = vrcp.pop 64.0
      %v1962 = vmul.f32 %v1951, %v1961
      %v1963 = vmul.f32 %v1954, %v1961
      %v1964 = vmul.f32 %v1957, %v1961
      %v1965 = vmul.f32 %v1960, %v1961
      %v1966 = vsub.f32 %v1943, %v1962
      %v1967 = vsub.f32 %v1944, %v1963
      %v1968 = vsub.f32 %v1945, %v1964
      %v1969 = vsub.f32 %v1946, %v1965
      %v1970 = vmul.f32 %v1966, %v1966
      %v1971 = vmul.f32 %v1967, %v1967
      %v1972 = vmul.f32 %v1968, %v1968
      %v1973 = vmul.f32 %v1969, %v1969
      %v1974 = vsel %vm764, %v1970, 0.0
      %1975 = vadd.xlane.f32.xlu0 %v1974
      %v1976 = vpop.xlane.xlu0 %1975
      %v1977 = vsel %vm764, %v1971, 0.0
      %1978 = vadd.xlane.f32.xlu0 %v1977
      %v1979 = vpop.xlane.xlu0 %1978
      %v1980 = vsel %vm764, %v1972, 0.0
      %1981 = vadd.xlane.f32.xlu0 %v1980
      %v1982 = vpop.xlane.xlu0 %1981
      %v1983 = vsel %vm764, %v1973, 0.0
      %1984 = vadd.xlane.f32.xlu0 %v1983
      %v1985 = vpop.xlane.xlu0 %1984
      %v1986 = vmul.f32 %v1976, %v1961
      %v1987 = vmul.f32 %v1979, %v1961
      %v1988 = vmul.f32 %v1982, %v1961
      %v1989 = vmul.f32 %v1985, %v1961
      %v1990 = vadd.f32 %v1986, 1e-05
      %v1991 = vadd.f32 %v1987, 1e-05
      %v1992 = vadd.f32 %v1988, 1e-05
      %v1993 = vadd.f32 %v1989, 1e-05
      %v1994 = vrsqrt.pop %v1990
      %v1995 = vrsqrt.pop %v1991
      %v1996 = vrsqrt.pop %v1992
      %v1997 = vrsqrt.pop %v1993
      %v1998 = vmul.f32 %v1966, %v1994
      %v1999 = vmul.f32 %v1967, %v1995
      %v2000 = vmul.f32 %v1968, %v1996
      %v2001 = vmul.f32 %v1969, %v1997
      %v2003 = vlaneseq
      %v2004 = vshrl.u32 %v2003, 7
      %v2005 = vsub.s32 0, %v2004
      %v2006 = vrot.slane %v1947, %v2005
      %v2008 = vmul.f32 %v1998, %v2006
      %v2009 = vmul.f32 %v1999, %v2006
      %v2010 = vmul.f32 %v2000, %v2006
      %v2011 = vmul.f32 %v2001, %v2006
      %v2013 = vlaneseq
      %v2014 = vshrl.u32 %v2013, 7
      %v2015 = vsub.s32 0, %v2014
      %v2016 = vrot.slane %v1948, %v2015
      %v2018 = vadd.f32 %v2008, %v2016
      %v2019 = vadd.f32 %v2009, %v2016
      %v2020 = vadd.f32 %v2010, %v2016
      %v2021 = vadd.f32 %v2011, %v2016
      %v2022 = vld [vmem:[%s14] sm:$0x1]
      %v2023 = vld [vmem:[%s8] sm:$0xf]
      %v2024 = vld [vmem:[%s8 + $0x4] sm:$0xf]
      %v2025 = vld [vmem:[%s8 + $0x8] sm:$0xf]
      %v2026 = vld [vmem:[%s8 + $0xc] sm:$0xf]
      %v2027 = vld [vmem:[%s8 + $0x10] sm:$0xf]
      %v2028 = vld [vmem:[%s8 + $0x14] sm:$0xf]
      %v2029 = vld [vmem:[%s8 + $0x18] sm:$0xf]
      %v2030 = vld [vmem:[%s8 + $0x1c] sm:$0xf]
      %v2031 = vpack.c.bf16 %v2019, %v2018
      %v2032 = vpack.c.bf16 %v2021, %v2020
      %v2033 = vld [vmem:[%s9] sm:$0x1]
      %v2035 = vlaneseq
      %v2036 = vshrl.u32 %v2035, 7
      %v2037 = vsub.s32 0, %v2036
      %v2038 = vrot.slane %v2033, %v2037
      %v2048 = vunpack.c.l.b16 %v2023
      %v2049 = vunpack.c.l.b16 %v2024
      %v2050 = vunpack.c.l.b16 %v2025
      %v2051 = vunpack.c.l.b16 %v2026
      %v2052 = vunpack.c.l.b16 %v2027
      %v2053 = vunpack.c.l.b16 %v2028
      %v2054 = vunpack.c.l.b16 %v2029
      %v2055 = vunpack.c.l.b16 %v2030
      %v2056 = vpack.c.b16 %v2049, %v2048
      %v2057 = vpack.c.b16 %v2051, %v2050
      %v2058 = vpack.c.b16 %v2053, %v2052
      %v2059 = vpack.c.b16 %v2055, %v2054
      %v2065 = vsel %vm764, %v2031, 0
      %v2068 = vsel %vm764, %v2032, 0
      %2070 = vmatprep.subr.bf16.mxu0 0
      %2071 = vmatpush1.bf16.msra.mxu0 %v2056
      %2072 = vmatprep.subr.bf16.mxu0 0
      %2073 = vmatpush1.bf16.msra.mxu0 %v2057
      %2074 = vmatprep.subr.bf16.mxu0 0
      %2075 = vmatpush1.bf16.msra.mxu0 %v2058
      %2076 = vmatprep.subr.bf16.mxu0 0
      %2077 = vmatpush1.bf16.msra.mxu0 %v2059
      %2078 = vmatprep.subr.bf16.mxu0 0
      %2079 = vmatpush1.bf16.msra.mxu0 0
      %2080 = vmatprep.subr.bf16.mxu0 0
      %2081 = vmatpush1.bf16.msra.mxu0 0
      %2082 = vmatprep.subr.bf16.mxu0 0
      %2083 = vmatpush1.bf16.msra.mxu0 0
      %2084 = vmatprep.subr.bf16.mxu0 0
      %2085 = vmatpush1.bf16.msra.mxu0 0
      %2086 = vmatprep.subr.bf16.mxu0 0
      %2087 = vmatpush1.bf16.msra.mxu0 0
      %2088 = vmatprep.subr.bf16.mxu0 0
      %2089 = vmatpush1.bf16.msra.mxu0 0
      %2090 = vmatprep.subr.bf16.mxu0 0
      %2091 = vmatpush1.bf16.msra.mxu0 0
      %2092 = vmatprep.subr.bf16.mxu0 0
      %2093 = vmatpush1.bf16.msra.mxu0 0
      %2094 = vmatprep.subr.bf16.mxu0 0
      %2095 = vmatpush1.bf16.msra.mxu0 0
      %2096 = vmatprep.subr.bf16.mxu0 0
      %2097 = vmatpush1.bf16.msra.mxu0 0
      %2098 = vmatprep.subr.bf16.mxu0 0
      %2099 = vmatpush1.bf16.msra.mxu0 0
      %2100 = vmatprep.subr.bf16.mxu0 0
      %2101 = vmatpush1.bf16.msra.mxu0 0
      %2102 = vmatprep.mubr.bf16.mxu0 0
      %2103 = vmatmul.mubr.bf16.gmra.mrb[0].mxu0 %v2065
      %v2104 = vpop.f32.mrb[0].mxu0
      %v2105 = vadd.f32 %v2038, %v2104
      %v2106 = vpop.f32.mrb[0].mxu0
      %v2107 = vpop.f32.mrb[0].mxu0
      %v2108 = vadd.f32 %v2038, %v2107
      %v2109 = vpop.f32.mrb[0].mxu0
      %2110 = vmatprep.mubr.bf16.mxu0 0
      %2111 = vmatmul.mubr.bf16.gmra.mrb[0].mxu0 %v2068
      %v2112 = vpop.f32.mrb[0].mxu0
      %v2113 = vadd.f32 %v2038, %v2112
      %v2114 = vpop.f32.mrb[0].mxu0
      %v2115 = vpop.f32.mrb[0].mxu0
      %v2116 = vadd.f32 %v2038, %v2115
      %v2117 = vpop.f32.mrb[0].mxu0
      %2118 = vdwg.mxu0
      %v2119 = vld [vmem:[%s10] sm:$0xf]
      %v2120 = vld [vmem:[%s10 + $0x4] sm:$0xf]
      %v2121 = vld [vmem:[%s10 + $0x8] sm:$0xf]
      %v2122 = vld [vmem:[%s10 + $0xc] sm:$0xf]
      %v2123 = vld [vmem:[%s10 + $0x10] sm:$0xf]
      %v2124 = vld [vmem:[%s10 + $0x14] sm:$0xf]
      %v2125 = vld [vmem:[%s10 + $0x18] sm:$0xf]
      %v2126 = vld [vmem:[%s10 + $0x1c] sm:$0xf]
      %v2135 = vunpack.c.l.b16 %v2119
      %v2136 = vunpack.c.l.b16 %v2120
      %v2137 = vunpack.c.l.b16 %v2121
      %v2138 = vunpack.c.l.b16 %v2122
      %v2139 = vunpack.c.l.b16 %v2123
      %v2140 = vunpack.c.l.b16 %v2124
      %v2141 = vunpack.c.l.b16 %v2125
      %v2142 = vunpack.c.l.b16 %v2126
      %v2143 = vpack.c.b16 %v2136, %v2135
      %v2144 = vpack.c.b16 %v2138, %v2137
      %v2145 = vpack.c.b16 %v2140, %v2139
      %v2146 = vpack.c.b16 %v2142, %v2141
      %2151 = vmatprep.subr.bf16.mxu0 0
      %2152 = vmatpush1.bf16.msra.mxu0 %v2143
      %2153 = vmatprep.subr.bf16.mxu0 0
      %2154 = vmatpush1.bf16.msra.mxu0 %v2144
      %2155 = vmatprep.subr.bf16.mxu0 0
      %2156 = vmatpush1.bf16.msra.mxu0 %v2145
      %2157 = vmatprep.subr.bf16.mxu0 0
      %2158 = vmatpush1.bf16.msra.mxu0 %v2146
      %2159 = vmatprep.subr.bf16.mxu0 0
      %2160 = vmatpush1.bf16.msra.mxu0 0
      %2161 = vmatprep.subr.bf16.mxu0 0
      %2162 = vmatpush1.bf16.msra.mxu0 0
      %2163 = vmatprep.subr.bf16.mxu0 0
      %2164 = vmatpush1.bf16.msra.mxu0 0
      %2165 = vmatprep.subr.bf16.mxu0 0
      %2166 = vmatpush1.bf16.msra.mxu0 0
      %2167 = vmatprep.subr.bf16.mxu0 0
      %2168 = vmatpush1.bf16.msra.mxu0 0
      %2169 = vmatprep.subr.bf16.mxu0 0
      %2170 = vmatpush1.bf16.msra.mxu0 0
      %2171 = vmatprep.subr.bf16.mxu0 0
      %2172 = vmatpush1.bf16.msra.mxu0 0
      %2173 = vmatprep.subr.bf16.mxu0 0
      %2174 = vmatpush1.bf16.msra.mxu0 0
      %2175 = vmatprep.subr.bf16.mxu0 0
      %2176 = vmatpush1.bf16.msra.mxu0 0
      %2177 = vmatprep.subr.bf16.mxu0 0
      %2178 = vmatpush1.bf16.msra.mxu0 0
      %2179 = vmatprep.subr.bf16.mxu0 0
      %2180 = vmatpush1.bf16.msra.mxu0 0
      %2181 = vmatprep.subr.bf16.mxu0 0
      %2182 = vmatpush1.bf16.msra.mxu0 0
      %2183 = vmatprep.mubr.bf16.mxu0 0
      %2184 = vmatmul.mubr.bf16.gmra.mrb[0].mxu0 %v2065
      %v2185 = vpop.f32.mrb[0].mxu0
      %v2186 = vadd.f32 0.0, %v2185
      %v2187 = vpop.f32.mrb[0].mxu0
      %v2188 = vpop.f32.mrb[0].mxu0
      %v2189 = vadd.f32 0.0, %v2188
      %v2190 = vpop.f32.mrb[0].mxu0
      %2191 = vmatprep.mubr.bf16.mxu0 0
      %2192 = vmatmul.mubr.bf16.gmra.mrb[0].mxu0 %v2068
      %v2193 = vpop.f32.mrb[0].mxu0
      %v2194 = vadd.f32 0.0, %v2193
      %v2195 = vpop.f32.mrb[0].mxu0
      %v2196 = vpop.f32.mrb[0].mxu0
      %v2197 = vadd.f32 0.0, %v2196
      %v2198 = vpop.f32.mrb[0].mxu0
      %2199 = vdwg.mxu0
      %v2200 = vld [vmem:[%s11] sm:$0xf]
      %v2201 = vld [vmem:[%s11 + $0x4] sm:$0xf]
      %v2202 = vld [vmem:[%s11 + $0x8] sm:$0xf]
      %v2203 = vld [vmem:[%s11 + $0xc] sm:$0xf]
      %v2204 = vld [vmem:[%s11 + $0x10] sm:$0xf]
      %v2205 = vld [vmem:[%s11 + $0x14] sm:$0xf]
      %v2206 = vld [vmem:[%s11 + $0x18] sm:$0xf]
      %v2207 = vld [vmem:[%s11 + $0x1c] sm:$0xf]
      %v2208 = vld [vmem:[%s12] sm:$0x1]
      %v2210 = vlaneseq
      %v2211 = vshrl.u32 %v2210, 7
      %v2212 = vsub.s32 0, %v2211
      %v2213 = vrot.slane %v2208, %v2212
      %v2223 = vunpack.c.l.b16 %v2200
      %v2224 = vunpack.c.l.b16 %v2201
      %v2225 = vunpack.c.l.b16 %v2202
      %v2226 = vunpack.c.l.b16 %v2203
      %v2227 = vunpack.c.l.b16 %v2204
      %v2228 = vunpack.c.l.b16 %v2205
      %v2229 = vunpack.c.l.b16 %v2206
      %v2230 = vunpack.c.l.b16 %v2207
      %v2231 = vpack.c.b16 %v2224, %v2223
      %v2232 = vpack.c.b16 %v2226, %v2225
      %v2233 = vpack.c.b16 %v2228, %v2227
      %v2234 = vpack.c.b16 %v2230, %v2229
      %2239 = vmatprep.subr.bf16.mxu0 0
      %2240 = vmatpush1.bf16.msra.mxu0 %v2231
      %2241 = vmatprep.subr.bf16.mxu0 0
      %2242 = vmatpush1.bf16.msra.mxu0 %v2232
      %2243 = vmatprep.subr.bf16.mxu0 0
      %2244 = vmatpush1.bf16.msra.mxu0 %v2233
      %2245 = vmatprep.subr.bf16.mxu0 0
      %2246 = vmatpush1.bf16.msra.mxu0 %v2234
      %2247 = vmatprep.subr.bf16.mxu0 0
      %2248 = vmatpush1.bf16.msra.mxu0 0
      %2249 = vmatprep.subr.bf16.mxu0 0
      %2250 = vmatpush1.bf16.msra.mxu0 0
      %2251 = vmatprep.subr.bf16.mxu0 0
      %2252 = vmatpush1.bf16.msra.mxu0 0
      %2253 = vmatprep.subr.bf16.mxu0 0
      %2254 = vmatpush1.bf16.msra.mxu0 0
      %2255 = vmatprep.subr.bf16.mxu0 0
      %2256 = vmatpush1.bf16.msra.mxu0 0
      %2257 = vmatprep.subr.bf16.mxu0 0
      %2258 = vmatpush1.bf16.msra.mxu0 0
      %2259 = vmatprep.subr.bf16.mxu0 0
      %2260 = vmatpush1.bf16.msra.mxu0 0
      %2261 = vmatprep.subr.bf16.mxu0 0
      %2262 = vmatpush1.bf16.msra.mxu0 0
      %2263 = vmatprep.subr.bf16.mxu0 0
      %2264 = vmatpush1.bf16.msra.mxu0 0
      %2265 = vmatprep.subr.bf16.mxu0 0
      %2266 = vmatpush1.bf16.msra.mxu0 0
      %2267 = vmatprep.subr.bf16.mxu0 0
      %2268 = vmatpush1.bf16.msra.mxu0 0
      %2269 = vmatprep.subr.bf16.mxu0 0
      %2270 = vmatpush1.bf16.msra.mxu0 0
      %2271 = vmatprep.mubr.bf16.mxu0 0
      %2272 = vmatmul.mubr.bf16.gmra.mrb[0].mxu0 %v2065
      %v2273 = vpop.f32.mrb[0].mxu0
      %v2274 = vadd.f32 %v2213, %v2273
      %v2275 = vpop.f32.mrb[0].mxu0
      %v2276 = vpop.f32.mrb[0].mxu0
      %v2277 = vadd.f32 %v2213, %v2276
      %v2278 = vpop.f32.mrb[0].mxu0
      %2279 = vmatprep.mubr.bf16.mxu0 0
      %2280 = vmatmul.mubr.bf16.gmra.mrb[0].mxu0 %v2068
      %v2281 = vpop.f32.mrb[0].mxu0
      %v2282 = vadd.f32 %v2213, %v2281
      %v2283 = vpop.f32.mrb[0].mxu0
      %v2284 = vpop.f32.mrb[0].mxu0
      %v2285 = vadd.f32 %v2213, %v2284
      %v2286 = vpop.f32.mrb[0].mxu0
      %2287 = vdwg.mxu0
      %v2288 = vpack.c.bf16 %v2108, %v2105
      %v2289 = vpack.c.bf16 %v2116, %v2113
      %v2290 = vpack.c.bf16 %v2189, %v2186
      %v2291 = vpack.c.bf16 %v2197, %v2194
      %vm2292 = vcmask 261120
      %v2294 = vsel %vm2292, %v2288, 0
      %v2297 = vsel %vm2292, %v2289, 0
      %v2300 = vsel %vm2292, %v2290, 0
      %v2303 = vsel %vm2292, %v2291, 0
      %2305 = vmatprep.subr.bf16.mxu0 0
      %2306 = vmatpush1.bf16.xpose.msra.mxu0 %v2300
      %2307 = vmatprep.subr.bf16.mxu0 0
      %2308 = vmatpush1.bf16.xpose.msra.mxu0 %v2303
      %2309 = vmatprep.subr.bf16.mxu0 0
      %2310 = vmatpush1.bf16.xpose.msra.mxu0 0
      %2311 = vmatprep.subr.bf16.mxu0 0
      %2312 = vmatpush1.bf16.xpose.msra.mxu0 0
      %2313 = vmatprep.subr.bf16.mxu0 0
      %2314 = vmatpush1.bf16.xpose.msra.mxu0 0
      %2315 = vmatprep.subr.bf16.mxu0 0
      %2316 = vmatpush1.bf16.xpose.msra.mxu0 0
      %2317 = vmatprep.subr.bf16.mxu0 0
      %2318 = vmatpush1.bf16.xpose.msra.mxu0 0
      %2319 = vmatprep.subr.bf16.mxu0 0
      %2320 = vmatpush1.bf16.xpose.msra.mxu0 0
      %2321 = vmatprep.subr.bf16.mxu0 0
      %2322 = vmatpush1.bf16.xpose.msra.mxu0 0
      %2323 = vmatprep.subr.bf16.mxu0 0
      %2324 = vmatpush1.bf16.xpose.msra.mxu0 0
      %2325 = vmatprep.subr.bf16.mxu0 0
      %2326 = vmatpush1.bf16.xpose.msra.mxu0 0
      %2327 = vmatprep.subr.bf16.mxu0 0
      %2328 = vmatpush1.bf16.xpose.msra.mxu0 0
      %2329 = vmatprep.subr.bf16.mxu0 0
      %2330 = vmatpush1.bf16.xpose.msra.mxu0 0
      %2331 = vmatprep.subr.bf16.mxu0 0
      %2332 = vmatpush1.bf16.xpose.msra.mxu0 0
      %2333 = vmatprep.subr.bf16.mxu0 0
      %2334 = vmatpush1.bf16.xpose.msra.mxu0 0
      %2335 = vmatprep.subr.bf16.mxu0 0
      %2336 = vmatpush1.bf16.xpose.msra.mxu0 0
      %2337 = vmatprep.mubr.bf16.mxu0 0
      %2338 = vmatmul.mubr.bf16.gmra.mrb[0].mxu0 %v2294
      %v2339 = vpop.f32.mrb[0].mxu0
      %v2340 = vadd.f32 0.0, %v2339
      %v2341 = vpop.f32.mrb[0].mxu0
      %v2342 = vpop.f32.mrb[0].mxu0
      %v2343 = vadd.f32 0.0, %v2342
      %v2344 = vpop.f32.mrb[0].mxu0
      %2345 = vmatprep.mubr.bf16.mxu0 0
      %2346 = vmatmul.mubr.bf16.gmra.mrb[0].mxu0 %v2297
      %v2347 = vpop.f32.mrb[0].mxu0
      %v2348 = vadd.f32 0.0, %v2347
      %v2349 = vpop.f32.mrb[0].mxu0
      %v2350 = vpop.f32.mrb[0].mxu0
      %v2351 = vadd.f32 0.0, %v2350
      %v2352 = vpop.f32.mrb[0].mxu0
      %2353 = vdwg.mxu0
      %v2354 = vsel %vm2292, %v2340, -inf
      %2355 = vmax.xlane.f32.xlu0 %v2354
      %v2356 = vpop.xlane.xlu0 %2355
      %v2357 = vsel %vm2292, %v2343, -inf
      %2358 = vmax.xlane.f32.xlu0 %v2357
      %v2359 = vpop.xlane.xlu0 %2358
      %v2360 = vsel %vm2292, %v2348, -inf
      %2361 = vmax.xlane.f32.xlu0 %v2360
      %v2362 = vpop.xlane.xlu0 %2361
      %v2363 = vsel %vm2292, %v2351, -inf
      %2364 = vmax.xlane.f32.xlu0 %v2363
      %v2365 = vpop.xlane.xlu0 %2364
      %v2366 = vsub.f32 %v2340, %v2356
      %v2367 = vsub.f32 %v2343, %v2359
      %v2368 = vsub.f32 %v2348, %v2362
      %v2369 = vsub.f32 %v2351, %v2365
      %v2370 = vmul.f32 %v2366, 1.442695
      %v2371 = vpow.pop %v2370
      %v2372 = vmul.f32 %v2367, 1.442695
      %v2373 = vpow.pop %v2372
      %v2374 = vmul.f32 %v2368, 1.442695
      %v2375 = vpow.pop %v2374
      %v2376 = vmul.f32 %v2369, 1.442695
      %v2377 = vpow.pop %v2376
      %v2378 = vsel %vm2292, %v2371, 0.0
      %2379 = vadd.xlane.f32.xlu0 %v2378
      %v2380 = vpop.xlane.xlu0 %2379
      %v2381 = vsel %vm2292, %v2373, 0.0
      %2382 = vadd.xlane.f32.xlu0 %v2381
      %v2383 = vpop.xlane.xlu0 %2382
      %v2384 = vsel %vm2292, %v2375, 0.0
      %2385 = vadd.xlane.f32.xlu0 %v2384
      %v2386 = vpop.xlane.xlu0 %2385
      %v2387 = vsel %vm2292, %v2377, 0.0
      %2388 = vadd.xlane.f32.xlu0 %v2387
      %v2389 = vpop.xlane.xlu0 %2388
      %v2390 = vrcp.pop %v2380
      %v2391 = vrcp.pop %v2383
      %v2392 = vrcp.pop %v2386
      %v2393 = vrcp.pop %v2389
      %v2394 = vmul.f32 %v2371, %v2390
      %v2395 = vmul.f32 %v2373, %v2391
      %v2396 = vmul.f32 %v2375, %v2392
      %v2397 = vmul.f32 %v2377, %v2393
      %v2398 = vpack.c.bf16 %v2395, %v2394
      %v2399 = vpack.c.bf16 %v2397, %v2396
      %v2400 = vpack.c.bf16 %v2277, %v2274
      %v2401 = vpack.c.bf16 %v2285, %v2282
      %v2403 = vsel %vm2292, %v2398, 0
      %v2406 = vsel %vm2292, %v2399, 0
      %2408 = vmatprep.subr.bf16.mxu0 0
      %2409 = vmatpush1.bf16.msra.mxu0 %v2400
      %2410 = vmatprep.subr.bf16.mxu0 0
      %2411 = vmatpush1.bf16.msra.mxu0 %v2401
      %2412 = vmatprep.subr.bf16.mxu0 0
      %2413 = vmatpush1.bf16.msra.mxu0 0
      %2414 = vmatprep.subr.bf16.mxu0 0
      %2415 = vmatpush1.bf16.msra.mxu0 0
      %2416 = vmatprep.subr.bf16.mxu0 0
      %2417 = vmatpush1.bf16.msra.mxu0 0
      %2418 = vmatprep.subr.bf16.mxu0 0
      %2419 = vmatpush1.bf16.msra.mxu0 0
      %2420 = vmatprep.subr.bf16.mxu0 0
      %2421 = vmatpush1.bf16.msra.mxu0 0
      %2422 = vmatprep.subr.bf16.mxu0 0
      %2423 = vmatpush1.bf16.msra.mxu0 0
      %2424 = vmatprep.subr.bf16.mxu0 0
      %2425 = vmatpush1.bf16.msra.mxu0 0
      %2426 = vmatprep.subr.bf16.mxu0 0
      %2427 = vmatpush1.bf16.msra.mxu0 0
      %2428 = vmatprep.subr.bf16.mxu0 0
      %2429 = vmatpush1.bf16.msra.mxu0 0
      %2430 = vmatprep.subr.bf16.mxu0 0
      %2431 = vmatpush1.bf16.msra.mxu0 0
      %2432 = vmatprep.subr.bf16.mxu0 0
      %2433 = vmatpush1.bf16.msra.mxu0 0
      %2434 = vmatprep.subr.bf16.mxu0 0
      %2435 = vmatpush1.bf16.msra.mxu0 0
      %2436 = vmatprep.subr.bf16.mxu0 0
      %2437 = vmatpush1.bf16.msra.mxu0 0
      %2438 = vmatprep.subr.bf16.mxu0 0
      %2439 = vmatpush1.bf16.msra.mxu0 0
      %2440 = vmatprep.mubr.bf16.mxu0 0
      %2441 = vmatmul.mubr.bf16.gmra.mrb[0].mxu0 %v2403
      %v2442 = vpop.f32.mrb[0].mxu0
      %v2443 = vadd.f32 0.0, %v2442
      %v2444 = vpop.f32.mrb[0].mxu0
      %v2445 = vpop.f32.mrb[0].mxu0
      %v2446 = vadd.f32 0.0, %v2445
      %v2447 = vpop.f32.mrb[0].mxu0
      %2448 = vmatprep.mubr.bf16.mxu0 0
      %2449 = vmatmul.mubr.bf16.gmra.mrb[0].mxu0 %v2406
      %v2450 = vpop.f32.mrb[0].mxu0
      %v2451 = vadd.f32 0.0, %v2450
      %v2452 = vpop.f32.mrb[0].mxu0
      %v2453 = vpop.f32.mrb[0].mxu0
      %v2454 = vadd.f32 0.0, %v2453
      %v2455 = vpop.f32.mrb[0].mxu0
      %2456 = vdwg.mxu0
      %v2457 = vld [vmem:[%s13] sm:$0xf]
      %v2458 = vld [vmem:[%s13 + $0x4] sm:$0xf]
      %v2459 = vld [vmem:[%s13 + $0x8] sm:$0xf]
      %v2460 = vld [vmem:[%s13 + $0xc] sm:$0xf]
      %v2461 = vpack.c.bf16 %v2446, %v2443
      %v2462 = vpack.c.bf16 %v2454, %v2451
      %s2463 = scalar_lea.vmem %s8, 32
      %v2464 = vld [vmem:[%s2463] sm:$0xf]
      %v2465 = vld [vmem:[%s2463 + $0x4] sm:$0xf]
      %v2466 = vld [vmem:[%s2463 + $0x8] sm:$0xf]
      %v2467 = vld [vmem:[%s2463 + $0xc] sm:$0xf]
      %v2468 = vld [vmem:[%s2463 + $0x10] sm:$0xf]
      %v2469 = vld [vmem:[%s2463 + $0x14] sm:$0xf]
      %v2470 = vld [vmem:[%s2463 + $0x18] sm:$0xf]
      %v2471 = vld [vmem:[%s2463 + $0x1c] sm:$0xf]
      %s2472 = scalar_lea.vmem %s9, 1
      %v2473 = vld [vmem:[%s2472] sm:$0x1]
      %v2475 = vlaneseq
      %v2476 = vshrl.u32 %v2475, 7
      %v2477 = vsub.s32 0, %v2476
      %v2478 = vrot.slane %v2473, %v2477
      %v2488 = vunpack.c.l.b16 %v2464
      %v2489 = vunpack.c.l.b16 %v2465
      %v2490 = vunpack.c.l.b16 %v2466
      %v2491 = vunpack.c.l.b16 %v2467
      %v2492 = vunpack.c.l.b16 %v2468
      %v2493 = vunpack.c.l.b16 %v2469
      %v2494 = vunpack.c.l.b16 %v2470
      %v2495 = vunpack.c.l.b16 %v2471
      %v2496 = vpack.c.b16 %v2489, %v2488
      %v2497 = vpack.c.b16 %v2491, %v2490
      %v2498 = vpack.c.b16 %v2493, %v2492
      %v2499 = vpack.c.b16 %v2495, %v2494
      %2504 = vmatprep.subr.bf16.mxu0 0
      %2505 = vmatpush1.bf16.msra.mxu0 %v2496
      %2506 = vmatprep.subr.bf16.mxu0 0
      %2507 = vmatpush1.bf16.msra.mxu0 %v2497
      %2508 = vmatprep.subr.bf16.mxu0 0
      %2509 = vmatpush1.bf16.msra.mxu0 %v2498
      %2510 = vmatprep.subr.bf16.mxu0 0
      %2511 = vmatpush1.bf16.msra.mxu0 %v2499
      %2512 = vmatprep.subr.bf16.mxu0 0
      %2513 = vmatpush1.bf16.msra.mxu0 0
      %2514 = vmatprep.subr.bf16.mxu0 0
      %2515 = vmatpush1.bf16.msra.mxu0 0
      %2516 = vmatprep.subr.bf16.mxu0 0
      %2517 = vmatpush1.bf16.msra.mxu0 0
      %2518 = vmatprep.subr.bf16.mxu0 0
      %2519 = vmatpush1.bf16.msra.mxu0 0
      %2520 = vmatprep.subr.bf16.mxu0 0
      %2521 = vmatpush1.bf16.msra.mxu0 0
      %2522 = vmatprep.subr.bf16.mxu0 0
      %2523 = vmatpush1.bf16.msra.mxu0 0
      %2524 = vmatprep.subr.bf16.mxu0 0
      %2525 = vmatpush1.bf16.msra.mxu0 0
      %2526 = vmatprep.subr.bf16.mxu0 0
      %2527 = vmatpush1.bf16.msra.mxu0 0
      %2528 = vmatprep.subr.bf16.mxu0 0
      %2529 = vmatpush1.bf16.msra.mxu0 0
      %2530 = vmatprep.subr.bf16.mxu0 0
      %2531 = vmatpush1.bf16.msra.mxu0 0
      %2532 = vmatprep.subr.bf16.mxu0 0
      %2533 = vmatpush1.bf16.msra.mxu0 0
      %2534 = vmatprep.subr.bf16.mxu0 0
      %2535 = vmatpush1.bf16.msra.mxu0 0
      %2536 = vmatprep.mubr.bf16.mxu0 0
      %2537 = vmatmul.mubr.bf16.gmra.mrb[0].mxu0 %v2065
      %v2538 = vpop.f32.mrb[0].mxu0
      %v2539 = vadd.f32 %v2478, %v2538
      %v2540 = vpop.f32.mrb[0].mxu0
      %v2541 = vpop.f32.mrb[0].mxu0
      %v2542 = vadd.f32 %v2478, %v2541
      %v2543 = vpop.f32.mrb[0].mxu0
      %2544 = vmatprep.mubr.bf16.mxu0 0
      %2545 = vmatmul.mubr.bf16.gmra.mrb[0].mxu0 %v2068
      %v2546 = vpop.f32.mrb[0].mxu0
      %v2547 = vadd.f32 %v2478, %v2546
      %v2548 = vpop.f32.mrb[0].mxu0
      %v2549 = vpop.f32.mrb[0].mxu0
      %v2550 = vadd.f32 %v2478, %v2549
      %v2551 = vpop.f32.mrb[0].mxu0
      %2552 = vdwg.mxu0
      %s2553 = scalar_lea.vmem %s10, 32
      %v2554 = vld [vmem:[%s2553] sm:$0xf]
      %v2555 = vld [vmem:[%s2553 + $0x4] sm:$0xf]
      %v2556 = vld [vmem:[%s2553 + $0x8] sm:$0xf]
      %v2557 = vld [vmem:[%s2553 + $0xc] sm:$0xf]
      %v2558 = vld [vmem:[%s2553 + $0x10] sm:$0xf]
      %v2559 = vld [vmem:[%s2553 + $0x14] sm:$0xf]
      %v2560 = vld [vmem:[%s2553 + $0x18] sm:$0xf]
      %v2561 = vld [vmem:[%s2553 + $0x1c] sm:$0xf]
      %v2570 = vunpack.c.l.b16 %v2554
      %v2571 = vunpack.c.l.b16 %v2555
      %v2572 = vunpack.c.l.b16 %v2556
      %v2573 = vunpack.c.l.b16 %v2557
      %v2574 = vunpack.c.l.b16 %v2558
      %v2575 = vunpack.c.l.b16 %v2559
      %v2576 = vunpack.c.l.b16 %v2560
      %v2577 = vunpack.c.l.b16 %v2561
      %v2578 = vpack.c.b16 %v2571, %v2570
      %v2579 = vpack.c.b16 %v2573, %v2572
      %v2580 = vpack.c.b16 %v2575, %v2574
      %v2581 = vpack.c.b16 %v2577, %v2576
      %2586 = vmatprep.subr.bf16.mxu0 0
      %2587 = vmatpush1.bf16.msra.mxu0 %v2578
      %2588 = vmatprep.subr.bf16.mxu0 0
      %2589 = vmatpush1.bf16.msra.mxu0 %v2579
      %2590 = vmatprep.subr.bf16.mxu0 0
      %2591 = vmatpush1.bf16.msra.mxu0 %v2580
      %2592 = vmatprep.subr.bf16.mxu0 0
      %2593 = vmatpush1.bf16.msra.mxu0 %v2581
      %2594 = vmatprep.subr.bf16.mxu0 0
      %2595 = vmatpush1.bf16.msra.mxu0 0
      %2596 = vmatprep.subr.bf16.mxu0 0
      %2597 = vmatpush1.bf16.msra.mxu0 0
      %2598 = vmatprep.subr.bf16.mxu0 0
      %2599 = vmatpush1.bf16.msra.mxu0 0
      %2600 = vmatprep.subr.bf16.mxu0 0
      %2601 = vmatpush1.bf16.msra.mxu0 0
      %2602 = vmatprep.subr.bf16.mxu0 0
      %2603 = vmatpush1.bf16.msra.mxu0 0
      %2604 = vmatprep.subr.bf16.mxu0 0
      %2605 = vmatpush1.bf16.msra.mxu0 0
      %2606 = vmatprep.subr.bf16.mxu0 0
      %2607 = vmatpush1.bf16.msra.mxu0 0
      %2608 = vmatprep.subr.bf16.mxu0 0
      %2609 = vmatpush1.bf16.msra.mxu0 0
      %2610 = vmatprep.subr.bf16.mxu0 0
      %2611 = vmatpush1.bf16.msra.mxu0 0
      %2612 = vmatprep.subr.bf16.mxu0 0
      %2613 = vmatpush1.bf16.msra.mxu0 0
      %2614 = vmatprep.subr.bf16.mxu0 0
      %2615 = vmatpush1.bf16.msra.mxu0 0
      %2616 = vmatprep.subr.bf16.mxu0 0
      %2617 = vmatpush1.bf16.msra.mxu0 0
      %2618 = vmatprep.mubr.bf16.mxu0 0
      %2619 = vmatmul.mubr.bf16.gmra.mrb[0].mxu0 %v2065
      %v2620 = vpop.f32.mrb[0].mxu0
      %v2621 = vadd.f32 0.0, %v2620
      %v2622 = vpop.f32.mrb[0].mxu0
      %v2623 = vpop.f32.mrb[0].mxu0
      %v2624 = vadd.f32 0.0, %v2623
      %v2625 = vpop.f32.mrb[0].mxu0
      %2626 = vmatprep.mubr.bf16.mxu0 0
      %2627 = vmatmul.mubr.bf16.gmra.mrb[0].mxu0 %v2068
      %v2628 = vpop.f32.mrb[0].mxu0
      %v2629 = vadd.f32 0.0, %v2628
      %v2630 = vpop.f32.mrb[0].mxu0
      %v2631 = vpop.f32.mrb[0].mxu0
      %v2632 = vadd.f32 0.0, %v2631
      %v2633 = vpop.f32.mrb[0].mxu0
      %2634 = vdwg.mxu0
      %s2635 = scalar_lea.vmem %s11, 32
      %v2636 = vld [vmem:[%s2635] sm:$0xf]
      %v2637 = vld [vmem:[%s2635 + $0x4] sm:$0xf]
      %v2638 = vld [vmem:[%s2635 + $0x8] sm:$0xf]
      %v2639 = vld [vmem:[%s2635 + $0xc] sm:$0xf]
      %v2640 = vld [vmem:[%s2635 + $0x10] sm:$0xf]
      %v2641 = vld [vmem:[%s2635 + $0x14] sm:$0xf]
      %v2642 = vld [vmem:[%s2635 + $0x18] sm:$0xf]
      %v2643 = vld [vmem:[%s2635 + $0x1c] sm:$0xf]
      %s2644 = scalar_lea.vmem %s12, 1
      %v2645 = vld [vmem:[%s2644] sm:$0x1]
      %v2647 = vlaneseq
      %v2648 = vshrl.u32 %v2647, 7
      %v2649 = vsub.s32 0, %v2648
      %v2650 = vrot.slane %v2645, %v2649
      %v2660 = vunpack.c.l.b16 %v2636
      %v2661 = vunpack.c.l.b16 %v2637
      %v2662 = vunpack.c.l.b16 %v2638
      %v2663 = vunpack.c.l.b16 %v2639
      %v2664 = vunpack.c.l.b16 %v2640
      %v2665 = vunpack.c.l.b16 %v2641
      %v2666 = vunpack.c.l.b16 %v2642
      %v2667 = vunpack.c.l.b16 %v2643
      %v2668 = vpack.c.b16 %v2661, %v2660
      %v2669 = vpack.c.b16 %v2663, %v2662
      %v2670 = vpack.c.b16 %v2665, %v2664
      %v2671 = vpack.c.b16 %v2667, %v2666
      %2676 = vmatprep.subr.bf16.mxu0 0
      %2677 = vmatpush1.bf16.msra.mxu0 %v2668
      %2678 = vmatprep.subr.bf16.mxu0 0
      %2679 = vmatpush1.bf16.msra.mxu0 %v2669
      %2680 = vmatprep.subr.bf16.mxu0 0
      %2681 = vmatpush1.bf16.msra.mxu0 %v2670
      %2682 = vmatprep.subr.bf16.mxu0 0
      %2683 = vmatpush1.bf16.msra.mxu0 %v2671
      %2684 = vmatprep.subr.bf16.mxu0 0
      %2685 = vmatpush1.bf16.msra.mxu0 0
      %2686 = vmatprep.subr.bf16.mxu0 0
      %2687 = vmatpush1.bf16.msra.mxu0 0
      %2688 = vmatprep.subr.bf16.mxu0 0
      %2689 = vmatpush1.bf16.msra.mxu0 0
      %2690 = vmatprep.subr.bf16.mxu0 0
      %2691 = vmatpush1.bf16.msra.mxu0 0
      %2692 = vmatprep.subr.bf16.mxu0 0
      %2693 = vmatpush1.bf16.msra.mxu0 0
      %2694 = vmatprep.subr.bf16.mxu0 0
      %2695 = vmatpush1.bf16.msra.mxu0 0
      %2696 = vmatprep.subr.bf16.mxu0 0
      %2697 = vmatpush1.bf16.msra.mxu0 0
      %2698 = vmatprep.subr.bf16.mxu0 0
      %2699 = vmatpush1.bf16.msra.mxu0 0
      %2700 = vmatprep.subr.bf16.mxu0 0
      %2701 = vmatpush1.bf16.msra.mxu0 0
      %2702 = vmatprep.subr.bf16.mxu0 0
      %2703 = vmatpush1.bf16.msra.mxu0 0
      %2704 = vmatprep.subr.bf16.mxu0 0
      %2705 = vmatpush1.bf16.msra.mxu0 0
      %2706 = vmatprep.subr.bf16.mxu0 0
      %2707 = vmatpush1.bf16.msra.mxu0 0
      %2708 = vmatprep.mubr.bf16.mxu0 0
      %2709 = vmatmul.mubr.bf16.gmra.mrb[0].mxu0 %v2065
      %v2710 = vpop.f32.mrb[0].mxu0
      %v2711 = vadd.f32 %v2650, %v2710
      %v2712 = vpop.f32.mrb[0].mxu0
      %v2713 = vpop.f32.mrb[0].mxu0
      %v2714 = vadd.f32 %v2650, %v2713
      %v2715 = vpop.f32.mrb[0].mxu0
      %2716 = vmatprep.mubr.bf16.mxu0 0
      %2717 = vmatmul.mubr.bf16.gmra.mrb[0].mxu0 %v2068
      %v2718 = vpop.f32.mrb[0].mxu0
      %v2719 = vadd.f32 %v2650, %v2718
      %v2720 = vpop.f32.mrb[0].mxu0
      %v2721 = vpop.f32.mrb[0].mxu0
      %v2722 = vadd.f32 %v2650, %v2721
      %v2723 = vpop.f32.mrb[0].mxu0
      %2724 = vdwg.mxu0
      %v2725 = vpack.c.bf16 %v2542, %v2539
      %v2726 = vpack.c.bf16 %v2550, %v2547
      %v2727 = vpack.c.bf16 %v2624, %v2621
      %v2728 = vpack.c.bf16 %v2632, %v2629
      %v2730 = vsel %vm2292, %v2725, 0
      %v2733 = vsel %vm2292, %v2726, 0
      %v2736 = vsel %vm2292, %v2727, 0
      %v2739 = vsel %vm2292, %v2728, 0
      %2741 = vmatprep.subr.bf16.mxu0 0
      %2742 = vmatpush1.bf16.xpose.msra.mxu0 %v2736
      %2743 = vmatprep.subr.bf16.mxu0 0
      %2744 = vmatpush1.bf16.xpose.msra.mxu0 %v2739
      %2745 = vmatprep.subr.bf16.mxu0 0
      %2746 = vmatpush1.bf16.xpose.msra.mxu0 0
      %2747 = vmatprep.subr.bf16.mxu0 0
      %2748 = vmatpush1.bf16.xpose.msra.mxu0 0
      %2749 = vmatprep.subr.bf16.mxu0 0
      %2750 = vmatpush1.bf16.xpose.msra.mxu0 0
      %2751 = vmatprep.subr.bf16.mxu0 0
      %2752 = vmatpush1.bf16.xpose.msra.mxu0 0
      %2753 = vmatprep.subr.bf16.mxu0 0
      %2754 = vmatpush1.bf16.xpose.msra.mxu0 0
      %2755 = vmatprep.subr.bf16.mxu0 0
      %2756 = vmatpush1.bf16.xpose.msra.mxu0 0
      %2757 = vmatprep.subr.bf16.mxu0 0
      %2758 = vmatpush1.bf16.xpose.msra.mxu0 0
      %2759 = vmatprep.subr.bf16.mxu0 0
      %2760 = vmatpush1.bf16.xpose.msra.mxu0 0
      %2761 = vmatprep.subr.bf16.mxu0 0
      %2762 = vmatpush1.bf16.xpose.msra.mxu0 0
      %2763 = vmatprep.subr.bf16.mxu0 0
      %2764 = vmatpush1.bf16.xpose.msra.mxu0 0
      %2765 = vmatprep.subr.bf16.mxu0 0
      %2766 = vmatpush1.bf16.xpose.msra.mxu0 0
      %2767 = vmatprep.subr.bf16.mxu0 0
      %2768 = vmatpush1.bf16.xpose.msra.mxu0 0
      %2769 = vmatprep.subr.bf16.mxu0 0
      %2770 = vmatpush1.bf16.xpose.msra.mxu0 0
      %2771 = vmatprep.subr.bf16.mxu0 0
      %2772 = vmatpush1.bf16.xpose.msra.mxu0 0
      %2773 = vmatprep.mubr.bf16.mxu0 0
      %2774 = vmatmul.mubr.bf16.gmra.mrb[0].mxu0 %v2730
      %v2775 = vpop.f32.mrb[0].mxu0
      %v2776 = vadd.f32 0.0, %v2775
      %v2777 = vpop.f32.mrb[0].mxu0
      %v2778 = vpop.f32.mrb[0].mxu0
      %v2779 = vadd.f32 0.0, %v2778
      %v2780 = vpop.f32.mrb[0].mxu0
      %2781 = vmatprep.mubr.bf16.mxu0 0
      %2782 = vmatmul.mubr.bf16.gmra.mrb[0].mxu0 %v2733
      %v2783 = vpop.f32.mrb[0].mxu0
      %v2784 = vadd.f32 0.0, %v2783
      %v2785 = vpop.f32.mrb[0].mxu0
      %v2786 = vpop.f32.mrb[0].mxu0
      %v2787 = vadd.f32 0.0, %v2786
      %v2788 = vpop.f32.mrb[0].mxu0
      %2789 = vdwg.mxu0
      %v2790 = vsel %vm2292, %v2776, -inf
      %2791 = vmax.xlane.f32.xlu0 %v2790
      %v2792 = vpop.xlane.xlu0 %2791
      %v2793 = vsel %vm2292, %v2779, -inf
      %2794 = vmax.xlane.f32.xlu0 %v2793
      %v2795 = vpop.xlane.xlu0 %2794
      %v2796 = vsel %vm2292, %v2784, -inf
      %2797 = vmax.xlane.f32.xlu0 %v2796
      %v2798 = vpop.xlane.xlu0 %2797
      %v2799 = vsel %vm2292, %v2787, -inf
      %2800 = vmax.xlane.f32.xlu0 %v2799
      %v2801 = vpop.xlane.xlu0 %2800
      %v2802 = vsub.f32 %v2776, %v2792
      %v2803 = vsub.f32 %v2779, %v2795
      %v2804 = vsub.f32 %v2784, %v2798
      %v2805 = vsub.f32 %v2787, %v2801
      %v2806 = vmul.f32 %v2802, 1.442695
      %v2807 = vpow.pop %v2806
      %v2808 = vmul.f32 %v2803, 1.442695
      %v2809 = vpow.pop %v2808
      %v2810 = vmul.f32 %v2804, 1.442695
      %v2811 = vpow.pop %v2810
      %v2812 = vmul.f32 %v2805, 1.442695
      %v2813 = vpow.pop %v2812
      %v2814 = vsel %vm2292, %v2807, 0.0
      %2815 = vadd.xlane.f32.xlu0 %v2814
      %v2816 = vpop.xlane.xlu0 %2815
      %v2817 = vsel %vm2292, %v2809, 0.0
      %2818 = vadd.xlane.f32.xlu0 %v2817
      %v2819 = vpop.xlane.xlu0 %2818
      %v2820 = vsel %vm2292, %v2811, 0.0
      %2821 = vadd.xlane.f32.xlu0 %v2820
      %v2822 = vpop.xlane.xlu0 %2821
      %v2823 = vsel %vm2292, %v2813, 0.0
      %2824 = vadd.xlane.f32.xlu0 %v2823
      %v2825 = vpop.xlane.xlu0 %2824
      %v2826 = vrcp.pop %v2816
      %v2827 = vrcp.pop %v2819
      %v2828 = vrcp.pop %v2822
      %v2829 = vrcp.pop %v2825
      %v2830 = vmul.f32 %v2807, %v2826
      %v2831 = vmul.f32 %v2809, %v2827
      %v2832 = vmul.f32 %v2811, %v2828
      %v2833 = vmul.f32 %v2813, %v2829
      %v2834 = vpack.c.bf16 %v2831, %v2830
      %v2835 = vpack.c.bf16 %v2833, %v2832
      %v2836 = vpack.c.bf16 %v2714, %v2711
      %v2837 = vpack.c.bf16 %v2722, %v2719
      %v2839 = vsel %vm2292, %v2834, 0
      %v2842 = vsel %vm2292, %v2835, 0
      %2844 = vmatprep.subr.bf16.mxu0 0
      %2845 = vmatpush1.bf16.msra.mxu0 %v2836
      %2846 = vmatprep.subr.bf16.mxu0 0
      %2847 = vmatpush1.bf16.msra.mxu0 %v2837
      %2848 = vmatprep.subr.bf16.mxu0 0
      %2849 = vmatpush1.bf16.msra.mxu0 0
      %2850 = vmatprep.subr.bf16.mxu0 0
      %2851 = vmatpush1.bf16.msra.mxu0 0
      %2852 = vmatprep.subr.bf16.mxu0 0
      %2853 = vmatpush1.bf16.msra.mxu0 0
      %2854 = vmatprep.subr.bf16.mxu0 0
      %2855 = vmatpush1.bf16.msra.mxu0 0
      %2856 = vmatprep.subr.bf16.mxu0 0
      %2857 = vmatpush1.bf16.msra.mxu0 0
      %2858 = vmatprep.subr.bf16.mxu0 0
      %2859 = vmatpush1.bf16.msra.mxu0 0
      %2860 = vmatprep.subr.bf16.mxu0 0
      %2861 = vmatpush1.bf16.msra.mxu0 0
      %2862 = vmatprep.subr.bf16.mxu0 0
      %2863 = vmatpush1.bf16.msra.mxu0 0
      %2864 = vmatprep.subr.bf16.mxu0 0
      %2865 = vmatpush1.bf16.msra.mxu0 0
      %2866 = vmatprep.subr.bf16.mxu0 0
      %2867 = vmatpush1.bf16.msra.mxu0 0
      %2868 = vmatprep.subr.bf16.mxu0 0
      %2869 = vmatpush1.bf16.msra.mxu0 0
      %2870 = vmatprep.subr.bf16.mxu0 0
      %2871 = vmatpush1.bf16.msra.mxu0 0
      %2872 = vmatprep.subr.bf16.mxu0 0
      %2873 = vmatpush1.bf16.msra.mxu0 0
      %2874 = vmatprep.subr.bf16.mxu0 0
      %2875 = vmatpush1.bf16.msra.mxu0 0
      %2876 = vmatprep.mubr.bf16.mxu0 0
      %2877 = vmatmul.mubr.bf16.gmra.mrb[0].mxu0 %v2839
      %v2878 = vpop.f32.mrb[0].mxu0
      %v2879 = vadd.f32 0.0, %v2878
      %v2880 = vpop.f32.mrb[0].mxu0
      %v2881 = vpop.f32.mrb[0].mxu0
      %v2882 = vadd.f32 0.0, %v2881
      %v2883 = vpop.f32.mrb[0].mxu0
      %2884 = vmatprep.mubr.bf16.mxu0 0
      %2885 = vmatmul.mubr.bf16.gmra.mrb[0].mxu0 %v2842
      %v2886 = vpop.f32.mrb[0].mxu0
      %v2887 = vadd.f32 0.0, %v2886
      %v2888 = vpop.f32.mrb[0].mxu0
      %v2889 = vpop.f32.mrb[0].mxu0
      %v2890 = vadd.f32 0.0, %v2889
      %v2891 = vpop.f32.mrb[0].mxu0
      %2892 = vdwg.mxu0
      %s2893 = scalar_lea.vmem %s13, 16
      %v2894 = vld [vmem:[%s2893] sm:$0xf]
      %v2895 = vld [vmem:[%s2893 + $0x4] sm:$0xf]
      %v2896 = vld [vmem:[%s2893 + $0x8] sm:$0xf]
      %v2897 = vld [vmem:[%s2893 + $0xc] sm:$0xf]
      %v2898 = vpack.c.bf16 %v2882, %v2879
      %v2899 = vpack.c.bf16 %v2890, %v2887
      %v2904 = vunpack.c.l.b16 %v2894
      %v2905 = vunpack.c.l.b16 %v2895
      %v2906 = vunpack.c.l.b16 %v2896
      %v2907 = vunpack.c.l.b16 %v2897
      %v2908 = vpack.c.b16 %v2905, %v2904
      %v2909 = vpack.c.b16 %v2907, %v2906
      %v2913 = vsel %vm2292, %v2898, 0
      %v2916 = vsel %vm2292, %v2899, 0
      %2918 = vmatprep.subr.bf16.mxu0 0
      %2919 = vmatpush1.bf16.msra.mxu0 %v2908
      %2920 = vmatprep.subr.bf16.mxu0 0
      %2921 = vmatpush1.bf16.msra.mxu0 %v2909
      %2922 = vmatprep.subr.bf16.mxu0 0
      %2923 = vmatpush1.bf16.msra.mxu0 0
      %2924 = vmatprep.subr.bf16.mxu0 0
      %2925 = vmatpush1.bf16.msra.mxu0 0
      %2926 = vmatprep.subr.bf16.mxu0 0
      %2927 = vmatpush1.bf16.msra.mxu0 0
      %2928 = vmatprep.subr.bf16.mxu0 0
      %2929 = vmatpush1.bf16.msra.mxu0 0
      %2930 = vmatprep.subr.bf16.mxu0 0
      %2931 = vmatpush1.bf16.msra.mxu0 0
      %2932 = vmatprep.subr.bf16.mxu0 0
      %2933 = vmatpush1.bf16.msra.mxu0 0
      %2934 = vmatprep.subr.bf16.mxu0 0
      %2935 = vmatpush1.bf16.msra.mxu0 0
      %2936 = vmatprep.subr.bf16.mxu0 0
      %2937 = vmatpush1.bf16.msra.mxu0 0
      %2938 = vmatprep.subr.bf16.mxu0 0
      %2939 = vmatpush1.bf16.msra.mxu0 0
      %2940 = vmatprep.subr.bf16.mxu0 0
      %2941 = vmatpush1.bf16.msra.mxu0 0
      %2942 = vmatprep.subr.bf16.mxu0 0
      %2943 = vmatpush1.bf16.msra.mxu0 0
      %2944 = vmatprep.subr.bf16.mxu0 0
      %2945 = vmatpush1.bf16.msra.mxu0 0
      %2946 = vmatprep.subr.bf16.mxu0 0
      %2947 = vmatpush1.bf16.msra.mxu0 0
      %2948 = vmatprep.subr.bf16.mxu0 0
      %2949 = vmatpush1.bf16.msra.mxu0 0
      %2950 = vmatprep.mubr.bf16.mxu0 0
      %2951 = vmatmul.mubr.bf16.gmra.mrb[0].mxu0 %v2913
      %v2952 = vpop.f32.mrb[0].mxu0
      %v2953 = vadd.f32 0.0, %v2952
      %v2954 = vpop.f32.mrb[0].mxu0
      %v2955 = vpop.f32.mrb[0].mxu0
      %v2956 = vadd.f32 0.0, %v2955
      %v2957 = vpop.f32.mrb[0].mxu0
      %2958 = vmatprep.mubr.bf16.mxu0 0
      %2959 = vmatmul.mubr.bf16.gmra.mrb[0].mxu0 %v2916
      %v2960 = vpop.f32.mrb[0].mxu0
      %v2961 = vadd.f32 0.0, %v2960
      %v2962 = vpop.f32.mrb[0].mxu0
      %v2963 = vpop.f32.mrb[0].mxu0
      %v2964 = vadd.f32 0.0, %v2963
      %v2965 = vpop.f32.mrb[0].mxu0
      %2966 = vdwg.mxu0
      %v2971 = vunpack.c.l.b16 %v2457
      %v2972 = vunpack.c.l.b16 %v2458
      %v2973 = vunpack.c.l.b16 %v2459
      %v2974 = vunpack.c.l.b16 %v2460
      %v2975 = vpack.c.b16 %v2972, %v2971
      %v2976 = vpack.c.b16 %v2974, %v2973
      %v2980 = vsel %vm2292, %v2461, 0
      %v2983 = vsel %vm2292, %v2462, 0
      %2985 = vmatprep.subr.bf16.mxu0 0
      %2986 = vmatpush1.bf16.msra.mxu0 %v2975
      %2987 = vmatprep.subr.bf16.mxu0 0
      %2988 = vmatpush1.bf16.msra.mxu0 %v2976
      %2989 = vmatprep.subr.bf16.mxu0 0
      %2990 = vmatpush1.bf16.msra.mxu0 0
      %2991 = vmatprep.subr.bf16.mxu0 0
      %2992 = vmatpush1.bf16.msra.mxu0 0
      %2993 = vmatprep.subr.bf16.mxu0 0
      %2994 = vmatpush1.bf16.msra.mxu0 0
      %2995 = vmatprep.subr.bf16.mxu0 0
      %2996 = vmatpush1.bf16.msra.mxu0 0
      %2997 = vmatprep.subr.bf16.mxu0 0
      %2998 = vmatpush1.bf16.msra.mxu0 0
      %2999 = vmatprep.subr.bf16.mxu0 0
      %3000 = vmatpush1.bf16.msra.mxu0 0
      %3001 = vmatprep.subr.bf16.mxu0 0
      %3002 = vmatpush1.bf16.msra.mxu0 0
      %3003 = vmatprep.subr.bf16.mxu0 0
      %3004 = vmatpush1.bf16.msra.mxu0 0
      %3005 = vmatprep.subr.bf16.mxu0 0
      %3006 = vmatpush1.bf16.msra.mxu0 0
      %3007 = vmatprep.subr.bf16.mxu0 0
      %3008 = vmatpush1.bf16.msra.mxu0 0
      %3009 = vmatprep.subr.bf16.mxu0 0
      %3010 = vmatpush1.bf16.msra.mxu0 0
      %3011 = vmatprep.subr.bf16.mxu0 0
      %3012 = vmatpush1.bf16.msra.mxu0 0
      %3013 = vmatprep.subr.bf16.mxu0 0
      %3014 = vmatpush1.bf16.msra.mxu0 0
      %3015 = vmatprep.subr.bf16.mxu0 0
      %3016 = vmatpush1.bf16.msra.mxu0 0
      %3017 = vmatprep.mubr.bf16.mxu0 0
      %3018 = vmatmul.mubr.bf16.gmra.mrb[0].mxu0 %v2980
      %v3019 = vpop.f32.mrb[0].mxu0
      %v3020 = vadd.f32 %v2953, %v3019
      %v3021 = vpop.f32.mrb[0].mxu0
      %v3022 = vpop.f32.mrb[0].mxu0
      %v3023 = vadd.f32 %v2956, %v3022
      %v3024 = vpop.f32.mrb[0].mxu0
      %3025 = vmatprep.mubr.bf16.mxu0 0
      %3026 = vmatmul.mubr.bf16.gmra.mrb[0].mxu0 %v2983
      %v3027 = vpop.f32.mrb[0].mxu0
      %v3028 = vadd.f32 %v2961, %v3027
      %v3029 = vpop.f32.mrb[0].mxu0
      %v3030 = vpop.f32.mrb[0].mxu0
      %v3031 = vadd.f32 %v2964, %v3030
      %v3032 = vpop.f32.mrb[0].mxu0
      %3033 = vdwg.mxu0
      %v3035 = vlaneseq
      %v3036 = vshrl.u32 %v3035, 7
      %v3037 = vsub.s32 0, %v3036
      %v3038 = vrot.slane %v2022, %v3037
      %v3040 = vadd.f32 %v3020, %v3038
      %v3041 = vadd.f32 %v3023, %v3038
      %v3042 = vadd.f32 %v3028, %v3038
      %v3043 = vadd.f32 %v3031, %v3038
      %v3044 = vadd.f32 %v1943, %v3040
      %v3045 = vadd.f32 %v1944, %v3041
      %v3046 = vadd.f32 %v1945, %v3042
      %v3047 = vadd.f32 %v1946, %v3043
      %v3048 = vld [vmem:[%s15] sm:$0x1]
      %v3049 = vld [vmem:[%s16] sm:$0x1]
      %v3050 = vsel %vm764, %v3044, 0.0
      %3051 = vadd.xlane.f32.xlu0 %v3050
      %v3052 = vpop.xlane.xlu0 %3051
      %v3053 = vsel %vm764, %v3045, 0.0
      %3054 = vadd.xlane.f32.xlu0 %v3053
      %v3055 = vpop.xlane.xlu0 %3054
      %v3056 = vsel %vm764, %v3046, 0.0
      %3057 = vadd.xlane.f32.xlu0 %v3056
      %v3058 = vpop.xlane.xlu0 %3057
      %v3059 = vsel %vm764, %v3047, 0.0
      %3060 = vadd.xlane.f32.xlu0 %v3059
      %v3061 = vpop.xlane.xlu0 %3060
      %v3062 = vmul.f32 %v3052, %v1961
      %v3063 = vmul.f32 %v3055, %v1961
      %v3064 = vmul.f32 %v3058, %v1961
      %v3065 = vmul.f32 %v3061, %v1961
      %v3066 = vsub.f32 %v3044, %v3062
      %v3067 = vsub.f32 %v3045, %v3063
      %v3068 = vsub.f32 %v3046, %v3064
      %v3069 = vsub.f32 %v3047, %v3065
      %v3070 = vmul.f32 %v3066, %v3066
      %v3071 = vmul.f32 %v3067, %v3067
      %v3072 = vmul.f32 %v3068, %v3068
      %v3073 = vmul.f32 %v3069, %v3069
      %v3074 = vsel %vm764, %v3070, 0.0
      %3075 = vadd.xlane.f32.xlu0 %v3074
      %v3076 = vpop.xlane.xlu0 %3075
      %v3077 = vsel %vm764, %v3071, 0.0
      %3078 = vadd.xlane.f32.xlu0 %v3077
      %v3079 = vpop.xlane.xlu0 %3078
      %v3080 = vsel %vm764, %v3072, 0.0
      %3081 = vadd.xlane.f32.xlu0 %v3080
      %v3082 = vpop.xlane.xlu0 %3081
      %v3083 = vsel %vm764, %v3073, 0.0
      %3084 = vadd.xlane.f32.xlu0 %v3083
      %v3085 = vpop.xlane.xlu0 %3084
      %v3086 = vmul.f32 %v3076, %v1961
      %v3087 = vmul.f32 %v3079, %v1961
      %v3088 = vmul.f32 %v3082, %v1961
      %v3089 = vmul.f32 %v3085, %v1961
      %v3090 = vadd.f32 %v3086, 1e-05
      %v3091 = vadd.f32 %v3087, 1e-05
      %v3092 = vadd.f32 %v3088, 1e-05
      %v3093 = vadd.f32 %v3089, 1e-05
      %v3094 = vrsqrt.pop %v3090
      %v3095 = vrsqrt.pop %v3091
      %v3096 = vrsqrt.pop %v3092
      %v3097 = vrsqrt.pop %v3093
      %v3098 = vmul.f32 %v3066, %v3094
      %v3099 = vmul.f32 %v3067, %v3095
      %v3100 = vmul.f32 %v3068, %v3096
      %v3101 = vmul.f32 %v3069, %v3097
      %v3103 = vlaneseq
      %v3104 = vshrl.u32 %v3103, 7
      %v3105 = vsub.s32 0, %v3104
      %v3106 = vrot.slane %v3048, %v3105
      %v3108 = vmul.f32 %v3098, %v3106
      %v3109 = vmul.f32 %v3099, %v3106
      %v3110 = vmul.f32 %v3100, %v3106
      %v3111 = vmul.f32 %v3101, %v3106
      %v3113 = vlaneseq
      %v3114 = vshrl.u32 %v3113, 7
      %v3115 = vsub.s32 0, %v3114
      %v3116 = vrot.slane %v3049, %v3115
      %v3118 = vadd.f32 %v3108, %v3116
      %v3119 = vadd.f32 %v3109, %v3116
      %v3120 = vadd.f32 %v3110, %v3116
      %v3121 = vadd.f32 %v3111, %v3116
      %v3122 = vld [vmem:[%s17] sm:$0xf]
      %v3123 = vld [vmem:[%s17 + $0x4] sm:$0xf]
      %v3124 = vld [vmem:[%s17 + $0x8] sm:$0xf]
      %v3125 = vld [vmem:[%s17 + $0xc] sm:$0xf]
      %v3126 = vld [vmem:[%s17 + $0x10] sm:$0xf]
      %v3127 = vld [vmem:[%s17 + $0x14] sm:$0xf]
      %v3128 = vld [vmem:[%s17 + $0x18] sm:$0xf]
      %v3129 = vld [vmem:[%s17 + $0x1c] sm:$0xf]
      %v3130 = vpack.c.bf16 %v3119, %v3118
      %v3131 = vpack.c.bf16 %v3121, %v3120
      %v3132 = vld [vmem:[%s18] sm:$0x1]
      %v3134 = vlaneseq
      %v3135 = vshrl.u32 %v3134, 7
      %v3136 = vsub.s32 0, %v3135
      %v3137 = vrot.slane %v3132, %v3136
      %v3147 = vunpack.c.l.b16 %v3122
      %v3148 = vunpack.c.l.b16 %v3123
      %v3149 = vunpack.c.l.b16 %v3124
      %v3150 = vunpack.c.l.b16 %v3125
      %v3151 = vunpack.c.l.b16 %v3126
      %v3152 = vunpack.c.l.b16 %v3127
      %v3153 = vunpack.c.l.b16 %v3128
      %v3154 = vunpack.c.l.b16 %v3129
      %v3155 = vpack.c.b16 %v3148, %v3147
      %v3156 = vpack.c.b16 %v3150, %v3149
      %v3157 = vpack.c.b16 %v3152, %v3151
      %v3158 = vpack.c.b16 %v3154, %v3153
      %v3164 = vsel %vm764, %v3130, 0
      %v3167 = vsel %vm764, %v3131, 0
      %3169 = vmatprep.subr.bf16.mxu0 0
      %3170 = vmatpush1.bf16.msra.mxu0 %v3155
      %3171 = vmatprep.subr.bf16.mxu0 0
      %3172 = vmatpush1.bf16.msra.mxu0 %v3156
      %3173 = vmatprep.subr.bf16.mxu0 0
      %3174 = vmatpush1.bf16.msra.mxu0 %v3157
      %3175 = vmatprep.subr.bf16.mxu0 0
      %3176 = vmatpush1.bf16.msra.mxu0 %v3158
      %3177 = vmatprep.subr.bf16.mxu0 0
      %3178 = vmatpush1.bf16.msra.mxu0 0
      %3179 = vmatprep.subr.bf16.mxu0 0
      %3180 = vmatpush1.bf16.msra.mxu0 0
      %3181 = vmatprep.subr.bf16.mxu0 0
      %3182 = vmatpush1.bf16.msra.mxu0 0
      %3183 = vmatprep.subr.bf16.mxu0 0
      %3184 = vmatpush1.bf16.msra.mxu0 0
      %3185 = vmatprep.subr.bf16.mxu0 0
      %3186 = vmatpush1.bf16.msra.mxu0 0
      %3187 = vmatprep.subr.bf16.mxu0 0
      %3188 = vmatpush1.bf16.msra.mxu0 0
      %3189 = vmatprep.subr.bf16.mxu0 0
      %3190 = vmatpush1.bf16.msra.mxu0 0
      %3191 = vmatprep.subr.bf16.mxu0 0
      %3192 = vmatpush1.bf16.msra.mxu0 0
      %3193 = vmatprep.subr.bf16.mxu0 0
      %3194 = vmatpush1.bf16.msra.mxu0 0
      %3195 = vmatprep.subr.bf16.mxu0 0
      %3196 = vmatpush1.bf16.msra.mxu0 0
      %3197 = vmatprep.subr.bf16.mxu0 0
      %3198 = vmatpush1.bf16.msra.mxu0 0
      %3199 = vmatprep.subr.bf16.mxu0 0
      %3200 = vmatpush1.bf16.msra.mxu0 0
      %3201 = vmatprep.mubr.bf16.mxu0 0
      %3202 = vmatmul.mubr.bf16.gmra.mrb[0].mxu0 %v3164
      %v3203 = vpop.f32.mrb[0].mxu0
      %v3204 = vadd.f32 %v3137, %v3203
      %v3205 = vpop.f32.mrb[0].mxu0
      %v3206 = vpop.f32.mrb[0].mxu0
      %v3207 = vadd.f32 %v3137, %v3206
      %v3208 = vpop.f32.mrb[0].mxu0
      %3209 = vmatprep.mubr.bf16.mxu0 0
      %3210 = vmatmul.mubr.bf16.gmra.mrb[0].mxu0 %v3167
      %v3211 = vpop.f32.mrb[0].mxu0
      %v3212 = vadd.f32 %v3137, %v3211
      %v3213 = vpop.f32.mrb[0].mxu0
      %v3214 = vpop.f32.mrb[0].mxu0
      %v3215 = vadd.f32 %v3137, %v3214
      %v3216 = vpop.f32.mrb[0].mxu0
      %3217 = vdwg.mxu0
      %v3218 = vmul.f32 %v3204, %v3204
      %v3219 = vmul.f32 %v3207, %v3207
      %v3220 = vmul.f32 %v3212, %v3212
      %v3221 = vmul.f32 %v3215, %v3215
      %v3222 = vmul.f32 %v3204, %v3218
      %v3223 = vmul.f32 %v3207, %v3219
      %v3224 = vmul.f32 %v3212, %v3220
      %v3225 = vmul.f32 %v3215, %v3221
      %v3226 = vmul.f32 %v3222, 0.044715
      %v3227 = vmul.f32 %v3223, 0.044715
      %v3228 = vmul.f32 %v3224, 0.044715
      %v3229 = vmul.f32 %v3225, 0.044715
      %v3230 = vadd.f32 %v3204, %v3226
      %v3231 = vadd.f32 %v3207, %v3227
      %v3232 = vadd.f32 %v3212, %v3228
      %v3233 = vadd.f32 %v3215, %v3229
      %v3234 = vmul.f32 %v3230, 0.7978846
      %v3235 = vmul.f32 %v3231, 0.7978846
      %v3236 = vmul.f32 %v3232, 0.7978846
      %v3237 = vmul.f32 %v3233, 0.7978846
      %v3238 = vtanh.pop %v3234
      %v3239 = vtanh.pop %v3235
      %v3240 = vtanh.pop %v3236
      %v3241 = vtanh.pop %v3237
      %v3242 = vadd.f32 %v3238, 1.0
      %v3243 = vadd.f32 %v3239, 1.0
      %v3244 = vadd.f32 %v3240, 1.0
      %v3245 = vadd.f32 %v3241, 1.0
      %v3246 = vmul.f32 %v3242, 0.5
      %v3247 = vmul.f32 %v3243, 0.5
      %v3248 = vmul.f32 %v3244, 0.5
      %v3249 = vmul.f32 %v3245, 0.5
      %v3250 = vmul.f32 %v3204, %v3246
      %v3251 = vmul.f32 %v3207, %v3247
      %v3252 = vmul.f32 %v3212, %v3248
      %v3253 = vmul.f32 %v3215, %v3249
      %v3254 = vld [vmem:[%s19] sm:$0xf]
      %v3255 = vld [vmem:[%s19 + $0x4] sm:$0xf]
      %v3256 = vld [vmem:[%s19 + $0x8] sm:$0xf]
      %v3257 = vld [vmem:[%s19 + $0xc] sm:$0xf]
      %v3258 = vld [vmem:[%s19 + $0x10] sm:$0xf]
      %v3259 = vld [vmem:[%s19 + $0x14] sm:$0xf]
      %v3260 = vld [vmem:[%s19 + $0x18] sm:$0xf]
      %v3261 = vld [vmem:[%s19 + $0x1c] sm:$0xf]
      %v3262 = vld [vmem:[%s19 + $0x20] sm:$0xf]
      %v3263 = vld [vmem:[%s19 + $0x24] sm:$0xf]
      %v3264 = vld [vmem:[%s19 + $0x28] sm:$0xf]
      %v3265 = vld [vmem:[%s19 + $0x2c] sm:$0xf]
      %v3266 = vld [vmem:[%s19 + $0x30] sm:$0xf]
      %v3267 = vld [vmem:[%s19 + $0x34] sm:$0xf]
      %v3268 = vld [vmem:[%s19 + $0x38] sm:$0xf]
      %v3269 = vld [vmem:[%s19 + $0x3c] sm:$0xf]
      %v3270 = vpack.c.bf16 %v3251, %v3250
      %v3271 = vpack.c.bf16 %v3253, %v3252
      %v3288 = vunpack.c.l.b16 %v3254
      %v3289 = vunpack.c.l.b16 %v3255
      %v3290 = vunpack.c.l.b16 %v3256
      %v3291 = vunpack.c.l.b16 %v3257
      %v3292 = vunpack.c.l.b16 %v3258
      %v3293 = vunpack.c.l.b16 %v3259
      %v3294 = vunpack.c.l.b16 %v3260
      %v3295 = vunpack.c.l.b16 %v3261
      %v3296 = vunpack.c.l.b16 %v3262
      %v3297 = vunpack.c.l.b16 %v3263
      %v3298 = vunpack.c.l.b16 %v3264
      %v3299 = vunpack.c.l.b16 %v3265
      %v3300 = vunpack.c.l.b16 %v3266
      %v3301 = vunpack.c.l.b16 %v3267
      %v3302 = vunpack.c.l.b16 %v3268
      %v3303 = vunpack.c.l.b16 %v3269
      %v3304 = vpack.c.b16 %v3289, %v3288
      %v3305 = vpack.c.b16 %v3291, %v3290
      %v3306 = vpack.c.b16 %v3293, %v3292
      %v3307 = vpack.c.b16 %v3295, %v3294
      %v3308 = vpack.c.b16 %v3297, %v3296
      %v3309 = vpack.c.b16 %v3299, %v3298
      %v3310 = vpack.c.b16 %v3301, %v3300
      %v3311 = vpack.c.b16 %v3303, %v3302
      %3320 = vmatprep.subr.bf16.mxu0 0
      %3321 = vmatpush1.bf16.msra.mxu0 %v3304
      %3322 = vmatprep.subr.bf16.mxu0 0
      %3323 = vmatpush1.bf16.msra.mxu0 %v3305
      %3324 = vmatprep.subr.bf16.mxu0 0
      %3325 = vmatpush1.bf16.msra.mxu0 %v3306
      %3326 = vmatprep.subr.bf16.mxu0 0
      %3327 = vmatpush1.bf16.msra.mxu0 %v3307
      %3328 = vmatprep.subr.bf16.mxu0 0
      %3329 = vmatpush1.bf16.msra.mxu0 %v3308
      %3330 = vmatprep.subr.bf16.mxu0 0
      %3331 = vmatpush1.bf16.msra.mxu0 %v3309
      %3332 = vmatprep.subr.bf16.mxu0 0
      %3333 = vmatpush1.bf16.msra.mxu0 %v3310
      %3334 = vmatprep.subr.bf16.mxu0 0
      %3335 = vmatpush1.bf16.msra.mxu0 %v3311
      %3336 = vmatprep.subr.bf16.mxu0 0
      %3337 = vmatpush1.bf16.msra.mxu0 0
      %3338 = vmatprep.subr.bf16.mxu0 0
      %3339 = vmatpush1.bf16.msra.mxu0 0
      %3340 = vmatprep.subr.bf16.mxu0 0
      %3341 = vmatpush1.bf16.msra.mxu0 0
      %3342 = vmatprep.subr.bf16.mxu0 0
      %3343 = vmatpush1.bf16.msra.mxu0 0
      %3344 = vmatprep.subr.bf16.mxu0 0
      %3345 = vmatpush1.bf16.msra.mxu0 0
      %3346 = vmatprep.subr.bf16.mxu0 0
      %3347 = vmatpush1.bf16.msra.mxu0 0
      %3348 = vmatprep.subr.bf16.mxu0 0
      %3349 = vmatpush1.bf16.msra.mxu0 0
      %3350 = vmatprep.subr.bf16.mxu0 0
      %3351 = vmatpush1.bf16.msra.mxu0 0
      %3352 = vmatprep.mubr.bf16.mxu0 0
      %3353 = vmatmul.mubr.bf16.gmra.mrb[0].mxu0 %v3270
      %v3354 = vpop.f32.mrb[0].mxu0
      %v3355 = vadd.f32 0.0, %v3354
      %v3356 = vpop.f32.mrb[0].mxu0
      %v3357 = vpop.f32.mrb[0].mxu0
      %v3358 = vadd.f32 0.0, %v3357
      %v3359 = vpop.f32.mrb[0].mxu0
      %3360 = vmatprep.mubr.bf16.mxu0 0
      %3361 = vmatmul.mubr.bf16.gmra.mrb[0].mxu0 %v3271
      %v3362 = vpop.f32.mrb[0].mxu0
      %v3363 = vadd.f32 0.0, %v3362
      %v3364 = vpop.f32.mrb[0].mxu0
      %v3365 = vpop.f32.mrb[0].mxu0
      %v3366 = vadd.f32 0.0, %v3365
      %v3367 = vpop.f32.mrb[0].mxu0
      %3368 = vdwg.mxu0
      %v3369 = vadd.f32 %v3044, %v3355
      %v3370 = vadd.f32 %v3045, %v3358
      %v3371 = vadd.f32 %v3046, %v3363
      %v3372 = vadd.f32 %v3047, %v3366
      %v3373 = vld [vmem:[%s20] sm:$0x1]
      %v3375 = vlaneseq
      %v3376 = vshrl.u32 %v3375, 7
      %v3377 = vsub.s32 0, %v3376
      %v3378 = vrot.slane %v3373, %v3377
      %v3380 = vadd.f32 %v3369, %v3378
      %v3381 = vadd.f32 %v3370, %v3378
      %v3382 = vadd.f32 %v3371, %v3378
      %v3383 = vadd.f32 %v3372, %v3378
      %v3384 = vld [vmem:[%s21] sm:$0x1]
      %v3385 = vld [vmem:[%s22] sm:$0x1]
      %v3386 = vsel %vm764, %v3380, 0.0
      %3387 = vadd.xlane.f32.xlu0 %v3386
      %v3388 = vpop.xlane.xlu0 %3387
      %v3389 = vsel %vm764, %v3381, 0.0
      %3390 = vadd.xlane.f32.xlu0 %v3389
      %v3391 = vpop.xlane.xlu0 %3390
      %v3392 = vsel %vm764, %v3382, 0.0
      %3393 = vadd.xlane.f32.xlu0 %v3392
      %v3394 = vpop.xlane.xlu0 %3393
      %v3395 = vsel %vm764, %v3383, 0.0
      %3396 = vadd.xlane.f32.xlu0 %v3395
      %v3397 = vpop.xlane.xlu0 %3396
      %v3398 = vmul.f32 %v3388, %v1961
      %v3399 = vmul.f32 %v3391, %v1961
      %v3400 = vmul.f32 %v3394, %v1961
      %v3401 = vmul.f32 %v3397, %v1961
      %v3402 = vsub.f32 %v3380, %v3398
      %v3403 = vsub.f32 %v3381, %v3399
      %v3404 = vsub.f32 %v3382, %v3400
      %v3405 = vsub.f32 %v3383, %v3401
      %v3406 = vmul.f32 %v3402, %v3402
      %v3407 = vmul.f32 %v3403, %v3403
      %v3408 = vmul.f32 %v3404, %v3404
      %v3409 = vmul.f32 %v3405, %v3405
      %v3410 = vsel %vm764, %v3406, 0.0
      %3411 = vadd.xlane.f32.xlu0 %v3410
      %v3412 = vpop.xlane.xlu0 %3411
      %v3413 = vsel %vm764, %v3407, 0.0
      %3414 = vadd.xlane.f32.xlu0 %v3413
      %v3415 = vpop.xlane.xlu0 %3414
      %v3416 = vsel %vm764, %v3408, 0.0
      %3417 = vadd.xlane.f32.xlu0 %v3416
      %v3418 = vpop.xlane.xlu0 %3417
      %v3419 = vsel %vm764, %v3409, 0.0
      %3420 = vadd.xlane.f32.xlu0 %v3419
      %v3421 = vpop.xlane.xlu0 %3420
      %v3422 = vmul.f32 %v3412, %v1961
      %v3423 = vmul.f32 %v3415, %v1961
      %v3424 = vmul.f32 %v3418, %v1961
      %v3425 = vmul.f32 %v3421, %v1961
      %v3426 = vadd.f32 %v3422, 1e-05
      %v3427 = vadd.f32 %v3423, 1e-05
      %v3428 = vadd.f32 %v3424, 1e-05
      %v3429 = vadd.f32 %v3425, 1e-05
      %v3430 = vrsqrt.pop %v3426
      %v3431 = vrsqrt.pop %v3427
      %v3432 = vrsqrt.pop %v3428
      %v3433 = vrsqrt.pop %v3429
      %v3434 = vmul.f32 %v3402, %v3430
      %v3435 = vmul.f32 %v3403, %v3431
      %v3436 = vmul.f32 %v3404, %v3432
      %v3437 = vmul.f32 %v3405, %v3433
      %v3439 = vlaneseq
      %v3440 = vshrl.u32 %v3439, 7
      %v3441 = vsub.s32 0, %v3440
      %v3442 = vrot.slane %v3384, %v3441
      %v3444 = vmul.f32 %v3434, %v3442
      %v3445 = vmul.f32 %v3435, %v3442
      %v3446 = vmul.f32 %v3436, %v3442
      %v3447 = vmul.f32 %v3437, %v3442
      %v3449 = vlaneseq
      %v3450 = vshrl.u32 %v3449, 7
      %v3451 = vsub.s32 0, %v3450
      %v3452 = vrot.slane %v3385, %v3451
      %v3454 = vadd.f32 %v3444, %v3452
      %v3455 = vadd.f32 %v3445, %v3452
      %v3456 = vadd.f32 %v3446, %v3452
      %v3457 = vadd.f32 %v3447, %v3452
      %v3458 = vpack.c.bf16 %v3455, %v3454
      %v3459 = vpack.c.bf16 %v3457, %v3456
      %v3462 = vunpack.c.l.b16 %v3458
      %v3463 = vunpack.c.h.b16 %v3458
      %v3464 = vunpack.c.l.b16 %v3459
      %v3465 = vunpack.c.h.b16 %v3459
      %v3466 = vpack.c.b16 %v3462, %v3462
      %v3467 = vpack.c.b16 %v3463, %v3463
      %v3468 = vpack.c.b16 %v3464, %v3464
      %v3469 = vpack.c.b16 %v3465, %v3465
      %vm3474 = vcmask 519168
      %3475 = vst.msk [vmem:[%s710] sm:$0xf] %vm3474, %v3466
      %3476 = vst.msk [vmem:[%s710 + $0x4] sm:$0xf] %vm3474, %v3467
      %3477 = vst.msk [vmem:[%s710 + $0x8] sm:$0xf] %vm3474, %v3468
      %3478 = vst.msk [vmem:[%s710 + $0xc] sm:$0xf] %vm3474, %v3469
      %p3479 = scmp.lt.s32.totalorder %s34, 1
      %s3480 = scalar_select %p3479, %s34, 1
      %s3481 = smul.addr %s3480, 4
      %s3482 = smul.addr %s3481, 4
      %s3483 = scalar_lea.vmem %s23, %s3482
      // Predicated region
      $region113: #{whisper_forward.2} parent=111 // pred_check
        %p3484 = pneg %p540
      $region114: #{whisper_forward.2} parent=111 // pred_check_branch
        %3486 = sbr.rel (%p3484) target = $region116
      $region115: #{whisper_forward.2} parent=111 // pred_region
        _
      $region116: #{whisper_forward.2} parent=111 // pred_fallthru
        _
    $region112: #{whisper_forward.2} parent=5 // pred_fallthru
      _
    %p3487 = scmp.le.s32.totalorder 2, %s29
    // Predicated region
    $region117: #{whisper_forward.2} parent=5 // pred_check
      %p3488 = pneg %p3487
    $region118: #{whisper_forward.2} parent=5 // pred_check_branch
      %3490 = sbr.rel (%p3488) target = $region120
    $region119: #{whisper_forward.2} parent=5 // pred_region
      %s3491 = ssub.s32 %s29, 2
      // Predicated region
      $region121: #{whisper_forward.2} parent=119 // pred_check
        %p3492 = pneg %p546
      $region122: #{whisper_forward.2} parent=119 // pred_check_branch
        %3494 = sbr.rel (%p3492) target = $region124
      $region123: #{whisper_forward.2} parent=119 // pred_region
        %p3495 = scmp.lt.s32.totalorder %s35, 1
        %s3496 = scalar_select %p3495, %s35, 1
        %s3497 = smul.addr %s3496, 4
        %s3498 = smul.addr %s3497, 4
        %s3499 = scalar_lea.vmem %s23, %s3498
      $region124: #{whisper_forward.2} parent=119 // pred_fallthru
        _
    $region120: #{whisper_forward.2} parent=5 // pred_fallthru
      _
  $region6: #{whisper_forward.2} parent=0 // loop_footer
    %s33 = sadd.s32 1, %s29
  $region7: #{whisper_forward.2} parent=0 // loop_footer_branch
    %28 = sbr.rel target = $region3
  $region8: #{whisper_forward.2} parent=0 // loop_exit
    _

</llo_original>
